<compile_context>
chip_gen: v6e
topology: v6e:2x2x1
jax: 0.10.0
libtpu: 0.0.40
codegen_flags: <defaults>
</compile_context>

<pallas_src>
import functools
import math

import jax
import jax.numpy as jnp
from jax.experimental import pallas as pl
from jax.experimental.pallas import tpu as pltpu


def _mha_kernel(num_heads, x_ref, w_in_ref, w_out_ref, b_ref, o_ref, qkv_ref, attn_ref):
    """One grid step = `tb` spatial positions, each attending over its own N tokens.

    x_ref    : (tb, N, C)   bf16 activations, grouped per spatial position
    w_in_ref : (C, 3C)      bf16 pre-transposed in_proj weight  (x @ W_in^T == x @ w_in_ref)
    w_out_ref: (C, C)       bf16 pre-transposed out_proj weight
    b_ref    : (1, 4C)      f32 packed [b_q | b_k | b_v | b_out]
    o_ref    : (tb, N, C)   f32 output
    qkv_ref  : (tb, N, 3C)  bf16 VMEM scratch (fused QKV projection)
    attn_ref : (tb, N, C)   bf16 VMEM scratch (concatenated per-head attention outputs)
    """
    tb, N, C = x_ref.shape
    Dh = C // num_heads
    scale = 1.0 / math.sqrt(Dh)

    w_in = w_in_ref[...]
    w_out = w_out_ref[...]
    b_all = b_ref[...]
    b_in = b_all[:, : 3 * C]        # (1, 3C)
    b_out = b_all[:, 3 * C:]        # (1, C)

    # Fused QKV projection: one full-K, lane-dense MXU matmul per sequence token
    # (N = image batch -> small); f32 accumulate + bias, stored as bf16 in scratch.
    for n in range(N):
        x_n = x_ref[:, n, :]                                                # (tb, C)
        qkv_n = jnp.dot(x_n, w_in, preferred_element_type=jnp.float32) + b_in
        qkv_ref[:, n, :] = qkv_n.astype(qkv_ref.dtype)

    # Per-head attention, batched over the tb spatial positions.  No mask is needed:
    # every position attends only within its own N-token sequence by construction.
    for h in range(num_heads):
        q = qkv_ref[:, :, h * Dh:(h + 1) * Dh]                              # (tb, N, Dh)
        k = qkv_ref[:, :, C + h * Dh:C + (h + 1) * Dh]
        v = qkv_ref[:, :, 2 * C + h * Dh:2 * C + (h + 1) * Dh]

        s = jnp.einsum("bqd,bkd->bqk", q, k,
                       preferred_element_type=jnp.float32) * scale          # (tb, N, N)
        s = s - jnp.max(s, axis=-1, keepdims=True)
        p = jnp.exp(s)
        p = p * pl.reciprocal(jnp.sum(p, axis=-1, keepdims=True), approx=True)

        oh = jnp.einsum("bqk,bkd->bqd", p.astype(v.dtype), v,
                        preferred_element_type=jnp.float32)                 # (tb, N, Dh)
        attn_ref[:, :, h * Dh:(h + 1) * Dh] = oh.astype(attn_ref.dtype)

    # Single full-K output projection per token (f32 accumulate + bias).
    for n in range(N):
        o_n = jnp.dot(attn_ref[:, n, :], w_out,
                      preferred_element_type=jnp.float32) + b_out           # (tb, C)
        o_ref[:, n, :] = o_n.astype(o_ref.dtype)


def _choose_tb(HW, N, C, vmem_budget_bytes):
    """Largest divisor of HW that fits the VMEM budget while keeping >= 2 grid steps."""
    # Rough per-spatial-position footprint: double-buffered bf16 x block + double-
    # buffered f32 out block + bf16 qkv / attn scratches.
    per_pos = N * C * (2 * 2 + 2 * 4 + 3 * 2 + 2)
    target = max(1, vmem_budget_bytes // max(per_pos, 1))
    best_par, best_any = None, None
    for d in range(1, HW + 1):
        if HW % d or d > target:
            continue
        best_any = d
        if HW // d >= 2:            # keep the grid shardable across TensorCores (v7x)
            best_par = d
    if best_par is not None:
        return best_par
    return best_any if best_any is not None else 1


def self_attention_forward(x, w_in, b_in, w_out, b_out, num_heads,
                           mxu_dtype=jnp.bfloat16,
                           vmem_budget_bytes=8 * 1024 * 1024):
    """x: (N, C, H, W).  Weights in PyTorch layout: w_in (3C, C), w_out (C, C)."""
    N, C, H, W = x.shape
    HW = H * W
    assert C % num_heads == 0, "num_heads must divide in_channels"

    # (N, C, H, W) -> (HW, N, C): spatial positions lead, seq (=image batch) next,
    # embed on lanes.  Cast activations / weights to bf16 host-side for the MXU.
    xg = jnp.transpose(x.reshape(N, C, HW), (2, 0, 1)).astype(mxu_dtype)    # (HW, N, C)
    w_in_t = jnp.transpose(w_in).astype(mxu_dtype)                          # (C, 3C)
    w_out_t = jnp.transpose(w_out).astype(mxu_dtype)                        # (C, C)
    b_all = jnp.concatenate([b_in, b_out]).reshape(1, 4 * C).astype(jnp.float32)

    tb = _choose_tb(HW, N, C, vmem_budget_bytes)
    grid = (HW // tb,)

    kernel = functools.partial(_mha_kernel, num_heads)
    out3 = pl.pallas_call(
        kernel,
        out_shape=jax.ShapeDtypeStruct((HW, N, C), jnp.float32),
        grid=grid,
        in_specs=[
            pl.BlockSpec((tb, N, C), lambda b: (b, 0, 0)),     # activations (tiled)
            pl.BlockSpec((C, 3 * C), lambda b: (0, 0)),        # in_proj W^T (constant)
            pl.BlockSpec((C, C), lambda b: (0, 0)),            # out_proj W^T (constant)
            pl.BlockSpec((1, 4 * C), lambda b: (0, 0)),        # packed biases
        ],
        out_specs=pl.BlockSpec((tb, N, C), lambda b: (b, 0, 0)),
        scratch_shapes=[
            pltpu.VMEM((tb, N, 3 * C), mxu_dtype),             # fused QKV
            pltpu.VMEM((tb, N, C), mxu_dtype),                 # concatenated head outputs
        ],
        compiler_params=pltpu.CompilerParams(
            dimension_semantics=("parallel",),
            vmem_limit_bytes=32 * 1024 * 1024,
        ),
    )(xg, w_in_t, w_out_t, b_all)

    # (HW, N, C) -> (N, C, HW) -> (N, C, H, W)
    return jnp.transpose(out3, (1, 2, 0)).reshape(N, C, H, W)


def self_attention_reference(x, w_in, b_in, w_out, b_out, num_heads,
                             mxu_dtype=jnp.float32):
    """Pure-JAX mirror of the PyTorch forward (batch_first=False MHA).

    With mxu_dtype=f32 this is the exact f32 reference; with mxu_dtype=bf16 it applies
    the same matmul-input casts as the kernel (f32 accumulation / softmax) so the
    comparison isolates structural correctness from bf16 quantisation.
    """
    N, C, H, W = x.shape
    HW = H * W
    Dh = C // num_heads
    scale = 1.0 / math.sqrt(Dh)
    hi = jax.lax.Precision.HIGHEST
    f32 = jnp.float32
    cast = lambda a: a.astype(mxu_dtype)

    xs = jnp.transpose(x.reshape(N, C, HW), (0, 2, 1))                     # (L=N, B=HW, C)
    qkv = jnp.einsum("lbc,ec->lbe", cast(xs), cast(w_in), precision=hi,
                     preferred_element_type=f32) + b_in                    # (N, HW, 3C)
    q, k, v = jnp.split(qkv, 3, axis=-1)
    qh = q.reshape(N, HW, num_heads, Dh)
    kh = k.reshape(N, HW, num_heads, Dh)
    vh = v.reshape(N, HW, num_heads, Dh)
    s = jnp.einsum("lbhd,mbhd->bhlm", cast(qh), cast(kh), precision=hi,
                   preferred_element_type=f32) * scale
    p = jax.nn.softmax(s, axis=-1)
    o = jnp.einsum("bhlm,mbhd->lbhd", cast(p), cast(vh), precision=hi,
                   preferred_element_type=f32).reshape(N, HW, C)
    o = jnp.einsum("lbc,ec->lbe", cast(o), cast(w_out), precision=hi,
                   preferred_element_type=f32) + b_out                     # (N, HW, C)
    return jnp.transpose(o, (0, 2, 1)).reshape(N, C, H, W)


if __name__ == "__main__":
    key = jax.random.PRNGKey(0)
    kx, kw1, kb1, kw2, kb2 = jax.random.split(key, 5)

    # Small config: in_channels=32, num_heads=8 (head_dim=4), batch=2, spatial 4x4.
    N, C, H, W = 2, 32, 4, 4
    num_heads = 8

    x = jax.random.normal(kx, (N, C, H, W), dtype=jnp.float32)
    lim_in = math.sqrt(6.0 / (C + 3 * C))      # xavier_uniform_-style for in_proj_weight
    lim_out = math.sqrt(6.0 / (C + C))
    w_in = jax.random.uniform(kw1, (3 * C, C), jnp.float32, -lim_in, lim_in)
    b_in = 0.1 * jax.random.normal(kb1, (3 * C,), dtype=jnp.float32)
    w_out = jax.random.uniform(kw2, (C, C), jnp.float32, -lim_out, lim_out)
    b_out = 0.1 * jax.random.normal(kb2, (C,), dtype=jnp.float32)

    out = self_attention_forward(x, w_in, b_in, w_out, b_out, num_heads)
    out = jax.block_until_ready(out)
    assert out.shape == (N, C, H, W), out.shape

    # Tight check vs a reference with matching bf16 MXU-input precision.
    ref_matched = self_attention_reference(x, w_in, b_in, w_out, b_out, num_heads,
                                           mxu_dtype=jnp.bfloat16)
    assert jnp.allclose(out, ref_matched, atol=1e-2, rtol=1e-2), \
        float(jnp.max(jnp.abs(out - ref_matched)))

    # Loose sanity check vs the exact f32 reference (bf16 quantisation headroom).
    ref_f32 = self_attention_reference(x, w_in, b_in, w_out, b_out, num_heads,
                                       mxu_dtype=jnp.float32)
    assert jnp.allclose(out, ref_f32, atol=1e-1, rtol=1e-1), \
        float(jnp.max(jnp.abs(out - ref_f32)))

    print("KERNEL_OK")
</pallas_src>

<mosaic_0001>
module attributes {stable_mosaic.version = 11 : i64} {
  func.func @_mha_kernel(%arg0: i32, %arg1: memref<8x2x32xbf16, #tpu.memory_space<vmem>>, %arg2: memref<32x96xbf16, #tpu.memory_space<vmem>>, %arg3: memref<32x32xbf16, #tpu.memory_space<vmem>>, %arg4: memref<1x128xf32, #tpu.memory_space<vmem>>, %arg5: memref<8x2x32xf32, #tpu.memory_space<vmem>>, %arg6: memref<8x2x96xbf16, #tpu.memory_space<vmem>>, %arg7: memref<8x2x32xbf16, #tpu.memory_space<vmem>>) attributes {dimension_semantics = [#tpu.dimension_semantics<parallel>], iteration_bounds = array<i64: 2>, scalar_prefetch = 0 : i64, scratch_operands = 2 : i64, tpu.core_type = #tpu.core_type<tc>, window_params = [{transform_indices = @transform_0, window_bounds = array<i64: 8, 2, 32>}, {pipeline_mode = #tpu.pipeline_mode<synchronous>, transform_indices = @transform_1, window_bounds = array<i64: 32, 96>}, {pipeline_mode = #tpu.pipeline_mode<synchronous>, transform_indices = @transform_2, window_bounds = array<i64: 32, 32>}, {pipeline_mode = #tpu.pipeline_mode<synchronous>, transform_indices = @transform_3, window_bounds = array<i64: 1, 128>}, {transform_indices = @transform_4, window_bounds = array<i64: 8, 2, 32>}]} {
    %c0 = arith.constant 0 : index
    %c0_0 = arith.constant 0 : index
    %0 = vector.load %arg2[%c0, %c0_0] : memref<32x96xbf16, #tpu.memory_space<vmem>>, vector<32x96xbf16>
    %c0_1 = arith.constant 0 : index
    %c0_2 = arith.constant 0 : index
    %1 = vector.load %arg3[%c0_1, %c0_2] : memref<32x32xbf16, #tpu.memory_space<vmem>>, vector<32x32xbf16>
    %c0_3 = arith.constant 0 : index
    %c0_4 = arith.constant 0 : index
    %2 = vector.load %arg4[%c0_3, %c0_4] : memref<1x128xf32, #tpu.memory_space<vmem>>, vector<1x128xf32>
    %3 = vector.extract_strided_slice %2 {offsets = [0, 0], sizes = [1, 96], strides = [1, 1]} : vector<1x128xf32> to vector<1x96xf32>
    %4 = vector.extract_strided_slice %2 {offsets = [0, 96], sizes = [1, 32], strides = [1, 1]} : vector<1x128xf32> to vector<1x32xf32>
    %c0_5 = arith.constant 0 : index
    %c0_6 = arith.constant 0 : index
    %c0_7 = arith.constant 0 : index
    %5 = vector.load %arg1[%c0_5, %c0_6, %c0_7] : memref<8x2x32xbf16, #tpu.memory_space<vmem>>, vector<8x1x32xbf16>
    %6 = vector.shape_cast %5 : vector<8x1x32xbf16> to vector<8x32xbf16>
    %cst = arith.constant dense<0.000000e+00> : vector<8x96xf32>
    %7 = tpu.matmul %6, %0, %cst {dimension_numbers = #tpu.dot_dimension_numbers<[1], [0], [0], [1], [0, 0, 1, 1], [], []>} : vector<8x32xbf16>, vector<32x96xbf16>, vector<8x96xf32> -> vector<8x96xf32>
    %8 = vector.broadcast %3 : vector<1x96xf32> to vector<8x96xf32>
    %9 = arith.addf %7, %8 : vector<8x96xf32>
    %10 = arith.truncf %9 : vector<8x96xf32> to vector<8x96xbf16>
    %c0_8 = arith.constant 0 : index
    %c0_9 = arith.constant 0 : index
    %c0_10 = arith.constant 0 : index
    %11 = vector.load %arg6[%c0_8, %c0_9, %c0_10] : memref<8x2x96xbf16, #tpu.memory_space<vmem>>, vector<8x1x96xbf16>
    %12 = vector.shape_cast %11 : vector<8x1x96xbf16> to vector<8x96xbf16>
    %13 = vector.shape_cast %10 : vector<8x96xbf16> to vector<8x1x96xbf16>
    tpu.vector_store %arg6[%c0_8, %c0_9, %c0_10], %13 {strides = array<i32>} : memref<8x2x96xbf16, #tpu.memory_space<vmem>>, vector<8x1x96xbf16>,
    %c0_11 = arith.constant 0 : index
    %c1 = arith.constant 1 : index
    %c0_12 = arith.constant 0 : index
    %14 = vector.load %arg1[%c0_11, %c1, %c0_12] : memref<8x2x32xbf16, #tpu.memory_space<vmem>>, vector<8x1x32xbf16>
    %15 = vector.shape_cast %14 : vector<8x1x32xbf16> to vector<8x32xbf16>
    %cst_13 = arith.constant dense<0.000000e+00> : vector<8x96xf32>
    %16 = tpu.matmul %15, %0, %cst_13 {dimension_numbers = #tpu.dot_dimension_numbers<[1], [0], [0], [1], [0, 0, 1, 1], [], []>} : vector<8x32xbf16>, vector<32x96xbf16>, vector<8x96xf32> -> vector<8x96xf32>
    %17 = vector.broadcast %3 : vector<1x96xf32> to vector<8x96xf32>
    %18 = arith.addf %16, %17 : vector<8x96xf32>
    %19 = arith.truncf %18 : vector<8x96xf32> to vector<8x96xbf16>
    %c0_14 = arith.constant 0 : index
    %c1_15 = arith.constant 1 : index
    %c0_16 = arith.constant 0 : index
    %20 = vector.load %arg6[%c0_14, %c1_15, %c0_16] : memref<8x2x96xbf16, #tpu.memory_space<vmem>>, vector<8x1x96xbf16>
    %21 = vector.shape_cast %20 : vector<8x1x96xbf16> to vector<8x96xbf16>
    %22 = vector.shape_cast %19 : vector<8x96xbf16> to vector<8x1x96xbf16>
    tpu.vector_store %arg6[%c0_14, %c1_15, %c0_16], %22 {strides = array<i32>} : memref<8x2x96xbf16, #tpu.memory_space<vmem>>, vector<8x1x96xbf16>,
    %c0_17 = arith.constant 0 : index
    %c0_18 = arith.constant 0 : index
    %c0_19 = arith.constant 0 : index
    %23 = vector.load %arg6[%c0_17, %c0_18, %c0_19] : memref<8x2x96xbf16, #tpu.memory_space<vmem>>, vector<8x2x4xbf16>
    %c0_20 = arith.constant 0 : index
    %c0_21 = arith.constant 0 : index
    %c32 = arith.constant 32 : index
    %24 = vector.load %arg6[%c0_20, %c0_21, %c32] : memref<8x2x96xbf16, #tpu.memory_space<vmem>>, vector<8x2x4xbf16>
    %c0_22 = arith.constant 0 : index
    %c0_23 = arith.constant 0 : index
    %c64 = arith.constant 64 : index
    %25 = vector.load %arg6[%c0_22, %c0_23, %c64] : memref<8x2x96xbf16, #tpu.memory_space<vmem>>, vector<8x2x4xbf16>
    "tpu.trace_start"() <{level = 10 : i32, message = "bqd,bkd->bqk"}> : () -> ()
    %cst_24 = arith.constant dense<0.000000e+00> : vector<8x2x2xf32>
    %26 = tpu.matmul %23, %24, %cst_24 {dimension_numbers = #tpu.dot_dimension_numbers<[2], [2], [1], [1], [0, 0, 0, 1, 1, 1], [0], [0]>} : vector<8x2x4xbf16>, vector<8x2x4xbf16>, vector<8x2x2xf32> -> vector<8x2x2xf32>
    "tpu.trace_stop"() : () -> ()
    %cst_25 = arith.constant 5.000000e-01 : f32
    %27 = vector.broadcast %cst_25 : f32 to vector<8x2x2xf32>
    %28 = arith.mulf %26, %27 : vector<8x2x2xf32>
    %cst_26 = arith.constant dense<0xFF800000> : vector<8x2xf32>
    %29 = vector.multi_reduction <maximumf>, %28, %cst_26 [2] : vector<8x2x2xf32> to vector<8x2xf32>
    %30 = vector.shape_cast %29 : vector<8x2xf32> to vector<8x2x1xf32>
    %31 = vector.broadcast %30 : vector<8x2x1xf32> to vector<8x2x2xf32>
    %32 = arith.subf %28, %31 : vector<8x2x2xf32>
    %33 = math.exp %32 : vector<8x2x2xf32>
    %cst_27 = arith.constant dense<0.000000e+00> : vector<8x2xf32>
    %34 = vector.multi_reduction <add>, %33, %cst_27 [2] : vector<8x2x2xf32> to vector<8x2xf32>
    %35 = vector.shape_cast %34 : vector<8x2xf32> to vector<8x2x1xf32>
    %36 = tpu.reciprocal %35 {approx = true} : vector<8x2x1xf32> -> vector<8x2x1xf32>
    %37 = vector.broadcast %36 : vector<8x2x1xf32> to vector<8x2x2xf32>
    %38 = arith.mulf %33, %37 : vector<8x2x2xf32>
    %39 = arith.truncf %38 : vector<8x2x2xf32> to vector<8x2x2xbf16>
    "tpu.trace_start"() <{level = 10 : i32, message = "bqk,bkd->bqd"}> : () -> ()
    %cst_28 = arith.constant dense<0.000000e+00> : vector<8x2x4xf32>
    %40 = tpu.matmul %39, %25, %cst_28 {dimension_numbers = #tpu.dot_dimension_numbers<[2], [1], [1], [2], [0, 0, 0, 1, 1, 2], [0], [0]>} : vector<8x2x2xbf16>, vector<8x2x4xbf16>, vector<8x2x4xf32> -> vector<8x2x4xf32>
    "tpu.trace_stop"() : () -> ()
    %41 = arith.truncf %40 : vector<8x2x4xf32> to vector<8x2x4xbf16>
    %c0_29 = arith.constant 0 : index
    %c0_30 = arith.constant 0 : index
    %c0_31 = arith.constant 0 : index
    %42 = vector.load %arg7[%c0_29, %c0_30, %c0_31] : memref<8x2x32xbf16, #tpu.memory_space<vmem>>, vector<8x2x4xbf16>
    tpu.vector_store %arg7[%c0_29, %c0_30, %c0_31], %41 {strides = array<i32>} : memref<8x2x32xbf16, #tpu.memory_space<vmem>>, vector<8x2x4xbf16>,
    %c0_32 = arith.constant 0 : index
    %c0_33 = arith.constant 0 : index
    %c4 = arith.constant 4 : index
    %43 = vector.load %arg6[%c0_32, %c0_33, %c4] : memref<8x2x96xbf16, #tpu.memory_space<vmem>>, vector<8x2x4xbf16>
    %c0_34 = arith.constant 0 : index
    %c0_35 = arith.constant 0 : index
    %c36 = arith.constant 36 : index
    %44 = vector.load %arg6[%c0_34, %c0_35, %c36] : memref<8x2x96xbf16, #tpu.memory_space<vmem>>, vector<8x2x4xbf16>
    %c0_36 = arith.constant 0 : index
    %c0_37 = arith.constant 0 : index
    %c68 = arith.constant 68 : index
    %45 = vector.load %arg6[%c0_36, %c0_37, %c68] : memref<8x2x96xbf16, #tpu.memory_space<vmem>>, vector<8x2x4xbf16>
    "tpu.trace_start"() <{level = 10 : i32, message = "bqd,bkd->bqk"}> : () -> ()
    %cst_38 = arith.constant dense<0.000000e+00> : vector<8x2x2xf32>
    %46 = tpu.matmul %43, %44, %cst_38 {dimension_numbers = #tpu.dot_dimension_numbers<[2], [2], [1], [1], [0, 0, 0, 1, 1, 1], [0], [0]>} : vector<8x2x4xbf16>, vector<8x2x4xbf16>, vector<8x2x2xf32> -> vector<8x2x2xf32>
    "tpu.trace_stop"() : () -> ()
    %cst_39 = arith.constant 5.000000e-01 : f32
    %47 = vector.broadcast %cst_39 : f32 to vector<8x2x2xf32>
    %48 = arith.mulf %46, %47 : vector<8x2x2xf32>
    %cst_40 = arith.constant dense<0xFF800000> : vector<8x2xf32>
    %49 = vector.multi_reduction <maximumf>, %48, %cst_40 [2] : vector<8x2x2xf32> to vector<8x2xf32>
    %50 = vector.shape_cast %49 : vector<8x2xf32> to vector<8x2x1xf32>
    %51 = vector.broadcast %50 : vector<8x2x1xf32> to vector<8x2x2xf32>
    %52 = arith.subf %48, %51 : vector<8x2x2xf32>
    %53 = math.exp %52 : vector<8x2x2xf32>
    %cst_41 = arith.constant dense<0.000000e+00> : vector<8x2xf32>
    %54 = vector.multi_reduction <add>, %53, %cst_41 [2] : vector<8x2x2xf32> to vector<8x2xf32>
    %55 = vector.shape_cast %54 : vector<8x2xf32> to vector<8x2x1xf32>
    %56 = tpu.reciprocal %55 {approx = true} : vector<8x2x1xf32> -> vector<8x2x1xf32>
    %57 = vector.broadcast %56 : vector<8x2x1xf32> to vector<8x2x2xf32>
    %58 = arith.mulf %53, %57 : vector<8x2x2xf32>
    %59 = arith.truncf %58 : vector<8x2x2xf32> to vector<8x2x2xbf16>
    "tpu.trace_start"() <{level = 10 : i32, message = "bqk,bkd->bqd"}> : () -> ()
    %cst_42 = arith.constant dense<0.000000e+00> : vector<8x2x4xf32>
    %60 = tpu.matmul %59, %45, %cst_42 {dimension_numbers = #tpu.dot_dimension_numbers<[2], [1], [1], [2], [0, 0, 0, 1, 1, 2], [0], [0]>} : vector<8x2x2xbf16>, vector<8x2x4xbf16>, vector<8x2x4xf32> -> vector<8x2x4xf32>
    "tpu.trace_stop"() : () -> ()
    %61 = arith.truncf %60 : vector<8x2x4xf32> to vector<8x2x4xbf16>
    %c0_43 = arith.constant 0 : index
    %c0_44 = arith.constant 0 : index
    %c4_45 = arith.constant 4 : index
    %62 = vector.load %arg7[%c0_43, %c0_44, %c4_45] : memref<8x2x32xbf16, #tpu.memory_space<vmem>>, vector<8x2x4xbf16>
    tpu.vector_store %arg7[%c0_43, %c0_44, %c4_45], %61 {strides = array<i32>} : memref<8x2x32xbf16, #tpu.memory_space<vmem>>, vector<8x2x4xbf16>,
    %c0_46 = arith.constant 0 : index
    %c0_47 = arith.constant 0 : index
    %c8 = arith.constant 8 : index
    %63 = vector.load %arg6[%c0_46, %c0_47, %c8] : memref<8x2x96xbf16, #tpu.memory_space<vmem>>, vector<8x2x4xbf16>
    %c0_48 = arith.constant 0 : index
    %c0_49 = arith.constant 0 : index
    %c40 = arith.constant 40 : index
    %64 = vector.load %arg6[%c0_48, %c0_49, %c40] : memref<8x2x96xbf16, #tpu.memory_space<vmem>>, vector<8x2x4xbf16>
    %c0_50 = arith.constant 0 : index
    %c0_51 = arith.constant 0 : index
    %c72 = arith.constant 72 : index
    %65 = vector.load %arg6[%c0_50, %c0_51, %c72] : memref<8x2x96xbf16, #tpu.memory_space<vmem>>, vector<8x2x4xbf16>
    "tpu.trace_start"() <{level = 10 : i32, message = "bqd,bkd->bqk"}> : () -> ()
    %cst_52 = arith.constant dense<0.000000e+00> : vector<8x2x2xf32>
    %66 = tpu.matmul %63, %64, %cst_52 {dimension_numbers = #tpu.dot_dimension_numbers<[2], [2], [1], [1], [0, 0, 0, 1, 1, 1], [0], [0]>} : vector<8x2x4xbf16>, vector<8x2x4xbf16>, vector<8x2x2xf32> -> vector<8x2x2xf32>
    "tpu.trace_stop"() : () -> ()
    %cst_53 = arith.constant 5.000000e-01 : f32
    %67 = vector.broadcast %cst_53 : f32 to vector<8x2x2xf32>
    %68 = arith.mulf %66, %67 : vector<8x2x2xf32>
    %cst_54 = arith.constant dense<0xFF800000> : vector<8x2xf32>
    %69 = vector.multi_reduction <maximumf>, %68, %cst_54 [2] : vector<8x2x2xf32> to vector<8x2xf32>
    %70 = vector.shape_cast %69 : vector<8x2xf32> to vector<8x2x1xf32>
    %71 = vector.broadcast %70 : vector<8x2x1xf32> to vector<8x2x2xf32>
    %72 = arith.subf %68, %71 : vector<8x2x2xf32>
    %73 = math.exp %72 : vector<8x2x2xf32>
    %cst_55 = arith.constant dense<0.000000e+00> : vector<8x2xf32>
    %74 = vector.multi_reduction <add>, %73, %cst_55 [2] : vector<8x2x2xf32> to vector<8x2xf32>
    %75 = vector.shape_cast %74 : vector<8x2xf32> to vector<8x2x1xf32>
    %76 = tpu.reciprocal %75 {approx = true} : vector<8x2x1xf32> -> vector<8x2x1xf32>
    %77 = vector.broadcast %76 : vector<8x2x1xf32> to vector<8x2x2xf32>
    %78 = arith.mulf %73, %77 : vector<8x2x2xf32>
    %79 = arith.truncf %78 : vector<8x2x2xf32> to vector<8x2x2xbf16>
    "tpu.trace_start"() <{level = 10 : i32, message = "bqk,bkd->bqd"}> : () -> ()
    %cst_56 = arith.constant dense<0.000000e+00> : vector<8x2x4xf32>
    %80 = tpu.matmul %79, %65, %cst_56 {dimension_numbers = #tpu.dot_dimension_numbers<[2], [1], [1], [2], [0, 0, 0, 1, 1, 2], [0], [0]>} : vector<8x2x2xbf16>, vector<8x2x4xbf16>, vector<8x2x4xf32> -> vector<8x2x4xf32>
    "tpu.trace_stop"() : () -> ()
    %81 = arith.truncf %80 : vector<8x2x4xf32> to vector<8x2x4xbf16>
    %c0_57 = arith.constant 0 : index
    %c0_58 = arith.constant 0 : index
    %c8_59 = arith.constant 8 : index
    %82 = vector.load %arg7[%c0_57, %c0_58, %c8_59] : memref<8x2x32xbf16, #tpu.memory_space<vmem>>, vector<8x2x4xbf16>
    tpu.vector_store %arg7[%c0_57, %c0_58, %c8_59], %81 {strides = array<i32>} : memref<8x2x32xbf16, #tpu.memory_space<vmem>>, vector<8x2x4xbf16>,
    %c0_60 = arith.constant 0 : index
    %c0_61 = arith.constant 0 : index
    %c12 = arith.constant 12 : index
    %83 = vector.load %arg6[%c0_60, %c0_61, %c12] : memref<8x2x96xbf16, #tpu.memory_space<vmem>>, vector<8x2x4xbf16>
    %c0_62 = arith.constant 0 : index
    %c0_63 = arith.constant 0 : index
    %c44 = arith.constant 44 : index
    %84 = vector.load %arg6[%c0_62, %c0_63, %c44] : memref<8x2x96xbf16, #tpu.memory_space<vmem>>, vector<8x2x4xbf16>
    %c0_64 = arith.constant 0 : index
    %c0_65 = arith.constant 0 : index
    %c76 = arith.constant 76 : index
    %85 = vector.load %arg6[%c0_64, %c0_65, %c76] : memref<8x2x96xbf16, #tpu.memory_space<vmem>>, vector<8x2x4xbf16>
    "tpu.trace_start"() <{level = 10 : i32, message = "bqd,bkd->bqk"}> : () -> ()
    %cst_66 = arith.constant dense<0.000000e+00> : vector<8x2x2xf32>
    %86 = tpu.matmul %83, %84, %cst_66 {dimension_numbers = #tpu.dot_dimension_numbers<[2], [2], [1], [1], [0, 0, 0, 1, 1, 1], [0], [0]>} : vector<8x2x4xbf16>, vector<8x2x4xbf16>, vector<8x2x2xf32> -> vector<8x2x2xf32>
    "tpu.trace_stop"() : () -> ()
    %cst_67 = arith.constant 5.000000e-01 : f32
    %87 = vector.broadcast %cst_67 : f32 to vector<8x2x2xf32>
    %88 = arith.mulf %86, %87 : vector<8x2x2xf32>
    %cst_68 = arith.constant dense<0xFF800000> : vector<8x2xf32>
    %89 = vector.multi_reduction <maximumf>, %88, %cst_68 [2] : vector<8x2x2xf32> to vector<8x2xf32>
    %90 = vector.shape_cast %89 : vector<8x2xf32> to vector<8x2x1xf32>
    %91 = vector.broadcast %90 : vector<8x2x1xf32> to vector<8x2x2xf32>
    %92 = arith.subf %88, %91 : vector<8x2x2xf32>
    %93 = math.exp %92 : vector<8x2x2xf32>
    %cst_69 = arith.constant dense<0.000000e+00> : vector<8x2xf32>
    %94 = vector.multi_reduction <add>, %93, %cst_69 [2] : vector<8x2x2xf32> to vector<8x2xf32>
    %95 = vector.shape_cast %94 : vector<8x2xf32> to vector<8x2x1xf32>
    %96 = tpu.reciprocal %95 {approx = true} : vector<8x2x1xf32> -> vector<8x2x1xf32>
    %97 = vector.broadcast %96 : vector<8x2x1xf32> to vector<8x2x2xf32>
    %98 = arith.mulf %93, %97 : vector<8x2x2xf32>
    %99 = arith.truncf %98 : vector<8x2x2xf32> to vector<8x2x2xbf16>
    "tpu.trace_start"() <{level = 10 : i32, message = "bqk,bkd->bqd"}> : () -> ()
    %cst_70 = arith.constant dense<0.000000e+00> : vector<8x2x4xf32>
    %100 = tpu.matmul %99, %85, %cst_70 {dimension_numbers = #tpu.dot_dimension_numbers<[2], [1], [1], [2], [0, 0, 0, 1, 1, 2], [0], [0]>} : vector<8x2x2xbf16>, vector<8x2x4xbf16>, vector<8x2x4xf32> -> vector<8x2x4xf32>
    "tpu.trace_stop"() : () -> ()
    %101 = arith.truncf %100 : vector<8x2x4xf32> to vector<8x2x4xbf16>
    %c0_71 = arith.constant 0 : index
    %c0_72 = arith.constant 0 : index
    %c12_73 = arith.constant 12 : index
    %102 = vector.load %arg7[%c0_71, %c0_72, %c12_73] : memref<8x2x32xbf16, #tpu.memory_space<vmem>>, vector<8x2x4xbf16>
    tpu.vector_store %arg7[%c0_71, %c0_72, %c12_73], %101 {strides = array<i32>} : memref<8x2x32xbf16, #tpu.memory_space<vmem>>, vector<8x2x4xbf16>,
    %c0_74 = arith.constant 0 : index
    %c0_75 = arith.constant 0 : index
    %c16 = arith.constant 16 : index
    %103 = vector.load %arg6[%c0_74, %c0_75, %c16] : memref<8x2x96xbf16, #tpu.memory_space<vmem>>, vector<8x2x4xbf16>
    %c0_76 = arith.constant 0 : index
    %c0_77 = arith.constant 0 : index
    %c48 = arith.constant 48 : index
    %104 = vector.load %arg6[%c0_76, %c0_77, %c48] : memref<8x2x96xbf16, #tpu.memory_space<vmem>>, vector<8x2x4xbf16>
    %c0_78 = arith.constant 0 : index
    %c0_79 = arith.constant 0 : index
    %c80 = arith.constant 80 : index
    %105 = vector.load %arg6[%c0_78, %c0_79, %c80] : memref<8x2x96xbf16, #tpu.memory_space<vmem>>, vector<8x2x4xbf16>
    "tpu.trace_start"() <{level = 10 : i32, message = "bqd,bkd->bqk"}> : () -> ()
    %cst_80 = arith.constant dense<0.000000e+00> : vector<8x2x2xf32>
    %106 = tpu.matmul %103, %104, %cst_80 {dimension_numbers = #tpu.dot_dimension_numbers<[2], [2], [1], [1], [0, 0, 0, 1, 1, 1], [0], [0]>} : vector<8x2x4xbf16>, vector<8x2x4xbf16>, vector<8x2x2xf32> -> vector<8x2x2xf32>
    "tpu.trace_stop"() : () -> ()
    %cst_81 = arith.constant 5.000000e-01 : f32
    %107 = vector.broadcast %cst_81 : f32 to vector<8x2x2xf32>
    %108 = arith.mulf %106, %107 : vector<8x2x2xf32>
    %cst_82 = arith.constant dense<0xFF800000> : vector<8x2xf32>
    %109 = vector.multi_reduction <maximumf>, %108, %cst_82 [2] : vector<8x2x2xf32> to vector<8x2xf32>
    %110 = vector.shape_cast %109 : vector<8x2xf32> to vector<8x2x1xf32>
    %111 = vector.broadcast %110 : vector<8x2x1xf32> to vector<8x2x2xf32>
    %112 = arith.subf %108, %111 : vector<8x2x2xf32>
    %113 = math.exp %112 : vector<8x2x2xf32>
    %cst_83 = arith.constant dense<0.000000e+00> : vector<8x2xf32>
    %114 = vector.multi_reduction <add>, %113, %cst_83 [2] : vector<8x2x2xf32> to vector<8x2xf32>
    %115 = vector.shape_cast %114 : vector<8x2xf32> to vector<8x2x1xf32>
    %116 = tpu.reciprocal %115 {approx = true} : vector<8x2x1xf32> -> vector<8x2x1xf32>
    %117 = vector.broadcast %116 : vector<8x2x1xf32> to vector<8x2x2xf32>
    %118 = arith.mulf %113, %117 : vector<8x2x2xf32>
    %119 = arith.truncf %118 : vector<8x2x2xf32> to vector<8x2x2xbf16>
    "tpu.trace_start"() <{level = 10 : i32, message = "bqk,bkd->bqd"}> : () -> ()
    %cst_84 = arith.constant dense<0.000000e+00> : vector<8x2x4xf32>
    %120 = tpu.matmul %119, %105, %cst_84 {dimension_numbers = #tpu.dot_dimension_numbers<[2], [1], [1], [2], [0, 0, 0, 1, 1, 2], [0], [0]>} : vector<8x2x2xbf16>, vector<8x2x4xbf16>, vector<8x2x4xf32> -> vector<8x2x4xf32>
    "tpu.trace_stop"() : () -> ()
    %121 = arith.truncf %120 : vector<8x2x4xf32> to vector<8x2x4xbf16>
    %c0_85 = arith.constant 0 : index
    %c0_86 = arith.constant 0 : index
    %c16_87 = arith.constant 16 : index
    %122 = vector.load %arg7[%c0_85, %c0_86, %c16_87] : memref<8x2x32xbf16, #tpu.memory_space<vmem>>, vector<8x2x4xbf16>
    tpu.vector_store %arg7[%c0_85, %c0_86, %c16_87], %121 {strides = array<i32>} : memref<8x2x32xbf16, #tpu.memory_space<vmem>>, vector<8x2x4xbf16>,
    %c0_88 = arith.constant 0 : index
    %c0_89 = arith.constant 0 : index
    %c20 = arith.constant 20 : index
    %123 = vector.load %arg6[%c0_88, %c0_89, %c20] : memref<8x2x96xbf16, #tpu.memory_space<vmem>>, vector<8x2x4xbf16>
    %c0_90 = arith.constant 0 : index
    %c0_91 = arith.constant 0 : index
    %c52 = arith.constant 52 : index
    %124 = vector.load %arg6[%c0_90, %c0_91, %c52] : memref<8x2x96xbf16, #tpu.memory_space<vmem>>, vector<8x2x4xbf16>
    %c0_92 = arith.constant 0 : index
    %c0_93 = arith.constant 0 : index
    %c84 = arith.constant 84 : index
    %125 = vector.load %arg6[%c0_92, %c0_93, %c84] : memref<8x2x96xbf16, #tpu.memory_space<vmem>>, vector<8x2x4xbf16>
    "tpu.trace_start"() <{level = 10 : i32, message = "bqd,bkd->bqk"}> : () -> ()
    %cst_94 = arith.constant dense<0.000000e+00> : vector<8x2x2xf32>
    %126 = tpu.matmul %123, %124, %cst_94 {dimension_numbers = #tpu.dot_dimension_numbers<[2], [2], [1], [1], [0, 0, 0, 1, 1, 1], [0], [0]>} : vector<8x2x4xbf16>, vector<8x2x4xbf16>, vector<8x2x2xf32> -> vector<8x2x2xf32>
    "tpu.trace_stop"() : () -> ()
    %cst_95 = arith.constant 5.000000e-01 : f32
    %127 = vector.broadcast %cst_95 : f32 to vector<8x2x2xf32>
    %128 = arith.mulf %126, %127 : vector<8x2x2xf32>
    %cst_96 = arith.constant dense<0xFF800000> : vector<8x2xf32>
    %129 = vector.multi_reduction <maximumf>, %128, %cst_96 [2] : vector<8x2x2xf32> to vector<8x2xf32>
    %130 = vector.shape_cast %129 : vector<8x2xf32> to vector<8x2x1xf32>
    %131 = vector.broadcast %130 : vector<8x2x1xf32> to vector<8x2x2xf32>
    %132 = arith.subf %128, %131 : vector<8x2x2xf32>
    %133 = math.exp %132 : vector<8x2x2xf32>
    %cst_97 = arith.constant dense<0.000000e+00> : vector<8x2xf32>
    %134 = vector.multi_reduction <add>, %133, %cst_97 [2] : vector<8x2x2xf32> to vector<8x2xf32>
    %135 = vector.shape_cast %134 : vector<8x2xf32> to vector<8x2x1xf32>
    %136 = tpu.reciprocal %135 {approx = true} : vector<8x2x1xf32> -> vector<8x2x1xf32>
    %137 = vector.broadcast %136 : vector<8x2x1xf32> to vector<8x2x2xf32>
    %138 = arith.mulf %133, %137 : vector<8x2x2xf32>
    %139 = arith.truncf %138 : vector<8x2x2xf32> to vector<8x2x2xbf16>
    "tpu.trace_start"() <{level = 10 : i32, message = "bqk,bkd->bqd"}> : () -> ()
    %cst_98 = arith.constant dense<0.000000e+00> : vector<8x2x4xf32>
    %140 = tpu.matmul %139, %125, %cst_98 {dimension_numbers = #tpu.dot_dimension_numbers<[2], [1], [1], [2], [0, 0, 0, 1, 1, 2], [0], [0]>} : vector<8x2x2xbf16>, vector<8x2x4xbf16>, vector<8x2x4xf32> -> vector<8x2x4xf32>
    "tpu.trace_stop"() : () -> ()
    %141 = arith.truncf %140 : vector<8x2x4xf32> to vector<8x2x4xbf16>
    %c0_99 = arith.constant 0 : index
    %c0_100 = arith.constant 0 : index
    %c20_101 = arith.constant 20 : index
    %142 = vector.load %arg7[%c0_99, %c0_100, %c20_101] : memref<8x2x32xbf16, #tpu.memory_space<vmem>>, vector<8x2x4xbf16>
    tpu.vector_store %arg7[%c0_99, %c0_100, %c20_101], %141 {strides = array<i32>} : memref<8x2x32xbf16, #tpu.memory_space<vmem>>, vector<8x2x4xbf16>,
    %c0_102 = arith.constant 0 : index
    %c0_103 = arith.constant 0 : index
    %c24 = arith.constant 24 : index
    %143 = vector.load %arg6[%c0_102, %c0_103, %c24] : memref<8x2x96xbf16, #tpu.memory_space<vmem>>, vector<8x2x4xbf16>
    %c0_104 = arith.constant 0 : index
    %c0_105 = arith.constant 0 : index
    %c56 = arith.constant 56 : index
    %144 = vector.load %arg6[%c0_104, %c0_105, %c56] : memref<8x2x96xbf16, #tpu.memory_space<vmem>>, vector<8x2x4xbf16>
    %c0_106 = arith.constant 0 : index
    %c0_107 = arith.constant 0 : index
    %c88 = arith.constant 88 : index
    %145 = vector.load %arg6[%c0_106, %c0_107, %c88] : memref<8x2x96xbf16, #tpu.memory_space<vmem>>, vector<8x2x4xbf16>
    "tpu.trace_start"() <{level = 10 : i32, message = "bqd,bkd->bqk"}> : () -> ()
    %cst_108 = arith.constant dense<0.000000e+00> : vector<8x2x2xf32>
    %146 = tpu.matmul %143, %144, %cst_108 {dimension_numbers = #tpu.dot_dimension_numbers<[2], [2], [1], [1], [0, 0, 0, 1, 1, 1], [0], [0]>} : vector<8x2x4xbf16>, vector<8x2x4xbf16>, vector<8x2x2xf32> -> vector<8x2x2xf32>
    "tpu.trace_stop"() : () -> ()
    %cst_109 = arith.constant 5.000000e-01 : f32
    %147 = vector.broadcast %cst_109 : f32 to vector<8x2x2xf32>
    %148 = arith.mulf %146, %147 : vector<8x2x2xf32>
    %cst_110 = arith.constant dense<0xFF800000> : vector<8x2xf32>
    %149 = vector.multi_reduction <maximumf>, %148, %cst_110 [2] : vector<8x2x2xf32> to vector<8x2xf32>
    %150 = vector.shape_cast %149 : vector<8x2xf32> to vector<8x2x1xf32>
    %151 = vector.broadcast %150 : vector<8x2x1xf32> to vector<8x2x2xf32>
    %152 = arith.subf %148, %151 : vector<8x2x2xf32>
    %153 = math.exp %152 : vector<8x2x2xf32>
    %cst_111 = arith.constant dense<0.000000e+00> : vector<8x2xf32>
    %154 = vector.multi_reduction <add>, %153, %cst_111 [2] : vector<8x2x2xf32> to vector<8x2xf32>
    %155 = vector.shape_cast %154 : vector<8x2xf32> to vector<8x2x1xf32>
    %156 = tpu.reciprocal %155 {approx = true} : vector<8x2x1xf32> -> vector<8x2x1xf32>
    %157 = vector.broadcast %156 : vector<8x2x1xf32> to vector<8x2x2xf32>
    %158 = arith.mulf %153, %157 : vector<8x2x2xf32>
    %159 = arith.truncf %158 : vector<8x2x2xf32> to vector<8x2x2xbf16>
    "tpu.trace_start"() <{level = 10 : i32, message = "bqk,bkd->bqd"}> : () -> ()
    %cst_112 = arith.constant dense<0.000000e+00> : vector<8x2x4xf32>
    %160 = tpu.matmul %159, %145, %cst_112 {dimension_numbers = #tpu.dot_dimension_numbers<[2], [1], [1], [2], [0, 0, 0, 1, 1, 2], [0], [0]>} : vector<8x2x2xbf16>, vector<8x2x4xbf16>, vector<8x2x4xf32> -> vector<8x2x4xf32>
    "tpu.trace_stop"() : () -> ()
    %161 = arith.truncf %160 : vector<8x2x4xf32> to vector<8x2x4xbf16>
    %c0_113 = arith.constant 0 : index
    %c0_114 = arith.constant 0 : index
    %c24_115 = arith.constant 24 : index
    %162 = vector.load %arg7[%c0_113, %c0_114, %c24_115] : memref<8x2x32xbf16, #tpu.memory_space<vmem>>, vector<8x2x4xbf16>
    tpu.vector_store %arg7[%c0_113, %c0_114, %c24_115], %161 {strides = array<i32>} : memref<8x2x32xbf16, #tpu.memory_space<vmem>>, vector<8x2x4xbf16>,
    %c0_116 = arith.constant 0 : index
    %c0_117 = arith.constant 0 : index
    %c28 = arith.constant 28 : index
    %163 = vector.load %arg6[%c0_116, %c0_117, %c28] : memref<8x2x96xbf16, #tpu.memory_space<vmem>>, vector<8x2x4xbf16>
    %c0_118 = arith.constant 0 : index
    %c0_119 = arith.constant 0 : index
    %c60 = arith.constant 60 : index
    %164 = vector.load %arg6[%c0_118, %c0_119, %c60] : memref<8x2x96xbf16, #tpu.memory_space<vmem>>, vector<8x2x4xbf16>
    %c0_120 = arith.constant 0 : index
    %c0_121 = arith.constant 0 : index
    %c92 = arith.constant 92 : index
    %165 = vector.load %arg6[%c0_120, %c0_121, %c92] : memref<8x2x96xbf16, #tpu.memory_space<vmem>>, vector<8x2x4xbf16>
    "tpu.trace_start"() <{level = 10 : i32, message = "bqd,bkd->bqk"}> : () -> ()
    %cst_122 = arith.constant dense<0.000000e+00> : vector<8x2x2xf32>
    %166 = tpu.matmul %163, %164, %cst_122 {dimension_numbers = #tpu.dot_dimension_numbers<[2], [2], [1], [1], [0, 0, 0, 1, 1, 1], [0], [0]>} : vector<8x2x4xbf16>, vector<8x2x4xbf16>, vector<8x2x2xf32> -> vector<8x2x2xf32>
    "tpu.trace_stop"() : () -> ()
    %cst_123 = arith.constant 5.000000e-01 : f32
    %167 = vector.broadcast %cst_123 : f32 to vector<8x2x2xf32>
    %168 = arith.mulf %166, %167 : vector<8x2x2xf32>
    %cst_124 = arith.constant dense<0xFF800000> : vector<8x2xf32>
    %169 = vector.multi_reduction <maximumf>, %168, %cst_124 [2] : vector<8x2x2xf32> to vector<8x2xf32>
    %170 = vector.shape_cast %169 : vector<8x2xf32> to vector<8x2x1xf32>
    %171 = vector.broadcast %170 : vector<8x2x1xf32> to vector<8x2x2xf32>
    %172 = arith.subf %168, %171 : vector<8x2x2xf32>
    %173 = math.exp %172 : vector<8x2x2xf32>
    %cst_125 = arith.constant dense<0.000000e+00> : vector<8x2xf32>
    %174 = vector.multi_reduction <add>, %173, %cst_125 [2] : vector<8x2x2xf32> to vector<8x2xf32>
    %175 = vector.shape_cast %174 : vector<8x2xf32> to vector<8x2x1xf32>
    %176 = tpu.reciprocal %175 {approx = true} : vector<8x2x1xf32> -> vector<8x2x1xf32>
    %177 = vector.broadcast %176 : vector<8x2x1xf32> to vector<8x2x2xf32>
    %178 = arith.mulf %173, %177 : vector<8x2x2xf32>
    %179 = arith.truncf %178 : vector<8x2x2xf32> to vector<8x2x2xbf16>
    "tpu.trace_start"() <{level = 10 : i32, message = "bqk,bkd->bqd"}> : () -> ()
    %cst_126 = arith.constant dense<0.000000e+00> : vector<8x2x4xf32>
    %180 = tpu.matmul %179, %165, %cst_126 {dimension_numbers = #tpu.dot_dimension_numbers<[2], [1], [1], [2], [0, 0, 0, 1, 1, 2], [0], [0]>} : vector<8x2x2xbf16>, vector<8x2x4xbf16>, vector<8x2x4xf32> -> vector<8x2x4xf32>
    "tpu.trace_stop"() : () -> ()
    %181 = arith.truncf %180 : vector<8x2x4xf32> to vector<8x2x4xbf16>
    %c0_127 = arith.constant 0 : index
    %c0_128 = arith.constant 0 : index
    %c28_129 = arith.constant 28 : index
    %182 = vector.load %arg7[%c0_127, %c0_128, %c28_129] : memref<8x2x32xbf16, #tpu.memory_space<vmem>>, vector<8x2x4xbf16>
    tpu.vector_store %arg7[%c0_127, %c0_128, %c28_129], %181 {strides = array<i32>} : memref<8x2x32xbf16, #tpu.memory_space<vmem>>, vector<8x2x4xbf16>,
    %c0_130 = arith.constant 0 : index
    %c0_131 = arith.constant 0 : index
    %c0_132 = arith.constant 0 : index
    %183 = vector.load %arg7[%c0_130, %c0_131, %c0_132] : memref<8x2x32xbf16, #tpu.memory_space<vmem>>, vector<8x1x32xbf16>
    %184 = vector.shape_cast %183 : vector<8x1x32xbf16> to vector<8x32xbf16>
    %cst_133 = arith.constant dense<0.000000e+00> : vector<8x32xf32>
    %185 = tpu.matmul %184, %1, %cst_133 {dimension_numbers = #tpu.dot_dimension_numbers<[1], [0], [0], [1], [0, 0, 1, 1], [], []>} : vector<8x32xbf16>, vector<32x32xbf16>, vector<8x32xf32> -> vector<8x32xf32>
    %186 = vector.broadcast %4 : vector<1x32xf32> to vector<8x32xf32>
    %187 = arith.addf %185, %186 : vector<8x32xf32>
    %c0_134 = arith.constant 0 : index
    %c0_135 = arith.constant 0 : index
    %c0_136 = arith.constant 0 : index
    %188 = vector.load %arg5[%c0_134, %c0_135, %c0_136] : memref<8x2x32xf32, #tpu.memory_space<vmem>>, vector<8x1x32xf32>
    %189 = vector.shape_cast %188 : vector<8x1x32xf32> to vector<8x32xf32>
    %190 = vector.shape_cast %187 : vector<8x32xf32> to vector<8x1x32xf32>
    tpu.vector_store %arg5[%c0_134, %c0_135, %c0_136], %190 {strides = array<i32>} : memref<8x2x32xf32, #tpu.memory_space<vmem>>, vector<8x1x32xf32>,
    %c0_137 = arith.constant 0 : index
    %c1_138 = arith.constant 1 : index
    %c0_139 = arith.constant 0 : index
    %191 = vector.load %arg7[%c0_137, %c1_138, %c0_139] : memref<8x2x32xbf16, #tpu.memory_space<vmem>>, vector<8x1x32xbf16>
    %192 = vector.shape_cast %191 : vector<8x1x32xbf16> to vector<8x32xbf16>
    %cst_140 = arith.constant dense<0.000000e+00> : vector<8x32xf32>
    %193 = tpu.matmul %192, %1, %cst_140 {dimension_numbers = #tpu.dot_dimension_numbers<[1], [0], [0], [1], [0, 0, 1, 1], [], []>} : vector<8x32xbf16>, vector<32x32xbf16>, vector<8x32xf32> -> vector<8x32xf32>
    %194 = vector.broadcast %4 : vector<1x32xf32> to vector<8x32xf32>
    %195 = arith.addf %193, %194 : vector<8x32xf32>
    %c0_141 = arith.constant 0 : index
    %c1_142 = arith.constant 1 : index
    %c0_143 = arith.constant 0 : index
    %196 = vector.load %arg5[%c0_141, %c1_142, %c0_143] : memref<8x2x32xf32, #tpu.memory_space<vmem>>, vector<8x1x32xf32>
    %197 = vector.shape_cast %196 : vector<8x1x32xf32> to vector<8x32xf32>
    %198 = vector.shape_cast %195 : vector<8x32xf32> to vector<8x1x32xf32>
    tpu.vector_store %arg5[%c0_141, %c1_142, %c0_143], %198 {strides = array<i32>} : memref<8x2x32xf32, #tpu.memory_space<vmem>>, vector<8x1x32xf32>,
    return
  }
  func.func @transform_0(%arg0: i32) -> (i32, i32, i32) {
    %c0_i32 = arith.constant 0 : i32
    %c0_i32_0 = arith.constant 0 : i32
    %c0_i32_1 = arith.constant 0 : i32
    return %arg0, %c0_i32, %c0_i32_0 : i32, i32, i32
  }
  func.func @transform_1(%arg0: i32) -> (i32, i32) {
    %c0_i32 = arith.constant 0 : i32
    %c0_i32_0 = arith.constant 0 : i32
    %c0_i32_1 = arith.constant 0 : i32
    return %c0_i32, %c0_i32_0 : i32, i32
  }
  func.func @transform_2(%arg0: i32) -> (i32, i32) {
    %c0_i32 = arith.constant 0 : i32
    %c0_i32_0 = arith.constant 0 : i32
    %c0_i32_1 = arith.constant 0 : i32
    return %c0_i32, %c0_i32_0 : i32, i32
  }
  func.func @transform_3(%arg0: i32) -> (i32, i32) {
    %c0_i32 = arith.constant 0 : i32
    %c0_i32_0 = arith.constant 0 : i32
    %c0_i32_1 = arith.constant 0 : i32
    return %c0_i32, %c0_i32_0 : i32, i32
  }
  func.func @transform_4(%arg0: i32) -> (i32, i32, i32) {
    %c0_i32 = arith.constant 0 : i32
    %c0_i32_0 = arith.constant 0 : i32
    %c0_i32_1 = arith.constant 0 : i32
    return %arg0, %c0_i32, %c0_i32_0 : i32, i32, i32
  }
}

</mosaic_0001>

<llo_original>
// kernel: tpu_custom_call.1
$region0: #{tpu_custom_call.1}
  #allocation0 [shape = 'u32[]', space=smem, size = 0x4, offset = 0x4, fixed_abs, tag = 'smem constant byte address 0x4 - core index']
  #allocation1 [shape = 'u32[144,128]{1,0:T(1,128)}', space=vmem, size = 0x12000, scoped, tag = 'internal scratch']
  #allocation2 [shape = 'bf16[8,2,96]{2,1,0:T(2,128)(2,1)}', space=vmem, size = 0x1000, scoped, tag = 'scratch operand']
  #allocation3 [shape = 'bf16[8,2,32]{2,1,0:T(2,128)(2,1)}', space=vmem, size = 0x1000, scoped, tag = 'scratch operand']
  %s0 = inlined_call_operand.hbm [shape: bf16[16,2,32], index: 0, kind: input, shape index: {}]
  %s1 = inlined_call_operand.hbm [shape: bf16[32,96], index: 1, kind: input, shape index: {}]
  %s2 = inlined_call_operand.hbm [shape: bf16[32,32], index: 2, kind: input, shape index: {}]
  %s3 = inlined_call_operand.vmem [shape: f32[1,128], index: 3, kind: input, shape index: {}]
  %s4 = inlined_call_operand.hbm [shape: f32[16,2,32], index: 4, kind: output, shape index: {}]
  %s5 = sld [smem:[#allocation0]]
  $region61: #{tpu_custom_call.1} parent=0
    _
  %s7 = ssub.s32 1, %s5
  %s8 = scalar_select 0, %s7, %s5
  $region1: #{tpu_custom_call.1} parent=0
    #allocation4 [shape = 'u8[8192]{0}', space=vmem, size = 0x2000, scoped, tag = 'input window, operand 0']
    #allocation5 [shape = 's32[2]{0}', space=sflag, size = 0x8, scoped, tag = 'scoped memory for tpu_custom_call.1']
    #allocation6 [shape = 's32[2]{0}', space=sflag, size = 0x8, scoped, tag = 'scoped memory for tpu_custom_call.1']
    #allocation7 [shape = 'u8[8192]{0}', space=vmem, size = 0x2000, scoped, tag = 'input window, operand 1, single buffered']
    #allocation8 [shape = 's32[1]{0}', space=sflag, size = 0x4, scoped, tag = 'scoped memory for tpu_custom_call.1']
    #allocation9 [shape = 'u8[8192]{0}', space=vmem, size = 0x2000, scoped, tag = 'input window, operand 2, single buffered']
    #allocation10 [shape = 'u8[16384]{0}', space=vmem, size = 0x4000, scoped, tag = 'output window, operand 0']
    %9 = vsyncpa [#allocation5], 0
    %s10 = scalar_lea.sflag [#allocation5], 1
    %11 = vsyncpa %s10, 0
    %12 = vsyncpa [#allocation8], 0
    %13 = vsyncpa [#allocation6], 0
    %s14 = scalar_lea.sflag [#allocation6], 1
    %15 = vsyncpa %s14, 0
    loop: start=0, step=1, limit=4
    $region2: #{tpu_custom_call.1} parent=1 // loop_pre_header
      _
    $region3: #{tpu_custom_call.1} parent=1 // loop_header
      %s17 = sphi 0, %s21
      %p18 = scmp.ge.s32.totalorder %s17, 4
      %s27 = sphi 0, %s29
      %s30 = sphi 0, %s27
      %s31 = sphi 0, %s30
      %s47 = sphi 0, %s31
      %s51 = sphi 0, %s51
      %s53 = sphi 0, %s51
      %s54 = sphi 0, %s53
      %s68 = sphi 0, %s54
      %s72 = sphi 0, %s72
      %s74 = sphi 0, %s72
      %s75 = sphi 0, %s74
      %s89 = sphi 0, %s75
      %s93 = sphi 0, %s93
      %s95 = sphi 0, %s93
      %s96 = sphi 0, %s95
      %s110 = sphi 0, %s96
      %s116 = sphi 0, %s118
      %s119 = sphi 0, %s116
      %s120 = sphi 0, %s119
      %s136 = sphi 0, %s120
    $region4: #{tpu_custom_call.1} parent=1 // loop_header_branch
      %20 = sbr.rel (%p18) target = $region8
    $region5: #{tpu_custom_call.1} parent=1 // loop_body
      %s22 = ssub.s32 %s17, 1
      %s23 = ssub.s32 %s17, 2
      %s24 = sadd.s32 %s17, 1
      %s25 = ssub.s32 %s17, %s24
      %p26 = scmp.eq.s32.totalorder %s25, 0
      %s28 = sadd.s32 %s27, 1
      %s29 = scalar_select %p26, %s27, %s28
      %p32 = pneg %p26
      %p33 = scmp.eq.s32.totalorder %s17, 1
      %p34 = por %p32, %p33
      %p35 = scmp.ne.s32.totalorder %s27, %s30
      %p36 = scmp.eq.s32.totalorder %s17, 0
      %p37 = por %p35, %p36
      %p38 = scmp.ne.s32.totalorder %s27, %s30
      %p39 = scmp.eq.s32.totalorder %s22, 1
      %p40 = por %p38, %p39
      %p41 = scmp.ne.s32.totalorder %s30, %s31
      %p42 = scmp.eq.s32.totalorder %s22, 0
      %p43 = por %p41, %p42
      %p44 = scmp.ne.s32.totalorder %s30, %s31
      %p45 = scmp.eq.s32.totalorder %s23, 1
      %p46 = por %p44, %p45
      %p48 = scmp.ne.s32.totalorder %s31, %s47
      %p49 = scmp.eq.s32.totalorder %s23, 0
      %p50 = por %p48, %p49
      %s52 = sadd.s32 %s51, 1
      %p55 = scmp.eq.s32.totalorder %s17, 1
      %p56 = scmp.ne.s32.totalorder %s51, %s53
      %p57 = scmp.eq.s32.totalorder %s17, 0
      %p58 = por %p56, %p57
      %p59 = scmp.ne.s32.totalorder %s51, %s53
      %p60 = scmp.eq.s32.totalorder %s22, 1
      %p61 = por %p59, %p60
      %p62 = scmp.ne.s32.totalorder %s53, %s54
      %p63 = scmp.eq.s32.totalorder %s22, 0
      %p64 = por %p62, %p63
      %p65 = scmp.ne.s32.totalorder %s53, %s54
      %p66 = scmp.eq.s32.totalorder %s23, 1
      %p67 = por %p65, %p66
      %p69 = scmp.ne.s32.totalorder %s54, %s68
      %p70 = scmp.eq.s32.totalorder %s23, 0
      %p71 = por %p69, %p70
      %s73 = sadd.s32 %s72, 1
      %p76 = scmp.eq.s32.totalorder %s17, 1
      %p77 = scmp.ne.s32.totalorder %s72, %s74
      %p78 = scmp.eq.s32.totalorder %s17, 0
      %p79 = por %p77, %p78
      %p80 = scmp.ne.s32.totalorder %s72, %s74
      %p81 = scmp.eq.s32.totalorder %s22, 1
      %p82 = por %p80, %p81
      %p83 = scmp.ne.s32.totalorder %s74, %s75
      %p84 = scmp.eq.s32.totalorder %s22, 0
      %p85 = por %p83, %p84
      %p86 = scmp.ne.s32.totalorder %s74, %s75
      %p87 = scmp.eq.s32.totalorder %s23, 1
      %p88 = por %p86, %p87
      %p90 = scmp.ne.s32.totalorder %s75, %s89
      %p91 = scmp.eq.s32.totalorder %s23, 0
      %p92 = por %p90, %p91
      %s94 = sadd.s32 %s93, 1
      %p97 = scmp.eq.s32.totalorder %s17, 1
      %p98 = scmp.ne.s32.totalorder %s93, %s95
      %p99 = scmp.eq.s32.totalorder %s17, 0
      %p100 = por %p98, %p99
      %p101 = scmp.ne.s32.totalorder %s93, %s95
      %p102 = scmp.eq.s32.totalorder %s22, 1
      %p103 = por %p101, %p102
      %p104 = scmp.ne.s32.totalorder %s95, %s96
      %p105 = scmp.eq.s32.totalorder %s22, 0
      %p106 = por %p104, %p105
      %p107 = scmp.ne.s32.totalorder %s95, %s96
      %p108 = scmp.eq.s32.totalorder %s23, 1
      %p109 = por %p107, %p108
      %p111 = scmp.ne.s32.totalorder %s96, %s110
      %p112 = scmp.eq.s32.totalorder %s23, 0
      %p113 = por %p111, %p112
      %s114 = ssub.s32 %s17, %s24
      %p115 = scmp.eq.s32.totalorder %s114, 0
      %s117 = sadd.s32 %s116, 1
      %s118 = scalar_select %p115, %s116, %s117
      %p121 = pneg %p115
      %p122 = scmp.eq.s32.totalorder %s17, 1
      %p123 = por %p121, %p122
      %p124 = scmp.ne.s32.totalorder %s116, %s119
      %p125 = scmp.eq.s32.totalorder %s17, 0
      %p126 = por %p124, %p125
      %p127 = scmp.ne.s32.totalorder %s116, %s119
      %p128 = scmp.eq.s32.totalorder %s22, 1
      %p129 = por %p127, %p128
      %p130 = scmp.ne.s32.totalorder %s119, %s120
      %p131 = scmp.eq.s32.totalorder %s22, 0
      %p132 = por %p130, %p131
      %p133 = scmp.ne.s32.totalorder %s119, %s120
      %p134 = scmp.eq.s32.totalorder %s23, 1
      %p135 = por %p133, %p134
      %p137 = scmp.ne.s32.totalorder %s120, %s136
      %p138 = scmp.eq.s32.totalorder %s23, 0
      %p139 = por %p137, %p138
      %p140 = scmp.le.s32.totalorder 1, %s17
      %p141 = scmp.lt.s32.totalorder %s17, 3
      %p142 = pnand %p140, %p141
      %p143 = pneg %p142
      // Predicated region
      $region9: #{tpu_custom_call.1} parent=5 // pred_check
        _
      $region10: #{tpu_custom_call.1} parent=5 // pred_check_branch
        %145 = sbr.rel (%p142) target = $region12
      $region11: #{tpu_custom_call.1} parent=5 // pred_region
        %s146 = ssub.s32 %s17, 1
        // Predicated region
        $region13: #{tpu_custom_call.1} parent=11 // pred_check
          %p147 = pneg %p64
        $region14: #{tpu_custom_call.1} parent=11 // pred_check_branch
          %149 = sbr.rel (%p147) target = $region16
        $region15: #{tpu_custom_call.1} parent=11 // pred_region
          %s151 = ssub.s32 256, 256
          %152 = vsyncadd [#allocation8], %s151
          %s153 = sshll.u32 [#allocation7], 4
          %s154 = int_to_ptr.vmem [resolvable:$true] %s153
          %159 = dma.hbm_to_vmem [thread:$0]  %s1, 256, %s154, [#allocation8], 64, 64, 4
        $region16: #{tpu_custom_call.1} parent=11 // pred_fallthru
          _
        // Predicated region
        $region17: #{tpu_custom_call.1} parent=11 // pred_check
          %p160 = pneg %p85
        $region18: #{tpu_custom_call.1} parent=11 // pred_check_branch
          %162 = sbr.rel (%p160) target = $region20
        $region19: #{tpu_custom_call.1} parent=11 // pred_region
          %s164 = ssub.s32 256, 256
          %165 = vsyncadd [#allocation8], %s164
          %s166 = sshll.u32 [#allocation9], 4
          %s167 = int_to_ptr.vmem [resolvable:$true] %s166
          %172 = dma.hbm_to_vmem [thread:$0]  %s2, 256, %s167, [#allocation8], 64, 64, 4
        $region20: #{tpu_custom_call.1} parent=11 // pred_fallthru
          _
        // Predicated region
        $region21: #{tpu_custom_call.1} parent=11 // pred_check
          %p173 = pneg %p106
        $region22: #{tpu_custom_call.1} parent=11 // pred_check_branch
          %175 = sbr.rel (%p173) target = $region24
        $region23: #{tpu_custom_call.1} parent=11 // pred_region
          _
        $region24: #{tpu_custom_call.1} parent=11 // pred_fallthru
          _
      $region12: #{tpu_custom_call.1} parent=5 // pred_fallthru
        _
      %p176 = scmp.lt.s32.totalorder %s17, 2
      // Predicated region
      $region25: #{tpu_custom_call.1} parent=5 // pred_check
        %p177 = pneg %p176
      $region26: #{tpu_custom_call.1} parent=5 // pred_check_branch
        %179 = sbr.rel (%p177) target = $region28
      $region27: #{tpu_custom_call.1} parent=5 // pred_region
        // Predicated region
        $region29: #{tpu_custom_call.1} parent=27 // pred_check
          %p180 = pneg %p37
        $region30: #{tpu_custom_call.1} parent=27 // pred_check_branch
          %182 = sbr.rel (%p180) target = $region32
        $region31: #{tpu_custom_call.1} parent=27 // pred_region
          %s183 = sand.u32 %s27, 1
          %s184 = scalar_lea.sflag [#allocation5], %s183
          %s185 = sand.u32 %s27, 1
          %s186 = smul.addr %s185, 8
          %s187 = scalar_lea.vmem [#allocation4], %s186
          %s188 = smul.u32 8, %s17
          %s190 = ssub.s32 128, 128
          %191 = vsyncadd %s184, %s190
          %s192 = smul.addr %s188, 16
          %s193 = scalar_lea.hbm %s0, %s192
          %s194 = sshll.u32 %s187, 4
          %s195 = int_to_ptr.vmem [resolvable:$true] %s194
          %200 = dma.hbm_to_vmem [thread:$0]  %s193, 128, %s195, %s184, 16, 16, 1
        $region32: #{tpu_custom_call.1} parent=27 // pred_fallthru
          _
      $region28: #{tpu_custom_call.1} parent=5 // pred_fallthru
        _
      %p201 = scmp.le.s32.totalorder 1, %s17
      %p202 = scmp.lt.s32.totalorder %s17, 3
      %p203 = pnand %p201, %p202
      %p204 = pneg %p203
      // Predicated region
      $region33: #{tpu_custom_call.1} parent=5 // pred_check
        _
      $region34: #{tpu_custom_call.1} parent=5 // pred_check_branch
        %206 = sbr.rel (%p203) target = $region36
      $region35: #{tpu_custom_call.1} parent=5 // pred_region
        %s207 = ssub.s32 %s17, 1
        %s208 = sand.u32 %s30, 1
        %s209 = scalar_lea.sflag [#allocation5], %s208
        %s210 = sand.u32 %s30, 1
        %s211 = smul.addr %s210, 8
        %s212 = scalar_lea.vmem [#allocation4], %s211
        // Predicated region
        $region37: #{tpu_custom_call.1} parent=35 // pred_check
          %p213 = pneg %p43
        $region38: #{tpu_custom_call.1} parent=35 // pred_check_branch
          %215 = sbr.rel (%p213) target = $region40
        $region39: #{tpu_custom_call.1} parent=35 // pred_region
          %216 = dma.done %s209, 128
        $region40: #{tpu_custom_call.1} parent=35 // pred_fallthru
          _
        // Predicated region
        $region41: #{tpu_custom_call.1} parent=35 // pred_check
          %p217 = pneg %p64
        $region42: #{tpu_custom_call.1} parent=35 // pred_check_branch
          %219 = sbr.rel (%p217) target = $region44
        $region43: #{tpu_custom_call.1} parent=35 // pred_region
          %220 = dma.done [#allocation8], 256
        $region44: #{tpu_custom_call.1} parent=35 // pred_fallthru
          _
        // Predicated region
        $region45: #{tpu_custom_call.1} parent=35 // pred_check
          %p221 = pneg %p85
        $region46: #{tpu_custom_call.1} parent=35 // pred_check_branch
          %223 = sbr.rel (%p221) target = $region48
        $region47: #{tpu_custom_call.1} parent=35 // pred_region
          %224 = dma.done [#allocation8], 256
        $region48: #{tpu_custom_call.1} parent=35 // pred_fallthru
          _
        %s225 = sand.u32 %s30, 1
        %s226 = scalar_lea.sflag [#allocation5], %s225
        %s227 = sand.u32 %s30, 1
        %s228 = smul.addr %s227, 8
        %s229 = scalar_lea.vmem [#allocation4], %s228
        %p230 = pneg %p43
        %p231 = pneg %p40
        %p232 = pneg %p64
        %p233 = pneg %p61
        %p234 = pneg %p85
        %p235 = pneg %p82
        %p236 = pneg %p106
        %p237 = pneg %p103
        %p238 = pneg %p132
        %p239 = pneg %p129
        %s240 = sand.u32 %s119, 1
        %s241 = scalar_lea.sflag [#allocation6], %s240
        %s242 = sand.u32 %s119, 1
        %s243 = smul.addr %s242, 16
        %s244 = scalar_lea.vmem [#allocation10], %s243
        %s245 = smul.u32 8, %s22
        %s246 = smul.u32 8, %s22
        %v248 = vld [vmem:[#allocation7] sm:$0xf]
        %v249 = vld [vmem:[#allocation7 + $0x4] sm:$0xf]
        %v250 = vld [vmem:[#allocation7 + $0x8] sm:$0xf]
        %v251 = vld [vmem:[#allocation7 + $0xc] sm:$0xf]
        %v252 = vld [vmem:[#allocation9] sm:$0xf]
        %v253 = vld [vmem:[#allocation9 + $0x4] sm:$0xf]
        %v254 = vld [vmem:[#allocation9 + $0x8] sm:$0xf]
        %v255 = vld [vmem:[#allocation9 + $0xc] sm:$0xf]
        %v256 = vld [vmem:[%s3] sm:$0x1]
        %v257 = vld [vmem:[%s212] sm:$0x1]
        %v258 = vld [vmem:[%s212 + $0x1] sm:$0x1]
        %v259 = vld [vmem:[%s212 + $0x2] sm:$0x1]
        %v260 = vld [vmem:[%s212 + $0x3] sm:$0x1]
        %v261 = vld [vmem:[%s212 + $0x4] sm:$0x1]
        %v262 = vld [vmem:[%s212 + $0x5] sm:$0x1]
        %v263 = vld [vmem:[%s212 + $0x6] sm:$0x1]
        %v264 = vld [vmem:[%s212 + $0x7] sm:$0x1]
        %v266 = vlaneseq
        %v267 = vshrl.u32 %v266, 7
        %v268 = vsub.s32 0, %v267
        %v269 = vrot.slane %v256, %v268
        %v280 = vunpack.c.l.s4 1966171168
        %v281 = vunpack.c.0.s8 %v280
        %v282 = vlaneseq
        %v283 = vshrl.u32 %v282, 7
        %v284 = vsub.s32 %v281, %v283
        %v285 = vrot.slane %v257, %v284
        %v287 = vunpack.c.l.s4 1966171168
        %v288 = vunpack.c.0.s8 %v287
        %v289 = vlaneseq
        %v290 = vshrl.u32 %v289, 7
        %v291 = vsub.s32 %v288, %v290
        %v292 = vrot.slane %v285, %v291
        %v294 = vunpack.c.l.s4 1966171168
        %v295 = vunpack.c.0.s8 %v294
        %v296 = vlaneseq
        %v297 = vshrl.u32 %v296, 7
        %v298 = vsub.s32 %v295, %v297
        %v299 = vrot.slane %v258, %v298
        %v301 = vunpack.c.l.s4 1966171168
        %v302 = vunpack.c.0.s8 %v301
        %v303 = vlaneseq
        %v304 = vshrl.u32 %v303, 7
        %v305 = vsub.s32 %v302, %v304
        %v306 = vrot.slane %v299, %v305
        %v308 = vunpack.c.l.s4 1966171168
        %v309 = vunpack.c.0.s8 %v308
        %v310 = vlaneseq
        %v311 = vshrl.u32 %v310, 7
        %v312 = vsub.s32 %v309, %v311
        %v313 = vrot.slane %v259, %v312
        %v315 = vunpack.c.l.s4 1966171168
        %v316 = vunpack.c.0.s8 %v315
        %v317 = vlaneseq
        %v318 = vshrl.u32 %v317, 7
        %v319 = vsub.s32 %v316, %v318
        %v320 = vrot.slane %v313, %v319
        %v322 = vunpack.c.l.s4 1966171168
        %v323 = vunpack.c.0.s8 %v322
        %v324 = vlaneseq
        %v325 = vshrl.u32 %v324, 7
        %v326 = vsub.s32 %v323, %v325
        %v327 = vrot.slane %v260, %v326
        %v329 = vunpack.c.l.s4 1966171168
        %v330 = vunpack.c.0.s8 %v329
        %v331 = vlaneseq
        %v332 = vshrl.u32 %v331, 7
        %v333 = vsub.s32 %v330, %v332
        %v334 = vrot.slane %v327, %v333
        %v336 = vunpack.c.l.s4 1966171168
        %v337 = vunpack.c.0.s8 %v336
        %v338 = vlaneseq
        %v339 = vshrl.u32 %v338, 7
        %v340 = vsub.s32 %v337, %v339
        %v341 = vrot.slane %v261, %v340
        %v343 = vunpack.c.l.s4 1966171168
        %v344 = vunpack.c.0.s8 %v343
        %v345 = vlaneseq
        %v346 = vshrl.u32 %v345, 7
        %v347 = vsub.s32 %v344, %v346
        %v348 = vrot.slane %v341, %v347
        %v350 = vunpack.c.l.s4 1966171168
        %v351 = vunpack.c.0.s8 %v350
        %v352 = vlaneseq
        %v353 = vshrl.u32 %v352, 7
        %v354 = vsub.s32 %v351, %v353
        %v355 = vrot.slane %v262, %v354
        %v357 = vunpack.c.l.s4 1966171168
        %v358 = vunpack.c.0.s8 %v357
        %v359 = vlaneseq
        %v360 = vshrl.u32 %v359, 7
        %v361 = vsub.s32 %v358, %v360
        %v362 = vrot.slane %v355, %v361
        %v364 = vunpack.c.l.s4 1966171168
        %v365 = vunpack.c.0.s8 %v364
        %v366 = vlaneseq
        %v367 = vshrl.u32 %v366, 7
        %v368 = vsub.s32 %v365, %v367
        %v369 = vrot.slane %v263, %v368
        %v371 = vunpack.c.l.s4 1966171168
        %v372 = vunpack.c.0.s8 %v371
        %v373 = vlaneseq
        %v374 = vshrl.u32 %v373, 7
        %v375 = vsub.s32 %v372, %v374
        %v376 = vrot.slane %v369, %v375
        %v378 = vunpack.c.l.s4 1966171168
        %v379 = vunpack.c.0.s8 %v378
        %v380 = vlaneseq
        %v381 = vshrl.u32 %v380, 7
        %v382 = vsub.s32 %v379, %v381
        %v383 = vrot.slane %v264, %v382
        %v385 = vunpack.c.l.s4 1966171168
        %v386 = vunpack.c.0.s8 %v385
        %v387 = vlaneseq
        %v388 = vshrl.u32 %v387, 7
        %v389 = vsub.s32 %v386, %v388
        %v390 = vrot.slane %v383, %v389
        %v391 = vunpack.c.l.b16 %v292
        %v392 = vunpack.c.l.b16 %v306
        %v393 = vunpack.c.l.b16 %v320
        %v394 = vunpack.c.l.b16 %v334
        %v395 = vunpack.c.l.b16 %v348
        %v396 = vunpack.c.l.b16 %v362
        %v397 = vunpack.c.l.b16 %v376
        %v398 = vunpack.c.l.b16 %v390
        %v399 = vrot.slane %v392, 7
        %vm400 = vcmask 1041409
        %v401 = vsel %vm400, %v399, %v391
        %v402 = vrot.slane %v393, 6
        %vm403 = vcmask 1042434
        %v404 = vsel %vm403, %v402, %v401
        %v405 = vrot.slane %v394, 5
        %vm406 = vcmask 1043459
        %v407 = vsel %vm406, %v405, %v404
        %v408 = vrot.slane %v395, 4
        %vm409 = vcmask 1044484
        %v410 = vsel %vm409, %v408, %v407
        %v411 = vrot.slane %v396, 3
        %vm412 = vcmask 1045509
        %v413 = vsel %vm412, %v411, %v410
        %v414 = vrot.slane %v397, 2
        %vm415 = vcmask 1046534
        %v416 = vsel %vm415, %v414, %v413
        %v417 = vrot.slane %v398, 1
        %vm418 = vcmask 1047559
        %v419 = vsel %vm418, %v417, %v416
        %v420 = vpack.c.b16 %v419, %v419
        %v425 = vunpack.c.l.b16 %v248
        %v426 = vunpack.c.l.b16 %v249
        %v427 = vunpack.c.l.b16 %v250
        %v428 = vunpack.c.l.b16 %v251
        %v429 = vpack.c.b16 %v426, %v425
        %v430 = vpack.c.b16 %v428, %v427
        %vm433 = vcmask 261120
        %v435 = vsel %vm433, %v420, 0
        %437 = vmatprep.subr.bf16.mxu0 0
        %438 = vmatpush1.bf16.msra.mxu0 0
        %439 = vmatprep.subr.bf16.mxu0 0
        %440 = vmatpush1.bf16.msra.mxu0 0
        %441 = vmatprep.subr.bf16.mxu0 0
        %442 = vmatpush1.bf16.msra.mxu0 0
        %443 = vmatprep.subr.bf16.mxu0 0
        %444 = vmatpush1.bf16.msra.mxu0 0
        %445 = vmatprep.subr.bf16.mxu0 0
        %446 = vmatpush1.bf16.msra.mxu0 0
        %447 = vmatprep.subr.bf16.mxu0 0
        %448 = vmatpush1.bf16.msra.mxu0 0
        %449 = vmatprep.subr.bf16.mxu0 0
        %450 = vmatpush1.bf16.msra.mxu0 %v430
        %451 = vmatprep.subr.bf16.mxu0 0
        %452 = vmatpush1.bf16.msra.mxu0 %v429
        %453 = vmatprep.subr.bf16.mxu0 0
        %454 = vmatpush2.bf16.msra.mxu0 0
        %455 = vmatprep.subr.bf16.mxu0 0
        %456 = vmatpush2.bf16.msra.mxu0 0
        %457 = vmatprep.subr.bf16.mxu0 0
        %458 = vmatpush2.bf16.msra.mxu0 0
        %459 = vmatprep.subr.bf16.mxu0 0
        %460 = vmatpush2.bf16.msra.mxu0 0
        %461 = vmatprep.subr.bf16.mxu0 0
        %462 = vmatpush2.bf16.msra.mxu0 0
        %463 = vmatprep.subr.bf16.mxu0 0
        %464 = vmatpush2.bf16.msra.mxu0 0
        %465 = vmatprep.subr.bf16.mxu0 0
        %466 = vmatpush2.bf16.msra.mxu0 0
        %467 = vmatprep.subr.bf16.mxu0 0
        %468 = vmatpush2.bf16.msra.mxu0 0
        %469 = vmatprep.mubr.bf16.mxu0 0
        %470 = vmatmul.mubr.bf16.gmra.mxu0 %v435
        %v471 = vpop.f32.mrf.mxu0
        %v472 = vadd.f32 %v269, %v471
        %v473 = vpop.f32.mrf.mxu0
        %v474 = vpop.f32.mrf.mxu0
        %v475 = vpop.f32.mrf.mxu0
        %476 = vdwg.mxu0
        %v477 = vpack.c.bf16 %v472, %v472
        %v480 = vunpack.c.l.s4 1966171168
        %v481 = vunpack.c.0.s8 %v480
        %v482 = vlaneseq
        %v483 = vshrl.u32 %v482, 7
        %v484 = vsub.s32 %v481, %v483
        %v485 = vrot.slane %v477, %v484
        %v486 = vcombine.high %v485, %v485
        %v488 = vunpack.c.l.s4 1966171168
        %v489 = vunpack.c.0.s8 %v488
        %v490 = vlaneseq
        %v491 = vshrl.u32 %v490, 7
        %v492 = vsub.s32 %v489, %v491
        %v493 = vrot.slane %v485, %v492
        %v495 = vunpack.c.l.s4 1966171168
        %v496 = vunpack.c.0.s8 %v495
        %v497 = vlaneseq
        %v498 = vshrl.u32 %v497, 7
        %v499 = vsub.s32 %v496, %v498
        %v500 = vrot.slane %v486, %v499
        %v501 = vcombine.high %v493, %v493
        %v502 = vcombine.high %v500, %v500
        %v503 = vunpack.i.l.s16 %v493
        %v504 = vunpack.i.h.s16 %v493
        %v505 = vunpack.i.l.s16 %v500
        %v506 = vunpack.i.h.s16 %v500
        %v507 = vunpack.i.l.s16 %v501
        %v508 = vunpack.i.h.s16 %v501
        %v509 = vunpack.i.l.s16 %v502
        %v510 = vunpack.i.h.s16 %v502
        %v511 = vpack.i.b16 %v503, %v503
        %v512 = vpack.i.b16 %v504, %v504
        %v513 = vpack.i.b16 %v505, %v505
        %v514 = vpack.i.b16 %v506, %v506
        %v515 = vpack.i.b16 %v507, %v507
        %v516 = vpack.i.b16 %v508, %v508
        %v517 = vpack.i.b16 %v509, %v509
        %v518 = vpack.i.b16 %v510, %v510
        %vm527 = vcmask 778240
        %vm528 = vsmask.f32 256
        %vm529 = vmand %vm527, %vm528
        %v530 = vld [vmem:[#allocation2] sm:$0x1]
        %v531 = vsel %vm529, %v511, %v530
        %532 = vst [vmem:[#allocation2] sm:$0x1] %v531
        %v533 = vld [vmem:[#allocation2 + $0x1] sm:$0x1]
        %v534 = vsel %vm529, %v512, %v533
        %535 = vst [vmem:[#allocation2 + $0x1] sm:$0x1] %v534
        %v536 = vld [vmem:[#allocation2 + $0x2] sm:$0x1]
        %v537 = vsel %vm529, %v513, %v536
        %538 = vst [vmem:[#allocation2 + $0x2] sm:$0x1] %v537
        %v539 = vld [vmem:[#allocation2 + $0x3] sm:$0x1]
        %v540 = vsel %vm529, %v514, %v539
        %541 = vst [vmem:[#allocation2 + $0x3] sm:$0x1] %v540
        %v542 = vld [vmem:[#allocation2 + $0x4] sm:$0x1]
        %v543 = vsel %vm529, %v515, %v542
        %544 = vst [vmem:[#allocation2 + $0x4] sm:$0x1] %v543
        %v545 = vld [vmem:[#allocation2 + $0x5] sm:$0x1]
        %v546 = vsel %vm529, %v516, %v545
        %547 = vst [vmem:[#allocation2 + $0x5] sm:$0x1] %v546
        %v548 = vld [vmem:[#allocation2 + $0x6] sm:$0x1]
        %v549 = vsel %vm529, %v517, %v548
        %550 = vst [vmem:[#allocation2 + $0x6] sm:$0x1] %v549
        %v551 = vld [vmem:[#allocation2 + $0x7] sm:$0x1]
        %v552 = vsel %vm529, %v518, %v551
        %553 = vst [vmem:[#allocation2 + $0x7] sm:$0x1] %v552
        %v554 = vld [vmem:[%s212] sm:$0x1]
        %v555 = vld [vmem:[%s212 + $0x1] sm:$0x1]
        %v556 = vld [vmem:[%s212 + $0x2] sm:$0x1]
        %v557 = vld [vmem:[%s212 + $0x3] sm:$0x1]
        %v558 = vld [vmem:[%s212 + $0x4] sm:$0x1]
        %v559 = vld [vmem:[%s212 + $0x5] sm:$0x1]
        %v560 = vld [vmem:[%s212 + $0x6] sm:$0x1]
        %v561 = vld [vmem:[%s212 + $0x7] sm:$0x1]
        %v571 = vunpack.c.l.s4 1966171168
        %v572 = vunpack.c.0.s8 %v571
        %v573 = vlaneseq
        %v574 = vshrl.u32 %v573, 7
        %v575 = vsub.s32 %v572, %v574
        %v576 = vrot.slane %v554, %v575
        %v578 = vunpack.c.l.s4 1966171168
        %v579 = vunpack.c.0.s8 %v578
        %v580 = vlaneseq
        %v581 = vshrl.u32 %v580, 7
        %v582 = vsub.s32 %v579, %v581
        %v583 = vrot.slane %v576, %v582
        %v585 = vunpack.c.l.s4 1966171168
        %v586 = vunpack.c.0.s8 %v585
        %v587 = vlaneseq
        %v588 = vshrl.u32 %v587, 7
        %v589 = vsub.s32 %v586, %v588
        %v590 = vrot.slane %v555, %v589
        %v592 = vunpack.c.l.s4 1966171168
        %v593 = vunpack.c.0.s8 %v592
        %v594 = vlaneseq
        %v595 = vshrl.u32 %v594, 7
        %v596 = vsub.s32 %v593, %v595
        %v597 = vrot.slane %v590, %v596
        %v599 = vunpack.c.l.s4 1966171168
        %v600 = vunpack.c.0.s8 %v599
        %v601 = vlaneseq
        %v602 = vshrl.u32 %v601, 7
        %v603 = vsub.s32 %v600, %v602
        %v604 = vrot.slane %v556, %v603
        %v606 = vunpack.c.l.s4 1966171168
        %v607 = vunpack.c.0.s8 %v606
        %v608 = vlaneseq
        %v609 = vshrl.u32 %v608, 7
        %v610 = vsub.s32 %v607, %v609
        %v611 = vrot.slane %v604, %v610
        %v613 = vunpack.c.l.s4 1966171168
        %v614 = vunpack.c.0.s8 %v613
        %v615 = vlaneseq
        %v616 = vshrl.u32 %v615, 7
        %v617 = vsub.s32 %v614, %v616
        %v618 = vrot.slane %v557, %v617
        %v620 = vunpack.c.l.s4 1966171168
        %v621 = vunpack.c.0.s8 %v620
        %v622 = vlaneseq
        %v623 = vshrl.u32 %v622, 7
        %v624 = vsub.s32 %v621, %v623
        %v625 = vrot.slane %v618, %v624
        %v627 = vunpack.c.l.s4 1966171168
        %v628 = vunpack.c.0.s8 %v627
        %v629 = vlaneseq
        %v630 = vshrl.u32 %v629, 7
        %v631 = vsub.s32 %v628, %v630
        %v632 = vrot.slane %v558, %v631
        %v634 = vunpack.c.l.s4 1966171168
        %v635 = vunpack.c.0.s8 %v634
        %v636 = vlaneseq
        %v637 = vshrl.u32 %v636, 7
        %v638 = vsub.s32 %v635, %v637
        %v639 = vrot.slane %v632, %v638
        %v641 = vunpack.c.l.s4 1966171168
        %v642 = vunpack.c.0.s8 %v641
        %v643 = vlaneseq
        %v644 = vshrl.u32 %v643, 7
        %v645 = vsub.s32 %v642, %v644
        %v646 = vrot.slane %v559, %v645
        %v648 = vunpack.c.l.s4 1966171168
        %v649 = vunpack.c.0.s8 %v648
        %v650 = vlaneseq
        %v651 = vshrl.u32 %v650, 7
        %v652 = vsub.s32 %v649, %v651
        %v653 = vrot.slane %v646, %v652
        %v655 = vunpack.c.l.s4 1966171168
        %v656 = vunpack.c.0.s8 %v655
        %v657 = vlaneseq
        %v658 = vshrl.u32 %v657, 7
        %v659 = vsub.s32 %v656, %v658
        %v660 = vrot.slane %v560, %v659
        %v662 = vunpack.c.l.s4 1966171168
        %v663 = vunpack.c.0.s8 %v662
        %v664 = vlaneseq
        %v665 = vshrl.u32 %v664, 7
        %v666 = vsub.s32 %v663, %v665
        %v667 = vrot.slane %v660, %v666
        %v669 = vunpack.c.l.s4 1966171168
        %v670 = vunpack.c.0.s8 %v669
        %v671 = vlaneseq
        %v672 = vshrl.u32 %v671, 7
        %v673 = vsub.s32 %v670, %v672
        %v674 = vrot.slane %v561, %v673
        %v676 = vunpack.c.l.s4 1966171168
        %v677 = vunpack.c.0.s8 %v676
        %v678 = vlaneseq
        %v679 = vshrl.u32 %v678, 7
        %v680 = vsub.s32 %v677, %v679
        %v681 = vrot.slane %v674, %v680
        %v682 = vunpack.c.l.b16 %v583
        %v683 = vunpack.c.l.b16 %v597
        %v684 = vunpack.c.l.b16 %v611
        %v685 = vunpack.c.l.b16 %v625
        %v686 = vunpack.c.l.b16 %v639
        %v687 = vunpack.c.l.b16 %v653
        %v688 = vunpack.c.l.b16 %v667
        %v689 = vunpack.c.l.b16 %v681
        %v690 = vrot.slane %v682, 1
        %v691 = vsel %vm400, %v683, %v690
        %v692 = vrot.slane %v684, 7
        %v693 = vsel %vm403, %v692, %v691
        %v694 = vrot.slane %v685, 6
        %v695 = vsel %vm406, %v694, %v693
        %v696 = vrot.slane %v686, 5
        %v697 = vsel %vm409, %v696, %v695
        %v698 = vrot.slane %v687, 4
        %v699 = vsel %vm412, %v698, %v697
        %v700 = vrot.slane %v688, 3
        %v701 = vsel %vm415, %v700, %v699
        %v702 = vrot.slane %v689, 2
        %v703 = vsel %vm418, %v702, %v701
        %v704 = vpack.c.b16 %v703, %v703
        %v706 = vsel %vm433, %v704, 0
        %708 = vmatprep.subr.bf16.mxu0 0
        %709 = vmatpush1.bf16.msra.mxu0 0
        %710 = vmatprep.subr.bf16.mxu0 0
        %711 = vmatpush1.bf16.msra.mxu0 0
        %712 = vmatprep.subr.bf16.mxu0 0
        %713 = vmatpush1.bf16.msra.mxu0 0
        %714 = vmatprep.subr.bf16.mxu0 0
        %715 = vmatpush1.bf16.msra.mxu0 0
        %716 = vmatprep.subr.bf16.mxu0 0
        %717 = vmatpush1.bf16.msra.mxu0 0
        %718 = vmatprep.subr.bf16.mxu0 0
        %719 = vmatpush1.bf16.msra.mxu0 0
        %720 = vmatprep.subr.bf16.mxu0 0
        %721 = vmatpush1.bf16.msra.mxu0 %v430
        %722 = vmatprep.subr.bf16.mxu0 0
        %723 = vmatpush1.bf16.msra.mxu0 %v429
        %724 = vmatprep.subr.bf16.mxu0 0
        %725 = vmatpush2.bf16.msra.mxu0 0
        %726 = vmatprep.subr.bf16.mxu0 0
        %727 = vmatpush2.bf16.msra.mxu0 0
        %728 = vmatprep.subr.bf16.mxu0 0
        %729 = vmatpush2.bf16.msra.mxu0 0
        %730 = vmatprep.subr.bf16.mxu0 0
        %731 = vmatpush2.bf16.msra.mxu0 0
        %732 = vmatprep.subr.bf16.mxu0 0
        %733 = vmatpush2.bf16.msra.mxu0 0
        %734 = vmatprep.subr.bf16.mxu0 0
        %735 = vmatpush2.bf16.msra.mxu0 0
        %736 = vmatprep.subr.bf16.mxu0 0
        %737 = vmatpush2.bf16.msra.mxu0 0
        %738 = vmatprep.subr.bf16.mxu0 0
        %739 = vmatpush2.bf16.msra.mxu0 0
        %740 = vmatprep.mubr.bf16.mxu0 0
        %741 = vmatmul.mubr.bf16.gmra.mxu0 %v706
        %v742 = vpop.f32.mrf.mxu0
        %v743 = vadd.f32 %v269, %v742
        %v744 = vpop.f32.mrf.mxu0
        %v745 = vpop.f32.mrf.mxu0
        %v746 = vpop.f32.mrf.mxu0
        %747 = vdwg.mxu0
        %v748 = vpack.c.bf16 %v743, %v743
        %v751 = vunpack.c.l.s4 1966171168
        %v752 = vunpack.c.0.s8 %v751
        %v753 = vlaneseq
        %v754 = vshrl.u32 %v753, 7
        %v755 = vsub.s32 %v752, %v754
        %v756 = vrot.slane %v748, %v755
        %v757 = vcombine.high %v756, %v756
        %v759 = vunpack.c.l.s4 1966171168
        %v760 = vunpack.c.0.s8 %v759
        %v761 = vlaneseq
        %v762 = vshrl.u32 %v761, 7
        %v763 = vsub.s32 %v760, %v762
        %v764 = vrot.slane %v756, %v763
        %v766 = vunpack.c.l.s4 1966171168
        %v767 = vunpack.c.0.s8 %v766
        %v768 = vlaneseq
        %v769 = vshrl.u32 %v768, 7
        %v770 = vsub.s32 %v767, %v769
        %v771 = vrot.slane %v757, %v770
        %v772 = vcombine.high %v764, %v764
        %v773 = vcombine.high %v771, %v771
        %v774 = vunpack.i.l.s16 %v764
        %v775 = vunpack.i.h.s16 %v764
        %v776 = vunpack.i.l.s16 %v771
        %v777 = vunpack.i.h.s16 %v771
        %v778 = vunpack.i.l.s16 %v772
        %v779 = vunpack.i.h.s16 %v772
        %v780 = vunpack.i.l.s16 %v773
        %v781 = vunpack.i.h.s16 %v773
        %v782 = vpack.i.b16 %v774, %v774
        %v783 = vpack.i.b16 %v775, %v775
        %v784 = vpack.i.b16 %v776, %v776
        %v785 = vpack.i.b16 %v777, %v777
        %v786 = vpack.i.b16 %v778, %v778
        %v787 = vpack.i.b16 %v779, %v779
        %v788 = vpack.i.b16 %v780, %v780
        %v789 = vpack.i.b16 %v781, %v781
        %vm798 = vsmask.f32 7938
        %vm799 = vmand %vm527, %vm798
        %v800 = vld [vmem:[#allocation2] sm:$0x1]
        %v801 = vsel %vm799, %v782, %v800
        %802 = vst [vmem:[#allocation2] sm:$0x1] %v801
        %v803 = vld [vmem:[#allocation2 + $0x1] sm:$0x1]
        %v804 = vsel %vm799, %v783, %v803
        %805 = vst [vmem:[#allocation2 + $0x1] sm:$0x1] %v804
        %v806 = vld [vmem:[#allocation2 + $0x2] sm:$0x1]
        %v807 = vsel %vm799, %v784, %v806
        %808 = vst [vmem:[#allocation2 + $0x2] sm:$0x1] %v807
        %v809 = vld [vmem:[#allocation2 + $0x3] sm:$0x1]
        %v810 = vsel %vm799, %v785, %v809
        %811 = vst [vmem:[#allocation2 + $0x3] sm:$0x1] %v810
        %v812 = vld [vmem:[#allocation2 + $0x4] sm:$0x1]
        %v813 = vsel %vm799, %v786, %v812
        %814 = vst [vmem:[#allocation2 + $0x4] sm:$0x1] %v813
        %v815 = vld [vmem:[#allocation2 + $0x5] sm:$0x1]
        %v816 = vsel %vm799, %v787, %v815
        %817 = vst [vmem:[#allocation2 + $0x5] sm:$0x1] %v816
        %v818 = vld [vmem:[#allocation2 + $0x6] sm:$0x1]
        %v819 = vsel %vm799, %v788, %v818
        %820 = vst [vmem:[#allocation2 + $0x6] sm:$0x1] %v819
        %v821 = vld [vmem:[#allocation2 + $0x7] sm:$0x1]
        %v822 = vsel %vm799, %v789, %v821
        %823 = vst [vmem:[#allocation2 + $0x7] sm:$0x1] %v822
        %v824 = vld [vmem:[#allocation2] sm:$0x1]
        %v825 = vld [vmem:[#allocation2 + $0x1] sm:$0x1]
        %v826 = vld [vmem:[#allocation2 + $0x2] sm:$0x1]
        %v827 = vld [vmem:[#allocation2 + $0x3] sm:$0x1]
        %v828 = vld [vmem:[#allocation2 + $0x4] sm:$0x1]
        %v829 = vld [vmem:[#allocation2 + $0x5] sm:$0x1]
        %v830 = vld [vmem:[#allocation2 + $0x6] sm:$0x1]
        %v831 = vld [vmem:[#allocation2 + $0x7] sm:$0x1]
        %v834 = vunpack.c.l.s4 1966171168
        %v835 = vunpack.c.0.s8 %v834
        %v836 = vlaneseq
        %v837 = vshrl.u32 %v836, 7
        %v838 = vsub.s32 %v835, %v837
        %v839 = vrot.slane %v824, %v838
        %v841 = vunpack.c.l.s4 1966171168
        %v842 = vunpack.c.0.s8 %v841
        %v843 = vlaneseq
        %v844 = vshrl.u32 %v843, 7
        %v845 = vsub.s32 %v842, %v844
        %v846 = vrot.slane %v839, %v845
        %847 = vrot.lane.b32.xlu0 %v846, 96
        %v848 = vpop.permute.xlu0 %847
        %vm849 = vcmask 31744
        %v851 = vsel %vm849, %v824, 0
        %v854 = vsel %vm849, %v848, 0
        %856 = vmatprep.subr.bf16.mxu0 0
        %857 = vmatpush1.bf16.xpose.msra.mxu0 0
        %858 = vmatprep.subr.bf16.mxu0 0
        %859 = vmatpush1.bf16.xpose.msra.mxu0 0
        %860 = vmatprep.subr.bf16.mxu0 0
        %861 = vmatpush1.bf16.xpose.msra.mxu0 0
        %862 = vmatprep.subr.bf16.mxu0 0
        %863 = vmatpush1.bf16.xpose.msra.mxu0 0
        %864 = vmatprep.subr.bf16.mxu0 0
        %865 = vmatpush1.bf16.xpose.msra.mxu0 0
        %866 = vmatprep.subr.bf16.mxu0 0
        %867 = vmatpush1.bf16.xpose.msra.mxu0 0
        %868 = vmatprep.subr.bf16.mxu0 0
        %869 = vmatpush1.bf16.xpose.msra.mxu0 0
        %870 = vmatprep.subr.bf16.mxu0 0
        %871 = vmatpush1.bf16.xpose.msra.mxu0 %v854
        %872 = vmatprep.subr.bf16.mxu0 0
        %873 = vmatpush2.bf16.xpose.msra.mxu0 0
        %874 = vmatprep.subr.bf16.mxu0 0
        %875 = vmatpush2.bf16.xpose.msra.mxu0 0
        %876 = vmatprep.subr.bf16.mxu0 0
        %877 = vmatpush2.bf16.xpose.msra.mxu0 0
        %878 = vmatprep.subr.bf16.mxu0 0
        %879 = vmatpush2.bf16.xpose.msra.mxu0 0
        %880 = vmatprep.subr.bf16.mxu0 0
        %881 = vmatpush2.bf16.xpose.msra.mxu0 0
        %882 = vmatprep.subr.bf16.mxu0 0
        %883 = vmatpush2.bf16.xpose.msra.mxu0 0
        %884 = vmatprep.subr.bf16.mxu0 0
        %885 = vmatpush2.bf16.xpose.msra.mxu0 0
        %886 = vmatprep.subr.bf16.mxu0 0
        %887 = vmatpush2.bf16.xpose.msra.mxu0 0
        %888 = vmatprep.mubr.bf16.mxu0 0
        %889 = vmatmul.mubr.bf16.gmra.mxu0 %v851
        %v890 = vpop.f32.mrf.mxu0
        %v891 = vadd.f32 0.0, %v890
        %v892 = vpop.f32.mrf.mxu0
        %v893 = vpop.f32.mrf.mxu0
        %v894 = vpop.f32.mrf.mxu0
        %895 = vdwg.mxu0
        %v898 = vunpack.c.l.s4 1966171168
        %v899 = vunpack.c.0.s8 %v898
        %v900 = vlaneseq
        %v901 = vshrl.u32 %v900, 7
        %v902 = vsub.s32 %v899, %v901
        %v903 = vrot.slane %v825, %v902
        %v905 = vunpack.c.l.s4 1966171168
        %v906 = vunpack.c.0.s8 %v905
        %v907 = vlaneseq
        %v908 = vshrl.u32 %v907, 7
        %v909 = vsub.s32 %v906, %v908
        %v910 = vrot.slane %v903, %v909
        %911 = vrot.lane.b32.xlu0 %v910, 96
        %v912 = vpop.permute.xlu0 %911
        %v914 = vsel %vm849, %v825, 0
        %v917 = vsel %vm849, %v912, 0
        %919 = vmatprep.subr.bf16.mxu0 0
        %920 = vmatpush1.bf16.xpose.msra.mxu0 0
        %921 = vmatprep.subr.bf16.mxu0 0
        %922 = vmatpush1.bf16.xpose.msra.mxu0 0
        %923 = vmatprep.subr.bf16.mxu0 0
        %924 = vmatpush1.bf16.xpose.msra.mxu0 0
        %925 = vmatprep.subr.bf16.mxu0 0
        %926 = vmatpush1.bf16.xpose.msra.mxu0 0
        %927 = vmatprep.subr.bf16.mxu0 0
        %928 = vmatpush1.bf16.xpose.msra.mxu0 0
        %929 = vmatprep.subr.bf16.mxu0 0
        %930 = vmatpush1.bf16.xpose.msra.mxu0 0
        %931 = vmatprep.subr.bf16.mxu0 0
        %932 = vmatpush1.bf16.xpose.msra.mxu0 0
        %933 = vmatprep.subr.bf16.mxu0 0
        %934 = vmatpush1.bf16.xpose.msra.mxu0 %v917
        %935 = vmatprep.subr.bf16.mxu0 0
        %936 = vmatpush2.bf16.xpose.msra.mxu0 0
        %937 = vmatprep.subr.bf16.mxu0 0
        %938 = vmatpush2.bf16.xpose.msra.mxu0 0
        %939 = vmatprep.subr.bf16.mxu0 0
        %940 = vmatpush2.bf16.xpose.msra.mxu0 0
        %941 = vmatprep.subr.bf16.mxu0 0
        %942 = vmatpush2.bf16.xpose.msra.mxu0 0
        %943 = vmatprep.subr.bf16.mxu0 0
        %944 = vmatpush2.bf16.xpose.msra.mxu0 0
        %945 = vmatprep.subr.bf16.mxu0 0
        %946 = vmatpush2.bf16.xpose.msra.mxu0 0
        %947 = vmatprep.subr.bf16.mxu0 0
        %948 = vmatpush2.bf16.xpose.msra.mxu0 0
        %949 = vmatprep.subr.bf16.mxu0 0
        %950 = vmatpush2.bf16.xpose.msra.mxu0 0
        %951 = vmatprep.mubr.bf16.mxu0 0
        %952 = vmatmul.mubr.bf16.gmra.mxu0 %v914
        %v953 = vpop.f32.mrf.mxu0
        %v954 = vadd.f32 0.0, %v953
        %v955 = vpop.f32.mrf.mxu0
        %v956 = vpop.f32.mrf.mxu0
        %v957 = vpop.f32.mrf.mxu0
        %958 = vdwg.mxu0
        %v961 = vunpack.c.l.s4 1966171168
        %v962 = vunpack.c.0.s8 %v961
        %v963 = vlaneseq
        %v964 = vshrl.u32 %v963, 7
        %v965 = vsub.s32 %v962, %v964
        %v966 = vrot.slane %v826, %v965
        %v968 = vunpack.c.l.s4 1966171168
        %v969 = vunpack.c.0.s8 %v968
        %v970 = vlaneseq
        %v971 = vshrl.u32 %v970, 7
        %v972 = vsub.s32 %v969, %v971
        %v973 = vrot.slane %v966, %v972
        %974 = vrot.lane.b32.xlu0 %v973, 96
        %v975 = vpop.permute.xlu0 %974
        %v977 = vsel %vm849, %v826, 0
        %v980 = vsel %vm849, %v975, 0
        %982 = vmatprep.subr.bf16.mxu0 0
        %983 = vmatpush1.bf16.xpose.msra.mxu0 0
        %984 = vmatprep.subr.bf16.mxu0 0
        %985 = vmatpush1.bf16.xpose.msra.mxu0 0
        %986 = vmatprep.subr.bf16.mxu0 0
        %987 = vmatpush1.bf16.xpose.msra.mxu0 0
        %988 = vmatprep.subr.bf16.mxu0 0
        %989 = vmatpush1.bf16.xpose.msra.mxu0 0
        %990 = vmatprep.subr.bf16.mxu0 0
        %991 = vmatpush1.bf16.xpose.msra.mxu0 0
        %992 = vmatprep.subr.bf16.mxu0 0
        %993 = vmatpush1.bf16.xpose.msra.mxu0 0
        %994 = vmatprep.subr.bf16.mxu0 0
        %995 = vmatpush1.bf16.xpose.msra.mxu0 0
        %996 = vmatprep.subr.bf16.mxu0 0
        %997 = vmatpush1.bf16.xpose.msra.mxu0 %v980
        %998 = vmatprep.subr.bf16.mxu0 0
        %999 = vmatpush2.bf16.xpose.msra.mxu0 0
        %1000 = vmatprep.subr.bf16.mxu0 0
        %1001 = vmatpush2.bf16.xpose.msra.mxu0 0
        %1002 = vmatprep.subr.bf16.mxu0 0
        %1003 = vmatpush2.bf16.xpose.msra.mxu0 0
        %1004 = vmatprep.subr.bf16.mxu0 0
        %1005 = vmatpush2.bf16.xpose.msra.mxu0 0
        %1006 = vmatprep.subr.bf16.mxu0 0
        %1007 = vmatpush2.bf16.xpose.msra.mxu0 0
        %1008 = vmatprep.subr.bf16.mxu0 0
        %1009 = vmatpush2.bf16.xpose.msra.mxu0 0
        %1010 = vmatprep.subr.bf16.mxu0 0
        %1011 = vmatpush2.bf16.xpose.msra.mxu0 0
        %1012 = vmatprep.subr.bf16.mxu0 0
        %1013 = vmatpush2.bf16.xpose.msra.mxu0 0
        %1014 = vmatprep.mubr.bf16.mxu0 0
        %1015 = vmatmul.mubr.bf16.gmra.mxu0 %v977
        %v1016 = vpop.f32.mrf.mxu0
        %v1017 = vadd.f32 0.0, %v1016
        %v1018 = vpop.f32.mrf.mxu0
        %v1019 = vpop.f32.mrf.mxu0
        %v1020 = vpop.f32.mrf.mxu0
        %1021 = vdwg.mxu0
        %v1024 = vunpack.c.l.s4 1966171168
        %v1025 = vunpack.c.0.s8 %v1024
        %v1026 = vlaneseq
        %v1027 = vshrl.u32 %v1026, 7
        %v1028 = vsub.s32 %v1025, %v1027
        %v1029 = vrot.slane %v827, %v1028
        %v1031 = vunpack.c.l.s4 1966171168
        %v1032 = vunpack.c.0.s8 %v1031
        %v1033 = vlaneseq
        %v1034 = vshrl.u32 %v1033, 7
        %v1035 = vsub.s32 %v1032, %v1034
        %v1036 = vrot.slane %v1029, %v1035
        %1037 = vrot.lane.b32.xlu0 %v1036, 96
        %v1038 = vpop.permute.xlu0 %1037
        %v1040 = vsel %vm849, %v827, 0
        %v1043 = vsel %vm849, %v1038, 0
        %1045 = vmatprep.subr.bf16.mxu0 0
        %1046 = vmatpush1.bf16.xpose.msra.mxu0 0
        %1047 = vmatprep.subr.bf16.mxu0 0
        %1048 = vmatpush1.bf16.xpose.msra.mxu0 0
        %1049 = vmatprep.subr.bf16.mxu0 0
        %1050 = vmatpush1.bf16.xpose.msra.mxu0 0
        %1051 = vmatprep.subr.bf16.mxu0 0
        %1052 = vmatpush1.bf16.xpose.msra.mxu0 0
        %1053 = vmatprep.subr.bf16.mxu0 0
        %1054 = vmatpush1.bf16.xpose.msra.mxu0 0
        %1055 = vmatprep.subr.bf16.mxu0 0
        %1056 = vmatpush1.bf16.xpose.msra.mxu0 0
        %1057 = vmatprep.subr.bf16.mxu0 0
        %1058 = vmatpush1.bf16.xpose.msra.mxu0 0
        %1059 = vmatprep.subr.bf16.mxu0 0
        %1060 = vmatpush1.bf16.xpose.msra.mxu0 %v1043
        %1061 = vmatprep.subr.bf16.mxu0 0
        %1062 = vmatpush2.bf16.xpose.msra.mxu0 0
        %1063 = vmatprep.subr.bf16.mxu0 0
        %1064 = vmatpush2.bf16.xpose.msra.mxu0 0
        %1065 = vmatprep.subr.bf16.mxu0 0
        %1066 = vmatpush2.bf16.xpose.msra.mxu0 0
        %1067 = vmatprep.subr.bf16.mxu0 0
        %1068 = vmatpush2.bf16.xpose.msra.mxu0 0
        %1069 = vmatprep.subr.bf16.mxu0 0
        %1070 = vmatpush2.bf16.xpose.msra.mxu0 0
        %1071 = vmatprep.subr.bf16.mxu0 0
        %1072 = vmatpush2.bf16.xpose.msra.mxu0 0
        %1073 = vmatprep.subr.bf16.mxu0 0
        %1074 = vmatpush2.bf16.xpose.msra.mxu0 0
        %1075 = vmatprep.subr.bf16.mxu0 0
        %1076 = vmatpush2.bf16.xpose.msra.mxu0 0
        %1077 = vmatprep.mubr.bf16.mxu0 0
        %1078 = vmatmul.mubr.bf16.gmra.mxu0 %v1040
        %v1079 = vpop.f32.mrf.mxu0
        %v1080 = vadd.f32 0.0, %v1079
        %v1081 = vpop.f32.mrf.mxu0
        %v1082 = vpop.f32.mrf.mxu0
        %v1083 = vpop.f32.mrf.mxu0
        %1084 = vdwg.mxu0
        %v1087 = vunpack.c.l.s4 1966171168
        %v1088 = vunpack.c.0.s8 %v1087
        %v1089 = vlaneseq
        %v1090 = vshrl.u32 %v1089, 7
        %v1091 = vsub.s32 %v1088, %v1090
        %v1092 = vrot.slane %v828, %v1091
        %v1094 = vunpack.c.l.s4 1966171168
        %v1095 = vunpack.c.0.s8 %v1094
        %v1096 = vlaneseq
        %v1097 = vshrl.u32 %v1096, 7
        %v1098 = vsub.s32 %v1095, %v1097
        %v1099 = vrot.slane %v1092, %v1098
        %1100 = vrot.lane.b32.xlu0 %v1099, 96
        %v1101 = vpop.permute.xlu0 %1100
        %v1103 = vsel %vm849, %v828, 0
        %v1106 = vsel %vm849, %v1101, 0
        %1108 = vmatprep.subr.bf16.mxu0 0
        %1109 = vmatpush1.bf16.xpose.msra.mxu0 0
        %1110 = vmatprep.subr.bf16.mxu0 0
        %1111 = vmatpush1.bf16.xpose.msra.mxu0 0
        %1112 = vmatprep.subr.bf16.mxu0 0
        %1113 = vmatpush1.bf16.xpose.msra.mxu0 0
        %1114 = vmatprep.subr.bf16.mxu0 0
        %1115 = vmatpush1.bf16.xpose.msra.mxu0 0
        %1116 = vmatprep.subr.bf16.mxu0 0
        %1117 = vmatpush1.bf16.xpose.msra.mxu0 0
        %1118 = vmatprep.subr.bf16.mxu0 0
        %1119 = vmatpush1.bf16.xpose.msra.mxu0 0
        %1120 = vmatprep.subr.bf16.mxu0 0
        %1121 = vmatpush1.bf16.xpose.msra.mxu0 0
        %1122 = vmatprep.subr.bf16.mxu0 0
        %1123 = vmatpush1.bf16.xpose.msra.mxu0 %v1106
        %1124 = vmatprep.subr.bf16.mxu0 0
        %1125 = vmatpush2.bf16.xpose.msra.mxu0 0
        %1126 = vmatprep.subr.bf16.mxu0 0
        %1127 = vmatpush2.bf16.xpose.msra.mxu0 0
        %1128 = vmatprep.subr.bf16.mxu0 0
        %1129 = vmatpush2.bf16.xpose.msra.mxu0 0
        %1130 = vmatprep.subr.bf16.mxu0 0
        %1131 = vmatpush2.bf16.xpose.msra.mxu0 0
        %1132 = vmatprep.subr.bf16.mxu0 0
        %1133 = vmatpush2.bf16.xpose.msra.mxu0 0
        %1134 = vmatprep.subr.bf16.mxu0 0
        %1135 = vmatpush2.bf16.xpose.msra.mxu0 0
        %1136 = vmatprep.subr.bf16.mxu0 0
        %1137 = vmatpush2.bf16.xpose.msra.mxu0 0
        %1138 = vmatprep.subr.bf16.mxu0 0
        %1139 = vmatpush2.bf16.xpose.msra.mxu0 0
        %1140 = vmatprep.mubr.bf16.mxu0 0
        %1141 = vmatmul.mubr.bf16.gmra.mxu0 %v1103
        %v1142 = vpop.f32.mrf.mxu0
        %v1143 = vadd.f32 0.0, %v1142
        %v1144 = vpop.f32.mrf.mxu0
        %v1145 = vpop.f32.mrf.mxu0
        %v1146 = vpop.f32.mrf.mxu0
        %1147 = vdwg.mxu0
        %v1150 = vunpack.c.l.s4 1966171168
        %v1151 = vunpack.c.0.s8 %v1150
        %v1152 = vlaneseq
        %v1153 = vshrl.u32 %v1152, 7
        %v1154 = vsub.s32 %v1151, %v1153
        %v1155 = vrot.slane %v829, %v1154
        %v1157 = vunpack.c.l.s4 1966171168
        %v1158 = vunpack.c.0.s8 %v1157
        %v1159 = vlaneseq
        %v1160 = vshrl.u32 %v1159, 7
        %v1161 = vsub.s32 %v1158, %v1160
        %v1162 = vrot.slane %v1155, %v1161
        %1163 = vrot.lane.b32.xlu0 %v1162, 96
        %v1164 = vpop.permute.xlu0 %1163
        %v1166 = vsel %vm849, %v829, 0
        %v1169 = vsel %vm849, %v1164, 0
        %1171 = vmatprep.subr.bf16.mxu0 0
        %1172 = vmatpush1.bf16.xpose.msra.mxu0 0
        %1173 = vmatprep.subr.bf16.mxu0 0
        %1174 = vmatpush1.bf16.xpose.msra.mxu0 0
        %1175 = vmatprep.subr.bf16.mxu0 0
        %1176 = vmatpush1.bf16.xpose.msra.mxu0 0
        %1177 = vmatprep.subr.bf16.mxu0 0
        %1178 = vmatpush1.bf16.xpose.msra.mxu0 0
        %1179 = vmatprep.subr.bf16.mxu0 0
        %1180 = vmatpush1.bf16.xpose.msra.mxu0 0
        %1181 = vmatprep.subr.bf16.mxu0 0
        %1182 = vmatpush1.bf16.xpose.msra.mxu0 0
        %1183 = vmatprep.subr.bf16.mxu0 0
        %1184 = vmatpush1.bf16.xpose.msra.mxu0 0
        %1185 = vmatprep.subr.bf16.mxu0 0
        %1186 = vmatpush1.bf16.xpose.msra.mxu0 %v1169
        %1187 = vmatprep.subr.bf16.mxu0 0
        %1188 = vmatpush2.bf16.xpose.msra.mxu0 0
        %1189 = vmatprep.subr.bf16.mxu0 0
        %1190 = vmatpush2.bf16.xpose.msra.mxu0 0
        %1191 = vmatprep.subr.bf16.mxu0 0
        %1192 = vmatpush2.bf16.xpose.msra.mxu0 0
        %1193 = vmatprep.subr.bf16.mxu0 0
        %1194 = vmatpush2.bf16.xpose.msra.mxu0 0
        %1195 = vmatprep.subr.bf16.mxu0 0
        %1196 = vmatpush2.bf16.xpose.msra.mxu0 0
        %1197 = vmatprep.subr.bf16.mxu0 0
        %1198 = vmatpush2.bf16.xpose.msra.mxu0 0
        %1199 = vmatprep.subr.bf16.mxu0 0
        %1200 = vmatpush2.bf16.xpose.msra.mxu0 0
        %1201 = vmatprep.subr.bf16.mxu0 0
        %1202 = vmatpush2.bf16.xpose.msra.mxu0 0
        %1203 = vmatprep.mubr.bf16.mxu0 0
        %1204 = vmatmul.mubr.bf16.gmra.mxu0 %v1166
        %v1205 = vpop.f32.mrf.mxu0
        %v1206 = vadd.f32 0.0, %v1205
        %v1207 = vpop.f32.mrf.mxu0
        %v1208 = vpop.f32.mrf.mxu0
        %v1209 = vpop.f32.mrf.mxu0
        %1210 = vdwg.mxu0
        %v1213 = vunpack.c.l.s4 1966171168
        %v1214 = vunpack.c.0.s8 %v1213
        %v1215 = vlaneseq
        %v1216 = vshrl.u32 %v1215, 7
        %v1217 = vsub.s32 %v1214, %v1216
        %v1218 = vrot.slane %v830, %v1217
        %v1220 = vunpack.c.l.s4 1966171168
        %v1221 = vunpack.c.0.s8 %v1220
        %v1222 = vlaneseq
        %v1223 = vshrl.u32 %v1222, 7
        %v1224 = vsub.s32 %v1221, %v1223
        %v1225 = vrot.slane %v1218, %v1224
        %1226 = vrot.lane.b32.xlu0 %v1225, 96
        %v1227 = vpop.permute.xlu0 %1226
        %v1229 = vsel %vm849, %v830, 0
        %v1232 = vsel %vm849, %v1227, 0
        %1234 = vmatprep.subr.bf16.mxu0 0
        %1235 = vmatpush1.bf16.xpose.msra.mxu0 0
        %1236 = vmatprep.subr.bf16.mxu0 0
        %1237 = vmatpush1.bf16.xpose.msra.mxu0 0
        %1238 = vmatprep.subr.bf16.mxu0 0
        %1239 = vmatpush1.bf16.xpose.msra.mxu0 0
        %1240 = vmatprep.subr.bf16.mxu0 0
        %1241 = vmatpush1.bf16.xpose.msra.mxu0 0
        %1242 = vmatprep.subr.bf16.mxu0 0
        %1243 = vmatpush1.bf16.xpose.msra.mxu0 0
        %1244 = vmatprep.subr.bf16.mxu0 0
        %1245 = vmatpush1.bf16.xpose.msra.mxu0 0
        %1246 = vmatprep.subr.bf16.mxu0 0
        %1247 = vmatpush1.bf16.xpose.msra.mxu0 0
        %1248 = vmatprep.subr.bf16.mxu0 0
        %1249 = vmatpush1.bf16.xpose.msra.mxu0 %v1232
        %1250 = vmatprep.subr.bf16.mxu0 0
        %1251 = vmatpush2.bf16.xpose.msra.mxu0 0
        %1252 = vmatprep.subr.bf16.mxu0 0
        %1253 = vmatpush2.bf16.xpose.msra.mxu0 0
        %1254 = vmatprep.subr.bf16.mxu0 0
        %1255 = vmatpush2.bf16.xpose.msra.mxu0 0
        %1256 = vmatprep.subr.bf16.mxu0 0
        %1257 = vmatpush2.bf16.xpose.msra.mxu0 0
        %1258 = vmatprep.subr.bf16.mxu0 0
        %1259 = vmatpush2.bf16.xpose.msra.mxu0 0
        %1260 = vmatprep.subr.bf16.mxu0 0
        %1261 = vmatpush2.bf16.xpose.msra.mxu0 0
        %1262 = vmatprep.subr.bf16.mxu0 0
        %1263 = vmatpush2.bf16.xpose.msra.mxu0 0
        %1264 = vmatprep.subr.bf16.mxu0 0
        %1265 = vmatpush2.bf16.xpose.msra.mxu0 0
        %1266 = vmatprep.mubr.bf16.mxu0 0
        %1267 = vmatmul.mubr.bf16.gmra.mxu0 %v1229
        %v1268 = vpop.f32.mrf.mxu0
        %v1269 = vadd.f32 0.0, %v1268
        %v1270 = vpop.f32.mrf.mxu0
        %v1271 = vpop.f32.mrf.mxu0
        %v1272 = vpop.f32.mrf.mxu0
        %1273 = vdwg.mxu0
        %v1276 = vunpack.c.l.s4 1966171168
        %v1277 = vunpack.c.0.s8 %v1276
        %v1278 = vlaneseq
        %v1279 = vshrl.u32 %v1278, 7
        %v1280 = vsub.s32 %v1277, %v1279
        %v1281 = vrot.slane %v831, %v1280
        %v1283 = vunpack.c.l.s4 1966171168
        %v1284 = vunpack.c.0.s8 %v1283
        %v1285 = vlaneseq
        %v1286 = vshrl.u32 %v1285, 7
        %v1287 = vsub.s32 %v1284, %v1286
        %v1288 = vrot.slane %v1281, %v1287
        %1289 = vrot.lane.b32.xlu0 %v1288, 96
        %v1290 = vpop.permute.xlu0 %1289
        %v1292 = vsel %vm849, %v831, 0
        %v1295 = vsel %vm849, %v1290, 0
        %1297 = vmatprep.subr.bf16.mxu0 0
        %1298 = vmatpush1.bf16.xpose.msra.mxu0 0
        %1299 = vmatprep.subr.bf16.mxu0 0
        %1300 = vmatpush1.bf16.xpose.msra.mxu0 0
        %1301 = vmatprep.subr.bf16.mxu0 0
        %1302 = vmatpush1.bf16.xpose.msra.mxu0 0
        %1303 = vmatprep.subr.bf16.mxu0 0
        %1304 = vmatpush1.bf16.xpose.msra.mxu0 0
        %1305 = vmatprep.subr.bf16.mxu0 0
        %1306 = vmatpush1.bf16.xpose.msra.mxu0 0
        %1307 = vmatprep.subr.bf16.mxu0 0
        %1308 = vmatpush1.bf16.xpose.msra.mxu0 0
        %1309 = vmatprep.subr.bf16.mxu0 0
        %1310 = vmatpush1.bf16.xpose.msra.mxu0 0
        %1311 = vmatprep.subr.bf16.mxu0 0
        %1312 = vmatpush1.bf16.xpose.msra.mxu0 %v1295
        %1313 = vmatprep.subr.bf16.mxu0 0
        %1314 = vmatpush2.bf16.xpose.msra.mxu0 0
        %1315 = vmatprep.subr.bf16.mxu0 0
        %1316 = vmatpush2.bf16.xpose.msra.mxu0 0
        %1317 = vmatprep.subr.bf16.mxu0 0
        %1318 = vmatpush2.bf16.xpose.msra.mxu0 0
        %1319 = vmatprep.subr.bf16.mxu0 0
        %1320 = vmatpush2.bf16.xpose.msra.mxu0 0
        %1321 = vmatprep.subr.bf16.mxu0 0
        %1322 = vmatpush2.bf16.xpose.msra.mxu0 0
        %1323 = vmatprep.subr.bf16.mxu0 0
        %1324 = vmatpush2.bf16.xpose.msra.mxu0 0
        %1325 = vmatprep.subr.bf16.mxu0 0
        %1326 = vmatpush2.bf16.xpose.msra.mxu0 0
        %1327 = vmatprep.subr.bf16.mxu0 0
        %1328 = vmatpush2.bf16.xpose.msra.mxu0 0
        %1329 = vmatprep.mubr.bf16.mxu0 0
        %1330 = vmatmul.mubr.bf16.gmra.mxu0 %v1292
        %v1331 = vpop.f32.mrf.mxu0
        %v1332 = vadd.f32 0.0, %v1331
        %v1333 = vpop.f32.mrf.mxu0
        %v1334 = vpop.f32.mrf.mxu0
        %v1335 = vpop.f32.mrf.mxu0
        %1336 = vdwg.mxu0
        %v1337 = vmul.f32 %v891, 0.5
        %v1338 = vmul.f32 %v954, 0.5
        %v1339 = vmul.f32 %v1017, 0.5
        %v1340 = vmul.f32 %v1080, 0.5
        %v1341 = vmul.f32 %v1143, 0.5
        %v1342 = vmul.f32 %v1206, 0.5
        %v1343 = vmul.f32 %v1269, 0.5
        %v1344 = vmul.f32 %v1332, 0.5
        %vm1345 = vcmask 9216
        %v1346 = vsel %vm1345, %v1337, -inf
        %1347 = vmax.xlane.f32.xlu0 %v1346
        %v1348 = vpop.xlane.xlu0 %1347
        %v1349 = vsel %vm1345, %v1338, -inf
        %1350 = vmax.xlane.f32.xlu0 %v1349
        %v1351 = vpop.xlane.xlu0 %1350
        %v1352 = vsel %vm1345, %v1339, -inf
        %1353 = vmax.xlane.f32.xlu0 %v1352
        %v1354 = vpop.xlane.xlu0 %1353
        %v1355 = vsel %vm1345, %v1340, -inf
        %1356 = vmax.xlane.f32.xlu0 %v1355
        %v1357 = vpop.xlane.xlu0 %1356
        %v1358 = vsel %vm1345, %v1341, -inf
        %1359 = vmax.xlane.f32.xlu0 %v1358
        %v1360 = vpop.xlane.xlu0 %1359
        %v1361 = vsel %vm1345, %v1342, -inf
        %1362 = vmax.xlane.f32.xlu0 %v1361
        %v1363 = vpop.xlane.xlu0 %1362
        %v1364 = vsel %vm1345, %v1343, -inf
        %1365 = vmax.xlane.f32.xlu0 %v1364
        %v1366 = vpop.xlane.xlu0 %1365
        %v1367 = vsel %vm1345, %v1344, -inf
        %1368 = vmax.xlane.f32.xlu0 %v1367
        %v1369 = vpop.xlane.xlu0 %1368
        %v1370 = vsub.f32 %v1337, %v1348
        %v1371 = vsub.f32 %v1338, %v1351
        %v1372 = vsub.f32 %v1339, %v1354
        %v1373 = vsub.f32 %v1340, %v1357
        %v1374 = vsub.f32 %v1341, %v1360
        %v1375 = vsub.f32 %v1342, %v1363
        %v1376 = vsub.f32 %v1343, %v1366
        %v1377 = vsub.f32 %v1344, %v1369
        %v1378 = vmul.f32 %v1370, 1.442695
        %v1379 = vpow.pop %v1378
        %v1380 = vmul.f32 %v1371, 1.442695
        %v1381 = vpow.pop %v1380
        %v1382 = vmul.f32 %v1372, 1.442695
        %v1383 = vpow.pop %v1382
        %v1384 = vmul.f32 %v1373, 1.442695
        %v1385 = vpow.pop %v1384
        %v1386 = vmul.f32 %v1374, 1.442695
        %v1387 = vpow.pop %v1386
        %v1388 = vmul.f32 %v1375, 1.442695
        %v1389 = vpow.pop %v1388
        %v1390 = vmul.f32 %v1376, 1.442695
        %v1391 = vpow.pop %v1390
        %v1392 = vmul.f32 %v1377, 1.442695
        %v1393 = vpow.pop %v1392
        %v1394 = vsel %vm1345, %v1379, 0.0
        %1395 = vadd.xlane.f32.xlu0 %v1394
        %v1396 = vpop.xlane.xlu0 %1395
        %v1397 = vsel %vm1345, %v1381, 0.0
        %1398 = vadd.xlane.f32.xlu0 %v1397
        %v1399 = vpop.xlane.xlu0 %1398
        %v1400 = vsel %vm1345, %v1383, 0.0
        %1401 = vadd.xlane.f32.xlu0 %v1400
        %v1402 = vpop.xlane.xlu0 %1401
        %v1403 = vsel %vm1345, %v1385, 0.0
        %1404 = vadd.xlane.f32.xlu0 %v1403
        %v1405 = vpop.xlane.xlu0 %1404
        %v1406 = vsel %vm1345, %v1387, 0.0
        %1407 = vadd.xlane.f32.xlu0 %v1406
        %v1408 = vpop.xlane.xlu0 %1407
        %v1409 = vsel %vm1345, %v1389, 0.0
        %1410 = vadd.xlane.f32.xlu0 %v1409
        %v1411 = vpop.xlane.xlu0 %1410
        %v1412 = vsel %vm1345, %v1391, 0.0
        %1413 = vadd.xlane.f32.xlu0 %v1412
        %v1414 = vpop.xlane.xlu0 %1413
        %v1415 = vsel %vm1345, %v1393, 0.0
        %1416 = vadd.xlane.f32.xlu0 %v1415
        %v1417 = vpop.xlane.xlu0 %1416
        %v1418 = vrcp.pop %v1396
        %v1419 = vrcp.pop %v1399
        %v1420 = vrcp.pop %v1402
        %v1421 = vrcp.pop %v1405
        %v1422 = vrcp.pop %v1408
        %v1423 = vrcp.pop %v1411
        %v1424 = vrcp.pop %v1414
        %v1425 = vrcp.pop %v1417
        %v1426 = vmul.f32 %v1379, %v1418
        %v1427 = vmul.f32 %v1381, %v1419
        %v1428 = vmul.f32 %v1383, %v1420
        %v1429 = vmul.f32 %v1385, %v1421
        %v1430 = vmul.f32 %v1387, %v1422
        %v1431 = vmul.f32 %v1389, %v1423
        %v1432 = vmul.f32 %v1391, %v1424
        %v1433 = vmul.f32 %v1393, %v1425
        %v1434 = vpack.c.bf16 %v1426, %v1426
        %v1435 = vpack.c.bf16 %v1427, %v1427
        %v1436 = vpack.c.bf16 %v1428, %v1428
        %v1437 = vpack.c.bf16 %v1429, %v1429
        %v1438 = vpack.c.bf16 %v1430, %v1430
        %v1439 = vpack.c.bf16 %v1431, %v1431
        %v1440 = vpack.c.bf16 %v1432, %v1432
        %v1441 = vpack.c.bf16 %v1433, %v1433
        %1442 = vrot.lane.b32.xlu0 %v846, 64
        %v1443 = vpop.permute.xlu0 %1442
        %vm1444 = vcmask 15360
        %v1446 = vsel %vm1444, %v1434, 0
        %vm1448 = vcmask 1040384
        %v1450 = vsel %vm1448, %v1443, 0
        %1452 = vmatprep.subr.bf16.mxu0 0
        %1453 = vmatpush1.bf16.msra.mxu0 0
        %1454 = vmatprep.subr.bf16.mxu0 0
        %1455 = vmatpush1.bf16.msra.mxu0 0
        %1456 = vmatprep.subr.bf16.mxu0 0
        %1457 = vmatpush1.bf16.msra.mxu0 0
        %1458 = vmatprep.subr.bf16.mxu0 0
        %1459 = vmatpush1.bf16.msra.mxu0 0
        %1460 = vmatprep.subr.bf16.mxu0 0
        %1461 = vmatpush1.bf16.msra.mxu0 0
        %1462 = vmatprep.subr.bf16.mxu0 0
        %1463 = vmatpush1.bf16.msra.mxu0 0
        %1464 = vmatprep.subr.bf16.mxu0 0
        %1465 = vmatpush1.bf16.msra.mxu0 0
        %1466 = vmatprep.subr.bf16.mxu0 0
        %1467 = vmatpush1.bf16.msra.mxu0 %v1450
        %1468 = vmatprep.subr.bf16.mxu0 0
        %1469 = vmatpush2.bf16.msra.mxu0 0
        %1470 = vmatprep.subr.bf16.mxu0 0
        %1471 = vmatpush2.bf16.msra.mxu0 0
        %1472 = vmatprep.subr.bf16.mxu0 0
        %1473 = vmatpush2.bf16.msra.mxu0 0
        %1474 = vmatprep.subr.bf16.mxu0 0
        %1475 = vmatpush2.bf16.msra.mxu0 0
        %1476 = vmatprep.subr.bf16.mxu0 0
        %1477 = vmatpush2.bf16.msra.mxu0 0
        %1478 = vmatprep.subr.bf16.mxu0 0
        %1479 = vmatpush2.bf16.msra.mxu0 0
        %1480 = vmatprep.subr.bf16.mxu0 0
        %1481 = vmatpush2.bf16.msra.mxu0 0
        %1482 = vmatprep.subr.bf16.mxu0 0
        %1483 = vmatpush2.bf16.msra.mxu0 0
        %1484 = vmatprep.mubr.bf16.mxu0 0
        %1485 = vmatmul.mubr.bf16.gmra.mxu0 %v1446
        %v1486 = vpop.f32.mrf.mxu0
        %v1487 = vadd.f32 0.0, %v1486
        %v1488 = vpop.f32.mrf.mxu0
        %v1489 = vpop.f32.mrf.mxu0
        %v1490 = vpop.f32.mrf.mxu0
        %1491 = vdwg.mxu0
        %1492 = vrot.lane.b32.xlu0 %v910, 64
        %v1493 = vpop.permute.xlu0 %1492
        %v1495 = vsel %vm1444, %v1435, 0
        %v1498 = vsel %vm1448, %v1493, 0
        %1500 = vmatprep.subr.bf16.mxu0 0
        %1501 = vmatpush1.bf16.msra.mxu0 0
        %1502 = vmatprep.subr.bf16.mxu0 0
        %1503 = vmatpush1.bf16.msra.mxu0 0
        %1504 = vmatprep.subr.bf16.mxu0 0
        %1505 = vmatpush1.bf16.msra.mxu0 0
        %1506 = vmatprep.subr.bf16.mxu0 0
        %1507 = vmatpush1.bf16.msra.mxu0 0
        %1508 = vmatprep.subr.bf16.mxu0 0
        %1509 = vmatpush1.bf16.msra.mxu0 0
        %1510 = vmatprep.subr.bf16.mxu0 0
        %1511 = vmatpush1.bf16.msra.mxu0 0
        %1512 = vmatprep.subr.bf16.mxu0 0
        %1513 = vmatpush1.bf16.msra.mxu0 0
        %1514 = vmatprep.subr.bf16.mxu0 0
        %1515 = vmatpush1.bf16.msra.mxu0 %v1498
        %1516 = vmatprep.subr.bf16.mxu0 0
        %1517 = vmatpush2.bf16.msra.mxu0 0
        %1518 = vmatprep.subr.bf16.mxu0 0
        %1519 = vmatpush2.bf16.msra.mxu0 0
        %1520 = vmatprep.subr.bf16.mxu0 0
        %1521 = vmatpush2.bf16.msra.mxu0 0
        %1522 = vmatprep.subr.bf16.mxu0 0
        %1523 = vmatpush2.bf16.msra.mxu0 0
        %1524 = vmatprep.subr.bf16.mxu0 0
        %1525 = vmatpush2.bf16.msra.mxu0 0
        %1526 = vmatprep.subr.bf16.mxu0 0
        %1527 = vmatpush2.bf16.msra.mxu0 0
        %1528 = vmatprep.subr.bf16.mxu0 0
        %1529 = vmatpush2.bf16.msra.mxu0 0
        %1530 = vmatprep.subr.bf16.mxu0 0
        %1531 = vmatpush2.bf16.msra.mxu0 0
        %1532 = vmatprep.mubr.bf16.mxu0 0
        %1533 = vmatmul.mubr.bf16.gmra.mxu0 %v1495
        %v1534 = vpop.f32.mrf.mxu0
        %v1535 = vadd.f32 0.0, %v1534
        %v1536 = vpop.f32.mrf.mxu0
        %v1537 = vpop.f32.mrf.mxu0
        %v1538 = vpop.f32.mrf.mxu0
        %1539 = vdwg.mxu0
        %1540 = vrot.lane.b32.xlu0 %v973, 64
        %v1541 = vpop.permute.xlu0 %1540
        %v1543 = vsel %vm1444, %v1436, 0
        %v1546 = vsel %vm1448, %v1541, 0
        %1548 = vmatprep.subr.bf16.mxu0 0
        %1549 = vmatpush1.bf16.msra.mxu0 0
        %1550 = vmatprep.subr.bf16.mxu0 0
        %1551 = vmatpush1.bf16.msra.mxu0 0
        %1552 = vmatprep.subr.bf16.mxu0 0
        %1553 = vmatpush1.bf16.msra.mxu0 0
        %1554 = vmatprep.subr.bf16.mxu0 0
        %1555 = vmatpush1.bf16.msra.mxu0 0
        %1556 = vmatprep.subr.bf16.mxu0 0
        %1557 = vmatpush1.bf16.msra.mxu0 0
        %1558 = vmatprep.subr.bf16.mxu0 0
        %1559 = vmatpush1.bf16.msra.mxu0 0
        %1560 = vmatprep.subr.bf16.mxu0 0
        %1561 = vmatpush1.bf16.msra.mxu0 0
        %1562 = vmatprep.subr.bf16.mxu0 0
        %1563 = vmatpush1.bf16.msra.mxu0 %v1546
        %1564 = vmatprep.subr.bf16.mxu0 0
        %1565 = vmatpush2.bf16.msra.mxu0 0
        %1566 = vmatprep.subr.bf16.mxu0 0
        %1567 = vmatpush2.bf16.msra.mxu0 0
        %1568 = vmatprep.subr.bf16.mxu0 0
        %1569 = vmatpush2.bf16.msra.mxu0 0
        %1570 = vmatprep.subr.bf16.mxu0 0
        %1571 = vmatpush2.bf16.msra.mxu0 0
        %1572 = vmatprep.subr.bf16.mxu0 0
        %1573 = vmatpush2.bf16.msra.mxu0 0
        %1574 = vmatprep.subr.bf16.mxu0 0
        %1575 = vmatpush2.bf16.msra.mxu0 0
        %1576 = vmatprep.subr.bf16.mxu0 0
        %1577 = vmatpush2.bf16.msra.mxu0 0
        %1578 = vmatprep.subr.bf16.mxu0 0
        %1579 = vmatpush2.bf16.msra.mxu0 0
        %1580 = vmatprep.mubr.bf16.mxu0 0
        %1581 = vmatmul.mubr.bf16.gmra.mxu0 %v1543
        %v1582 = vpop.f32.mrf.mxu0
        %v1583 = vadd.f32 0.0, %v1582
        %v1584 = vpop.f32.mrf.mxu0
        %v1585 = vpop.f32.mrf.mxu0
        %v1586 = vpop.f32.mrf.mxu0
        %1587 = vdwg.mxu0
        %1588 = vrot.lane.b32.xlu0 %v1036, 64
        %v1589 = vpop.permute.xlu0 %1588
        %v1591 = vsel %vm1444, %v1437, 0
        %v1594 = vsel %vm1448, %v1589, 0
        %1596 = vmatprep.subr.bf16.mxu0 0
        %1597 = vmatpush1.bf16.msra.mxu0 0
        %1598 = vmatprep.subr.bf16.mxu0 0
        %1599 = vmatpush1.bf16.msra.mxu0 0
        %1600 = vmatprep.subr.bf16.mxu0 0
        %1601 = vmatpush1.bf16.msra.mxu0 0
        %1602 = vmatprep.subr.bf16.mxu0 0
        %1603 = vmatpush1.bf16.msra.mxu0 0
        %1604 = vmatprep.subr.bf16.mxu0 0
        %1605 = vmatpush1.bf16.msra.mxu0 0
        %1606 = vmatprep.subr.bf16.mxu0 0
        %1607 = vmatpush1.bf16.msra.mxu0 0
        %1608 = vmatprep.subr.bf16.mxu0 0
        %1609 = vmatpush1.bf16.msra.mxu0 0
        %1610 = vmatprep.subr.bf16.mxu0 0
        %1611 = vmatpush1.bf16.msra.mxu0 %v1594
        %1612 = vmatprep.subr.bf16.mxu0 0
        %1613 = vmatpush2.bf16.msra.mxu0 0
        %1614 = vmatprep.subr.bf16.mxu0 0
        %1615 = vmatpush2.bf16.msra.mxu0 0
        %1616 = vmatprep.subr.bf16.mxu0 0
        %1617 = vmatpush2.bf16.msra.mxu0 0
        %1618 = vmatprep.subr.bf16.mxu0 0
        %1619 = vmatpush2.bf16.msra.mxu0 0
        %1620 = vmatprep.subr.bf16.mxu0 0
        %1621 = vmatpush2.bf16.msra.mxu0 0
        %1622 = vmatprep.subr.bf16.mxu0 0
        %1623 = vmatpush2.bf16.msra.mxu0 0
        %1624 = vmatprep.subr.bf16.mxu0 0
        %1625 = vmatpush2.bf16.msra.mxu0 0
        %1626 = vmatprep.subr.bf16.mxu0 0
        %1627 = vmatpush2.bf16.msra.mxu0 0
        %1628 = vmatprep.mubr.bf16.mxu0 0
        %1629 = vmatmul.mubr.bf16.gmra.mxu0 %v1591
        %v1630 = vpop.f32.mrf.mxu0
        %v1631 = vadd.f32 0.0, %v1630
        %v1632 = vpop.f32.mrf.mxu0
        %v1633 = vpop.f32.mrf.mxu0
        %v1634 = vpop.f32.mrf.mxu0
        %1635 = vdwg.mxu0
        %1636 = vrot.lane.b32.xlu0 %v1099, 64
        %v1637 = vpop.permute.xlu0 %1636
        %v1639 = vsel %vm1444, %v1438, 0
        %v1642 = vsel %vm1448, %v1637, 0
        %1644 = vmatprep.subr.bf16.mxu0 0
        %1645 = vmatpush1.bf16.msra.mxu0 0
        %1646 = vmatprep.subr.bf16.mxu0 0
        %1647 = vmatpush1.bf16.msra.mxu0 0
        %1648 = vmatprep.subr.bf16.mxu0 0
        %1649 = vmatpush1.bf16.msra.mxu0 0
        %1650 = vmatprep.subr.bf16.mxu0 0
        %1651 = vmatpush1.bf16.msra.mxu0 0
        %1652 = vmatprep.subr.bf16.mxu0 0
        %1653 = vmatpush1.bf16.msra.mxu0 0
        %1654 = vmatprep.subr.bf16.mxu0 0
        %1655 = vmatpush1.bf16.msra.mxu0 0
        %1656 = vmatprep.subr.bf16.mxu0 0
        %1657 = vmatpush1.bf16.msra.mxu0 0
        %1658 = vmatprep.subr.bf16.mxu0 0
        %1659 = vmatpush1.bf16.msra.mxu0 %v1642
        %1660 = vmatprep.subr.bf16.mxu0 0
        %1661 = vmatpush2.bf16.msra.mxu0 0
        %1662 = vmatprep.subr.bf16.mxu0 0
        %1663 = vmatpush2.bf16.msra.mxu0 0
        %1664 = vmatprep.subr.bf16.mxu0 0
        %1665 = vmatpush2.bf16.msra.mxu0 0
        %1666 = vmatprep.subr.bf16.mxu0 0
        %1667 = vmatpush2.bf16.msra.mxu0 0
        %1668 = vmatprep.subr.bf16.mxu0 0
        %1669 = vmatpush2.bf16.msra.mxu0 0
        %1670 = vmatprep.subr.bf16.mxu0 0
        %1671 = vmatpush2.bf16.msra.mxu0 0
        %1672 = vmatprep.subr.bf16.mxu0 0
        %1673 = vmatpush2.bf16.msra.mxu0 0
        %1674 = vmatprep.subr.bf16.mxu0 0
        %1675 = vmatpush2.bf16.msra.mxu0 0
        %1676 = vmatprep.mubr.bf16.mxu0 0
        %1677 = vmatmul.mubr.bf16.gmra.mxu0 %v1639
        %v1678 = vpop.f32.mrf.mxu0
        %v1679 = vadd.f32 0.0, %v1678
        %v1680 = vpop.f32.mrf.mxu0
        %v1681 = vpop.f32.mrf.mxu0
        %v1682 = vpop.f32.mrf.mxu0
        %1683 = vdwg.mxu0
        %1684 = vrot.lane.b32.xlu0 %v1162, 64
        %v1685 = vpop.permute.xlu0 %1684
        %v1687 = vsel %vm1444, %v1439, 0
        %v1690 = vsel %vm1448, %v1685, 0
        %1692 = vmatprep.subr.bf16.mxu0 0
        %1693 = vmatpush1.bf16.msra.mxu0 0
        %1694 = vmatprep.subr.bf16.mxu0 0
        %1695 = vmatpush1.bf16.msra.mxu0 0
        %1696 = vmatprep.subr.bf16.mxu0 0
        %1697 = vmatpush1.bf16.msra.mxu0 0
        %1698 = vmatprep.subr.bf16.mxu0 0
        %1699 = vmatpush1.bf16.msra.mxu0 0
        %1700 = vmatprep.subr.bf16.mxu0 0
        %1701 = vmatpush1.bf16.msra.mxu0 0
        %1702 = vmatprep.subr.bf16.mxu0 0
        %1703 = vmatpush1.bf16.msra.mxu0 0
        %1704 = vmatprep.subr.bf16.mxu0 0
        %1705 = vmatpush1.bf16.msra.mxu0 0
        %1706 = vmatprep.subr.bf16.mxu0 0
        %1707 = vmatpush1.bf16.msra.mxu0 %v1690
        %1708 = vmatprep.subr.bf16.mxu0 0
        %1709 = vmatpush2.bf16.msra.mxu0 0
        %1710 = vmatprep.subr.bf16.mxu0 0
        %1711 = vmatpush2.bf16.msra.mxu0 0
        %1712 = vmatprep.subr.bf16.mxu0 0
        %1713 = vmatpush2.bf16.msra.mxu0 0
        %1714 = vmatprep.subr.bf16.mxu0 0
        %1715 = vmatpush2.bf16.msra.mxu0 0
        %1716 = vmatprep.subr.bf16.mxu0 0
        %1717 = vmatpush2.bf16.msra.mxu0 0
        %1718 = vmatprep.subr.bf16.mxu0 0
        %1719 = vmatpush2.bf16.msra.mxu0 0
        %1720 = vmatprep.subr.bf16.mxu0 0
        %1721 = vmatpush2.bf16.msra.mxu0 0
        %1722 = vmatprep.subr.bf16.mxu0 0
        %1723 = vmatpush2.bf16.msra.mxu0 0
        %1724 = vmatprep.mubr.bf16.mxu0 0
        %1725 = vmatmul.mubr.bf16.gmra.mxu0 %v1687
        %v1726 = vpop.f32.mrf.mxu0
        %v1727 = vadd.f32 0.0, %v1726
        %v1728 = vpop.f32.mrf.mxu0
        %v1729 = vpop.f32.mrf.mxu0
        %v1730 = vpop.f32.mrf.mxu0
        %1731 = vdwg.mxu0
        %1732 = vrot.lane.b32.xlu0 %v1225, 64
        %v1733 = vpop.permute.xlu0 %1732
        %v1735 = vsel %vm1444, %v1440, 0
        %v1738 = vsel %vm1448, %v1733, 0
        %1740 = vmatprep.subr.bf16.mxu0 0
        %1741 = vmatpush1.bf16.msra.mxu0 0
        %1742 = vmatprep.subr.bf16.mxu0 0
        %1743 = vmatpush1.bf16.msra.mxu0 0
        %1744 = vmatprep.subr.bf16.mxu0 0
        %1745 = vmatpush1.bf16.msra.mxu0 0
        %1746 = vmatprep.subr.bf16.mxu0 0
        %1747 = vmatpush1.bf16.msra.mxu0 0
        %1748 = vmatprep.subr.bf16.mxu0 0
        %1749 = vmatpush1.bf16.msra.mxu0 0
        %1750 = vmatprep.subr.bf16.mxu0 0
        %1751 = vmatpush1.bf16.msra.mxu0 0
        %1752 = vmatprep.subr.bf16.mxu0 0
        %1753 = vmatpush1.bf16.msra.mxu0 0
        %1754 = vmatprep.subr.bf16.mxu0 0
        %1755 = vmatpush1.bf16.msra.mxu0 %v1738
        %1756 = vmatprep.subr.bf16.mxu0 0
        %1757 = vmatpush2.bf16.msra.mxu0 0
        %1758 = vmatprep.subr.bf16.mxu0 0
        %1759 = vmatpush2.bf16.msra.mxu0 0
        %1760 = vmatprep.subr.bf16.mxu0 0
        %1761 = vmatpush2.bf16.msra.mxu0 0
        %1762 = vmatprep.subr.bf16.mxu0 0
        %1763 = vmatpush2.bf16.msra.mxu0 0
        %1764 = vmatprep.subr.bf16.mxu0 0
        %1765 = vmatpush2.bf16.msra.mxu0 0
        %1766 = vmatprep.subr.bf16.mxu0 0
        %1767 = vmatpush2.bf16.msra.mxu0 0
        %1768 = vmatprep.subr.bf16.mxu0 0
        %1769 = vmatpush2.bf16.msra.mxu0 0
        %1770 = vmatprep.subr.bf16.mxu0 0
        %1771 = vmatpush2.bf16.msra.mxu0 0
        %1772 = vmatprep.mubr.bf16.mxu0 0
        %1773 = vmatmul.mubr.bf16.gmra.mxu0 %v1735
        %v1774 = vpop.f32.mrf.mxu0
        %v1775 = vadd.f32 0.0, %v1774
        %v1776 = vpop.f32.mrf.mxu0
        %v1777 = vpop.f32.mrf.mxu0
        %v1778 = vpop.f32.mrf.mxu0
        %1779 = vdwg.mxu0
        %1780 = vrot.lane.b32.xlu0 %v1288, 64
        %v1781 = vpop.permute.xlu0 %1780
        %v1783 = vsel %vm1444, %v1441, 0
        %v1786 = vsel %vm1448, %v1781, 0
        %1788 = vmatprep.subr.bf16.mxu0 0
        %1789 = vmatpush1.bf16.msra.mxu0 0
        %1790 = vmatprep.subr.bf16.mxu0 0
        %1791 = vmatpush1.bf16.msra.mxu0 0
        %1792 = vmatprep.subr.bf16.mxu0 0
        %1793 = vmatpush1.bf16.msra.mxu0 0
        %1794 = vmatprep.subr.bf16.mxu0 0
        %1795 = vmatpush1.bf16.msra.mxu0 0
        %1796 = vmatprep.subr.bf16.mxu0 0
        %1797 = vmatpush1.bf16.msra.mxu0 0
        %1798 = vmatprep.subr.bf16.mxu0 0
        %1799 = vmatpush1.bf16.msra.mxu0 0
        %1800 = vmatprep.subr.bf16.mxu0 0
        %1801 = vmatpush1.bf16.msra.mxu0 0
        %1802 = vmatprep.subr.bf16.mxu0 0
        %1803 = vmatpush1.bf16.msra.mxu0 %v1786
        %1804 = vmatprep.subr.bf16.mxu0 0
        %1805 = vmatpush2.bf16.msra.mxu0 0
        %1806 = vmatprep.subr.bf16.mxu0 0
        %1807 = vmatpush2.bf16.msra.mxu0 0
        %1808 = vmatprep.subr.bf16.mxu0 0
        %1809 = vmatpush2.bf16.msra.mxu0 0
        %1810 = vmatprep.subr.bf16.mxu0 0
        %1811 = vmatpush2.bf16.msra.mxu0 0
        %1812 = vmatprep.subr.bf16.mxu0 0
        %1813 = vmatpush2.bf16.msra.mxu0 0
        %1814 = vmatprep.subr.bf16.mxu0 0
        %1815 = vmatpush2.bf16.msra.mxu0 0
        %1816 = vmatprep.subr.bf16.mxu0 0
        %1817 = vmatpush2.bf16.msra.mxu0 0
        %1818 = vmatprep.subr.bf16.mxu0 0
        %1819 = vmatpush2.bf16.msra.mxu0 0
        %1820 = vmatprep.mubr.bf16.mxu0 0
        %1821 = vmatmul.mubr.bf16.gmra.mxu0 %v1783
        %v1822 = vpop.f32.mrf.mxu0
        %v1823 = vadd.f32 0.0, %v1822
        %v1824 = vpop.f32.mrf.mxu0
        %v1825 = vpop.f32.mrf.mxu0
        %v1826 = vpop.f32.mrf.mxu0
        %1827 = vdwg.mxu0
        %v1828 = vpack.c.bf16 %v1487, %v1487
        %v1829 = vpack.c.bf16 %v1535, %v1535
        %v1830 = vpack.c.bf16 %v1583, %v1583
        %v1831 = vpack.c.bf16 %v1631, %v1631
        %v1832 = vpack.c.bf16 %v1679, %v1679
        %v1833 = vpack.c.bf16 %v1727, %v1727
        %v1834 = vpack.c.bf16 %v1775, %v1775
        %v1835 = vpack.c.bf16 %v1823, %v1823
        %vm1836 = vcmask 24576
        %1837 = vst.msk [vmem:[#allocation3] sm:$0x1] %vm1836, %v1828
        %1838 = vst.msk [vmem:[#allocation3 + $0x1] sm:$0x1] %vm1836, %v1829
        %1839 = vst.msk [vmem:[#allocation3 + $0x2] sm:$0x1] %vm1836, %v1830
        %1840 = vst.msk [vmem:[#allocation3 + $0x3] sm:$0x1] %vm1836, %v1831
        %1841 = vst.msk [vmem:[#allocation3 + $0x4] sm:$0x1] %vm1836, %v1832
        %1842 = vst.msk [vmem:[#allocation3 + $0x5] sm:$0x1] %vm1836, %v1833
        %1843 = vst.msk [vmem:[#allocation3 + $0x6] sm:$0x1] %vm1836, %v1834
        %1844 = vst.msk [vmem:[#allocation3 + $0x7] sm:$0x1] %vm1836, %v1835
        %v1845 = vld [vmem:[#allocation2] sm:$0x1]
        %v1846 = vld [vmem:[#allocation2 + $0x1] sm:$0x1]
        %v1847 = vld [vmem:[#allocation2 + $0x2] sm:$0x1]
        %v1848 = vld [vmem:[#allocation2 + $0x3] sm:$0x1]
        %v1849 = vld [vmem:[#allocation2 + $0x4] sm:$0x1]
        %v1850 = vld [vmem:[#allocation2 + $0x5] sm:$0x1]
        %v1851 = vld [vmem:[#allocation2 + $0x6] sm:$0x1]
        %v1852 = vld [vmem:[#allocation2 + $0x7] sm:$0x1]
        %v1855 = vunpack.c.l.s4 1966171168
        %v1856 = vunpack.c.0.s8 %v1855
        %v1857 = vlaneseq
        %v1858 = vshrl.u32 %v1857, 7
        %v1859 = vsub.s32 %v1856, %v1858
        %v1860 = vrot.slane %v1845, %v1859
        %v1862 = vunpack.c.l.s4 1966171168
        %v1863 = vunpack.c.0.s8 %v1862
        %v1864 = vlaneseq
        %v1865 = vshrl.u32 %v1864, 7
        %v1866 = vsub.s32 %v1863, %v1865
        %v1867 = vrot.slane %v1860, %v1866
        %1868 = vrot.lane.b32.xlu0 %v1867, 124
        %v1869 = vpop.permute.xlu0 %1868
        %1870 = vrot.lane.b32.xlu0 %v1867, 92
        %v1871 = vpop.permute.xlu0 %1870
        %v1873 = vsel %vm849, %v1869, 0
        %v1876 = vsel %vm849, %v1871, 0
        %1878 = vmatprep.subr.bf16.mxu0 0
        %1879 = vmatpush1.bf16.xpose.msra.mxu0 0
        %1880 = vmatprep.subr.bf16.mxu0 0
        %1881 = vmatpush1.bf16.xpose.msra.mxu0 0
        %1882 = vmatprep.subr.bf16.mxu0 0
        %1883 = vmatpush1.bf16.xpose.msra.mxu0 0
        %1884 = vmatprep.subr.bf16.mxu0 0
        %1885 = vmatpush1.bf16.xpose.msra.mxu0 0
        %1886 = vmatprep.subr.bf16.mxu0 0
        %1887 = vmatpush1.bf16.xpose.msra.mxu0 0
        %1888 = vmatprep.subr.bf16.mxu0 0
        %1889 = vmatpush1.bf16.xpose.msra.mxu0 0
        %1890 = vmatprep.subr.bf16.mxu0 0
        %1891 = vmatpush1.bf16.xpose.msra.mxu0 0
        %1892 = vmatprep.subr.bf16.mxu0 0
        %1893 = vmatpush1.bf16.xpose.msra.mxu0 %v1876
        %1894 = vmatprep.subr.bf16.mxu0 0
        %1895 = vmatpush2.bf16.xpose.msra.mxu0 0
        %1896 = vmatprep.subr.bf16.mxu0 0
        %1897 = vmatpush2.bf16.xpose.msra.mxu0 0
        %1898 = vmatprep.subr.bf16.mxu0 0
        %1899 = vmatpush2.bf16.xpose.msra.mxu0 0
        %1900 = vmatprep.subr.bf16.mxu0 0
        %1901 = vmatpush2.bf16.xpose.msra.mxu0 0
        %1902 = vmatprep.subr.bf16.mxu0 0
        %1903 = vmatpush2.bf16.xpose.msra.mxu0 0
        %1904 = vmatprep.subr.bf16.mxu0 0
        %1905 = vmatpush2.bf16.xpose.msra.mxu0 0
        %1906 = vmatprep.subr.bf16.mxu0 0
        %1907 = vmatpush2.bf16.xpose.msra.mxu0 0
        %1908 = vmatprep.subr.bf16.mxu0 0
        %1909 = vmatpush2.bf16.xpose.msra.mxu0 0
        %1910 = vmatprep.mubr.bf16.mxu0 0
        %1911 = vmatmul.mubr.bf16.gmra.mxu0 %v1873
        %v1912 = vpop.f32.mrf.mxu0
        %v1913 = vadd.f32 0.0, %v1912
        %v1914 = vpop.f32.mrf.mxu0
        %v1915 = vpop.f32.mrf.mxu0
        %v1916 = vpop.f32.mrf.mxu0
        %1917 = vdwg.mxu0
        %v1920 = vunpack.c.l.s4 1966171168
        %v1921 = vunpack.c.0.s8 %v1920
        %v1922 = vlaneseq
        %v1923 = vshrl.u32 %v1922, 7
        %v1924 = vsub.s32 %v1921, %v1923
        %v1925 = vrot.slane %v1846, %v1924
        %v1927 = vunpack.c.l.s4 1966171168
        %v1928 = vunpack.c.0.s8 %v1927
        %v1929 = vlaneseq
        %v1930 = vshrl.u32 %v1929, 7
        %v1931 = vsub.s32 %v1928, %v1930
        %v1932 = vrot.slane %v1925, %v1931
        %1933 = vrot.lane.b32.xlu0 %v1932, 124
        %v1934 = vpop.permute.xlu0 %1933
        %1935 = vrot.lane.b32.xlu0 %v1932, 92
        %v1936 = vpop.permute.xlu0 %1935
        %v1938 = vsel %vm849, %v1934, 0
        %v1941 = vsel %vm849, %v1936, 0
        %1943 = vmatprep.subr.bf16.mxu0 0
        %1944 = vmatpush1.bf16.xpose.msra.mxu0 0
        %1945 = vmatprep.subr.bf16.mxu0 0
        %1946 = vmatpush1.bf16.xpose.msra.mxu0 0
        %1947 = vmatprep.subr.bf16.mxu0 0
        %1948 = vmatpush1.bf16.xpose.msra.mxu0 0
        %1949 = vmatprep.subr.bf16.mxu0 0
        %1950 = vmatpush1.bf16.xpose.msra.mxu0 0
        %1951 = vmatprep.subr.bf16.mxu0 0
        %1952 = vmatpush1.bf16.xpose.msra.mxu0 0
        %1953 = vmatprep.subr.bf16.mxu0 0
        %1954 = vmatpush1.bf16.xpose.msra.mxu0 0
        %1955 = vmatprep.subr.bf16.mxu0 0
        %1956 = vmatpush1.bf16.xpose.msra.mxu0 0
        %1957 = vmatprep.subr.bf16.mxu0 0
        %1958 = vmatpush1.bf16.xpose.msra.mxu0 %v1941
        %1959 = vmatprep.subr.bf16.mxu0 0
        %1960 = vmatpush2.bf16.xpose.msra.mxu0 0
        %1961 = vmatprep.subr.bf16.mxu0 0
        %1962 = vmatpush2.bf16.xpose.msra.mxu0 0
        %1963 = vmatprep.subr.bf16.mxu0 0
        %1964 = vmatpush2.bf16.xpose.msra.mxu0 0
        %1965 = vmatprep.subr.bf16.mxu0 0
        %1966 = vmatpush2.bf16.xpose.msra.mxu0 0
        %1967 = vmatprep.subr.bf16.mxu0 0
        %1968 = vmatpush2.bf16.xpose.msra.mxu0 0
        %1969 = vmatprep.subr.bf16.mxu0 0
        %1970 = vmatpush2.bf16.xpose.msra.mxu0 0
        %1971 = vmatprep.subr.bf16.mxu0 0
        %1972 = vmatpush2.bf16.xpose.msra.mxu0 0
        %1973 = vmatprep.subr.bf16.mxu0 0
        %1974 = vmatpush2.bf16.xpose.msra.mxu0 0
        %1975 = vmatprep.mubr.bf16.mxu0 0
        %1976 = vmatmul.mubr.bf16.gmra.mxu0 %v1938
        %v1977 = vpop.f32.mrf.mxu0
        %v1978 = vadd.f32 0.0, %v1977
        %v1979 = vpop.f32.mrf.mxu0
        %v1980 = vpop.f32.mrf.mxu0
        %v1981 = vpop.f32.mrf.mxu0
        %1982 = vdwg.mxu0
        %v1985 = vunpack.c.l.s4 1966171168
        %v1986 = vunpack.c.0.s8 %v1985
        %v1987 = vlaneseq
        %v1988 = vshrl.u32 %v1987, 7
        %v1989 = vsub.s32 %v1986, %v1988
        %v1990 = vrot.slane %v1847, %v1989
        %v1992 = vunpack.c.l.s4 1966171168
        %v1993 = vunpack.c.0.s8 %v1992
        %v1994 = vlaneseq
        %v1995 = vshrl.u32 %v1994, 7
        %v1996 = vsub.s32 %v1993, %v1995
        %v1997 = vrot.slane %v1990, %v1996
        %1998 = vrot.lane.b32.xlu0 %v1997, 124
        %v1999 = vpop.permute.xlu0 %1998
        %2000 = vrot.lane.b32.xlu0 %v1997, 92
        %v2001 = vpop.permute.xlu0 %2000
        %v2003 = vsel %vm849, %v1999, 0
        %v2006 = vsel %vm849, %v2001, 0
        %2008 = vmatprep.subr.bf16.mxu0 0
        %2009 = vmatpush1.bf16.xpose.msra.mxu0 0
        %2010 = vmatprep.subr.bf16.mxu0 0
        %2011 = vmatpush1.bf16.xpose.msra.mxu0 0
        %2012 = vmatprep.subr.bf16.mxu0 0
        %2013 = vmatpush1.bf16.xpose.msra.mxu0 0
        %2014 = vmatprep.subr.bf16.mxu0 0
        %2015 = vmatpush1.bf16.xpose.msra.mxu0 0
        %2016 = vmatprep.subr.bf16.mxu0 0
        %2017 = vmatpush1.bf16.xpose.msra.mxu0 0
        %2018 = vmatprep.subr.bf16.mxu0 0
        %2019 = vmatpush1.bf16.xpose.msra.mxu0 0
        %2020 = vmatprep.subr.bf16.mxu0 0
        %2021 = vmatpush1.bf16.xpose.msra.mxu0 0
        %2022 = vmatprep.subr.bf16.mxu0 0
        %2023 = vmatpush1.bf16.xpose.msra.mxu0 %v2006
        %2024 = vmatprep.subr.bf16.mxu0 0
        %2025 = vmatpush2.bf16.xpose.msra.mxu0 0
        %2026 = vmatprep.subr.bf16.mxu0 0
        %2027 = vmatpush2.bf16.xpose.msra.mxu0 0
        %2028 = vmatprep.subr.bf16.mxu0 0
        %2029 = vmatpush2.bf16.xpose.msra.mxu0 0
        %2030 = vmatprep.subr.bf16.mxu0 0
        %2031 = vmatpush2.bf16.xpose.msra.mxu0 0
        %2032 = vmatprep.subr.bf16.mxu0 0
        %2033 = vmatpush2.bf16.xpose.msra.mxu0 0
        %2034 = vmatprep.subr.bf16.mxu0 0
        %2035 = vmatpush2.bf16.xpose.msra.mxu0 0
        %2036 = vmatprep.subr.bf16.mxu0 0
        %2037 = vmatpush2.bf16.xpose.msra.mxu0 0
        %2038 = vmatprep.subr.bf16.mxu0 0
        %2039 = vmatpush2.bf16.xpose.msra.mxu0 0
        %2040 = vmatprep.mubr.bf16.mxu0 0
        %2041 = vmatmul.mubr.bf16.gmra.mxu0 %v2003
        %v2042 = vpop.f32.mrf.mxu0
        %v2043 = vadd.f32 0.0, %v2042
        %v2044 = vpop.f32.mrf.mxu0
        %v2045 = vpop.f32.mrf.mxu0
        %v2046 = vpop.f32.mrf.mxu0
        %2047 = vdwg.mxu0
        %v2050 = vunpack.c.l.s4 1966171168
        %v2051 = vunpack.c.0.s8 %v2050
        %v2052 = vlaneseq
        %v2053 = vshrl.u32 %v2052, 7
        %v2054 = vsub.s32 %v2051, %v2053
        %v2055 = vrot.slane %v1848, %v2054
        %v2057 = vunpack.c.l.s4 1966171168
        %v2058 = vunpack.c.0.s8 %v2057
        %v2059 = vlaneseq
        %v2060 = vshrl.u32 %v2059, 7
        %v2061 = vsub.s32 %v2058, %v2060
        %v2062 = vrot.slane %v2055, %v2061
        %2063 = vrot.lane.b32.xlu0 %v2062, 124
        %v2064 = vpop.permute.xlu0 %2063
        %2065 = vrot.lane.b32.xlu0 %v2062, 92
        %v2066 = vpop.permute.xlu0 %2065
        %v2068 = vsel %vm849, %v2064, 0
        %v2071 = vsel %vm849, %v2066, 0
        %2073 = vmatprep.subr.bf16.mxu0 0
        %2074 = vmatpush1.bf16.xpose.msra.mxu0 0
        %2075 = vmatprep.subr.bf16.mxu0 0
        %2076 = vmatpush1.bf16.xpose.msra.mxu0 0
        %2077 = vmatprep.subr.bf16.mxu0 0
        %2078 = vmatpush1.bf16.xpose.msra.mxu0 0
        %2079 = vmatprep.subr.bf16.mxu0 0
        %2080 = vmatpush1.bf16.xpose.msra.mxu0 0
        %2081 = vmatprep.subr.bf16.mxu0 0
        %2082 = vmatpush1.bf16.xpose.msra.mxu0 0
        %2083 = vmatprep.subr.bf16.mxu0 0
        %2084 = vmatpush1.bf16.xpose.msra.mxu0 0
        %2085 = vmatprep.subr.bf16.mxu0 0
        %2086 = vmatpush1.bf16.xpose.msra.mxu0 0
        %2087 = vmatprep.subr.bf16.mxu0 0
        %2088 = vmatpush1.bf16.xpose.msra.mxu0 %v2071
        %2089 = vmatprep.subr.bf16.mxu0 0
        %2090 = vmatpush2.bf16.xpose.msra.mxu0 0
        %2091 = vmatprep.subr.bf16.mxu0 0
        %2092 = vmatpush2.bf16.xpose.msra.mxu0 0
        %2093 = vmatprep.subr.bf16.mxu0 0
        %2094 = vmatpush2.bf16.xpose.msra.mxu0 0
        %2095 = vmatprep.subr.bf16.mxu0 0
        %2096 = vmatpush2.bf16.xpose.msra.mxu0 0
        %2097 = vmatprep.subr.bf16.mxu0 0
        %2098 = vmatpush2.bf16.xpose.msra.mxu0 0
        %2099 = vmatprep.subr.bf16.mxu0 0
        %2100 = vmatpush2.bf16.xpose.msra.mxu0 0
        %2101 = vmatprep.subr.bf16.mxu0 0
        %2102 = vmatpush2.bf16.xpose.msra.mxu0 0
        %2103 = vmatprep.subr.bf16.mxu0 0
        %2104 = vmatpush2.bf16.xpose.msra.mxu0 0
        %2105 = vmatprep.mubr.bf16.mxu0 0
        %2106 = vmatmul.mubr.bf16.gmra.mxu0 %v2068
        %v2107 = vpop.f32.mrf.mxu0
        %v2108 = vadd.f32 0.0, %v2107
        %v2109 = vpop.f32.mrf.mxu0
        %v2110 = vpop.f32.mrf.mxu0
        %v2111 = vpop.f32.mrf.mxu0
        %2112 = vdwg.mxu0
        %v2115 = vunpack.c.l.s4 1966171168
        %v2116 = vunpack.c.0.s8 %v2115
        %v2117 = vlaneseq
        %v2118 = vshrl.u32 %v2117, 7
        %v2119 = vsub.s32 %v2116, %v2118
        %v2120 = vrot.slane %v1849, %v2119
        %v2122 = vunpack.c.l.s4 1966171168
        %v2123 = vunpack.c.0.s8 %v2122
        %v2124 = vlaneseq
        %v2125 = vshrl.u32 %v2124, 7
        %v2126 = vsub.s32 %v2123, %v2125
        %v2127 = vrot.slane %v2120, %v2126
        %2128 = vrot.lane.b32.xlu0 %v2127, 124
        %v2129 = vpop.permute.xlu0 %2128
        %2130 = vrot.lane.b32.xlu0 %v2127, 92
        %v2131 = vpop.permute.xlu0 %2130
        %v2133 = vsel %vm849, %v2129, 0
        %v2136 = vsel %vm849, %v2131, 0
        %2138 = vmatprep.subr.bf16.mxu0 0
        %2139 = vmatpush1.bf16.xpose.msra.mxu0 0
        %2140 = vmatprep.subr.bf16.mxu0 0
        %2141 = vmatpush1.bf16.xpose.msra.mxu0 0
        %2142 = vmatprep.subr.bf16.mxu0 0
        %2143 = vmatpush1.bf16.xpose.msra.mxu0 0
        %2144 = vmatprep.subr.bf16.mxu0 0
        %2145 = vmatpush1.bf16.xpose.msra.mxu0 0
        %2146 = vmatprep.subr.bf16.mxu0 0
        %2147 = vmatpush1.bf16.xpose.msra.mxu0 0
        %2148 = vmatprep.subr.bf16.mxu0 0
        %2149 = vmatpush1.bf16.xpose.msra.mxu0 0
        %2150 = vmatprep.subr.bf16.mxu0 0
        %2151 = vmatpush1.bf16.xpose.msra.mxu0 0
        %2152 = vmatprep.subr.bf16.mxu0 0
        %2153 = vmatpush1.bf16.xpose.msra.mxu0 %v2136
        %2154 = vmatprep.subr.bf16.mxu0 0
        %2155 = vmatpush2.bf16.xpose.msra.mxu0 0
        %2156 = vmatprep.subr.bf16.mxu0 0
        %2157 = vmatpush2.bf16.xpose.msra.mxu0 0
        %2158 = vmatprep.subr.bf16.mxu0 0
        %2159 = vmatpush2.bf16.xpose.msra.mxu0 0
        %2160 = vmatprep.subr.bf16.mxu0 0
        %2161 = vmatpush2.bf16.xpose.msra.mxu0 0
        %2162 = vmatprep.subr.bf16.mxu0 0
        %2163 = vmatpush2.bf16.xpose.msra.mxu0 0
        %2164 = vmatprep.subr.bf16.mxu0 0
        %2165 = vmatpush2.bf16.xpose.msra.mxu0 0
        %2166 = vmatprep.subr.bf16.mxu0 0
        %2167 = vmatpush2.bf16.xpose.msra.mxu0 0
        %2168 = vmatprep.subr.bf16.mxu0 0
        %2169 = vmatpush2.bf16.xpose.msra.mxu0 0
        %2170 = vmatprep.mubr.bf16.mxu0 0
        %2171 = vmatmul.mubr.bf16.gmra.mxu0 %v2133
        %v2172 = vpop.f32.mrf.mxu0
        %v2173 = vadd.f32 0.0, %v2172
        %v2174 = vpop.f32.mrf.mxu0
        %v2175 = vpop.f32.mrf.mxu0
        %v2176 = vpop.f32.mrf.mxu0
        %2177 = vdwg.mxu0
        %v2180 = vunpack.c.l.s4 1966171168
        %v2181 = vunpack.c.0.s8 %v2180
        %v2182 = vlaneseq
        %v2183 = vshrl.u32 %v2182, 7
        %v2184 = vsub.s32 %v2181, %v2183
        %v2185 = vrot.slane %v1850, %v2184
        %v2187 = vunpack.c.l.s4 1966171168
        %v2188 = vunpack.c.0.s8 %v2187
        %v2189 = vlaneseq
        %v2190 = vshrl.u32 %v2189, 7
        %v2191 = vsub.s32 %v2188, %v2190
        %v2192 = vrot.slane %v2185, %v2191
        %2193 = vrot.lane.b32.xlu0 %v2192, 124
        %v2194 = vpop.permute.xlu0 %2193
        %2195 = vrot.lane.b32.xlu0 %v2192, 92
        %v2196 = vpop.permute.xlu0 %2195
        %v2198 = vsel %vm849, %v2194, 0
        %v2201 = vsel %vm849, %v2196, 0
        %2203 = vmatprep.subr.bf16.mxu0 0
        %2204 = vmatpush1.bf16.xpose.msra.mxu0 0
        %2205 = vmatprep.subr.bf16.mxu0 0
        %2206 = vmatpush1.bf16.xpose.msra.mxu0 0
        %2207 = vmatprep.subr.bf16.mxu0 0
        %2208 = vmatpush1.bf16.xpose.msra.mxu0 0
        %2209 = vmatprep.subr.bf16.mxu0 0
        %2210 = vmatpush1.bf16.xpose.msra.mxu0 0
        %2211 = vmatprep.subr.bf16.mxu0 0
        %2212 = vmatpush1.bf16.xpose.msra.mxu0 0
        %2213 = vmatprep.subr.bf16.mxu0 0
        %2214 = vmatpush1.bf16.xpose.msra.mxu0 0
        %2215 = vmatprep.subr.bf16.mxu0 0
        %2216 = vmatpush1.bf16.xpose.msra.mxu0 0
        %2217 = vmatprep.subr.bf16.mxu0 0
        %2218 = vmatpush1.bf16.xpose.msra.mxu0 %v2201
        %2219 = vmatprep.subr.bf16.mxu0 0
        %2220 = vmatpush2.bf16.xpose.msra.mxu0 0
        %2221 = vmatprep.subr.bf16.mxu0 0
        %2222 = vmatpush2.bf16.xpose.msra.mxu0 0
        %2223 = vmatprep.subr.bf16.mxu0 0
        %2224 = vmatpush2.bf16.xpose.msra.mxu0 0
        %2225 = vmatprep.subr.bf16.mxu0 0
        %2226 = vmatpush2.bf16.xpose.msra.mxu0 0
        %2227 = vmatprep.subr.bf16.mxu0 0
        %2228 = vmatpush2.bf16.xpose.msra.mxu0 0
        %2229 = vmatprep.subr.bf16.mxu0 0
        %2230 = vmatpush2.bf16.xpose.msra.mxu0 0
        %2231 = vmatprep.subr.bf16.mxu0 0
        %2232 = vmatpush2.bf16.xpose.msra.mxu0 0
        %2233 = vmatprep.subr.bf16.mxu0 0
        %2234 = vmatpush2.bf16.xpose.msra.mxu0 0
        %2235 = vmatprep.mubr.bf16.mxu0 0
        %2236 = vmatmul.mubr.bf16.gmra.mxu0 %v2198
        %v2237 = vpop.f32.mrf.mxu0
        %v2238 = vadd.f32 0.0, %v2237
        %v2239 = vpop.f32.mrf.mxu0
        %v2240 = vpop.f32.mrf.mxu0
        %v2241 = vpop.f32.mrf.mxu0
        %2242 = vdwg.mxu0
        %v2245 = vunpack.c.l.s4 1966171168
        %v2246 = vunpack.c.0.s8 %v2245
        %v2247 = vlaneseq
        %v2248 = vshrl.u32 %v2247, 7
        %v2249 = vsub.s32 %v2246, %v2248
        %v2250 = vrot.slane %v1851, %v2249
        %v2252 = vunpack.c.l.s4 1966171168
        %v2253 = vunpack.c.0.s8 %v2252
        %v2254 = vlaneseq
        %v2255 = vshrl.u32 %v2254, 7
        %v2256 = vsub.s32 %v2253, %v2255
        %v2257 = vrot.slane %v2250, %v2256
        %2258 = vrot.lane.b32.xlu0 %v2257, 124
        %v2259 = vpop.permute.xlu0 %2258
        %2260 = vrot.lane.b32.xlu0 %v2257, 92
        %v2261 = vpop.permute.xlu0 %2260
        %v2263 = vsel %vm849, %v2259, 0
        %v2266 = vsel %vm849, %v2261, 0
        %2268 = vmatprep.subr.bf16.mxu0 0
        %2269 = vmatpush1.bf16.xpose.msra.mxu0 0
        %2270 = vmatprep.subr.bf16.mxu0 0
        %2271 = vmatpush1.bf16.xpose.msra.mxu0 0
        %2272 = vmatprep.subr.bf16.mxu0 0
        %2273 = vmatpush1.bf16.xpose.msra.mxu0 0
        %2274 = vmatprep.subr.bf16.mxu0 0
        %2275 = vmatpush1.bf16.xpose.msra.mxu0 0
        %2276 = vmatprep.subr.bf16.mxu0 0
        %2277 = vmatpush1.bf16.xpose.msra.mxu0 0
        %2278 = vmatprep.subr.bf16.mxu0 0
        %2279 = vmatpush1.bf16.xpose.msra.mxu0 0
        %2280 = vmatprep.subr.bf16.mxu0 0
        %2281 = vmatpush1.bf16.xpose.msra.mxu0 0
        %2282 = vmatprep.subr.bf16.mxu0 0
        %2283 = vmatpush1.bf16.xpose.msra.mxu0 %v2266
        %2284 = vmatprep.subr.bf16.mxu0 0
        %2285 = vmatpush2.bf16.xpose.msra.mxu0 0
        %2286 = vmatprep.subr.bf16.mxu0 0
        %2287 = vmatpush2.bf16.xpose.msra.mxu0 0
        %2288 = vmatprep.subr.bf16.mxu0 0
        %2289 = vmatpush2.bf16.xpose.msra.mxu0 0
        %2290 = vmatprep.subr.bf16.mxu0 0
        %2291 = vmatpush2.bf16.xpose.msra.mxu0 0
        %2292 = vmatprep.subr.bf16.mxu0 0
        %2293 = vmatpush2.bf16.xpose.msra.mxu0 0
        %2294 = vmatprep.subr.bf16.mxu0 0
        %2295 = vmatpush2.bf16.xpose.msra.mxu0 0
        %2296 = vmatprep.subr.bf16.mxu0 0
        %2297 = vmatpush2.bf16.xpose.msra.mxu0 0
        %2298 = vmatprep.subr.bf16.mxu0 0
        %2299 = vmatpush2.bf16.xpose.msra.mxu0 0
        %2300 = vmatprep.mubr.bf16.mxu0 0
        %2301 = vmatmul.mubr.bf16.gmra.mxu0 %v2263
        %v2302 = vpop.f32.mrf.mxu0
        %v2303 = vadd.f32 0.0, %v2302
        %v2304 = vpop.f32.mrf.mxu0
        %v2305 = vpop.f32.mrf.mxu0
        %v2306 = vpop.f32.mrf.mxu0
        %2307 = vdwg.mxu0
        %v2310 = vunpack.c.l.s4 1966171168
        %v2311 = vunpack.c.0.s8 %v2310
        %v2312 = vlaneseq
        %v2313 = vshrl.u32 %v2312, 7
        %v2314 = vsub.s32 %v2311, %v2313
        %v2315 = vrot.slane %v1852, %v2314
        %v2317 = vunpack.c.l.s4 1966171168
        %v2318 = vunpack.c.0.s8 %v2317
        %v2319 = vlaneseq
        %v2320 = vshrl.u32 %v2319, 7
        %v2321 = vsub.s32 %v2318, %v2320
        %v2322 = vrot.slane %v2315, %v2321
        %2323 = vrot.lane.b32.xlu0 %v2322, 124
        %v2324 = vpop.permute.xlu0 %2323
        %2325 = vrot.lane.b32.xlu0 %v2322, 92
        %v2326 = vpop.permute.xlu0 %2325
        %v2328 = vsel %vm849, %v2324, 0
        %v2331 = vsel %vm849, %v2326, 0
        %2333 = vmatprep.subr.bf16.mxu0 0
        %2334 = vmatpush1.bf16.xpose.msra.mxu0 0
        %2335 = vmatprep.subr.bf16.mxu0 0
        %2336 = vmatpush1.bf16.xpose.msra.mxu0 0
        %2337 = vmatprep.subr.bf16.mxu0 0
        %2338 = vmatpush1.bf16.xpose.msra.mxu0 0
        %2339 = vmatprep.subr.bf16.mxu0 0
        %2340 = vmatpush1.bf16.xpose.msra.mxu0 0
        %2341 = vmatprep.subr.bf16.mxu0 0
        %2342 = vmatpush1.bf16.xpose.msra.mxu0 0
        %2343 = vmatprep.subr.bf16.mxu0 0
        %2344 = vmatpush1.bf16.xpose.msra.mxu0 0
        %2345 = vmatprep.subr.bf16.mxu0 0
        %2346 = vmatpush1.bf16.xpose.msra.mxu0 0
        %2347 = vmatprep.subr.bf16.mxu0 0
        %2348 = vmatpush1.bf16.xpose.msra.mxu0 %v2331
        %2349 = vmatprep.subr.bf16.mxu0 0
        %2350 = vmatpush2.bf16.xpose.msra.mxu0 0
        %2351 = vmatprep.subr.bf16.mxu0 0
        %2352 = vmatpush2.bf16.xpose.msra.mxu0 0
        %2353 = vmatprep.subr.bf16.mxu0 0
        %2354 = vmatpush2.bf16.xpose.msra.mxu0 0
        %2355 = vmatprep.subr.bf16.mxu0 0
        %2356 = vmatpush2.bf16.xpose.msra.mxu0 0
        %2357 = vmatprep.subr.bf16.mxu0 0
        %2358 = vmatpush2.bf16.xpose.msra.mxu0 0
        %2359 = vmatprep.subr.bf16.mxu0 0
        %2360 = vmatpush2.bf16.xpose.msra.mxu0 0
        %2361 = vmatprep.subr.bf16.mxu0 0
        %2362 = vmatpush2.bf16.xpose.msra.mxu0 0
        %2363 = vmatprep.subr.bf16.mxu0 0
        %2364 = vmatpush2.bf16.xpose.msra.mxu0 0
        %2365 = vmatprep.mubr.bf16.mxu0 0
        %2366 = vmatmul.mubr.bf16.gmra.mxu0 %v2328
        %v2367 = vpop.f32.mrf.mxu0
        %v2368 = vadd.f32 0.0, %v2367
        %v2369 = vpop.f32.mrf.mxu0
        %v2370 = vpop.f32.mrf.mxu0
        %v2371 = vpop.f32.mrf.mxu0
        %2372 = vdwg.mxu0
        %v2373 = vmul.f32 %v1913, 0.5
        %v2374 = vmul.f32 %v1978, 0.5
        %v2375 = vmul.f32 %v2043, 0.5
        %v2376 = vmul.f32 %v2108, 0.5
        %v2377 = vmul.f32 %v2173, 0.5
        %v2378 = vmul.f32 %v2238, 0.5
        %v2379 = vmul.f32 %v2303, 0.5
        %v2380 = vmul.f32 %v2368, 0.5
        %v2381 = vsel %vm1345, %v2373, -inf
        %2382 = vmax.xlane.f32.xlu0 %v2381
        %v2383 = vpop.xlane.xlu0 %2382
        %v2384 = vsel %vm1345, %v2374, -inf
        %2385 = vmax.xlane.f32.xlu0 %v2384
        %v2386 = vpop.xlane.xlu0 %2385
        %v2387 = vsel %vm1345, %v2375, -inf
        %2388 = vmax.xlane.f32.xlu0 %v2387
        %v2389 = vpop.xlane.xlu0 %2388
        %v2390 = vsel %vm1345, %v2376, -inf
        %2391 = vmax.xlane.f32.xlu0 %v2390
        %v2392 = vpop.xlane.xlu0 %2391
        %v2393 = vsel %vm1345, %v2377, -inf
        %2394 = vmax.xlane.f32.xlu0 %v2393
        %v2395 = vpop.xlane.xlu0 %2394
        %v2396 = vsel %vm1345, %v2378, -inf
        %2397 = vmax.xlane.f32.xlu0 %v2396
        %v2398 = vpop.xlane.xlu0 %2397
        %v2399 = vsel %vm1345, %v2379, -inf
        %2400 = vmax.xlane.f32.xlu0 %v2399
        %v2401 = vpop.xlane.xlu0 %2400
        %v2402 = vsel %vm1345, %v2380, -inf
        %2403 = vmax.xlane.f32.xlu0 %v2402
        %v2404 = vpop.xlane.xlu0 %2403
        %v2405 = vsub.f32 %v2373, %v2383
        %v2406 = vsub.f32 %v2374, %v2386
        %v2407 = vsub.f32 %v2375, %v2389
        %v2408 = vsub.f32 %v2376, %v2392
        %v2409 = vsub.f32 %v2377, %v2395
        %v2410 = vsub.f32 %v2378, %v2398
        %v2411 = vsub.f32 %v2379, %v2401
        %v2412 = vsub.f32 %v2380, %v2404
        %v2413 = vmul.f32 %v2405, 1.442695
        %v2414 = vpow.pop %v2413
        %v2415 = vmul.f32 %v2406, 1.442695
        %v2416 = vpow.pop %v2415
        %v2417 = vmul.f32 %v2407, 1.442695
        %v2418 = vpow.pop %v2417
        %v2419 = vmul.f32 %v2408, 1.442695
        %v2420 = vpow.pop %v2419
        %v2421 = vmul.f32 %v2409, 1.442695
        %v2422 = vpow.pop %v2421
        %v2423 = vmul.f32 %v2410, 1.442695
        %v2424 = vpow.pop %v2423
        %v2425 = vmul.f32 %v2411, 1.442695
        %v2426 = vpow.pop %v2425
        %v2427 = vmul.f32 %v2412, 1.442695
        %v2428 = vpow.pop %v2427
        %v2429 = vsel %vm1345, %v2414, 0.0
        %2430 = vadd.xlane.f32.xlu0 %v2429
        %v2431 = vpop.xlane.xlu0 %2430
        %v2432 = vsel %vm1345, %v2416, 0.0
        %2433 = vadd.xlane.f32.xlu0 %v2432
        %v2434 = vpop.xlane.xlu0 %2433
        %v2435 = vsel %vm1345, %v2418, 0.0
        %2436 = vadd.xlane.f32.xlu0 %v2435
        %v2437 = vpop.xlane.xlu0 %2436
        %v2438 = vsel %vm1345, %v2420, 0.0
        %2439 = vadd.xlane.f32.xlu0 %v2438
        %v2440 = vpop.xlane.xlu0 %2439
        %v2441 = vsel %vm1345, %v2422, 0.0
        %2442 = vadd.xlane.f32.xlu0 %v2441
        %v2443 = vpop.xlane.xlu0 %2442
        %v2444 = vsel %vm1345, %v2424, 0.0
        %2445 = vadd.xlane.f32.xlu0 %v2444
        %v2446 = vpop.xlane.xlu0 %2445
        %v2447 = vsel %vm1345, %v2426, 0.0
        %2448 = vadd.xlane.f32.xlu0 %v2447
        %v2449 = vpop.xlane.xlu0 %2448
        %v2450 = vsel %vm1345, %v2428, 0.0
        %2451 = vadd.xlane.f32.xlu0 %v2450
        %v2452 = vpop.xlane.xlu0 %2451
        %v2453 = vrcp.pop %v2431
        %v2454 = vrcp.pop %v2434
        %v2455 = vrcp.pop %v2437
        %v2456 = vrcp.pop %v2440
        %v2457 = vrcp.pop %v2443
        %v2458 = vrcp.pop %v2446
        %v2459 = vrcp.pop %v2449
        %v2460 = vrcp.pop %v2452
        %v2461 = vmul.f32 %v2414, %v2453
        %v2462 = vmul.f32 %v2416, %v2454
        %v2463 = vmul.f32 %v2418, %v2455
        %v2464 = vmul.f32 %v2420, %v2456
        %v2465 = vmul.f32 %v2422, %v2457
        %v2466 = vmul.f32 %v2424, %v2458
        %v2467 = vmul.f32 %v2426, %v2459
        %v2468 = vmul.f32 %v2428, %v2460
        %v2469 = vpack.c.bf16 %v2461, %v2461
        %v2470 = vpack.c.bf16 %v2462, %v2462
        %v2471 = vpack.c.bf16 %v2463, %v2463
        %v2472 = vpack.c.bf16 %v2464, %v2464
        %v2473 = vpack.c.bf16 %v2465, %v2465
        %v2474 = vpack.c.bf16 %v2466, %v2466
        %v2475 = vpack.c.bf16 %v2467, %v2467
        %v2476 = vpack.c.bf16 %v2468, %v2468
        %2477 = vrot.lane.b32.xlu0 %v1867, 60
        %v2478 = vpop.permute.xlu0 %2477
        %v2480 = vsel %vm1444, %v2469, 0
        %v2483 = vsel %vm1448, %v2478, 0
        %2485 = vmatprep.subr.bf16.mxu0 0
        %2486 = vmatpush1.bf16.msra.mxu0 0
        %2487 = vmatprep.subr.bf16.mxu0 0
        %2488 = vmatpush1.bf16.msra.mxu0 0
        %2489 = vmatprep.subr.bf16.mxu0 0
        %2490 = vmatpush1.bf16.msra.mxu0 0
        %2491 = vmatprep.subr.bf16.mxu0 0
        %2492 = vmatpush1.bf16.msra.mxu0 0
        %2493 = vmatprep.subr.bf16.mxu0 0
        %2494 = vmatpush1.bf16.msra.mxu0 0
        %2495 = vmatprep.subr.bf16.mxu0 0
        %2496 = vmatpush1.bf16.msra.mxu0 0
        %2497 = vmatprep.subr.bf16.mxu0 0
        %2498 = vmatpush1.bf16.msra.mxu0 0
        %2499 = vmatprep.subr.bf16.mxu0 0
        %2500 = vmatpush1.bf16.msra.mxu0 %v2483
        %2501 = vmatprep.subr.bf16.mxu0 0
        %2502 = vmatpush2.bf16.msra.mxu0 0
        %2503 = vmatprep.subr.bf16.mxu0 0
        %2504 = vmatpush2.bf16.msra.mxu0 0
        %2505 = vmatprep.subr.bf16.mxu0 0
        %2506 = vmatpush2.bf16.msra.mxu0 0
        %2507 = vmatprep.subr.bf16.mxu0 0
        %2508 = vmatpush2.bf16.msra.mxu0 0
        %2509 = vmatprep.subr.bf16.mxu0 0
        %2510 = vmatpush2.bf16.msra.mxu0 0
        %2511 = vmatprep.subr.bf16.mxu0 0
        %2512 = vmatpush2.bf16.msra.mxu0 0
        %2513 = vmatprep.subr.bf16.mxu0 0
        %2514 = vmatpush2.bf16.msra.mxu0 0
        %2515 = vmatprep.subr.bf16.mxu0 0
        %2516 = vmatpush2.bf16.msra.mxu0 0
        %2517 = vmatprep.mubr.bf16.mxu0 0
        %2518 = vmatmul.mubr.bf16.gmra.mxu0 %v2480
        %v2519 = vpop.f32.mrf.mxu0
        %v2520 = vadd.f32 0.0, %v2519
        %v2521 = vpop.f32.mrf.mxu0
        %v2522 = vpop.f32.mrf.mxu0
        %v2523 = vpop.f32.mrf.mxu0
        %2524 = vdwg.mxu0
        %2525 = vrot.lane.b32.xlu0 %v1932, 60
        %v2526 = vpop.permute.xlu0 %2525
        %v2528 = vsel %vm1444, %v2470, 0
        %v2531 = vsel %vm1448, %v2526, 0
        %2533 = vmatprep.subr.bf16.mxu0 0
        %2534 = vmatpush1.bf16.msra.mxu0 0
        %2535 = vmatprep.subr.bf16.mxu0 0
        %2536 = vmatpush1.bf16.msra.mxu0 0
        %2537 = vmatprep.subr.bf16.mxu0 0
        %2538 = vmatpush1.bf16.msra.mxu0 0
        %2539 = vmatprep.subr.bf16.mxu0 0
        %2540 = vmatpush1.bf16.msra.mxu0 0
        %2541 = vmatprep.subr.bf16.mxu0 0
        %2542 = vmatpush1.bf16.msra.mxu0 0
        %2543 = vmatprep.subr.bf16.mxu0 0
        %2544 = vmatpush1.bf16.msra.mxu0 0
        %2545 = vmatprep.subr.bf16.mxu0 0
        %2546 = vmatpush1.bf16.msra.mxu0 0
        %2547 = vmatprep.subr.bf16.mxu0 0
        %2548 = vmatpush1.bf16.msra.mxu0 %v2531
        %2549 = vmatprep.subr.bf16.mxu0 0
        %2550 = vmatpush2.bf16.msra.mxu0 0
        %2551 = vmatprep.subr.bf16.mxu0 0
        %2552 = vmatpush2.bf16.msra.mxu0 0
        %2553 = vmatprep.subr.bf16.mxu0 0
        %2554 = vmatpush2.bf16.msra.mxu0 0
        %2555 = vmatprep.subr.bf16.mxu0 0
        %2556 = vmatpush2.bf16.msra.mxu0 0
        %2557 = vmatprep.subr.bf16.mxu0 0
        %2558 = vmatpush2.bf16.msra.mxu0 0
        %2559 = vmatprep.subr.bf16.mxu0 0
        %2560 = vmatpush2.bf16.msra.mxu0 0
        %2561 = vmatprep.subr.bf16.mxu0 0
        %2562 = vmatpush2.bf16.msra.mxu0 0
        %2563 = vmatprep.subr.bf16.mxu0 0
        %2564 = vmatpush2.bf16.msra.mxu0 0
        %2565 = vmatprep.mubr.bf16.mxu0 0
        %2566 = vmatmul.mubr.bf16.gmra.mxu0 %v2528
        %v2567 = vpop.f32.mrf.mxu0
        %v2568 = vadd.f32 0.0, %v2567
        %v2569 = vpop.f32.mrf.mxu0
        %v2570 = vpop.f32.mrf.mxu0
        %v2571 = vpop.f32.mrf.mxu0
        %2572 = vdwg.mxu0
        %2573 = vrot.lane.b32.xlu0 %v1997, 60
        %v2574 = vpop.permute.xlu0 %2573
        %v2576 = vsel %vm1444, %v2471, 0
        %v2579 = vsel %vm1448, %v2574, 0
        %2581 = vmatprep.subr.bf16.mxu0 0
        %2582 = vmatpush1.bf16.msra.mxu0 0
        %2583 = vmatprep.subr.bf16.mxu0 0
        %2584 = vmatpush1.bf16.msra.mxu0 0
        %2585 = vmatprep.subr.bf16.mxu0 0
        %2586 = vmatpush1.bf16.msra.mxu0 0
        %2587 = vmatprep.subr.bf16.mxu0 0
        %2588 = vmatpush1.bf16.msra.mxu0 0
        %2589 = vmatprep.subr.bf16.mxu0 0
        %2590 = vmatpush1.bf16.msra.mxu0 0
        %2591 = vmatprep.subr.bf16.mxu0 0
        %2592 = vmatpush1.bf16.msra.mxu0 0
        %2593 = vmatprep.subr.bf16.mxu0 0
        %2594 = vmatpush1.bf16.msra.mxu0 0
        %2595 = vmatprep.subr.bf16.mxu0 0
        %2596 = vmatpush1.bf16.msra.mxu0 %v2579
        %2597 = vmatprep.subr.bf16.mxu0 0
        %2598 = vmatpush2.bf16.msra.mxu0 0
        %2599 = vmatprep.subr.bf16.mxu0 0
        %2600 = vmatpush2.bf16.msra.mxu0 0
        %2601 = vmatprep.subr.bf16.mxu0 0
        %2602 = vmatpush2.bf16.msra.mxu0 0
        %2603 = vmatprep.subr.bf16.mxu0 0
        %2604 = vmatpush2.bf16.msra.mxu0 0
        %2605 = vmatprep.subr.bf16.mxu0 0
        %2606 = vmatpush2.bf16.msra.mxu0 0
        %2607 = vmatprep.subr.bf16.mxu0 0
        %2608 = vmatpush2.bf16.msra.mxu0 0
        %2609 = vmatprep.subr.bf16.mxu0 0
        %2610 = vmatpush2.bf16.msra.mxu0 0
        %2611 = vmatprep.subr.bf16.mxu0 0
        %2612 = vmatpush2.bf16.msra.mxu0 0
        %2613 = vmatprep.mubr.bf16.mxu0 0
        %2614 = vmatmul.mubr.bf16.gmra.mxu0 %v2576
        %v2615 = vpop.f32.mrf.mxu0
        %v2616 = vadd.f32 0.0, %v2615
        %v2617 = vpop.f32.mrf.mxu0
        %v2618 = vpop.f32.mrf.mxu0
        %v2619 = vpop.f32.mrf.mxu0
        %2620 = vdwg.mxu0
        %2621 = vrot.lane.b32.xlu0 %v2062, 60
        %v2622 = vpop.permute.xlu0 %2621
        %v2624 = vsel %vm1444, %v2472, 0
        %v2627 = vsel %vm1448, %v2622, 0
        %2629 = vmatprep.subr.bf16.mxu0 0
        %2630 = vmatpush1.bf16.msra.mxu0 0
        %2631 = vmatprep.subr.bf16.mxu0 0
        %2632 = vmatpush1.bf16.msra.mxu0 0
        %2633 = vmatprep.subr.bf16.mxu0 0
        %2634 = vmatpush1.bf16.msra.mxu0 0
        %2635 = vmatprep.subr.bf16.mxu0 0
        %2636 = vmatpush1.bf16.msra.mxu0 0
        %2637 = vmatprep.subr.bf16.mxu0 0
        %2638 = vmatpush1.bf16.msra.mxu0 0
        %2639 = vmatprep.subr.bf16.mxu0 0
        %2640 = vmatpush1.bf16.msra.mxu0 0
        %2641 = vmatprep.subr.bf16.mxu0 0
        %2642 = vmatpush1.bf16.msra.mxu0 0
        %2643 = vmatprep.subr.bf16.mxu0 0
        %2644 = vmatpush1.bf16.msra.mxu0 %v2627
        %2645 = vmatprep.subr.bf16.mxu0 0
        %2646 = vmatpush2.bf16.msra.mxu0 0
        %2647 = vmatprep.subr.bf16.mxu0 0
        %2648 = vmatpush2.bf16.msra.mxu0 0
        %2649 = vmatprep.subr.bf16.mxu0 0
        %2650 = vmatpush2.bf16.msra.mxu0 0
        %2651 = vmatprep.subr.bf16.mxu0 0
        %2652 = vmatpush2.bf16.msra.mxu0 0
        %2653 = vmatprep.subr.bf16.mxu0 0
        %2654 = vmatpush2.bf16.msra.mxu0 0
        %2655 = vmatprep.subr.bf16.mxu0 0
        %2656 = vmatpush2.bf16.msra.mxu0 0
        %2657 = vmatprep.subr.bf16.mxu0 0
        %2658 = vmatpush2.bf16.msra.mxu0 0
        %2659 = vmatprep.subr.bf16.mxu0 0
        %2660 = vmatpush2.bf16.msra.mxu0 0
        %2661 = vmatprep.mubr.bf16.mxu0 0
        %2662 = vmatmul.mubr.bf16.gmra.mxu0 %v2624
        %v2663 = vpop.f32.mrf.mxu0
        %v2664 = vadd.f32 0.0, %v2663
        %v2665 = vpop.f32.mrf.mxu0
        %v2666 = vpop.f32.mrf.mxu0
        %v2667 = vpop.f32.mrf.mxu0
        %2668 = vdwg.mxu0
        %2669 = vrot.lane.b32.xlu0 %v2127, 60
        %v2670 = vpop.permute.xlu0 %2669
        %v2672 = vsel %vm1444, %v2473, 0
        %v2675 = vsel %vm1448, %v2670, 0
        %2677 = vmatprep.subr.bf16.mxu0 0
        %2678 = vmatpush1.bf16.msra.mxu0 0
        %2679 = vmatprep.subr.bf16.mxu0 0
        %2680 = vmatpush1.bf16.msra.mxu0 0
        %2681 = vmatprep.subr.bf16.mxu0 0
        %2682 = vmatpush1.bf16.msra.mxu0 0
        %2683 = vmatprep.subr.bf16.mxu0 0
        %2684 = vmatpush1.bf16.msra.mxu0 0
        %2685 = vmatprep.subr.bf16.mxu0 0
        %2686 = vmatpush1.bf16.msra.mxu0 0
        %2687 = vmatprep.subr.bf16.mxu0 0
        %2688 = vmatpush1.bf16.msra.mxu0 0
        %2689 = vmatprep.subr.bf16.mxu0 0
        %2690 = vmatpush1.bf16.msra.mxu0 0
        %2691 = vmatprep.subr.bf16.mxu0 0
        %2692 = vmatpush1.bf16.msra.mxu0 %v2675
        %2693 = vmatprep.subr.bf16.mxu0 0
        %2694 = vmatpush2.bf16.msra.mxu0 0
        %2695 = vmatprep.subr.bf16.mxu0 0
        %2696 = vmatpush2.bf16.msra.mxu0 0
        %2697 = vmatprep.subr.bf16.mxu0 0
        %2698 = vmatpush2.bf16.msra.mxu0 0
        %2699 = vmatprep.subr.bf16.mxu0 0
        %2700 = vmatpush2.bf16.msra.mxu0 0
        %2701 = vmatprep.subr.bf16.mxu0 0
        %2702 = vmatpush2.bf16.msra.mxu0 0
        %2703 = vmatprep.subr.bf16.mxu0 0
        %2704 = vmatpush2.bf16.msra.mxu0 0
        %2705 = vmatprep.subr.bf16.mxu0 0
        %2706 = vmatpush2.bf16.msra.mxu0 0
        %2707 = vmatprep.subr.bf16.mxu0 0
        %2708 = vmatpush2.bf16.msra.mxu0 0
        %2709 = vmatprep.mubr.bf16.mxu0 0
        %2710 = vmatmul.mubr.bf16.gmra.mxu0 %v2672
        %v2711 = vpop.f32.mrf.mxu0
        %v2712 = vadd.f32 0.0, %v2711
        %v2713 = vpop.f32.mrf.mxu0
        %v2714 = vpop.f32.mrf.mxu0
        %v2715 = vpop.f32.mrf.mxu0
        %2716 = vdwg.mxu0
        %2717 = vrot.lane.b32.xlu0 %v2192, 60
        %v2718 = vpop.permute.xlu0 %2717
        %v2720 = vsel %vm1444, %v2474, 0
        %v2723 = vsel %vm1448, %v2718, 0
        %2725 = vmatprep.subr.bf16.mxu0 0
        %2726 = vmatpush1.bf16.msra.mxu0 0
        %2727 = vmatprep.subr.bf16.mxu0 0
        %2728 = vmatpush1.bf16.msra.mxu0 0
        %2729 = vmatprep.subr.bf16.mxu0 0
        %2730 = vmatpush1.bf16.msra.mxu0 0
        %2731 = vmatprep.subr.bf16.mxu0 0
        %2732 = vmatpush1.bf16.msra.mxu0 0
        %2733 = vmatprep.subr.bf16.mxu0 0
        %2734 = vmatpush1.bf16.msra.mxu0 0
        %2735 = vmatprep.subr.bf16.mxu0 0
        %2736 = vmatpush1.bf16.msra.mxu0 0
        %2737 = vmatprep.subr.bf16.mxu0 0
        %2738 = vmatpush1.bf16.msra.mxu0 0
        %2739 = vmatprep.subr.bf16.mxu0 0
        %2740 = vmatpush1.bf16.msra.mxu0 %v2723
        %2741 = vmatprep.subr.bf16.mxu0 0
        %2742 = vmatpush2.bf16.msra.mxu0 0
        %2743 = vmatprep.subr.bf16.mxu0 0
        %2744 = vmatpush2.bf16.msra.mxu0 0
        %2745 = vmatprep.subr.bf16.mxu0 0
        %2746 = vmatpush2.bf16.msra.mxu0 0
        %2747 = vmatprep.subr.bf16.mxu0 0
        %2748 = vmatpush2.bf16.msra.mxu0 0
        %2749 = vmatprep.subr.bf16.mxu0 0
        %2750 = vmatpush2.bf16.msra.mxu0 0
        %2751 = vmatprep.subr.bf16.mxu0 0
        %2752 = vmatpush2.bf16.msra.mxu0 0
        %2753 = vmatprep.subr.bf16.mxu0 0
        %2754 = vmatpush2.bf16.msra.mxu0 0
        %2755 = vmatprep.subr.bf16.mxu0 0
        %2756 = vmatpush2.bf16.msra.mxu0 0
        %2757 = vmatprep.mubr.bf16.mxu0 0
        %2758 = vmatmul.mubr.bf16.gmra.mxu0 %v2720
        %v2759 = vpop.f32.mrf.mxu0
        %v2760 = vadd.f32 0.0, %v2759
        %v2761 = vpop.f32.mrf.mxu0
        %v2762 = vpop.f32.mrf.mxu0
        %v2763 = vpop.f32.mrf.mxu0
        %2764 = vdwg.mxu0
        %2765 = vrot.lane.b32.xlu0 %v2257, 60
        %v2766 = vpop.permute.xlu0 %2765
        %v2768 = vsel %vm1444, %v2475, 0
        %v2771 = vsel %vm1448, %v2766, 0
        %2773 = vmatprep.subr.bf16.mxu0 0
        %2774 = vmatpush1.bf16.msra.mxu0 0
        %2775 = vmatprep.subr.bf16.mxu0 0
        %2776 = vmatpush1.bf16.msra.mxu0 0
        %2777 = vmatprep.subr.bf16.mxu0 0
        %2778 = vmatpush1.bf16.msra.mxu0 0
        %2779 = vmatprep.subr.bf16.mxu0 0
        %2780 = vmatpush1.bf16.msra.mxu0 0
        %2781 = vmatprep.subr.bf16.mxu0 0
        %2782 = vmatpush1.bf16.msra.mxu0 0
        %2783 = vmatprep.subr.bf16.mxu0 0
        %2784 = vmatpush1.bf16.msra.mxu0 0
        %2785 = vmatprep.subr.bf16.mxu0 0
        %2786 = vmatpush1.bf16.msra.mxu0 0
        %2787 = vmatprep.subr.bf16.mxu0 0
        %2788 = vmatpush1.bf16.msra.mxu0 %v2771
        %2789 = vmatprep.subr.bf16.mxu0 0
        %2790 = vmatpush2.bf16.msra.mxu0 0
        %2791 = vmatprep.subr.bf16.mxu0 0
        %2792 = vmatpush2.bf16.msra.mxu0 0
        %2793 = vmatprep.subr.bf16.mxu0 0
        %2794 = vmatpush2.bf16.msra.mxu0 0
        %2795 = vmatprep.subr.bf16.mxu0 0
        %2796 = vmatpush2.bf16.msra.mxu0 0
        %2797 = vmatprep.subr.bf16.mxu0 0
        %2798 = vmatpush2.bf16.msra.mxu0 0
        %2799 = vmatprep.subr.bf16.mxu0 0
        %2800 = vmatpush2.bf16.msra.mxu0 0
        %2801 = vmatprep.subr.bf16.mxu0 0
        %2802 = vmatpush2.bf16.msra.mxu0 0
        %2803 = vmatprep.subr.bf16.mxu0 0
        %2804 = vmatpush2.bf16.msra.mxu0 0
        %2805 = vmatprep.mubr.bf16.mxu0 0
        %2806 = vmatmul.mubr.bf16.gmra.mxu0 %v2768
        %v2807 = vpop.f32.mrf.mxu0
        %v2808 = vadd.f32 0.0, %v2807
        %v2809 = vpop.f32.mrf.mxu0
        %v2810 = vpop.f32.mrf.mxu0
        %v2811 = vpop.f32.mrf.mxu0
        %2812 = vdwg.mxu0
        %2813 = vrot.lane.b32.xlu0 %v2322, 60
        %v2814 = vpop.permute.xlu0 %2813
        %v2816 = vsel %vm1444, %v2476, 0
        %v2819 = vsel %vm1448, %v2814, 0
        %2821 = vmatprep.subr.bf16.mxu0 0
        %2822 = vmatpush1.bf16.msra.mxu0 0
        %2823 = vmatprep.subr.bf16.mxu0 0
        %2824 = vmatpush1.bf16.msra.mxu0 0
        %2825 = vmatprep.subr.bf16.mxu0 0
        %2826 = vmatpush1.bf16.msra.mxu0 0
        %2827 = vmatprep.subr.bf16.mxu0 0
        %2828 = vmatpush1.bf16.msra.mxu0 0
        %2829 = vmatprep.subr.bf16.mxu0 0
        %2830 = vmatpush1.bf16.msra.mxu0 0
        %2831 = vmatprep.subr.bf16.mxu0 0
        %2832 = vmatpush1.bf16.msra.mxu0 0
        %2833 = vmatprep.subr.bf16.mxu0 0
        %2834 = vmatpush1.bf16.msra.mxu0 0
        %2835 = vmatprep.subr.bf16.mxu0 0
        %2836 = vmatpush1.bf16.msra.mxu0 %v2819
        %2837 = vmatprep.subr.bf16.mxu0 0
        %2838 = vmatpush2.bf16.msra.mxu0 0
        %2839 = vmatprep.subr.bf16.mxu0 0
        %2840 = vmatpush2.bf16.msra.mxu0 0
        %2841 = vmatprep.subr.bf16.mxu0 0
        %2842 = vmatpush2.bf16.msra.mxu0 0
        %2843 = vmatprep.subr.bf16.mxu0 0
        %2844 = vmatpush2.bf16.msra.mxu0 0
        %2845 = vmatprep.subr.bf16.mxu0 0
        %2846 = vmatpush2.bf16.msra.mxu0 0
        %2847 = vmatprep.subr.bf16.mxu0 0
        %2848 = vmatpush2.bf16.msra.mxu0 0
        %2849 = vmatprep.subr.bf16.mxu0 0
        %2850 = vmatpush2.bf16.msra.mxu0 0
        %2851 = vmatprep.subr.bf16.mxu0 0
        %2852 = vmatpush2.bf16.msra.mxu0 0
        %2853 = vmatprep.mubr.bf16.mxu0 0
        %2854 = vmatmul.mubr.bf16.gmra.mxu0 %v2816
        %v2855 = vpop.f32.mrf.mxu0
        %v2856 = vadd.f32 0.0, %v2855
        %v2857 = vpop.f32.mrf.mxu0
        %v2858 = vpop.f32.mrf.mxu0
        %v2859 = vpop.f32.mrf.mxu0
        %2860 = vdwg.mxu0
        %v2861 = vpack.c.bf16 %v2520, %v2520
        %v2862 = vpack.c.bf16 %v2568, %v2568
        %v2863 = vpack.c.bf16 %v2616, %v2616
        %v2864 = vpack.c.bf16 %v2664, %v2664
        %v2865 = vpack.c.bf16 %v2712, %v2712
        %v2866 = vpack.c.bf16 %v2760, %v2760
        %v2867 = vpack.c.bf16 %v2808, %v2808
        %v2868 = vpack.c.bf16 %v2856, %v2856
        %v2878 = vunpack.c.l.s4 1966171168
        %v2879 = vunpack.c.0.s8 %v2878
        %v2880 = vlaneseq
        %v2881 = vshrl.u32 %v2880, 7
        %v2882 = vsub.s32 %v2879, %v2881
        %v2883 = vrot.slane %v2861, %v2882
        %v2885 = vunpack.c.l.s4 1966171168
        %v2886 = vunpack.c.0.s8 %v2885
        %v2887 = vlaneseq
        %v2888 = vshrl.u32 %v2887, 7
        %v2889 = vsub.s32 %v2886, %v2888
        %v2890 = vrot.slane %v2883, %v2889
        %v2892 = vunpack.c.l.s4 1966171168
        %v2893 = vunpack.c.0.s8 %v2892
        %v2894 = vlaneseq
        %v2895 = vshrl.u32 %v2894, 7
        %v2896 = vsub.s32 %v2893, %v2895
        %v2897 = vrot.slane %v2862, %v2896
        %v2899 = vunpack.c.l.s4 1966171168
        %v2900 = vunpack.c.0.s8 %v2899
        %v2901 = vlaneseq
        %v2902 = vshrl.u32 %v2901, 7
        %v2903 = vsub.s32 %v2900, %v2902
        %v2904 = vrot.slane %v2897, %v2903
        %v2906 = vunpack.c.l.s4 1966171168
        %v2907 = vunpack.c.0.s8 %v2906
        %v2908 = vlaneseq
        %v2909 = vshrl.u32 %v2908, 7
        %v2910 = vsub.s32 %v2907, %v2909
        %v2911 = vrot.slane %v2863, %v2910
        %v2913 = vunpack.c.l.s4 1966171168
        %v2914 = vunpack.c.0.s8 %v2913
        %v2915 = vlaneseq
        %v2916 = vshrl.u32 %v2915, 7
        %v2917 = vsub.s32 %v2914, %v2916
        %v2918 = vrot.slane %v2911, %v2917
        %v2920 = vunpack.c.l.s4 1966171168
        %v2921 = vunpack.c.0.s8 %v2920
        %v2922 = vlaneseq
        %v2923 = vshrl.u32 %v2922, 7
        %v2924 = vsub.s32 %v2921, %v2923
        %v2925 = vrot.slane %v2864, %v2924
        %v2927 = vunpack.c.l.s4 1966171168
        %v2928 = vunpack.c.0.s8 %v2927
        %v2929 = vlaneseq
        %v2930 = vshrl.u32 %v2929, 7
        %v2931 = vsub.s32 %v2928, %v2930
        %v2932 = vrot.slane %v2925, %v2931
        %v2934 = vunpack.c.l.s4 1966171168
        %v2935 = vunpack.c.0.s8 %v2934
        %v2936 = vlaneseq
        %v2937 = vshrl.u32 %v2936, 7
        %v2938 = vsub.s32 %v2935, %v2937
        %v2939 = vrot.slane %v2865, %v2938
        %v2941 = vunpack.c.l.s4 1966171168
        %v2942 = vunpack.c.0.s8 %v2941
        %v2943 = vlaneseq
        %v2944 = vshrl.u32 %v2943, 7
        %v2945 = vsub.s32 %v2942, %v2944
        %v2946 = vrot.slane %v2939, %v2945
        %v2948 = vunpack.c.l.s4 1966171168
        %v2949 = vunpack.c.0.s8 %v2948
        %v2950 = vlaneseq
        %v2951 = vshrl.u32 %v2950, 7
        %v2952 = vsub.s32 %v2949, %v2951
        %v2953 = vrot.slane %v2866, %v2952
        %v2955 = vunpack.c.l.s4 1966171168
        %v2956 = vunpack.c.0.s8 %v2955
        %v2957 = vlaneseq
        %v2958 = vshrl.u32 %v2957, 7
        %v2959 = vsub.s32 %v2956, %v2958
        %v2960 = vrot.slane %v2953, %v2959
        %v2962 = vunpack.c.l.s4 1966171168
        %v2963 = vunpack.c.0.s8 %v2962
        %v2964 = vlaneseq
        %v2965 = vshrl.u32 %v2964, 7
        %v2966 = vsub.s32 %v2963, %v2965
        %v2967 = vrot.slane %v2867, %v2966
        %v2969 = vunpack.c.l.s4 1966171168
        %v2970 = vunpack.c.0.s8 %v2969
        %v2971 = vlaneseq
        %v2972 = vshrl.u32 %v2971, 7
        %v2973 = vsub.s32 %v2970, %v2972
        %v2974 = vrot.slane %v2967, %v2973
        %v2976 = vunpack.c.l.s4 1966171168
        %v2977 = vunpack.c.0.s8 %v2976
        %v2978 = vlaneseq
        %v2979 = vshrl.u32 %v2978, 7
        %v2980 = vsub.s32 %v2977, %v2979
        %v2981 = vrot.slane %v2868, %v2980
        %v2983 = vunpack.c.l.s4 1966171168
        %v2984 = vunpack.c.0.s8 %v2983
        %v2985 = vlaneseq
        %v2986 = vshrl.u32 %v2985, 7
        %v2987 = vsub.s32 %v2984, %v2986
        %v2988 = vrot.slane %v2981, %v2987
        %2989 = vrot.lane.b32.xlu0 %v2890, 4
        %v2990 = vpop.permute.xlu0 %2989
        %2991 = vrot.lane.b32.xlu0 %v2904, 4
        %v2992 = vpop.permute.xlu0 %2991
        %2993 = vrot.lane.b32.xlu0 %v2918, 4
        %v2994 = vpop.permute.xlu0 %2993
        %2995 = vrot.lane.b32.xlu0 %v2932, 4
        %v2996 = vpop.permute.xlu0 %2995
        %2997 = vrot.lane.b32.xlu0 %v2946, 4
        %v2998 = vpop.permute.xlu0 %2997
        %2999 = vrot.lane.b32.xlu0 %v2960, 4
        %v3000 = vpop.permute.xlu0 %2999
        %3001 = vrot.lane.b32.xlu0 %v2974, 4
        %v3002 = vpop.permute.xlu0 %3001
        %3003 = vrot.lane.b32.xlu0 %v2988, 4
        %v3004 = vpop.permute.xlu0 %3003
        %vm3013 = vcmask 57376
        %3014 = vst.msk [vmem:[#allocation3] sm:$0x1] %vm3013, %v2990
        %3015 = vst.msk [vmem:[#allocation3 + $0x1] sm:$0x1] %vm3013, %v2992
        %3016 = vst.msk [vmem:[#allocation3 + $0x2] sm:$0x1] %vm3013, %v2994
        %3017 = vst.msk [vmem:[#allocation3 + $0x3] sm:$0x1] %vm3013, %v2996
        %3018 = vst.msk [vmem:[#allocation3 + $0x4] sm:$0x1] %vm3013, %v2998
        %3019 = vst.msk [vmem:[#allocation3 + $0x5] sm:$0x1] %vm3013, %v3000
        %3020 = vst.msk [vmem:[#allocation3 + $0x6] sm:$0x1] %vm3013, %v3002
        %3021 = vst.msk [vmem:[#allocation3 + $0x7] sm:$0x1] %vm3013, %v3004
        %v3022 = vld [vmem:[#allocation2] sm:$0x1]
        %v3023 = vld [vmem:[#allocation2 + $0x1] sm:$0x1]
        %v3024 = vld [vmem:[#allocation2 + $0x2] sm:$0x1]
        %v3025 = vld [vmem:[#allocation2 + $0x3] sm:$0x1]
        %v3026 = vld [vmem:[#allocation2 + $0x4] sm:$0x1]
        %v3027 = vld [vmem:[#allocation2 + $0x5] sm:$0x1]
        %v3028 = vld [vmem:[#allocation2 + $0x6] sm:$0x1]
        %v3029 = vld [vmem:[#allocation2 + $0x7] sm:$0x1]
        %v3032 = vunpack.c.l.s4 1966171168
        %v3033 = vunpack.c.0.s8 %v3032
        %v3034 = vlaneseq
        %v3035 = vshrl.u32 %v3034, 7
        %v3036 = vsub.s32 %v3033, %v3035
        %v3037 = vrot.slane %v3022, %v3036
        %v3039 = vunpack.c.l.s4 1966171168
        %v3040 = vunpack.c.0.s8 %v3039
        %v3041 = vlaneseq
        %v3042 = vshrl.u32 %v3041, 7
        %v3043 = vsub.s32 %v3040, %v3042
        %v3044 = vrot.slane %v3037, %v3043
        %3045 = vrot.lane.b32.xlu0 %v3044, 120
        %v3046 = vpop.permute.xlu0 %3045
        %3047 = vrot.lane.b32.xlu0 %v3044, 88
        %v3048 = vpop.permute.xlu0 %3047
        %v3050 = vsel %vm849, %v3046, 0
        %v3053 = vsel %vm849, %v3048, 0
        %3055 = vmatprep.subr.bf16.mxu0 0
        %3056 = vmatpush1.bf16.xpose.msra.mxu0 0
        %3057 = vmatprep.subr.bf16.mxu0 0
        %3058 = vmatpush1.bf16.xpose.msra.mxu0 0
        %3059 = vmatprep.subr.bf16.mxu0 0
        %3060 = vmatpush1.bf16.xpose.msra.mxu0 0
        %3061 = vmatprep.subr.bf16.mxu0 0
        %3062 = vmatpush1.bf16.xpose.msra.mxu0 0
        %3063 = vmatprep.subr.bf16.mxu0 0
        %3064 = vmatpush1.bf16.xpose.msra.mxu0 0
        %3065 = vmatprep.subr.bf16.mxu0 0
        %3066 = vmatpush1.bf16.xpose.msra.mxu0 0
        %3067 = vmatprep.subr.bf16.mxu0 0
        %3068 = vmatpush1.bf16.xpose.msra.mxu0 0
        %3069 = vmatprep.subr.bf16.mxu0 0
        %3070 = vmatpush1.bf16.xpose.msra.mxu0 %v3053
        %3071 = vmatprep.subr.bf16.mxu0 0
        %3072 = vmatpush2.bf16.xpose.msra.mxu0 0
        %3073 = vmatprep.subr.bf16.mxu0 0
        %3074 = vmatpush2.bf16.xpose.msra.mxu0 0
        %3075 = vmatprep.subr.bf16.mxu0 0
        %3076 = vmatpush2.bf16.xpose.msra.mxu0 0
        %3077 = vmatprep.subr.bf16.mxu0 0
        %3078 = vmatpush2.bf16.xpose.msra.mxu0 0
        %3079 = vmatprep.subr.bf16.mxu0 0
        %3080 = vmatpush2.bf16.xpose.msra.mxu0 0
        %3081 = vmatprep.subr.bf16.mxu0 0
        %3082 = vmatpush2.bf16.xpose.msra.mxu0 0
        %3083 = vmatprep.subr.bf16.mxu0 0
        %3084 = vmatpush2.bf16.xpose.msra.mxu0 0
        %3085 = vmatprep.subr.bf16.mxu0 0
        %3086 = vmatpush2.bf16.xpose.msra.mxu0 0
        %3087 = vmatprep.mubr.bf16.mxu0 0
        %3088 = vmatmul.mubr.bf16.gmra.mxu0 %v3050
        %v3089 = vpop.f32.mrf.mxu0
        %v3090 = vadd.f32 0.0, %v3089
        %v3091 = vpop.f32.mrf.mxu0
        %v3092 = vpop.f32.mrf.mxu0
        %v3093 = vpop.f32.mrf.mxu0
        %3094 = vdwg.mxu0
        %v3097 = vunpack.c.l.s4 1966171168
        %v3098 = vunpack.c.0.s8 %v3097
        %v3099 = vlaneseq
        %v3100 = vshrl.u32 %v3099, 7
        %v3101 = vsub.s32 %v3098, %v3100
        %v3102 = vrot.slane %v3023, %v3101
        %v3104 = vunpack.c.l.s4 1966171168
        %v3105 = vunpack.c.0.s8 %v3104
        %v3106 = vlaneseq
        %v3107 = vshrl.u32 %v3106, 7
        %v3108 = vsub.s32 %v3105, %v3107
        %v3109 = vrot.slane %v3102, %v3108
        %3110 = vrot.lane.b32.xlu0 %v3109, 120
        %v3111 = vpop.permute.xlu0 %3110
        %3112 = vrot.lane.b32.xlu0 %v3109, 88
        %v3113 = vpop.permute.xlu0 %3112
        %v3115 = vsel %vm849, %v3111, 0
        %v3118 = vsel %vm849, %v3113, 0
        %3120 = vmatprep.subr.bf16.mxu0 0
        %3121 = vmatpush1.bf16.xpose.msra.mxu0 0
        %3122 = vmatprep.subr.bf16.mxu0 0
        %3123 = vmatpush1.bf16.xpose.msra.mxu0 0
        %3124 = vmatprep.subr.bf16.mxu0 0
        %3125 = vmatpush1.bf16.xpose.msra.mxu0 0
        %3126 = vmatprep.subr.bf16.mxu0 0
        %3127 = vmatpush1.bf16.xpose.msra.mxu0 0
        %3128 = vmatprep.subr.bf16.mxu0 0
        %3129 = vmatpush1.bf16.xpose.msra.mxu0 0
        %3130 = vmatprep.subr.bf16.mxu0 0
        %3131 = vmatpush1.bf16.xpose.msra.mxu0 0
        %3132 = vmatprep.subr.bf16.mxu0 0
        %3133 = vmatpush1.bf16.xpose.msra.mxu0 0
        %3134 = vmatprep.subr.bf16.mxu0 0
        %3135 = vmatpush1.bf16.xpose.msra.mxu0 %v3118
        %3136 = vmatprep.subr.bf16.mxu0 0
        %3137 = vmatpush2.bf16.xpose.msra.mxu0 0
        %3138 = vmatprep.subr.bf16.mxu0 0
        %3139 = vmatpush2.bf16.xpose.msra.mxu0 0
        %3140 = vmatprep.subr.bf16.mxu0 0
        %3141 = vmatpush2.bf16.xpose.msra.mxu0 0
        %3142 = vmatprep.subr.bf16.mxu0 0
        %3143 = vmatpush2.bf16.xpose.msra.mxu0 0
        %3144 = vmatprep.subr.bf16.mxu0 0
        %3145 = vmatpush2.bf16.xpose.msra.mxu0 0
        %3146 = vmatprep.subr.bf16.mxu0 0
        %3147 = vmatpush2.bf16.xpose.msra.mxu0 0
        %3148 = vmatprep.subr.bf16.mxu0 0
        %3149 = vmatpush2.bf16.xpose.msra.mxu0 0
        %3150 = vmatprep.subr.bf16.mxu0 0
        %3151 = vmatpush2.bf16.xpose.msra.mxu0 0
        %3152 = vmatprep.mubr.bf16.mxu0 0
        %3153 = vmatmul.mubr.bf16.gmra.mxu0 %v3115
        %v3154 = vpop.f32.mrf.mxu0
        %v3155 = vadd.f32 0.0, %v3154
        %v3156 = vpop.f32.mrf.mxu0
        %v3157 = vpop.f32.mrf.mxu0
        %v3158 = vpop.f32.mrf.mxu0
        %3159 = vdwg.mxu0
        %v3162 = vunpack.c.l.s4 1966171168
        %v3163 = vunpack.c.0.s8 %v3162
        %v3164 = vlaneseq
        %v3165 = vshrl.u32 %v3164, 7
        %v3166 = vsub.s32 %v3163, %v3165
        %v3167 = vrot.slane %v3024, %v3166
        %v3169 = vunpack.c.l.s4 1966171168
        %v3170 = vunpack.c.0.s8 %v3169
        %v3171 = vlaneseq
        %v3172 = vshrl.u32 %v3171, 7
        %v3173 = vsub.s32 %v3170, %v3172
        %v3174 = vrot.slane %v3167, %v3173
        %3175 = vrot.lane.b32.xlu0 %v3174, 120
        %v3176 = vpop.permute.xlu0 %3175
        %3177 = vrot.lane.b32.xlu0 %v3174, 88
        %v3178 = vpop.permute.xlu0 %3177
        %v3180 = vsel %vm849, %v3176, 0
        %v3183 = vsel %vm849, %v3178, 0
        %3185 = vmatprep.subr.bf16.mxu0 0
        %3186 = vmatpush1.bf16.xpose.msra.mxu0 0
        %3187 = vmatprep.subr.bf16.mxu0 0
        %3188 = vmatpush1.bf16.xpose.msra.mxu0 0
        %3189 = vmatprep.subr.bf16.mxu0 0
        %3190 = vmatpush1.bf16.xpose.msra.mxu0 0
        %3191 = vmatprep.subr.bf16.mxu0 0
        %3192 = vmatpush1.bf16.xpose.msra.mxu0 0
        %3193 = vmatprep.subr.bf16.mxu0 0
        %3194 = vmatpush1.bf16.xpose.msra.mxu0 0
        %3195 = vmatprep.subr.bf16.mxu0 0
        %3196 = vmatpush1.bf16.xpose.msra.mxu0 0
        %3197 = vmatprep.subr.bf16.mxu0 0
        %3198 = vmatpush1.bf16.xpose.msra.mxu0 0
        %3199 = vmatprep.subr.bf16.mxu0 0
        %3200 = vmatpush1.bf16.xpose.msra.mxu0 %v3183
        %3201 = vmatprep.subr.bf16.mxu0 0
        %3202 = vmatpush2.bf16.xpose.msra.mxu0 0
        %3203 = vmatprep.subr.bf16.mxu0 0
        %3204 = vmatpush2.bf16.xpose.msra.mxu0 0
        %3205 = vmatprep.subr.bf16.mxu0 0
        %3206 = vmatpush2.bf16.xpose.msra.mxu0 0
        %3207 = vmatprep.subr.bf16.mxu0 0
        %3208 = vmatpush2.bf16.xpose.msra.mxu0 0
        %3209 = vmatprep.subr.bf16.mxu0 0
        %3210 = vmatpush2.bf16.xpose.msra.mxu0 0
        %3211 = vmatprep.subr.bf16.mxu0 0
        %3212 = vmatpush2.bf16.xpose.msra.mxu0 0
        %3213 = vmatprep.subr.bf16.mxu0 0
        %3214 = vmatpush2.bf16.xpose.msra.mxu0 0
        %3215 = vmatprep.subr.bf16.mxu0 0
        %3216 = vmatpush2.bf16.xpose.msra.mxu0 0
        %3217 = vmatprep.mubr.bf16.mxu0 0
        %3218 = vmatmul.mubr.bf16.gmra.mxu0 %v3180
        %v3219 = vpop.f32.mrf.mxu0
        %v3220 = vadd.f32 0.0, %v3219
        %v3221 = vpop.f32.mrf.mxu0
        %v3222 = vpop.f32.mrf.mxu0
        %v3223 = vpop.f32.mrf.mxu0
        %3224 = vdwg.mxu0
        %v3227 = vunpack.c.l.s4 1966171168
        %v3228 = vunpack.c.0.s8 %v3227
        %v3229 = vlaneseq
        %v3230 = vshrl.u32 %v3229, 7
        %v3231 = vsub.s32 %v3228, %v3230
        %v3232 = vrot.slane %v3025, %v3231
        %v3234 = vunpack.c.l.s4 1966171168
        %v3235 = vunpack.c.0.s8 %v3234
        %v3236 = vlaneseq
        %v3237 = vshrl.u32 %v3236, 7
        %v3238 = vsub.s32 %v3235, %v3237
        %v3239 = vrot.slane %v3232, %v3238
        %3240 = vrot.lane.b32.xlu0 %v3239, 120
        %v3241 = vpop.permute.xlu0 %3240
        %3242 = vrot.lane.b32.xlu0 %v3239, 88
        %v3243 = vpop.permute.xlu0 %3242
        %v3245 = vsel %vm849, %v3241, 0
        %v3248 = vsel %vm849, %v3243, 0
        %3250 = vmatprep.subr.bf16.mxu0 0
        %3251 = vmatpush1.bf16.xpose.msra.mxu0 0
        %3252 = vmatprep.subr.bf16.mxu0 0
        %3253 = vmatpush1.bf16.xpose.msra.mxu0 0
        %3254 = vmatprep.subr.bf16.mxu0 0
        %3255 = vmatpush1.bf16.xpose.msra.mxu0 0
        %3256 = vmatprep.subr.bf16.mxu0 0
        %3257 = vmatpush1.bf16.xpose.msra.mxu0 0
        %3258 = vmatprep.subr.bf16.mxu0 0
        %3259 = vmatpush1.bf16.xpose.msra.mxu0 0
        %3260 = vmatprep.subr.bf16.mxu0 0
        %3261 = vmatpush1.bf16.xpose.msra.mxu0 0
        %3262 = vmatprep.subr.bf16.mxu0 0
        %3263 = vmatpush1.bf16.xpose.msra.mxu0 0
        %3264 = vmatprep.subr.bf16.mxu0 0
        %3265 = vmatpush1.bf16.xpose.msra.mxu0 %v3248
        %3266 = vmatprep.subr.bf16.mxu0 0
        %3267 = vmatpush2.bf16.xpose.msra.mxu0 0
        %3268 = vmatprep.subr.bf16.mxu0 0
        %3269 = vmatpush2.bf16.xpose.msra.mxu0 0
        %3270 = vmatprep.subr.bf16.mxu0 0
        %3271 = vmatpush2.bf16.xpose.msra.mxu0 0
        %3272 = vmatprep.subr.bf16.mxu0 0
        %3273 = vmatpush2.bf16.xpose.msra.mxu0 0
        %3274 = vmatprep.subr.bf16.mxu0 0
        %3275 = vmatpush2.bf16.xpose.msra.mxu0 0
        %3276 = vmatprep.subr.bf16.mxu0 0
        %3277 = vmatpush2.bf16.xpose.msra.mxu0 0
        %3278 = vmatprep.subr.bf16.mxu0 0
        %3279 = vmatpush2.bf16.xpose.msra.mxu0 0
        %3280 = vmatprep.subr.bf16.mxu0 0
        %3281 = vmatpush2.bf16.xpose.msra.mxu0 0
        %3282 = vmatprep.mubr.bf16.mxu0 0
        %3283 = vmatmul.mubr.bf16.gmra.mxu0 %v3245
        %v3284 = vpop.f32.mrf.mxu0
        %v3285 = vadd.f32 0.0, %v3284
        %v3286 = vpop.f32.mrf.mxu0
        %v3287 = vpop.f32.mrf.mxu0
        %v3288 = vpop.f32.mrf.mxu0
        %3289 = vdwg.mxu0
        %v3292 = vunpack.c.l.s4 1966171168
        %v3293 = vunpack.c.0.s8 %v3292
        %v3294 = vlaneseq
        %v3295 = vshrl.u32 %v3294, 7
        %v3296 = vsub.s32 %v3293, %v3295
        %v3297 = vrot.slane %v3026, %v3296
        %v3299 = vunpack.c.l.s4 1966171168
        %v3300 = vunpack.c.0.s8 %v3299
        %v3301 = vlaneseq
        %v3302 = vshrl.u32 %v3301, 7
        %v3303 = vsub.s32 %v3300, %v3302
        %v3304 = vrot.slane %v3297, %v3303
        %3305 = vrot.lane.b32.xlu0 %v3304, 120
        %v3306 = vpop.permute.xlu0 %3305
        %3307 = vrot.lane.b32.xlu0 %v3304, 88
        %v3308 = vpop.permute.xlu0 %3307
        %v3310 = vsel %vm849, %v3306, 0
        %v3313 = vsel %vm849, %v3308, 0
        %3315 = vmatprep.subr.bf16.mxu0 0
        %3316 = vmatpush1.bf16.xpose.msra.mxu0 0
        %3317 = vmatprep.subr.bf16.mxu0 0
        %3318 = vmatpush1.bf16.xpose.msra.mxu0 0
        %3319 = vmatprep.subr.bf16.mxu0 0
        %3320 = vmatpush1.bf16.xpose.msra.mxu0 0
        %3321 = vmatprep.subr.bf16.mxu0 0
        %3322 = vmatpush1.bf16.xpose.msra.mxu0 0
        %3323 = vmatprep.subr.bf16.mxu0 0
        %3324 = vmatpush1.bf16.xpose.msra.mxu0 0
        %3325 = vmatprep.subr.bf16.mxu0 0
        %3326 = vmatpush1.bf16.xpose.msra.mxu0 0
        %3327 = vmatprep.subr.bf16.mxu0 0
        %3328 = vmatpush1.bf16.xpose.msra.mxu0 0
        %3329 = vmatprep.subr.bf16.mxu0 0
        %3330 = vmatpush1.bf16.xpose.msra.mxu0 %v3313
        %3331 = vmatprep.subr.bf16.mxu0 0
        %3332 = vmatpush2.bf16.xpose.msra.mxu0 0
        %3333 = vmatprep.subr.bf16.mxu0 0
        %3334 = vmatpush2.bf16.xpose.msra.mxu0 0
        %3335 = vmatprep.subr.bf16.mxu0 0
        %3336 = vmatpush2.bf16.xpose.msra.mxu0 0
        %3337 = vmatprep.subr.bf16.mxu0 0
        %3338 = vmatpush2.bf16.xpose.msra.mxu0 0
        %3339 = vmatprep.subr.bf16.mxu0 0
        %3340 = vmatpush2.bf16.xpose.msra.mxu0 0
        %3341 = vmatprep.subr.bf16.mxu0 0
        %3342 = vmatpush2.bf16.xpose.msra.mxu0 0
        %3343 = vmatprep.subr.bf16.mxu0 0
        %3344 = vmatpush2.bf16.xpose.msra.mxu0 0
        %3345 = vmatprep.subr.bf16.mxu0 0
        %3346 = vmatpush2.bf16.xpose.msra.mxu0 0
        %3347 = vmatprep.mubr.bf16.mxu0 0
        %3348 = vmatmul.mubr.bf16.gmra.mxu0 %v3310
        %v3349 = vpop.f32.mrf.mxu0
        %v3350 = vadd.f32 0.0, %v3349
        %v3351 = vpop.f32.mrf.mxu0
        %v3352 = vpop.f32.mrf.mxu0
        %v3353 = vpop.f32.mrf.mxu0
        %3354 = vdwg.mxu0
        %v3357 = vunpack.c.l.s4 1966171168
        %v3358 = vunpack.c.0.s8 %v3357
        %v3359 = vlaneseq
        %v3360 = vshrl.u32 %v3359, 7
        %v3361 = vsub.s32 %v3358, %v3360
        %v3362 = vrot.slane %v3027, %v3361
        %v3364 = vunpack.c.l.s4 1966171168
        %v3365 = vunpack.c.0.s8 %v3364
        %v3366 = vlaneseq
        %v3367 = vshrl.u32 %v3366, 7
        %v3368 = vsub.s32 %v3365, %v3367
        %v3369 = vrot.slane %v3362, %v3368
        %3370 = vrot.lane.b32.xlu0 %v3369, 120
        %v3371 = vpop.permute.xlu0 %3370
        %3372 = vrot.lane.b32.xlu0 %v3369, 88
        %v3373 = vpop.permute.xlu0 %3372
        %v3375 = vsel %vm849, %v3371, 0
        %v3378 = vsel %vm849, %v3373, 0
        %3380 = vmatprep.subr.bf16.mxu0 0
        %3381 = vmatpush1.bf16.xpose.msra.mxu0 0
        %3382 = vmatprep.subr.bf16.mxu0 0
        %3383 = vmatpush1.bf16.xpose.msra.mxu0 0
        %3384 = vmatprep.subr.bf16.mxu0 0
        %3385 = vmatpush1.bf16.xpose.msra.mxu0 0
        %3386 = vmatprep.subr.bf16.mxu0 0
        %3387 = vmatpush1.bf16.xpose.msra.mxu0 0
        %3388 = vmatprep.subr.bf16.mxu0 0
        %3389 = vmatpush1.bf16.xpose.msra.mxu0 0
        %3390 = vmatprep.subr.bf16.mxu0 0
        %3391 = vmatpush1.bf16.xpose.msra.mxu0 0
        %3392 = vmatprep.subr.bf16.mxu0 0
        %3393 = vmatpush1.bf16.xpose.msra.mxu0 0
        %3394 = vmatprep.subr.bf16.mxu0 0
        %3395 = vmatpush1.bf16.xpose.msra.mxu0 %v3378
        %3396 = vmatprep.subr.bf16.mxu0 0
        %3397 = vmatpush2.bf16.xpose.msra.mxu0 0
        %3398 = vmatprep.subr.bf16.mxu0 0
        %3399 = vmatpush2.bf16.xpose.msra.mxu0 0
        %3400 = vmatprep.subr.bf16.mxu0 0
        %3401 = vmatpush2.bf16.xpose.msra.mxu0 0
        %3402 = vmatprep.subr.bf16.mxu0 0
        %3403 = vmatpush2.bf16.xpose.msra.mxu0 0
        %3404 = vmatprep.subr.bf16.mxu0 0
        %3405 = vmatpush2.bf16.xpose.msra.mxu0 0
        %3406 = vmatprep.subr.bf16.mxu0 0
        %3407 = vmatpush2.bf16.xpose.msra.mxu0 0
        %3408 = vmatprep.subr.bf16.mxu0 0
        %3409 = vmatpush2.bf16.xpose.msra.mxu0 0
        %3410 = vmatprep.subr.bf16.mxu0 0
        %3411 = vmatpush2.bf16.xpose.msra.mxu0 0
        %3412 = vmatprep.mubr.bf16.mxu0 0
        %3413 = vmatmul.mubr.bf16.gmra.mxu0 %v3375
        %v3414 = vpop.f32.mrf.mxu0
        %v3415 = vadd.f32 0.0, %v3414
        %v3416 = vpop.f32.mrf.mxu0
        %v3417 = vpop.f32.mrf.mxu0
        %v3418 = vpop.f32.mrf.mxu0
        %3419 = vdwg.mxu0
        %v3422 = vunpack.c.l.s4 1966171168
        %v3423 = vunpack.c.0.s8 %v3422
        %v3424 = vlaneseq
        %v3425 = vshrl.u32 %v3424, 7
        %v3426 = vsub.s32 %v3423, %v3425
        %v3427 = vrot.slane %v3028, %v3426
        %v3429 = vunpack.c.l.s4 1966171168
        %v3430 = vunpack.c.0.s8 %v3429
        %v3431 = vlaneseq
        %v3432 = vshrl.u32 %v3431, 7
        %v3433 = vsub.s32 %v3430, %v3432
        %v3434 = vrot.slane %v3427, %v3433
        %3435 = vrot.lane.b32.xlu0 %v3434, 120
        %v3436 = vpop.permute.xlu0 %3435
        %3437 = vrot.lane.b32.xlu0 %v3434, 88
        %v3438 = vpop.permute.xlu0 %3437
        %v3440 = vsel %vm849, %v3436, 0
        %v3443 = vsel %vm849, %v3438, 0
        %3445 = vmatprep.subr.bf16.mxu0 0
        %3446 = vmatpush1.bf16.xpose.msra.mxu0 0
        %3447 = vmatprep.subr.bf16.mxu0 0
        %3448 = vmatpush1.bf16.xpose.msra.mxu0 0
        %3449 = vmatprep.subr.bf16.mxu0 0
        %3450 = vmatpush1.bf16.xpose.msra.mxu0 0
        %3451 = vmatprep.subr.bf16.mxu0 0
        %3452 = vmatpush1.bf16.xpose.msra.mxu0 0
        %3453 = vmatprep.subr.bf16.mxu0 0
        %3454 = vmatpush1.bf16.xpose.msra.mxu0 0
        %3455 = vmatprep.subr.bf16.mxu0 0
        %3456 = vmatpush1.bf16.xpose.msra.mxu0 0
        %3457 = vmatprep.subr.bf16.mxu0 0
        %3458 = vmatpush1.bf16.xpose.msra.mxu0 0
        %3459 = vmatprep.subr.bf16.mxu0 0
        %3460 = vmatpush1.bf16.xpose.msra.mxu0 %v3443
        %3461 = vmatprep.subr.bf16.mxu0 0
        %3462 = vmatpush2.bf16.xpose.msra.mxu0 0
        %3463 = vmatprep.subr.bf16.mxu0 0
        %3464 = vmatpush2.bf16.xpose.msra.mxu0 0
        %3465 = vmatprep.subr.bf16.mxu0 0
        %3466 = vmatpush2.bf16.xpose.msra.mxu0 0
        %3467 = vmatprep.subr.bf16.mxu0 0
        %3468 = vmatpush2.bf16.xpose.msra.mxu0 0
        %3469 = vmatprep.subr.bf16.mxu0 0
        %3470 = vmatpush2.bf16.xpose.msra.mxu0 0
        %3471 = vmatprep.subr.bf16.mxu0 0
        %3472 = vmatpush2.bf16.xpose.msra.mxu0 0
        %3473 = vmatprep.subr.bf16.mxu0 0
        %3474 = vmatpush2.bf16.xpose.msra.mxu0 0
        %3475 = vmatprep.subr.bf16.mxu0 0
        %3476 = vmatpush2.bf16.xpose.msra.mxu0 0
        %3477 = vmatprep.mubr.bf16.mxu0 0
        %3478 = vmatmul.mubr.bf16.gmra.mxu0 %v3440
        %v3479 = vpop.f32.mrf.mxu0
        %v3480 = vadd.f32 0.0, %v3479
        %v3481 = vpop.f32.mrf.mxu0
        %v3482 = vpop.f32.mrf.mxu0
        %v3483 = vpop.f32.mrf.mxu0
        %3484 = vdwg.mxu0
        %v3487 = vunpack.c.l.s4 1966171168
        %v3488 = vunpack.c.0.s8 %v3487
        %v3489 = vlaneseq
        %v3490 = vshrl.u32 %v3489, 7
        %v3491 = vsub.s32 %v3488, %v3490
        %v3492 = vrot.slane %v3029, %v3491
        %v3494 = vunpack.c.l.s4 1966171168
        %v3495 = vunpack.c.0.s8 %v3494
        %v3496 = vlaneseq
        %v3497 = vshrl.u32 %v3496, 7
        %v3498 = vsub.s32 %v3495, %v3497
        %v3499 = vrot.slane %v3492, %v3498
        %3500 = vrot.lane.b32.xlu0 %v3499, 120
        %v3501 = vpop.permute.xlu0 %3500
        %3502 = vrot.lane.b32.xlu0 %v3499, 88
        %v3503 = vpop.permute.xlu0 %3502
        %v3505 = vsel %vm849, %v3501, 0
        %v3508 = vsel %vm849, %v3503, 0
        %3510 = vmatprep.subr.bf16.mxu0 0
        %3511 = vmatpush1.bf16.xpose.msra.mxu0 0
        %3512 = vmatprep.subr.bf16.mxu0 0
        %3513 = vmatpush1.bf16.xpose.msra.mxu0 0
        %3514 = vmatprep.subr.bf16.mxu0 0
        %3515 = vmatpush1.bf16.xpose.msra.mxu0 0
        %3516 = vmatprep.subr.bf16.mxu0 0
        %3517 = vmatpush1.bf16.xpose.msra.mxu0 0
        %3518 = vmatprep.subr.bf16.mxu0 0
        %3519 = vmatpush1.bf16.xpose.msra.mxu0 0
        %3520 = vmatprep.subr.bf16.mxu0 0
        %3521 = vmatpush1.bf16.xpose.msra.mxu0 0
        %3522 = vmatprep.subr.bf16.mxu0 0
        %3523 = vmatpush1.bf16.xpose.msra.mxu0 0
        %3524 = vmatprep.subr.bf16.mxu0 0
        %3525 = vmatpush1.bf16.xpose.msra.mxu0 %v3508
        %3526 = vmatprep.subr.bf16.mxu0 0
        %3527 = vmatpush2.bf16.xpose.msra.mxu0 0
        %3528 = vmatprep.subr.bf16.mxu0 0
        %3529 = vmatpush2.bf16.xpose.msra.mxu0 0
        %3530 = vmatprep.subr.bf16.mxu0 0
        %3531 = vmatpush2.bf16.xpose.msra.mxu0 0
        %3532 = vmatprep.subr.bf16.mxu0 0
        %3533 = vmatpush2.bf16.xpose.msra.mxu0 0
        %3534 = vmatprep.subr.bf16.mxu0 0
        %3535 = vmatpush2.bf16.xpose.msra.mxu0 0
        %3536 = vmatprep.subr.bf16.mxu0 0
        %3537 = vmatpush2.bf16.xpose.msra.mxu0 0
        %3538 = vmatprep.subr.bf16.mxu0 0
        %3539 = vmatpush2.bf16.xpose.msra.mxu0 0
        %3540 = vmatprep.subr.bf16.mxu0 0
        %3541 = vmatpush2.bf16.xpose.msra.mxu0 0
        %3542 = vmatprep.mubr.bf16.mxu0 0
        %3543 = vmatmul.mubr.bf16.gmra.mxu0 %v3505
        %v3544 = vpop.f32.mrf.mxu0
        %v3545 = vadd.f32 0.0, %v3544
        %v3546 = vpop.f32.mrf.mxu0
        %v3547 = vpop.f32.mrf.mxu0
        %v3548 = vpop.f32.mrf.mxu0
        %3549 = vdwg.mxu0
        %v3550 = vmul.f32 %v3090, 0.5
        %v3551 = vmul.f32 %v3155, 0.5
        %v3552 = vmul.f32 %v3220, 0.5
        %v3553 = vmul.f32 %v3285, 0.5
        %v3554 = vmul.f32 %v3350, 0.5
        %v3555 = vmul.f32 %v3415, 0.5
        %v3556 = vmul.f32 %v3480, 0.5
        %v3557 = vmul.f32 %v3545, 0.5
        %v3558 = vsel %vm1345, %v3550, -inf
        %3559 = vmax.xlane.f32.xlu0 %v3558
        %v3560 = vpop.xlane.xlu0 %3559
        %v3561 = vsel %vm1345, %v3551, -inf
        %3562 = vmax.xlane.f32.xlu0 %v3561
        %v3563 = vpop.xlane.xlu0 %3562
        %v3564 = vsel %vm1345, %v3552, -inf
        %3565 = vmax.xlane.f32.xlu0 %v3564
        %v3566 = vpop.xlane.xlu0 %3565
        %v3567 = vsel %vm1345, %v3553, -inf
        %3568 = vmax.xlane.f32.xlu0 %v3567
        %v3569 = vpop.xlane.xlu0 %3568
        %v3570 = vsel %vm1345, %v3554, -inf
        %3571 = vmax.xlane.f32.xlu0 %v3570
        %v3572 = vpop.xlane.xlu0 %3571
        %v3573 = vsel %vm1345, %v3555, -inf
        %3574 = vmax.xlane.f32.xlu0 %v3573
        %v3575 = vpop.xlane.xlu0 %3574
        %v3576 = vsel %vm1345, %v3556, -inf
        %3577 = vmax.xlane.f32.xlu0 %v3576
        %v3578 = vpop.xlane.xlu0 %3577
        %v3579 = vsel %vm1345, %v3557, -inf
        %3580 = vmax.xlane.f32.xlu0 %v3579
        %v3581 = vpop.xlane.xlu0 %3580
        %v3582 = vsub.f32 %v3550, %v3560
        %v3583 = vsub.f32 %v3551, %v3563
        %v3584 = vsub.f32 %v3552, %v3566
        %v3585 = vsub.f32 %v3553, %v3569
        %v3586 = vsub.f32 %v3554, %v3572
        %v3587 = vsub.f32 %v3555, %v3575
        %v3588 = vsub.f32 %v3556, %v3578
        %v3589 = vsub.f32 %v3557, %v3581
        %v3590 = vmul.f32 %v3582, 1.442695
        %v3591 = vpow.pop %v3590
        %v3592 = vmul.f32 %v3583, 1.442695
        %v3593 = vpow.pop %v3592
        %v3594 = vmul.f32 %v3584, 1.442695
        %v3595 = vpow.pop %v3594
        %v3596 = vmul.f32 %v3585, 1.442695
        %v3597 = vpow.pop %v3596
        %v3598 = vmul.f32 %v3586, 1.442695
        %v3599 = vpow.pop %v3598
        %v3600 = vmul.f32 %v3587, 1.442695
        %v3601 = vpow.pop %v3600
        %v3602 = vmul.f32 %v3588, 1.442695
        %v3603 = vpow.pop %v3602
        %v3604 = vmul.f32 %v3589, 1.442695
        %v3605 = vpow.pop %v3604
        %v3606 = vsel %vm1345, %v3591, 0.0
        %3607 = vadd.xlane.f32.xlu0 %v3606
        %v3608 = vpop.xlane.xlu0 %3607
        %v3609 = vsel %vm1345, %v3593, 0.0
        %3610 = vadd.xlane.f32.xlu0 %v3609
        %v3611 = vpop.xlane.xlu0 %3610
        %v3612 = vsel %vm1345, %v3595, 0.0
        %3613 = vadd.xlane.f32.xlu0 %v3612
        %v3614 = vpop.xlane.xlu0 %3613
        %v3615 = vsel %vm1345, %v3597, 0.0
        %3616 = vadd.xlane.f32.xlu0 %v3615
        %v3617 = vpop.xlane.xlu0 %3616
        %v3618 = vsel %vm1345, %v3599, 0.0
        %3619 = vadd.xlane.f32.xlu0 %v3618
        %v3620 = vpop.xlane.xlu0 %3619
        %v3621 = vsel %vm1345, %v3601, 0.0
        %3622 = vadd.xlane.f32.xlu0 %v3621
        %v3623 = vpop.xlane.xlu0 %3622
        %v3624 = vsel %vm1345, %v3603, 0.0
        %3625 = vadd.xlane.f32.xlu0 %v3624
        %v3626 = vpop.xlane.xlu0 %3625
        %v3627 = vsel %vm1345, %v3605, 0.0
        %3628 = vadd.xlane.f32.xlu0 %v3627
        %v3629 = vpop.xlane.xlu0 %3628
        %v3630 = vrcp.pop %v3608
        %v3631 = vrcp.pop %v3611
        %v3632 = vrcp.pop %v3614
        %v3633 = vrcp.pop %v3617
        %v3634 = vrcp.pop %v3620
        %v3635 = vrcp.pop %v3623
        %v3636 = vrcp.pop %v3626
        %v3637 = vrcp.pop %v3629
        %v3638 = vmul.f32 %v3591, %v3630
        %v3639 = vmul.f32 %v3593, %v3631
        %v3640 = vmul.f32 %v3595, %v3632
        %v3641 = vmul.f32 %v3597, %v3633
        %v3642 = vmul.f32 %v3599, %v3634
        %v3643 = vmul.f32 %v3601, %v3635
        %v3644 = vmul.f32 %v3603, %v3636
        %v3645 = vmul.f32 %v3605, %v3637
        %v3646 = vpack.c.bf16 %v3638, %v3638
        %v3647 = vpack.c.bf16 %v3639, %v3639
        %v3648 = vpack.c.bf16 %v3640, %v3640
        %v3649 = vpack.c.bf16 %v3641, %v3641
        %v3650 = vpack.c.bf16 %v3642, %v3642
        %v3651 = vpack.c.bf16 %v3643, %v3643
        %v3652 = vpack.c.bf16 %v3644, %v3644
        %v3653 = vpack.c.bf16 %v3645, %v3645
        %3654 = vrot.lane.b32.xlu0 %v3044, 56
        %v3655 = vpop.permute.xlu0 %3654
        %v3657 = vsel %vm1444, %v3646, 0
        %v3660 = vsel %vm1448, %v3655, 0
        %3662 = vmatprep.subr.bf16.mxu0 0
        %3663 = vmatpush1.bf16.msra.mxu0 0
        %3664 = vmatprep.subr.bf16.mxu0 0
        %3665 = vmatpush1.bf16.msra.mxu0 0
        %3666 = vmatprep.subr.bf16.mxu0 0
        %3667 = vmatpush1.bf16.msra.mxu0 0
        %3668 = vmatprep.subr.bf16.mxu0 0
        %3669 = vmatpush1.bf16.msra.mxu0 0
        %3670 = vmatprep.subr.bf16.mxu0 0
        %3671 = vmatpush1.bf16.msra.mxu0 0
        %3672 = vmatprep.subr.bf16.mxu0 0
        %3673 = vmatpush1.bf16.msra.mxu0 0
        %3674 = vmatprep.subr.bf16.mxu0 0
        %3675 = vmatpush1.bf16.msra.mxu0 0
        %3676 = vmatprep.subr.bf16.mxu0 0
        %3677 = vmatpush1.bf16.msra.mxu0 %v3660
        %3678 = vmatprep.subr.bf16.mxu0 0
        %3679 = vmatpush2.bf16.msra.mxu0 0
        %3680 = vmatprep.subr.bf16.mxu0 0
        %3681 = vmatpush2.bf16.msra.mxu0 0
        %3682 = vmatprep.subr.bf16.mxu0 0
        %3683 = vmatpush2.bf16.msra.mxu0 0
        %3684 = vmatprep.subr.bf16.mxu0 0
        %3685 = vmatpush2.bf16.msra.mxu0 0
        %3686 = vmatprep.subr.bf16.mxu0 0
        %3687 = vmatpush2.bf16.msra.mxu0 0
        %3688 = vmatprep.subr.bf16.mxu0 0
        %3689 = vmatpush2.bf16.msra.mxu0 0
        %3690 = vmatprep.subr.bf16.mxu0 0
        %3691 = vmatpush2.bf16.msra.mxu0 0
        %3692 = vmatprep.subr.bf16.mxu0 0
        %3693 = vmatpush2.bf16.msra.mxu0 0
        %3694 = vmatprep.mubr.bf16.mxu0 0
        %3695 = vmatmul.mubr.bf16.gmra.mxu0 %v3657
        %v3696 = vpop.f32.mrf.mxu0
        %v3697 = vadd.f32 0.0, %v3696
        %v3698 = vpop.f32.mrf.mxu0
        %v3699 = vpop.f32.mrf.mxu0
        %v3700 = vpop.f32.mrf.mxu0
        %3701 = vdwg.mxu0
        %3702 = vrot.lane.b32.xlu0 %v3109, 56
        %v3703 = vpop.permute.xlu0 %3702
        %v3705 = vsel %vm1444, %v3647, 0
        %v3708 = vsel %vm1448, %v3703, 0
        %3710 = vmatprep.subr.bf16.mxu0 0
        %3711 = vmatpush1.bf16.msra.mxu0 0
        %3712 = vmatprep.subr.bf16.mxu0 0
        %3713 = vmatpush1.bf16.msra.mxu0 0
        %3714 = vmatprep.subr.bf16.mxu0 0
        %3715 = vmatpush1.bf16.msra.mxu0 0
        %3716 = vmatprep.subr.bf16.mxu0 0
        %3717 = vmatpush1.bf16.msra.mxu0 0
        %3718 = vmatprep.subr.bf16.mxu0 0
        %3719 = vmatpush1.bf16.msra.mxu0 0
        %3720 = vmatprep.subr.bf16.mxu0 0
        %3721 = vmatpush1.bf16.msra.mxu0 0
        %3722 = vmatprep.subr.bf16.mxu0 0
        %3723 = vmatpush1.bf16.msra.mxu0 0
        %3724 = vmatprep.subr.bf16.mxu0 0
        %3725 = vmatpush1.bf16.msra.mxu0 %v3708
        %3726 = vmatprep.subr.bf16.mxu0 0
        %3727 = vmatpush2.bf16.msra.mxu0 0
        %3728 = vmatprep.subr.bf16.mxu0 0
        %3729 = vmatpush2.bf16.msra.mxu0 0
        %3730 = vmatprep.subr.bf16.mxu0 0
        %3731 = vmatpush2.bf16.msra.mxu0 0
        %3732 = vmatprep.subr.bf16.mxu0 0
        %3733 = vmatpush2.bf16.msra.mxu0 0
        %3734 = vmatprep.subr.bf16.mxu0 0
        %3735 = vmatpush2.bf16.msra.mxu0 0
        %3736 = vmatprep.subr.bf16.mxu0 0
        %3737 = vmatpush2.bf16.msra.mxu0 0
        %3738 = vmatprep.subr.bf16.mxu0 0
        %3739 = vmatpush2.bf16.msra.mxu0 0
        %3740 = vmatprep.subr.bf16.mxu0 0
        %3741 = vmatpush2.bf16.msra.mxu0 0
        %3742 = vmatprep.mubr.bf16.mxu0 0
        %3743 = vmatmul.mubr.bf16.gmra.mxu0 %v3705
        %v3744 = vpop.f32.mrf.mxu0
        %v3745 = vadd.f32 0.0, %v3744
        %v3746 = vpop.f32.mrf.mxu0
        %v3747 = vpop.f32.mrf.mxu0
        %v3748 = vpop.f32.mrf.mxu0
        %3749 = vdwg.mxu0
        %3750 = vrot.lane.b32.xlu0 %v3174, 56
        %v3751 = vpop.permute.xlu0 %3750
        %v3753 = vsel %vm1444, %v3648, 0
        %v3756 = vsel %vm1448, %v3751, 0
        %3758 = vmatprep.subr.bf16.mxu0 0
        %3759 = vmatpush1.bf16.msra.mxu0 0
        %3760 = vmatprep.subr.bf16.mxu0 0
        %3761 = vmatpush1.bf16.msra.mxu0 0
        %3762 = vmatprep.subr.bf16.mxu0 0
        %3763 = vmatpush1.bf16.msra.mxu0 0
        %3764 = vmatprep.subr.bf16.mxu0 0
        %3765 = vmatpush1.bf16.msra.mxu0 0
        %3766 = vmatprep.subr.bf16.mxu0 0
        %3767 = vmatpush1.bf16.msra.mxu0 0
        %3768 = vmatprep.subr.bf16.mxu0 0
        %3769 = vmatpush1.bf16.msra.mxu0 0
        %3770 = vmatprep.subr.bf16.mxu0 0
        %3771 = vmatpush1.bf16.msra.mxu0 0
        %3772 = vmatprep.subr.bf16.mxu0 0
        %3773 = vmatpush1.bf16.msra.mxu0 %v3756
        %3774 = vmatprep.subr.bf16.mxu0 0
        %3775 = vmatpush2.bf16.msra.mxu0 0
        %3776 = vmatprep.subr.bf16.mxu0 0
        %3777 = vmatpush2.bf16.msra.mxu0 0
        %3778 = vmatprep.subr.bf16.mxu0 0
        %3779 = vmatpush2.bf16.msra.mxu0 0
        %3780 = vmatprep.subr.bf16.mxu0 0
        %3781 = vmatpush2.bf16.msra.mxu0 0
        %3782 = vmatprep.subr.bf16.mxu0 0
        %3783 = vmatpush2.bf16.msra.mxu0 0
        %3784 = vmatprep.subr.bf16.mxu0 0
        %3785 = vmatpush2.bf16.msra.mxu0 0
        %3786 = vmatprep.subr.bf16.mxu0 0
        %3787 = vmatpush2.bf16.msra.mxu0 0
        %3788 = vmatprep.subr.bf16.mxu0 0
        %3789 = vmatpush2.bf16.msra.mxu0 0
        %3790 = vmatprep.mubr.bf16.mxu0 0
        %3791 = vmatmul.mubr.bf16.gmra.mxu0 %v3753
        %v3792 = vpop.f32.mrf.mxu0
        %v3793 = vadd.f32 0.0, %v3792
        %v3794 = vpop.f32.mrf.mxu0
        %v3795 = vpop.f32.mrf.mxu0
        %v3796 = vpop.f32.mrf.mxu0
        %3797 = vdwg.mxu0
        %3798 = vrot.lane.b32.xlu0 %v3239, 56
        %v3799 = vpop.permute.xlu0 %3798
        %v3801 = vsel %vm1444, %v3649, 0
        %v3804 = vsel %vm1448, %v3799, 0
        %3806 = vmatprep.subr.bf16.mxu0 0
        %3807 = vmatpush1.bf16.msra.mxu0 0
        %3808 = vmatprep.subr.bf16.mxu0 0
        %3809 = vmatpush1.bf16.msra.mxu0 0
        %3810 = vmatprep.subr.bf16.mxu0 0
        %3811 = vmatpush1.bf16.msra.mxu0 0
        %3812 = vmatprep.subr.bf16.mxu0 0
        %3813 = vmatpush1.bf16.msra.mxu0 0
        %3814 = vmatprep.subr.bf16.mxu0 0
        %3815 = vmatpush1.bf16.msra.mxu0 0
        %3816 = vmatprep.subr.bf16.mxu0 0
        %3817 = vmatpush1.bf16.msra.mxu0 0
        %3818 = vmatprep.subr.bf16.mxu0 0
        %3819 = vmatpush1.bf16.msra.mxu0 0
        %3820 = vmatprep.subr.bf16.mxu0 0
        %3821 = vmatpush1.bf16.msra.mxu0 %v3804
        %3822 = vmatprep.subr.bf16.mxu0 0
        %3823 = vmatpush2.bf16.msra.mxu0 0
        %3824 = vmatprep.subr.bf16.mxu0 0
        %3825 = vmatpush2.bf16.msra.mxu0 0
        %3826 = vmatprep.subr.bf16.mxu0 0
        %3827 = vmatpush2.bf16.msra.mxu0 0
        %3828 = vmatprep.subr.bf16.mxu0 0
        %3829 = vmatpush2.bf16.msra.mxu0 0
        %3830 = vmatprep.subr.bf16.mxu0 0
        %3831 = vmatpush2.bf16.msra.mxu0 0
        %3832 = vmatprep.subr.bf16.mxu0 0
        %3833 = vmatpush2.bf16.msra.mxu0 0
        %3834 = vmatprep.subr.bf16.mxu0 0
        %3835 = vmatpush2.bf16.msra.mxu0 0
        %3836 = vmatprep.subr.bf16.mxu0 0
        %3837 = vmatpush2.bf16.msra.mxu0 0
        %3838 = vmatprep.mubr.bf16.mxu0 0
        %3839 = vmatmul.mubr.bf16.gmra.mxu0 %v3801
        %v3840 = vpop.f32.mrf.mxu0
        %v3841 = vadd.f32 0.0, %v3840
        %v3842 = vpop.f32.mrf.mxu0
        %v3843 = vpop.f32.mrf.mxu0
        %v3844 = vpop.f32.mrf.mxu0
        %3845 = vdwg.mxu0
        %3846 = vrot.lane.b32.xlu0 %v3304, 56
        %v3847 = vpop.permute.xlu0 %3846
        %v3849 = vsel %vm1444, %v3650, 0
        %v3852 = vsel %vm1448, %v3847, 0
        %3854 = vmatprep.subr.bf16.mxu0 0
        %3855 = vmatpush1.bf16.msra.mxu0 0
        %3856 = vmatprep.subr.bf16.mxu0 0
        %3857 = vmatpush1.bf16.msra.mxu0 0
        %3858 = vmatprep.subr.bf16.mxu0 0
        %3859 = vmatpush1.bf16.msra.mxu0 0
        %3860 = vmatprep.subr.bf16.mxu0 0
        %3861 = vmatpush1.bf16.msra.mxu0 0
        %3862 = vmatprep.subr.bf16.mxu0 0
        %3863 = vmatpush1.bf16.msra.mxu0 0
        %3864 = vmatprep.subr.bf16.mxu0 0
        %3865 = vmatpush1.bf16.msra.mxu0 0
        %3866 = vmatprep.subr.bf16.mxu0 0
        %3867 = vmatpush1.bf16.msra.mxu0 0
        %3868 = vmatprep.subr.bf16.mxu0 0
        %3869 = vmatpush1.bf16.msra.mxu0 %v3852
        %3870 = vmatprep.subr.bf16.mxu0 0
        %3871 = vmatpush2.bf16.msra.mxu0 0
        %3872 = vmatprep.subr.bf16.mxu0 0
        %3873 = vmatpush2.bf16.msra.mxu0 0
        %3874 = vmatprep.subr.bf16.mxu0 0
        %3875 = vmatpush2.bf16.msra.mxu0 0
        %3876 = vmatprep.subr.bf16.mxu0 0
        %3877 = vmatpush2.bf16.msra.mxu0 0
        %3878 = vmatprep.subr.bf16.mxu0 0
        %3879 = vmatpush2.bf16.msra.mxu0 0
        %3880 = vmatprep.subr.bf16.mxu0 0
        %3881 = vmatpush2.bf16.msra.mxu0 0
        %3882 = vmatprep.subr.bf16.mxu0 0
        %3883 = vmatpush2.bf16.msra.mxu0 0
        %3884 = vmatprep.subr.bf16.mxu0 0
        %3885 = vmatpush2.bf16.msra.mxu0 0
        %3886 = vmatprep.mubr.bf16.mxu0 0
        %3887 = vmatmul.mubr.bf16.gmra.mxu0 %v3849
        %v3888 = vpop.f32.mrf.mxu0
        %v3889 = vadd.f32 0.0, %v3888
        %v3890 = vpop.f32.mrf.mxu0
        %v3891 = vpop.f32.mrf.mxu0
        %v3892 = vpop.f32.mrf.mxu0
        %3893 = vdwg.mxu0
        %3894 = vrot.lane.b32.xlu0 %v3369, 56
        %v3895 = vpop.permute.xlu0 %3894
        %v3897 = vsel %vm1444, %v3651, 0
        %v3900 = vsel %vm1448, %v3895, 0
        %3902 = vmatprep.subr.bf16.mxu0 0
        %3903 = vmatpush1.bf16.msra.mxu0 0
        %3904 = vmatprep.subr.bf16.mxu0 0
        %3905 = vmatpush1.bf16.msra.mxu0 0
        %3906 = vmatprep.subr.bf16.mxu0 0
        %3907 = vmatpush1.bf16.msra.mxu0 0
        %3908 = vmatprep.subr.bf16.mxu0 0
        %3909 = vmatpush1.bf16.msra.mxu0 0
        %3910 = vmatprep.subr.bf16.mxu0 0
        %3911 = vmatpush1.bf16.msra.mxu0 0
        %3912 = vmatprep.subr.bf16.mxu0 0
        %3913 = vmatpush1.bf16.msra.mxu0 0
        %3914 = vmatprep.subr.bf16.mxu0 0
        %3915 = vmatpush1.bf16.msra.mxu0 0
        %3916 = vmatprep.subr.bf16.mxu0 0
        %3917 = vmatpush1.bf16.msra.mxu0 %v3900
        %3918 = vmatprep.subr.bf16.mxu0 0
        %3919 = vmatpush2.bf16.msra.mxu0 0
        %3920 = vmatprep.subr.bf16.mxu0 0
        %3921 = vmatpush2.bf16.msra.mxu0 0
        %3922 = vmatprep.subr.bf16.mxu0 0
        %3923 = vmatpush2.bf16.msra.mxu0 0
        %3924 = vmatprep.subr.bf16.mxu0 0
        %3925 = vmatpush2.bf16.msra.mxu0 0
        %3926 = vmatprep.subr.bf16.mxu0 0
        %3927 = vmatpush2.bf16.msra.mxu0 0
        %3928 = vmatprep.subr.bf16.mxu0 0
        %3929 = vmatpush2.bf16.msra.mxu0 0
        %3930 = vmatprep.subr.bf16.mxu0 0
        %3931 = vmatpush2.bf16.msra.mxu0 0
        %3932 = vmatprep.subr.bf16.mxu0 0
        %3933 = vmatpush2.bf16.msra.mxu0 0
        %3934 = vmatprep.mubr.bf16.mxu0 0
        %3935 = vmatmul.mubr.bf16.gmra.mxu0 %v3897
        %v3936 = vpop.f32.mrf.mxu0
        %v3937 = vadd.f32 0.0, %v3936
        %v3938 = vpop.f32.mrf.mxu0
        %v3939 = vpop.f32.mrf.mxu0
        %v3940 = vpop.f32.mrf.mxu0
        %3941 = vdwg.mxu0
        %3942 = vrot.lane.b32.xlu0 %v3434, 56
        %v3943 = vpop.permute.xlu0 %3942
        %v3945 = vsel %vm1444, %v3652, 0
        %v3948 = vsel %vm1448, %v3943, 0
        %3950 = vmatprep.subr.bf16.mxu0 0
        %3951 = vmatpush1.bf16.msra.mxu0 0
        %3952 = vmatprep.subr.bf16.mxu0 0
        %3953 = vmatpush1.bf16.msra.mxu0 0
        %3954 = vmatprep.subr.bf16.mxu0 0
        %3955 = vmatpush1.bf16.msra.mxu0 0
        %3956 = vmatprep.subr.bf16.mxu0 0
        %3957 = vmatpush1.bf16.msra.mxu0 0
        %3958 = vmatprep.subr.bf16.mxu0 0
        %3959 = vmatpush1.bf16.msra.mxu0 0
        %3960 = vmatprep.subr.bf16.mxu0 0
        %3961 = vmatpush1.bf16.msra.mxu0 0
        %3962 = vmatprep.subr.bf16.mxu0 0
        %3963 = vmatpush1.bf16.msra.mxu0 0
        %3964 = vmatprep.subr.bf16.mxu0 0
        %3965 = vmatpush1.bf16.msra.mxu0 %v3948
        %3966 = vmatprep.subr.bf16.mxu0 0
        %3967 = vmatpush2.bf16.msra.mxu0 0
        %3968 = vmatprep.subr.bf16.mxu0 0
        %3969 = vmatpush2.bf16.msra.mxu0 0
        %3970 = vmatprep.subr.bf16.mxu0 0
        %3971 = vmatpush2.bf16.msra.mxu0 0
        %3972 = vmatprep.subr.bf16.mxu0 0
        %3973 = vmatpush2.bf16.msra.mxu0 0
        %3974 = vmatprep.subr.bf16.mxu0 0
        %3975 = vmatpush2.bf16.msra.mxu0 0
        %3976 = vmatprep.subr.bf16.mxu0 0
        %3977 = vmatpush2.bf16.msra.mxu0 0
        %3978 = vmatprep.subr.bf16.mxu0 0
        %3979 = vmatpush2.bf16.msra.mxu0 0
        %3980 = vmatprep.subr.bf16.mxu0 0
        %3981 = vmatpush2.bf16.msra.mxu0 0
        %3982 = vmatprep.mubr.bf16.mxu0 0
        %3983 = vmatmul.mubr.bf16.gmra.mxu0 %v3945
        %v3984 = vpop.f32.mrf.mxu0
        %v3985 = vadd.f32 0.0, %v3984
        %v3986 = vpop.f32.mrf.mxu0
        %v3987 = vpop.f32.mrf.mxu0
        %v3988 = vpop.f32.mrf.mxu0
        %3989 = vdwg.mxu0
        %3990 = vrot.lane.b32.xlu0 %v3499, 56
        %v3991 = vpop.permute.xlu0 %3990
        %v3993 = vsel %vm1444, %v3653, 0
        %v3996 = vsel %vm1448, %v3991, 0
        %3998 = vmatprep.subr.bf16.mxu0 0
        %3999 = vmatpush1.bf16.msra.mxu0 0
        %4000 = vmatprep.subr.bf16.mxu0 0
        %4001 = vmatpush1.bf16.msra.mxu0 0
        %4002 = vmatprep.subr.bf16.mxu0 0
        %4003 = vmatpush1.bf16.msra.mxu0 0
        %4004 = vmatprep.subr.bf16.mxu0 0
        %4005 = vmatpush1.bf16.msra.mxu0 0
        %4006 = vmatprep.subr.bf16.mxu0 0
        %4007 = vmatpush1.bf16.msra.mxu0 0
        %4008 = vmatprep.subr.bf16.mxu0 0
        %4009 = vmatpush1.bf16.msra.mxu0 0
        %4010 = vmatprep.subr.bf16.mxu0 0
        %4011 = vmatpush1.bf16.msra.mxu0 0
        %4012 = vmatprep.subr.bf16.mxu0 0
        %4013 = vmatpush1.bf16.msra.mxu0 %v3996
        %4014 = vmatprep.subr.bf16.mxu0 0
        %4015 = vmatpush2.bf16.msra.mxu0 0
        %4016 = vmatprep.subr.bf16.mxu0 0
        %4017 = vmatpush2.bf16.msra.mxu0 0
        %4018 = vmatprep.subr.bf16.mxu0 0
        %4019 = vmatpush2.bf16.msra.mxu0 0
        %4020 = vmatprep.subr.bf16.mxu0 0
        %4021 = vmatpush2.bf16.msra.mxu0 0
        %4022 = vmatprep.subr.bf16.mxu0 0
        %4023 = vmatpush2.bf16.msra.mxu0 0
        %4024 = vmatprep.subr.bf16.mxu0 0
        %4025 = vmatpush2.bf16.msra.mxu0 0
        %4026 = vmatprep.subr.bf16.mxu0 0
        %4027 = vmatpush2.bf16.msra.mxu0 0
        %4028 = vmatprep.subr.bf16.mxu0 0
        %4029 = vmatpush2.bf16.msra.mxu0 0
        %4030 = vmatprep.mubr.bf16.mxu0 0
        %4031 = vmatmul.mubr.bf16.gmra.mxu0 %v3993
        %v4032 = vpop.f32.mrf.mxu0
        %v4033 = vadd.f32 0.0, %v4032
        %v4034 = vpop.f32.mrf.mxu0
        %v4035 = vpop.f32.mrf.mxu0
        %v4036 = vpop.f32.mrf.mxu0
        %4037 = vdwg.mxu0
        %v4038 = vpack.c.bf16 %v3697, %v3697
        %v4039 = vpack.c.bf16 %v3745, %v3745
        %v4040 = vpack.c.bf16 %v3793, %v3793
        %v4041 = vpack.c.bf16 %v3841, %v3841
        %v4042 = vpack.c.bf16 %v3889, %v3889
        %v4043 = vpack.c.bf16 %v3937, %v3937
        %v4044 = vpack.c.bf16 %v3985, %v3985
        %v4045 = vpack.c.bf16 %v4033, %v4033
        %v4055 = vunpack.c.l.s4 1966171168
        %v4056 = vunpack.c.0.s8 %v4055
        %v4057 = vlaneseq
        %v4058 = vshrl.u32 %v4057, 7
        %v4059 = vsub.s32 %v4056, %v4058
        %v4060 = vrot.slane %v4038, %v4059
        %v4062 = vunpack.c.l.s4 1966171168
        %v4063 = vunpack.c.0.s8 %v4062
        %v4064 = vlaneseq
        %v4065 = vshrl.u32 %v4064, 7
        %v4066 = vsub.s32 %v4063, %v4065
        %v4067 = vrot.slane %v4060, %v4066
        %v4069 = vunpack.c.l.s4 1966171168
        %v4070 = vunpack.c.0.s8 %v4069
        %v4071 = vlaneseq
        %v4072 = vshrl.u32 %v4071, 7
        %v4073 = vsub.s32 %v4070, %v4072
        %v4074 = vrot.slane %v4039, %v4073
        %v4076 = vunpack.c.l.s4 1966171168
        %v4077 = vunpack.c.0.s8 %v4076
        %v4078 = vlaneseq
        %v4079 = vshrl.u32 %v4078, 7
        %v4080 = vsub.s32 %v4077, %v4079
        %v4081 = vrot.slane %v4074, %v4080
        %v4083 = vunpack.c.l.s4 1966171168
        %v4084 = vunpack.c.0.s8 %v4083
        %v4085 = vlaneseq
        %v4086 = vshrl.u32 %v4085, 7
        %v4087 = vsub.s32 %v4084, %v4086
        %v4088 = vrot.slane %v4040, %v4087
        %v4090 = vunpack.c.l.s4 1966171168
        %v4091 = vunpack.c.0.s8 %v4090
        %v4092 = vlaneseq
        %v4093 = vshrl.u32 %v4092, 7
        %v4094 = vsub.s32 %v4091, %v4093
        %v4095 = vrot.slane %v4088, %v4094
        %v4097 = vunpack.c.l.s4 1966171168
        %v4098 = vunpack.c.0.s8 %v4097
        %v4099 = vlaneseq
        %v4100 = vshrl.u32 %v4099, 7
        %v4101 = vsub.s32 %v4098, %v4100
        %v4102 = vrot.slane %v4041, %v4101
        %v4104 = vunpack.c.l.s4 1966171168
        %v4105 = vunpack.c.0.s8 %v4104
        %v4106 = vlaneseq
        %v4107 = vshrl.u32 %v4106, 7
        %v4108 = vsub.s32 %v4105, %v4107
        %v4109 = vrot.slane %v4102, %v4108
        %v4111 = vunpack.c.l.s4 1966171168
        %v4112 = vunpack.c.0.s8 %v4111
        %v4113 = vlaneseq
        %v4114 = vshrl.u32 %v4113, 7
        %v4115 = vsub.s32 %v4112, %v4114
        %v4116 = vrot.slane %v4042, %v4115
        %v4118 = vunpack.c.l.s4 1966171168
        %v4119 = vunpack.c.0.s8 %v4118
        %v4120 = vlaneseq
        %v4121 = vshrl.u32 %v4120, 7
        %v4122 = vsub.s32 %v4119, %v4121
        %v4123 = vrot.slane %v4116, %v4122
        %v4125 = vunpack.c.l.s4 1966171168
        %v4126 = vunpack.c.0.s8 %v4125
        %v4127 = vlaneseq
        %v4128 = vshrl.u32 %v4127, 7
        %v4129 = vsub.s32 %v4126, %v4128
        %v4130 = vrot.slane %v4043, %v4129
        %v4132 = vunpack.c.l.s4 1966171168
        %v4133 = vunpack.c.0.s8 %v4132
        %v4134 = vlaneseq
        %v4135 = vshrl.u32 %v4134, 7
        %v4136 = vsub.s32 %v4133, %v4135
        %v4137 = vrot.slane %v4130, %v4136
        %v4139 = vunpack.c.l.s4 1966171168
        %v4140 = vunpack.c.0.s8 %v4139
        %v4141 = vlaneseq
        %v4142 = vshrl.u32 %v4141, 7
        %v4143 = vsub.s32 %v4140, %v4142
        %v4144 = vrot.slane %v4044, %v4143
        %v4146 = vunpack.c.l.s4 1966171168
        %v4147 = vunpack.c.0.s8 %v4146
        %v4148 = vlaneseq
        %v4149 = vshrl.u32 %v4148, 7
        %v4150 = vsub.s32 %v4147, %v4149
        %v4151 = vrot.slane %v4144, %v4150
        %v4153 = vunpack.c.l.s4 1966171168
        %v4154 = vunpack.c.0.s8 %v4153
        %v4155 = vlaneseq
        %v4156 = vshrl.u32 %v4155, 7
        %v4157 = vsub.s32 %v4154, %v4156
        %v4158 = vrot.slane %v4045, %v4157
        %v4160 = vunpack.c.l.s4 1966171168
        %v4161 = vunpack.c.0.s8 %v4160
        %v4162 = vlaneseq
        %v4163 = vshrl.u32 %v4162, 7
        %v4164 = vsub.s32 %v4161, %v4163
        %v4165 = vrot.slane %v4158, %v4164
        %4166 = vrot.lane.b32.xlu0 %v4067, 8
        %v4167 = vpop.permute.xlu0 %4166
        %4168 = vrot.lane.b32.xlu0 %v4081, 8
        %v4169 = vpop.permute.xlu0 %4168
        %4170 = vrot.lane.b32.xlu0 %v4095, 8
        %v4171 = vpop.permute.xlu0 %4170
        %4172 = vrot.lane.b32.xlu0 %v4109, 8
        %v4173 = vpop.permute.xlu0 %4172
        %4174 = vrot.lane.b32.xlu0 %v4123, 8
        %v4175 = vpop.permute.xlu0 %4174
        %4176 = vrot.lane.b32.xlu0 %v4137, 8
        %v4177 = vpop.permute.xlu0 %4176
        %4178 = vrot.lane.b32.xlu0 %v4151, 8
        %v4179 = vpop.permute.xlu0 %4178
        %4180 = vrot.lane.b32.xlu0 %v4165, 8
        %v4181 = vpop.permute.xlu0 %4180
        %vm4190 = vcmask 90176
        %4191 = vst.msk [vmem:[#allocation3] sm:$0x1] %vm4190, %v4167
        %4192 = vst.msk [vmem:[#allocation3 + $0x1] sm:$0x1] %vm4190, %v4169
        %4193 = vst.msk [vmem:[#allocation3 + $0x2] sm:$0x1] %vm4190, %v4171
        %4194 = vst.msk [vmem:[#allocation3 + $0x3] sm:$0x1] %vm4190, %v4173
        %4195 = vst.msk [vmem:[#allocation3 + $0x4] sm:$0x1] %vm4190, %v4175
        %4196 = vst.msk [vmem:[#allocation3 + $0x5] sm:$0x1] %vm4190, %v4177
        %4197 = vst.msk [vmem:[#allocation3 + $0x6] sm:$0x1] %vm4190, %v4179
        %4198 = vst.msk [vmem:[#allocation3 + $0x7] sm:$0x1] %vm4190, %v4181
        %v4199 = vld [vmem:[#allocation2] sm:$0x1]
        %v4200 = vld [vmem:[#allocation2 + $0x1] sm:$0x1]
        %v4201 = vld [vmem:[#allocation2 + $0x2] sm:$0x1]
        %v4202 = vld [vmem:[#allocation2 + $0x3] sm:$0x1]
        %v4203 = vld [vmem:[#allocation2 + $0x4] sm:$0x1]
        %v4204 = vld [vmem:[#allocation2 + $0x5] sm:$0x1]
        %v4205 = vld [vmem:[#allocation2 + $0x6] sm:$0x1]
        %v4206 = vld [vmem:[#allocation2 + $0x7] sm:$0x1]
        %v4209 = vunpack.c.l.s4 1966171168
        %v4210 = vunpack.c.0.s8 %v4209
        %v4211 = vlaneseq
        %v4212 = vshrl.u32 %v4211, 7
        %v4213 = vsub.s32 %v4210, %v4212
        %v4214 = vrot.slane %v4199, %v4213
        %v4216 = vunpack.c.l.s4 1966171168
        %v4217 = vunpack.c.0.s8 %v4216
        %v4218 = vlaneseq
        %v4219 = vshrl.u32 %v4218, 7
        %v4220 = vsub.s32 %v4217, %v4219
        %v4221 = vrot.slane %v4214, %v4220
        %4222 = vrot.lane.b32.xlu0 %v4221, 116
        %v4223 = vpop.permute.xlu0 %4222
        %4224 = vrot.lane.b32.xlu0 %v4221, 84
        %v4225 = vpop.permute.xlu0 %4224
        %v4227 = vsel %vm849, %v4223, 0
        %v4230 = vsel %vm849, %v4225, 0
        %4232 = vmatprep.subr.bf16.mxu0 0
        %4233 = vmatpush1.bf16.xpose.msra.mxu0 0
        %4234 = vmatprep.subr.bf16.mxu0 0
        %4235 = vmatpush1.bf16.xpose.msra.mxu0 0
        %4236 = vmatprep.subr.bf16.mxu0 0
        %4237 = vmatpush1.bf16.xpose.msra.mxu0 0
        %4238 = vmatprep.subr.bf16.mxu0 0
        %4239 = vmatpush1.bf16.xpose.msra.mxu0 0
        %4240 = vmatprep.subr.bf16.mxu0 0
        %4241 = vmatpush1.bf16.xpose.msra.mxu0 0
        %4242 = vmatprep.subr.bf16.mxu0 0
        %4243 = vmatpush1.bf16.xpose.msra.mxu0 0
        %4244 = vmatprep.subr.bf16.mxu0 0
        %4245 = vmatpush1.bf16.xpose.msra.mxu0 0
        %4246 = vmatprep.subr.bf16.mxu0 0
        %4247 = vmatpush1.bf16.xpose.msra.mxu0 %v4230
        %4248 = vmatprep.subr.bf16.mxu0 0
        %4249 = vmatpush2.bf16.xpose.msra.mxu0 0
        %4250 = vmatprep.subr.bf16.mxu0 0
        %4251 = vmatpush2.bf16.xpose.msra.mxu0 0
        %4252 = vmatprep.subr.bf16.mxu0 0
        %4253 = vmatpush2.bf16.xpose.msra.mxu0 0
        %4254 = vmatprep.subr.bf16.mxu0 0
        %4255 = vmatpush2.bf16.xpose.msra.mxu0 0
        %4256 = vmatprep.subr.bf16.mxu0 0
        %4257 = vmatpush2.bf16.xpose.msra.mxu0 0
        %4258 = vmatprep.subr.bf16.mxu0 0
        %4259 = vmatpush2.bf16.xpose.msra.mxu0 0
        %4260 = vmatprep.subr.bf16.mxu0 0
        %4261 = vmatpush2.bf16.xpose.msra.mxu0 0
        %4262 = vmatprep.subr.bf16.mxu0 0
        %4263 = vmatpush2.bf16.xpose.msra.mxu0 0
        %4264 = vmatprep.mubr.bf16.mxu0 0
        %4265 = vmatmul.mubr.bf16.gmra.mxu0 %v4227
        %v4266 = vpop.f32.mrf.mxu0
        %v4267 = vadd.f32 0.0, %v4266
        %v4268 = vpop.f32.mrf.mxu0
        %v4269 = vpop.f32.mrf.mxu0
        %v4270 = vpop.f32.mrf.mxu0
        %4271 = vdwg.mxu0
        %v4274 = vunpack.c.l.s4 1966171168
        %v4275 = vunpack.c.0.s8 %v4274
        %v4276 = vlaneseq
        %v4277 = vshrl.u32 %v4276, 7
        %v4278 = vsub.s32 %v4275, %v4277
        %v4279 = vrot.slane %v4200, %v4278
        %v4281 = vunpack.c.l.s4 1966171168
        %v4282 = vunpack.c.0.s8 %v4281
        %v4283 = vlaneseq
        %v4284 = vshrl.u32 %v4283, 7
        %v4285 = vsub.s32 %v4282, %v4284
        %v4286 = vrot.slane %v4279, %v4285
        %4287 = vrot.lane.b32.xlu0 %v4286, 116
        %v4288 = vpop.permute.xlu0 %4287
        %4289 = vrot.lane.b32.xlu0 %v4286, 84
        %v4290 = vpop.permute.xlu0 %4289
        %v4292 = vsel %vm849, %v4288, 0
        %v4295 = vsel %vm849, %v4290, 0
        %4297 = vmatprep.subr.bf16.mxu0 0
        %4298 = vmatpush1.bf16.xpose.msra.mxu0 0
        %4299 = vmatprep.subr.bf16.mxu0 0
        %4300 = vmatpush1.bf16.xpose.msra.mxu0 0
        %4301 = vmatprep.subr.bf16.mxu0 0
        %4302 = vmatpush1.bf16.xpose.msra.mxu0 0
        %4303 = vmatprep.subr.bf16.mxu0 0
        %4304 = vmatpush1.bf16.xpose.msra.mxu0 0
        %4305 = vmatprep.subr.bf16.mxu0 0
        %4306 = vmatpush1.bf16.xpose.msra.mxu0 0
        %4307 = vmatprep.subr.bf16.mxu0 0
        %4308 = vmatpush1.bf16.xpose.msra.mxu0 0
        %4309 = vmatprep.subr.bf16.mxu0 0
        %4310 = vmatpush1.bf16.xpose.msra.mxu0 0
        %4311 = vmatprep.subr.bf16.mxu0 0
        %4312 = vmatpush1.bf16.xpose.msra.mxu0 %v4295
        %4313 = vmatprep.subr.bf16.mxu0 0
        %4314 = vmatpush2.bf16.xpose.msra.mxu0 0
        %4315 = vmatprep.subr.bf16.mxu0 0
        %4316 = vmatpush2.bf16.xpose.msra.mxu0 0
        %4317 = vmatprep.subr.bf16.mxu0 0
        %4318 = vmatpush2.bf16.xpose.msra.mxu0 0
        %4319 = vmatprep.subr.bf16.mxu0 0
        %4320 = vmatpush2.bf16.xpose.msra.mxu0 0
        %4321 = vmatprep.subr.bf16.mxu0 0
        %4322 = vmatpush2.bf16.xpose.msra.mxu0 0
        %4323 = vmatprep.subr.bf16.mxu0 0
        %4324 = vmatpush2.bf16.xpose.msra.mxu0 0
        %4325 = vmatprep.subr.bf16.mxu0 0
        %4326 = vmatpush2.bf16.xpose.msra.mxu0 0
        %4327 = vmatprep.subr.bf16.mxu0 0
        %4328 = vmatpush2.bf16.xpose.msra.mxu0 0
        %4329 = vmatprep.mubr.bf16.mxu0 0
        %4330 = vmatmul.mubr.bf16.gmra.mxu0 %v4292
        %v4331 = vpop.f32.mrf.mxu0
        %v4332 = vadd.f32 0.0, %v4331
        %v4333 = vpop.f32.mrf.mxu0
        %v4334 = vpop.f32.mrf.mxu0
        %v4335 = vpop.f32.mrf.mxu0
        %4336 = vdwg.mxu0
        %v4339 = vunpack.c.l.s4 1966171168
        %v4340 = vunpack.c.0.s8 %v4339
        %v4341 = vlaneseq
        %v4342 = vshrl.u32 %v4341, 7
        %v4343 = vsub.s32 %v4340, %v4342
        %v4344 = vrot.slane %v4201, %v4343
        %v4346 = vunpack.c.l.s4 1966171168
        %v4347 = vunpack.c.0.s8 %v4346
        %v4348 = vlaneseq
        %v4349 = vshrl.u32 %v4348, 7
        %v4350 = vsub.s32 %v4347, %v4349
        %v4351 = vrot.slane %v4344, %v4350
        %4352 = vrot.lane.b32.xlu0 %v4351, 116
        %v4353 = vpop.permute.xlu0 %4352
        %4354 = vrot.lane.b32.xlu0 %v4351, 84
        %v4355 = vpop.permute.xlu0 %4354
        %v4357 = vsel %vm849, %v4353, 0
        %v4360 = vsel %vm849, %v4355, 0
        %4362 = vmatprep.subr.bf16.mxu0 0
        %4363 = vmatpush1.bf16.xpose.msra.mxu0 0
        %4364 = vmatprep.subr.bf16.mxu0 0
        %4365 = vmatpush1.bf16.xpose.msra.mxu0 0
        %4366 = vmatprep.subr.bf16.mxu0 0
        %4367 = vmatpush1.bf16.xpose.msra.mxu0 0
        %4368 = vmatprep.subr.bf16.mxu0 0
        %4369 = vmatpush1.bf16.xpose.msra.mxu0 0
        %4370 = vmatprep.subr.bf16.mxu0 0
        %4371 = vmatpush1.bf16.xpose.msra.mxu0 0
        %4372 = vmatprep.subr.bf16.mxu0 0
        %4373 = vmatpush1.bf16.xpose.msra.mxu0 0
        %4374 = vmatprep.subr.bf16.mxu0 0
        %4375 = vmatpush1.bf16.xpose.msra.mxu0 0
        %4376 = vmatprep.subr.bf16.mxu0 0
        %4377 = vmatpush1.bf16.xpose.msra.mxu0 %v4360
        %4378 = vmatprep.subr.bf16.mxu0 0
        %4379 = vmatpush2.bf16.xpose.msra.mxu0 0
        %4380 = vmatprep.subr.bf16.mxu0 0
        %4381 = vmatpush2.bf16.xpose.msra.mxu0 0
        %4382 = vmatprep.subr.bf16.mxu0 0
        %4383 = vmatpush2.bf16.xpose.msra.mxu0 0
        %4384 = vmatprep.subr.bf16.mxu0 0
        %4385 = vmatpush2.bf16.xpose.msra.mxu0 0
        %4386 = vmatprep.subr.bf16.mxu0 0
        %4387 = vmatpush2.bf16.xpose.msra.mxu0 0
        %4388 = vmatprep.subr.bf16.mxu0 0
        %4389 = vmatpush2.bf16.xpose.msra.mxu0 0
        %4390 = vmatprep.subr.bf16.mxu0 0
        %4391 = vmatpush2.bf16.xpose.msra.mxu0 0
        %4392 = vmatprep.subr.bf16.mxu0 0
        %4393 = vmatpush2.bf16.xpose.msra.mxu0 0
        %4394 = vmatprep.mubr.bf16.mxu0 0
        %4395 = vmatmul.mubr.bf16.gmra.mxu0 %v4357
        %v4396 = vpop.f32.mrf.mxu0
        %v4397 = vadd.f32 0.0, %v4396
        %v4398 = vpop.f32.mrf.mxu0
        %v4399 = vpop.f32.mrf.mxu0
        %v4400 = vpop.f32.mrf.mxu0
        %4401 = vdwg.mxu0
        %v4404 = vunpack.c.l.s4 1966171168
        %v4405 = vunpack.c.0.s8 %v4404
        %v4406 = vlaneseq
        %v4407 = vshrl.u32 %v4406, 7
        %v4408 = vsub.s32 %v4405, %v4407
        %v4409 = vrot.slane %v4202, %v4408
        %v4411 = vunpack.c.l.s4 1966171168
        %v4412 = vunpack.c.0.s8 %v4411
        %v4413 = vlaneseq
        %v4414 = vshrl.u32 %v4413, 7
        %v4415 = vsub.s32 %v4412, %v4414
        %v4416 = vrot.slane %v4409, %v4415
        %4417 = vrot.lane.b32.xlu0 %v4416, 116
        %v4418 = vpop.permute.xlu0 %4417
        %4419 = vrot.lane.b32.xlu0 %v4416, 84
        %v4420 = vpop.permute.xlu0 %4419
        %v4422 = vsel %vm849, %v4418, 0
        %v4425 = vsel %vm849, %v4420, 0
        %4427 = vmatprep.subr.bf16.mxu0 0
        %4428 = vmatpush1.bf16.xpose.msra.mxu0 0
        %4429 = vmatprep.subr.bf16.mxu0 0
        %4430 = vmatpush1.bf16.xpose.msra.mxu0 0
        %4431 = vmatprep.subr.bf16.mxu0 0
        %4432 = vmatpush1.bf16.xpose.msra.mxu0 0
        %4433 = vmatprep.subr.bf16.mxu0 0
        %4434 = vmatpush1.bf16.xpose.msra.mxu0 0
        %4435 = vmatprep.subr.bf16.mxu0 0
        %4436 = vmatpush1.bf16.xpose.msra.mxu0 0
        %4437 = vmatprep.subr.bf16.mxu0 0
        %4438 = vmatpush1.bf16.xpose.msra.mxu0 0
        %4439 = vmatprep.subr.bf16.mxu0 0
        %4440 = vmatpush1.bf16.xpose.msra.mxu0 0
        %4441 = vmatprep.subr.bf16.mxu0 0
        %4442 = vmatpush1.bf16.xpose.msra.mxu0 %v4425
        %4443 = vmatprep.subr.bf16.mxu0 0
        %4444 = vmatpush2.bf16.xpose.msra.mxu0 0
        %4445 = vmatprep.subr.bf16.mxu0 0
        %4446 = vmatpush2.bf16.xpose.msra.mxu0 0
        %4447 = vmatprep.subr.bf16.mxu0 0
        %4448 = vmatpush2.bf16.xpose.msra.mxu0 0
        %4449 = vmatprep.subr.bf16.mxu0 0
        %4450 = vmatpush2.bf16.xpose.msra.mxu0 0
        %4451 = vmatprep.subr.bf16.mxu0 0
        %4452 = vmatpush2.bf16.xpose.msra.mxu0 0
        %4453 = vmatprep.subr.bf16.mxu0 0
        %4454 = vmatpush2.bf16.xpose.msra.mxu0 0
        %4455 = vmatprep.subr.bf16.mxu0 0
        %4456 = vmatpush2.bf16.xpose.msra.mxu0 0
        %4457 = vmatprep.subr.bf16.mxu0 0
        %4458 = vmatpush2.bf16.xpose.msra.mxu0 0
        %4459 = vmatprep.mubr.bf16.mxu0 0
        %4460 = vmatmul.mubr.bf16.gmra.mxu0 %v4422
        %v4461 = vpop.f32.mrf.mxu0
        %v4462 = vadd.f32 0.0, %v4461
        %v4463 = vpop.f32.mrf.mxu0
        %v4464 = vpop.f32.mrf.mxu0
        %v4465 = vpop.f32.mrf.mxu0
        %4466 = vdwg.mxu0
        %v4469 = vunpack.c.l.s4 1966171168
        %v4470 = vunpack.c.0.s8 %v4469
        %v4471 = vlaneseq
        %v4472 = vshrl.u32 %v4471, 7
        %v4473 = vsub.s32 %v4470, %v4472
        %v4474 = vrot.slane %v4203, %v4473
        %v4476 = vunpack.c.l.s4 1966171168
        %v4477 = vunpack.c.0.s8 %v4476
        %v4478 = vlaneseq
        %v4479 = vshrl.u32 %v4478, 7
        %v4480 = vsub.s32 %v4477, %v4479
        %v4481 = vrot.slane %v4474, %v4480
        %4482 = vrot.lane.b32.xlu0 %v4481, 116
        %v4483 = vpop.permute.xlu0 %4482
        %4484 = vrot.lane.b32.xlu0 %v4481, 84
        %v4485 = vpop.permute.xlu0 %4484
        %v4487 = vsel %vm849, %v4483, 0
        %v4490 = vsel %vm849, %v4485, 0
        %4492 = vmatprep.subr.bf16.mxu0 0
        %4493 = vmatpush1.bf16.xpose.msra.mxu0 0
        %4494 = vmatprep.subr.bf16.mxu0 0
        %4495 = vmatpush1.bf16.xpose.msra.mxu0 0
        %4496 = vmatprep.subr.bf16.mxu0 0
        %4497 = vmatpush1.bf16.xpose.msra.mxu0 0
        %4498 = vmatprep.subr.bf16.mxu0 0
        %4499 = vmatpush1.bf16.xpose.msra.mxu0 0
        %4500 = vmatprep.subr.bf16.mxu0 0
        %4501 = vmatpush1.bf16.xpose.msra.mxu0 0
        %4502 = vmatprep.subr.bf16.mxu0 0
        %4503 = vmatpush1.bf16.xpose.msra.mxu0 0
        %4504 = vmatprep.subr.bf16.mxu0 0
        %4505 = vmatpush1.bf16.xpose.msra.mxu0 0
        %4506 = vmatprep.subr.bf16.mxu0 0
        %4507 = vmatpush1.bf16.xpose.msra.mxu0 %v4490
        %4508 = vmatprep.subr.bf16.mxu0 0
        %4509 = vmatpush2.bf16.xpose.msra.mxu0 0
        %4510 = vmatprep.subr.bf16.mxu0 0
        %4511 = vmatpush2.bf16.xpose.msra.mxu0 0
        %4512 = vmatprep.subr.bf16.mxu0 0
        %4513 = vmatpush2.bf16.xpose.msra.mxu0 0
        %4514 = vmatprep.subr.bf16.mxu0 0
        %4515 = vmatpush2.bf16.xpose.msra.mxu0 0
        %4516 = vmatprep.subr.bf16.mxu0 0
        %4517 = vmatpush2.bf16.xpose.msra.mxu0 0
        %4518 = vmatprep.subr.bf16.mxu0 0
        %4519 = vmatpush2.bf16.xpose.msra.mxu0 0
        %4520 = vmatprep.subr.bf16.mxu0 0
        %4521 = vmatpush2.bf16.xpose.msra.mxu0 0
        %4522 = vmatprep.subr.bf16.mxu0 0
        %4523 = vmatpush2.bf16.xpose.msra.mxu0 0
        %4524 = vmatprep.mubr.bf16.mxu0 0
        %4525 = vmatmul.mubr.bf16.gmra.mxu0 %v4487
        %v4526 = vpop.f32.mrf.mxu0
        %v4527 = vadd.f32 0.0, %v4526
        %v4528 = vpop.f32.mrf.mxu0
        %v4529 = vpop.f32.mrf.mxu0
        %v4530 = vpop.f32.mrf.mxu0
        %4531 = vdwg.mxu0
        %v4534 = vunpack.c.l.s4 1966171168
        %v4535 = vunpack.c.0.s8 %v4534
        %v4536 = vlaneseq
        %v4537 = vshrl.u32 %v4536, 7
        %v4538 = vsub.s32 %v4535, %v4537
        %v4539 = vrot.slane %v4204, %v4538
        %v4541 = vunpack.c.l.s4 1966171168
        %v4542 = vunpack.c.0.s8 %v4541
        %v4543 = vlaneseq
        %v4544 = vshrl.u32 %v4543, 7
        %v4545 = vsub.s32 %v4542, %v4544
        %v4546 = vrot.slane %v4539, %v4545
        %4547 = vrot.lane.b32.xlu0 %v4546, 116
        %v4548 = vpop.permute.xlu0 %4547
        %4549 = vrot.lane.b32.xlu0 %v4546, 84
        %v4550 = vpop.permute.xlu0 %4549
        %v4552 = vsel %vm849, %v4548, 0
        %v4555 = vsel %vm849, %v4550, 0
        %4557 = vmatprep.subr.bf16.mxu0 0
        %4558 = vmatpush1.bf16.xpose.msra.mxu0 0
        %4559 = vmatprep.subr.bf16.mxu0 0
        %4560 = vmatpush1.bf16.xpose.msra.mxu0 0
        %4561 = vmatprep.subr.bf16.mxu0 0
        %4562 = vmatpush1.bf16.xpose.msra.mxu0 0
        %4563 = vmatprep.subr.bf16.mxu0 0
        %4564 = vmatpush1.bf16.xpose.msra.mxu0 0
        %4565 = vmatprep.subr.bf16.mxu0 0
        %4566 = vmatpush1.bf16.xpose.msra.mxu0 0
        %4567 = vmatprep.subr.bf16.mxu0 0
        %4568 = vmatpush1.bf16.xpose.msra.mxu0 0
        %4569 = vmatprep.subr.bf16.mxu0 0
        %4570 = vmatpush1.bf16.xpose.msra.mxu0 0
        %4571 = vmatprep.subr.bf16.mxu0 0
        %4572 = vmatpush1.bf16.xpose.msra.mxu0 %v4555
        %4573 = vmatprep.subr.bf16.mxu0 0
        %4574 = vmatpush2.bf16.xpose.msra.mxu0 0
        %4575 = vmatprep.subr.bf16.mxu0 0
        %4576 = vmatpush2.bf16.xpose.msra.mxu0 0
        %4577 = vmatprep.subr.bf16.mxu0 0
        %4578 = vmatpush2.bf16.xpose.msra.mxu0 0
        %4579 = vmatprep.subr.bf16.mxu0 0
        %4580 = vmatpush2.bf16.xpose.msra.mxu0 0
        %4581 = vmatprep.subr.bf16.mxu0 0
        %4582 = vmatpush2.bf16.xpose.msra.mxu0 0
        %4583 = vmatprep.subr.bf16.mxu0 0
        %4584 = vmatpush2.bf16.xpose.msra.mxu0 0
        %4585 = vmatprep.subr.bf16.mxu0 0
        %4586 = vmatpush2.bf16.xpose.msra.mxu0 0
        %4587 = vmatprep.subr.bf16.mxu0 0
        %4588 = vmatpush2.bf16.xpose.msra.mxu0 0
        %4589 = vmatprep.mubr.bf16.mxu0 0
        %4590 = vmatmul.mubr.bf16.gmra.mxu0 %v4552
        %v4591 = vpop.f32.mrf.mxu0
        %v4592 = vadd.f32 0.0, %v4591
        %v4593 = vpop.f32.mrf.mxu0
        %v4594 = vpop.f32.mrf.mxu0
        %v4595 = vpop.f32.mrf.mxu0
        %4596 = vdwg.mxu0
        %v4599 = vunpack.c.l.s4 1966171168
        %v4600 = vunpack.c.0.s8 %v4599
        %v4601 = vlaneseq
        %v4602 = vshrl.u32 %v4601, 7
        %v4603 = vsub.s32 %v4600, %v4602
        %v4604 = vrot.slane %v4205, %v4603
        %v4606 = vunpack.c.l.s4 1966171168
        %v4607 = vunpack.c.0.s8 %v4606
        %v4608 = vlaneseq
        %v4609 = vshrl.u32 %v4608, 7
        %v4610 = vsub.s32 %v4607, %v4609
        %v4611 = vrot.slane %v4604, %v4610
        %4612 = vrot.lane.b32.xlu0 %v4611, 116
        %v4613 = vpop.permute.xlu0 %4612
        %4614 = vrot.lane.b32.xlu0 %v4611, 84
        %v4615 = vpop.permute.xlu0 %4614
        %v4617 = vsel %vm849, %v4613, 0
        %v4620 = vsel %vm849, %v4615, 0
        %4622 = vmatprep.subr.bf16.mxu0 0
        %4623 = vmatpush1.bf16.xpose.msra.mxu0 0
        %4624 = vmatprep.subr.bf16.mxu0 0
        %4625 = vmatpush1.bf16.xpose.msra.mxu0 0
        %4626 = vmatprep.subr.bf16.mxu0 0
        %4627 = vmatpush1.bf16.xpose.msra.mxu0 0
        %4628 = vmatprep.subr.bf16.mxu0 0
        %4629 = vmatpush1.bf16.xpose.msra.mxu0 0
        %4630 = vmatprep.subr.bf16.mxu0 0
        %4631 = vmatpush1.bf16.xpose.msra.mxu0 0
        %4632 = vmatprep.subr.bf16.mxu0 0
        %4633 = vmatpush1.bf16.xpose.msra.mxu0 0
        %4634 = vmatprep.subr.bf16.mxu0 0
        %4635 = vmatpush1.bf16.xpose.msra.mxu0 0
        %4636 = vmatprep.subr.bf16.mxu0 0
        %4637 = vmatpush1.bf16.xpose.msra.mxu0 %v4620
        %4638 = vmatprep.subr.bf16.mxu0 0
        %4639 = vmatpush2.bf16.xpose.msra.mxu0 0
        %4640 = vmatprep.subr.bf16.mxu0 0
        %4641 = vmatpush2.bf16.xpose.msra.mxu0 0
        %4642 = vmatprep.subr.bf16.mxu0 0
        %4643 = vmatpush2.bf16.xpose.msra.mxu0 0
        %4644 = vmatprep.subr.bf16.mxu0 0
        %4645 = vmatpush2.bf16.xpose.msra.mxu0 0
        %4646 = vmatprep.subr.bf16.mxu0 0
        %4647 = vmatpush2.bf16.xpose.msra.mxu0 0
        %4648 = vmatprep.subr.bf16.mxu0 0
        %4649 = vmatpush2.bf16.xpose.msra.mxu0 0
        %4650 = vmatprep.subr.bf16.mxu0 0
        %4651 = vmatpush2.bf16.xpose.msra.mxu0 0
        %4652 = vmatprep.subr.bf16.mxu0 0
        %4653 = vmatpush2.bf16.xpose.msra.mxu0 0
        %4654 = vmatprep.mubr.bf16.mxu0 0
        %4655 = vmatmul.mubr.bf16.gmra.mxu0 %v4617
        %v4656 = vpop.f32.mrf.mxu0
        %v4657 = vadd.f32 0.0, %v4656
        %v4658 = vpop.f32.mrf.mxu0
        %v4659 = vpop.f32.mrf.mxu0
        %v4660 = vpop.f32.mrf.mxu0
        %4661 = vdwg.mxu0
        %v4664 = vunpack.c.l.s4 1966171168
        %v4665 = vunpack.c.0.s8 %v4664
        %v4666 = vlaneseq
        %v4667 = vshrl.u32 %v4666, 7
        %v4668 = vsub.s32 %v4665, %v4667
        %v4669 = vrot.slane %v4206, %v4668
        %v4671 = vunpack.c.l.s4 1966171168
        %v4672 = vunpack.c.0.s8 %v4671
        %v4673 = vlaneseq
        %v4674 = vshrl.u32 %v4673, 7
        %v4675 = vsub.s32 %v4672, %v4674
        %v4676 = vrot.slane %v4669, %v4675
        %4677 = vrot.lane.b32.xlu0 %v4676, 116
        %v4678 = vpop.permute.xlu0 %4677
        %4679 = vrot.lane.b32.xlu0 %v4676, 84
        %v4680 = vpop.permute.xlu0 %4679
        %v4682 = vsel %vm849, %v4678, 0
        %v4685 = vsel %vm849, %v4680, 0
        %4687 = vmatprep.subr.bf16.mxu0 0
        %4688 = vmatpush1.bf16.xpose.msra.mxu0 0
        %4689 = vmatprep.subr.bf16.mxu0 0
        %4690 = vmatpush1.bf16.xpose.msra.mxu0 0
        %4691 = vmatprep.subr.bf16.mxu0 0
        %4692 = vmatpush1.bf16.xpose.msra.mxu0 0
        %4693 = vmatprep.subr.bf16.mxu0 0
        %4694 = vmatpush1.bf16.xpose.msra.mxu0 0
        %4695 = vmatprep.subr.bf16.mxu0 0
        %4696 = vmatpush1.bf16.xpose.msra.mxu0 0
        %4697 = vmatprep.subr.bf16.mxu0 0
        %4698 = vmatpush1.bf16.xpose.msra.mxu0 0
        %4699 = vmatprep.subr.bf16.mxu0 0
        %4700 = vmatpush1.bf16.xpose.msra.mxu0 0
        %4701 = vmatprep.subr.bf16.mxu0 0
        %4702 = vmatpush1.bf16.xpose.msra.mxu0 %v4685
        %4703 = vmatprep.subr.bf16.mxu0 0
        %4704 = vmatpush2.bf16.xpose.msra.mxu0 0
        %4705 = vmatprep.subr.bf16.mxu0 0
        %4706 = vmatpush2.bf16.xpose.msra.mxu0 0
        %4707 = vmatprep.subr.bf16.mxu0 0
        %4708 = vmatpush2.bf16.xpose.msra.mxu0 0
        %4709 = vmatprep.subr.bf16.mxu0 0
        %4710 = vmatpush2.bf16.xpose.msra.mxu0 0
        %4711 = vmatprep.subr.bf16.mxu0 0
        %4712 = vmatpush2.bf16.xpose.msra.mxu0 0
        %4713 = vmatprep.subr.bf16.mxu0 0
        %4714 = vmatpush2.bf16.xpose.msra.mxu0 0
        %4715 = vmatprep.subr.bf16.mxu0 0
        %4716 = vmatpush2.bf16.xpose.msra.mxu0 0
        %4717 = vmatprep.subr.bf16.mxu0 0
        %4718 = vmatpush2.bf16.xpose.msra.mxu0 0
        %4719 = vmatprep.mubr.bf16.mxu0 0
        %4720 = vmatmul.mubr.bf16.gmra.mxu0 %v4682
        %v4721 = vpop.f32.mrf.mxu0
        %v4722 = vadd.f32 0.0, %v4721
        %v4723 = vpop.f32.mrf.mxu0
        %v4724 = vpop.f32.mrf.mxu0
        %v4725 = vpop.f32.mrf.mxu0
        %4726 = vdwg.mxu0
        %v4727 = vmul.f32 %v4267, 0.5
        %v4728 = vmul.f32 %v4332, 0.5
        %v4729 = vmul.f32 %v4397, 0.5
        %v4730 = vmul.f32 %v4462, 0.5
        %v4731 = vmul.f32 %v4527, 0.5
        %v4732 = vmul.f32 %v4592, 0.5
        %v4733 = vmul.f32 %v4657, 0.5
        %v4734 = vmul.f32 %v4722, 0.5
        %v4735 = vsel %vm1345, %v4727, -inf
        %4736 = vmax.xlane.f32.xlu0 %v4735
        %v4737 = vpop.xlane.xlu0 %4736
        %v4738 = vsel %vm1345, %v4728, -inf
        %4739 = vmax.xlane.f32.xlu0 %v4738
        %v4740 = vpop.xlane.xlu0 %4739
        %v4741 = vsel %vm1345, %v4729, -inf
        %4742 = vmax.xlane.f32.xlu0 %v4741
        %v4743 = vpop.xlane.xlu0 %4742
        %v4744 = vsel %vm1345, %v4730, -inf
        %4745 = vmax.xlane.f32.xlu0 %v4744
        %v4746 = vpop.xlane.xlu0 %4745
        %v4747 = vsel %vm1345, %v4731, -inf
        %4748 = vmax.xlane.f32.xlu0 %v4747
        %v4749 = vpop.xlane.xlu0 %4748
        %v4750 = vsel %vm1345, %v4732, -inf
        %4751 = vmax.xlane.f32.xlu0 %v4750
        %v4752 = vpop.xlane.xlu0 %4751
        %v4753 = vsel %vm1345, %v4733, -inf
        %4754 = vmax.xlane.f32.xlu0 %v4753
        %v4755 = vpop.xlane.xlu0 %4754
        %v4756 = vsel %vm1345, %v4734, -inf
        %4757 = vmax.xlane.f32.xlu0 %v4756
        %v4758 = vpop.xlane.xlu0 %4757
        %v4759 = vsub.f32 %v4727, %v4737
        %v4760 = vsub.f32 %v4728, %v4740
        %v4761 = vsub.f32 %v4729, %v4743
        %v4762 = vsub.f32 %v4730, %v4746
        %v4763 = vsub.f32 %v4731, %v4749
        %v4764 = vsub.f32 %v4732, %v4752
        %v4765 = vsub.f32 %v4733, %v4755
        %v4766 = vsub.f32 %v4734, %v4758
        %v4767 = vmul.f32 %v4759, 1.442695
        %v4768 = vpow.pop %v4767
        %v4769 = vmul.f32 %v4760, 1.442695
        %v4770 = vpow.pop %v4769
        %v4771 = vmul.f32 %v4761, 1.442695
        %v4772 = vpow.pop %v4771
        %v4773 = vmul.f32 %v4762, 1.442695
        %v4774 = vpow.pop %v4773
        %v4775 = vmul.f32 %v4763, 1.442695
        %v4776 = vpow.pop %v4775
        %v4777 = vmul.f32 %v4764, 1.442695
        %v4778 = vpow.pop %v4777
        %v4779 = vmul.f32 %v4765, 1.442695
        %v4780 = vpow.pop %v4779
        %v4781 = vmul.f32 %v4766, 1.442695
        %v4782 = vpow.pop %v4781
        %v4783 = vsel %vm1345, %v4768, 0.0
        %4784 = vadd.xlane.f32.xlu0 %v4783
        %v4785 = vpop.xlane.xlu0 %4784
        %v4786 = vsel %vm1345, %v4770, 0.0
        %4787 = vadd.xlane.f32.xlu0 %v4786
        %v4788 = vpop.xlane.xlu0 %4787
        %v4789 = vsel %vm1345, %v4772, 0.0
        %4790 = vadd.xlane.f32.xlu0 %v4789
        %v4791 = vpop.xlane.xlu0 %4790
        %v4792 = vsel %vm1345, %v4774, 0.0
        %4793 = vadd.xlane.f32.xlu0 %v4792
        %v4794 = vpop.xlane.xlu0 %4793
        %v4795 = vsel %vm1345, %v4776, 0.0
        %4796 = vadd.xlane.f32.xlu0 %v4795
        %v4797 = vpop.xlane.xlu0 %4796
        %v4798 = vsel %vm1345, %v4778, 0.0
        %4799 = vadd.xlane.f32.xlu0 %v4798
        %v4800 = vpop.xlane.xlu0 %4799
        %v4801 = vsel %vm1345, %v4780, 0.0
        %4802 = vadd.xlane.f32.xlu0 %v4801
        %v4803 = vpop.xlane.xlu0 %4802
        %v4804 = vsel %vm1345, %v4782, 0.0
        %4805 = vadd.xlane.f32.xlu0 %v4804
        %v4806 = vpop.xlane.xlu0 %4805
        %v4807 = vrcp.pop %v4785
        %v4808 = vrcp.pop %v4788
        %v4809 = vrcp.pop %v4791
        %v4810 = vrcp.pop %v4794
        %v4811 = vrcp.pop %v4797
        %v4812 = vrcp.pop %v4800
        %v4813 = vrcp.pop %v4803
        %v4814 = vrcp.pop %v4806
        %v4815 = vmul.f32 %v4768, %v4807
        %v4816 = vmul.f32 %v4770, %v4808
        %v4817 = vmul.f32 %v4772, %v4809
        %v4818 = vmul.f32 %v4774, %v4810
        %v4819 = vmul.f32 %v4776, %v4811
        %v4820 = vmul.f32 %v4778, %v4812
        %v4821 = vmul.f32 %v4780, %v4813
        %v4822 = vmul.f32 %v4782, %v4814
        %v4823 = vpack.c.bf16 %v4815, %v4815
        %v4824 = vpack.c.bf16 %v4816, %v4816
        %v4825 = vpack.c.bf16 %v4817, %v4817
        %v4826 = vpack.c.bf16 %v4818, %v4818
        %v4827 = vpack.c.bf16 %v4819, %v4819
        %v4828 = vpack.c.bf16 %v4820, %v4820
        %v4829 = vpack.c.bf16 %v4821, %v4821
        %v4830 = vpack.c.bf16 %v4822, %v4822
        %4831 = vrot.lane.b32.xlu0 %v4221, 52
        %v4832 = vpop.permute.xlu0 %4831
        %v4834 = vsel %vm1444, %v4823, 0
        %v4837 = vsel %vm1448, %v4832, 0
        %4839 = vmatprep.subr.bf16.mxu0 0
        %4840 = vmatpush1.bf16.msra.mxu0 0
        %4841 = vmatprep.subr.bf16.mxu0 0
        %4842 = vmatpush1.bf16.msra.mxu0 0
        %4843 = vmatprep.subr.bf16.mxu0 0
        %4844 = vmatpush1.bf16.msra.mxu0 0
        %4845 = vmatprep.subr.bf16.mxu0 0
        %4846 = vmatpush1.bf16.msra.mxu0 0
        %4847 = vmatprep.subr.bf16.mxu0 0
        %4848 = vmatpush1.bf16.msra.mxu0 0
        %4849 = vmatprep.subr.bf16.mxu0 0
        %4850 = vmatpush1.bf16.msra.mxu0 0
        %4851 = vmatprep.subr.bf16.mxu0 0
        %4852 = vmatpush1.bf16.msra.mxu0 0
        %4853 = vmatprep.subr.bf16.mxu0 0
        %4854 = vmatpush1.bf16.msra.mxu0 %v4837
        %4855 = vmatprep.subr.bf16.mxu0 0
        %4856 = vmatpush2.bf16.msra.mxu0 0
        %4857 = vmatprep.subr.bf16.mxu0 0
        %4858 = vmatpush2.bf16.msra.mxu0 0
        %4859 = vmatprep.subr.bf16.mxu0 0
        %4860 = vmatpush2.bf16.msra.mxu0 0
        %4861 = vmatprep.subr.bf16.mxu0 0
        %4862 = vmatpush2.bf16.msra.mxu0 0
        %4863 = vmatprep.subr.bf16.mxu0 0
        %4864 = vmatpush2.bf16.msra.mxu0 0
        %4865 = vmatprep.subr.bf16.mxu0 0
        %4866 = vmatpush2.bf16.msra.mxu0 0
        %4867 = vmatprep.subr.bf16.mxu0 0
        %4868 = vmatpush2.bf16.msra.mxu0 0
        %4869 = vmatprep.subr.bf16.mxu0 0
        %4870 = vmatpush2.bf16.msra.mxu0 0
        %4871 = vmatprep.mubr.bf16.mxu0 0
        %4872 = vmatmul.mubr.bf16.gmra.mxu0 %v4834
        %v4873 = vpop.f32.mrf.mxu0
        %v4874 = vadd.f32 0.0, %v4873
        %v4875 = vpop.f32.mrf.mxu0
        %v4876 = vpop.f32.mrf.mxu0
        %v4877 = vpop.f32.mrf.mxu0
        %4878 = vdwg.mxu0
        %4879 = vrot.lane.b32.xlu0 %v4286, 52
        %v4880 = vpop.permute.xlu0 %4879
        %v4882 = vsel %vm1444, %v4824, 0
        %v4885 = vsel %vm1448, %v4880, 0
        %4887 = vmatprep.subr.bf16.mxu0 0
        %4888 = vmatpush1.bf16.msra.mxu0 0
        %4889 = vmatprep.subr.bf16.mxu0 0
        %4890 = vmatpush1.bf16.msra.mxu0 0
        %4891 = vmatprep.subr.bf16.mxu0 0
        %4892 = vmatpush1.bf16.msra.mxu0 0
        %4893 = vmatprep.subr.bf16.mxu0 0
        %4894 = vmatpush1.bf16.msra.mxu0 0
        %4895 = vmatprep.subr.bf16.mxu0 0
        %4896 = vmatpush1.bf16.msra.mxu0 0
        %4897 = vmatprep.subr.bf16.mxu0 0
        %4898 = vmatpush1.bf16.msra.mxu0 0
        %4899 = vmatprep.subr.bf16.mxu0 0
        %4900 = vmatpush1.bf16.msra.mxu0 0
        %4901 = vmatprep.subr.bf16.mxu0 0
        %4902 = vmatpush1.bf16.msra.mxu0 %v4885
        %4903 = vmatprep.subr.bf16.mxu0 0
        %4904 = vmatpush2.bf16.msra.mxu0 0
        %4905 = vmatprep.subr.bf16.mxu0 0
        %4906 = vmatpush2.bf16.msra.mxu0 0
        %4907 = vmatprep.subr.bf16.mxu0 0
        %4908 = vmatpush2.bf16.msra.mxu0 0
        %4909 = vmatprep.subr.bf16.mxu0 0
        %4910 = vmatpush2.bf16.msra.mxu0 0
        %4911 = vmatprep.subr.bf16.mxu0 0
        %4912 = vmatpush2.bf16.msra.mxu0 0
        %4913 = vmatprep.subr.bf16.mxu0 0
        %4914 = vmatpush2.bf16.msra.mxu0 0
        %4915 = vmatprep.subr.bf16.mxu0 0
        %4916 = vmatpush2.bf16.msra.mxu0 0
        %4917 = vmatprep.subr.bf16.mxu0 0
        %4918 = vmatpush2.bf16.msra.mxu0 0
        %4919 = vmatprep.mubr.bf16.mxu0 0
        %4920 = vmatmul.mubr.bf16.gmra.mxu0 %v4882
        %v4921 = vpop.f32.mrf.mxu0
        %v4922 = vadd.f32 0.0, %v4921
        %v4923 = vpop.f32.mrf.mxu0
        %v4924 = vpop.f32.mrf.mxu0
        %v4925 = vpop.f32.mrf.mxu0
        %4926 = vdwg.mxu0
        %4927 = vrot.lane.b32.xlu0 %v4351, 52
        %v4928 = vpop.permute.xlu0 %4927
        %v4930 = vsel %vm1444, %v4825, 0
        %v4933 = vsel %vm1448, %v4928, 0
        %4935 = vmatprep.subr.bf16.mxu0 0
        %4936 = vmatpush1.bf16.msra.mxu0 0
        %4937 = vmatprep.subr.bf16.mxu0 0
        %4938 = vmatpush1.bf16.msra.mxu0 0
        %4939 = vmatprep.subr.bf16.mxu0 0
        %4940 = vmatpush1.bf16.msra.mxu0 0
        %4941 = vmatprep.subr.bf16.mxu0 0
        %4942 = vmatpush1.bf16.msra.mxu0 0
        %4943 = vmatprep.subr.bf16.mxu0 0
        %4944 = vmatpush1.bf16.msra.mxu0 0
        %4945 = vmatprep.subr.bf16.mxu0 0
        %4946 = vmatpush1.bf16.msra.mxu0 0
        %4947 = vmatprep.subr.bf16.mxu0 0
        %4948 = vmatpush1.bf16.msra.mxu0 0
        %4949 = vmatprep.subr.bf16.mxu0 0
        %4950 = vmatpush1.bf16.msra.mxu0 %v4933
        %4951 = vmatprep.subr.bf16.mxu0 0
        %4952 = vmatpush2.bf16.msra.mxu0 0
        %4953 = vmatprep.subr.bf16.mxu0 0
        %4954 = vmatpush2.bf16.msra.mxu0 0
        %4955 = vmatprep.subr.bf16.mxu0 0
        %4956 = vmatpush2.bf16.msra.mxu0 0
        %4957 = vmatprep.subr.bf16.mxu0 0
        %4958 = vmatpush2.bf16.msra.mxu0 0
        %4959 = vmatprep.subr.bf16.mxu0 0
        %4960 = vmatpush2.bf16.msra.mxu0 0
        %4961 = vmatprep.subr.bf16.mxu0 0
        %4962 = vmatpush2.bf16.msra.mxu0 0
        %4963 = vmatprep.subr.bf16.mxu0 0
        %4964 = vmatpush2.bf16.msra.mxu0 0
        %4965 = vmatprep.subr.bf16.mxu0 0
        %4966 = vmatpush2.bf16.msra.mxu0 0
        %4967 = vmatprep.mubr.bf16.mxu0 0
        %4968 = vmatmul.mubr.bf16.gmra.mxu0 %v4930
        %v4969 = vpop.f32.mrf.mxu0
        %v4970 = vadd.f32 0.0, %v4969
        %v4971 = vpop.f32.mrf.mxu0
        %v4972 = vpop.f32.mrf.mxu0
        %v4973 = vpop.f32.mrf.mxu0
        %4974 = vdwg.mxu0
        %4975 = vrot.lane.b32.xlu0 %v4416, 52
        %v4976 = vpop.permute.xlu0 %4975
        %v4978 = vsel %vm1444, %v4826, 0
        %v4981 = vsel %vm1448, %v4976, 0
        %4983 = vmatprep.subr.bf16.mxu0 0
        %4984 = vmatpush1.bf16.msra.mxu0 0
        %4985 = vmatprep.subr.bf16.mxu0 0
        %4986 = vmatpush1.bf16.msra.mxu0 0
        %4987 = vmatprep.subr.bf16.mxu0 0
        %4988 = vmatpush1.bf16.msra.mxu0 0
        %4989 = vmatprep.subr.bf16.mxu0 0
        %4990 = vmatpush1.bf16.msra.mxu0 0
        %4991 = vmatprep.subr.bf16.mxu0 0
        %4992 = vmatpush1.bf16.msra.mxu0 0
        %4993 = vmatprep.subr.bf16.mxu0 0
        %4994 = vmatpush1.bf16.msra.mxu0 0
        %4995 = vmatprep.subr.bf16.mxu0 0
        %4996 = vmatpush1.bf16.msra.mxu0 0
        %4997 = vmatprep.subr.bf16.mxu0 0
        %4998 = vmatpush1.bf16.msra.mxu0 %v4981
        %4999 = vmatprep.subr.bf16.mxu0 0
        %5000 = vmatpush2.bf16.msra.mxu0 0
        %5001 = vmatprep.subr.bf16.mxu0 0
        %5002 = vmatpush2.bf16.msra.mxu0 0
        %5003 = vmatprep.subr.bf16.mxu0 0
        %5004 = vmatpush2.bf16.msra.mxu0 0
        %5005 = vmatprep.subr.bf16.mxu0 0
        %5006 = vmatpush2.bf16.msra.mxu0 0
        %5007 = vmatprep.subr.bf16.mxu0 0
        %5008 = vmatpush2.bf16.msra.mxu0 0
        %5009 = vmatprep.subr.bf16.mxu0 0
        %5010 = vmatpush2.bf16.msra.mxu0 0
        %5011 = vmatprep.subr.bf16.mxu0 0
        %5012 = vmatpush2.bf16.msra.mxu0 0
        %5013 = vmatprep.subr.bf16.mxu0 0
        %5014 = vmatpush2.bf16.msra.mxu0 0
        %5015 = vmatprep.mubr.bf16.mxu0 0
        %5016 = vmatmul.mubr.bf16.gmra.mxu0 %v4978
        %v5017 = vpop.f32.mrf.mxu0
        %v5018 = vadd.f32 0.0, %v5017
        %v5019 = vpop.f32.mrf.mxu0
        %v5020 = vpop.f32.mrf.mxu0
        %v5021 = vpop.f32.mrf.mxu0
        %5022 = vdwg.mxu0
        %5023 = vrot.lane.b32.xlu0 %v4481, 52
        %v5024 = vpop.permute.xlu0 %5023
        %v5026 = vsel %vm1444, %v4827, 0
        %v5029 = vsel %vm1448, %v5024, 0
        %5031 = vmatprep.subr.bf16.mxu0 0
        %5032 = vmatpush1.bf16.msra.mxu0 0
        %5033 = vmatprep.subr.bf16.mxu0 0
        %5034 = vmatpush1.bf16.msra.mxu0 0
        %5035 = vmatprep.subr.bf16.mxu0 0
        %5036 = vmatpush1.bf16.msra.mxu0 0
        %5037 = vmatprep.subr.bf16.mxu0 0
        %5038 = vmatpush1.bf16.msra.mxu0 0
        %5039 = vmatprep.subr.bf16.mxu0 0
        %5040 = vmatpush1.bf16.msra.mxu0 0
        %5041 = vmatprep.subr.bf16.mxu0 0
        %5042 = vmatpush1.bf16.msra.mxu0 0
        %5043 = vmatprep.subr.bf16.mxu0 0
        %5044 = vmatpush1.bf16.msra.mxu0 0
        %5045 = vmatprep.subr.bf16.mxu0 0
        %5046 = vmatpush1.bf16.msra.mxu0 %v5029
        %5047 = vmatprep.subr.bf16.mxu0 0
        %5048 = vmatpush2.bf16.msra.mxu0 0
        %5049 = vmatprep.subr.bf16.mxu0 0
        %5050 = vmatpush2.bf16.msra.mxu0 0
        %5051 = vmatprep.subr.bf16.mxu0 0
        %5052 = vmatpush2.bf16.msra.mxu0 0
        %5053 = vmatprep.subr.bf16.mxu0 0
        %5054 = vmatpush2.bf16.msra.mxu0 0
        %5055 = vmatprep.subr.bf16.mxu0 0
        %5056 = vmatpush2.bf16.msra.mxu0 0
        %5057 = vmatprep.subr.bf16.mxu0 0
        %5058 = vmatpush2.bf16.msra.mxu0 0
        %5059 = vmatprep.subr.bf16.mxu0 0
        %5060 = vmatpush2.bf16.msra.mxu0 0
        %5061 = vmatprep.subr.bf16.mxu0 0
        %5062 = vmatpush2.bf16.msra.mxu0 0
        %5063 = vmatprep.mubr.bf16.mxu0 0
        %5064 = vmatmul.mubr.bf16.gmra.mxu0 %v5026
        %v5065 = vpop.f32.mrf.mxu0
        %v5066 = vadd.f32 0.0, %v5065
        %v5067 = vpop.f32.mrf.mxu0
        %v5068 = vpop.f32.mrf.mxu0
        %v5069 = vpop.f32.mrf.mxu0
        %5070 = vdwg.mxu0
        %5071 = vrot.lane.b32.xlu0 %v4546, 52
        %v5072 = vpop.permute.xlu0 %5071
        %v5074 = vsel %vm1444, %v4828, 0
        %v5077 = vsel %vm1448, %v5072, 0
        %5079 = vmatprep.subr.bf16.mxu0 0
        %5080 = vmatpush1.bf16.msra.mxu0 0
        %5081 = vmatprep.subr.bf16.mxu0 0
        %5082 = vmatpush1.bf16.msra.mxu0 0
        %5083 = vmatprep.subr.bf16.mxu0 0
        %5084 = vmatpush1.bf16.msra.mxu0 0
        %5085 = vmatprep.subr.bf16.mxu0 0
        %5086 = vmatpush1.bf16.msra.mxu0 0
        %5087 = vmatprep.subr.bf16.mxu0 0
        %5088 = vmatpush1.bf16.msra.mxu0 0
        %5089 = vmatprep.subr.bf16.mxu0 0
        %5090 = vmatpush1.bf16.msra.mxu0 0
        %5091 = vmatprep.subr.bf16.mxu0 0
        %5092 = vmatpush1.bf16.msra.mxu0 0
        %5093 = vmatprep.subr.bf16.mxu0 0
        %5094 = vmatpush1.bf16.msra.mxu0 %v5077
        %5095 = vmatprep.subr.bf16.mxu0 0
        %5096 = vmatpush2.bf16.msra.mxu0 0
        %5097 = vmatprep.subr.bf16.mxu0 0
        %5098 = vmatpush2.bf16.msra.mxu0 0
        %5099 = vmatprep.subr.bf16.mxu0 0
        %5100 = vmatpush2.bf16.msra.mxu0 0
        %5101 = vmatprep.subr.bf16.mxu0 0
        %5102 = vmatpush2.bf16.msra.mxu0 0
        %5103 = vmatprep.subr.bf16.mxu0 0
        %5104 = vmatpush2.bf16.msra.mxu0 0
        %5105 = vmatprep.subr.bf16.mxu0 0
        %5106 = vmatpush2.bf16.msra.mxu0 0
        %5107 = vmatprep.subr.bf16.mxu0 0
        %5108 = vmatpush2.bf16.msra.mxu0 0
        %5109 = vmatprep.subr.bf16.mxu0 0
        %5110 = vmatpush2.bf16.msra.mxu0 0
        %5111 = vmatprep.mubr.bf16.mxu0 0
        %5112 = vmatmul.mubr.bf16.gmra.mxu0 %v5074
        %v5113 = vpop.f32.mrf.mxu0
        %v5114 = vadd.f32 0.0, %v5113
        %v5115 = vpop.f32.mrf.mxu0
        %v5116 = vpop.f32.mrf.mxu0
        %v5117 = vpop.f32.mrf.mxu0
        %5118 = vdwg.mxu0
        %5119 = vrot.lane.b32.xlu0 %v4611, 52
        %v5120 = vpop.permute.xlu0 %5119
        %v5122 = vsel %vm1444, %v4829, 0
        %v5125 = vsel %vm1448, %v5120, 0
        %5127 = vmatprep.subr.bf16.mxu0 0
        %5128 = vmatpush1.bf16.msra.mxu0 0
        %5129 = vmatprep.subr.bf16.mxu0 0
        %5130 = vmatpush1.bf16.msra.mxu0 0
        %5131 = vmatprep.subr.bf16.mxu0 0
        %5132 = vmatpush1.bf16.msra.mxu0 0
        %5133 = vmatprep.subr.bf16.mxu0 0
        %5134 = vmatpush1.bf16.msra.mxu0 0
        %5135 = vmatprep.subr.bf16.mxu0 0
        %5136 = vmatpush1.bf16.msra.mxu0 0
        %5137 = vmatprep.subr.bf16.mxu0 0
        %5138 = vmatpush1.bf16.msra.mxu0 0
        %5139 = vmatprep.subr.bf16.mxu0 0
        %5140 = vmatpush1.bf16.msra.mxu0 0
        %5141 = vmatprep.subr.bf16.mxu0 0
        %5142 = vmatpush1.bf16.msra.mxu0 %v5125
        %5143 = vmatprep.subr.bf16.mxu0 0
        %5144 = vmatpush2.bf16.msra.mxu0 0
        %5145 = vmatprep.subr.bf16.mxu0 0
        %5146 = vmatpush2.bf16.msra.mxu0 0
        %5147 = vmatprep.subr.bf16.mxu0 0
        %5148 = vmatpush2.bf16.msra.mxu0 0
        %5149 = vmatprep.subr.bf16.mxu0 0
        %5150 = vmatpush2.bf16.msra.mxu0 0
        %5151 = vmatprep.subr.bf16.mxu0 0
        %5152 = vmatpush2.bf16.msra.mxu0 0
        %5153 = vmatprep.subr.bf16.mxu0 0
        %5154 = vmatpush2.bf16.msra.mxu0 0
        %5155 = vmatprep.subr.bf16.mxu0 0
        %5156 = vmatpush2.bf16.msra.mxu0 0
        %5157 = vmatprep.subr.bf16.mxu0 0
        %5158 = vmatpush2.bf16.msra.mxu0 0
        %5159 = vmatprep.mubr.bf16.mxu0 0
        %5160 = vmatmul.mubr.bf16.gmra.mxu0 %v5122
        %v5161 = vpop.f32.mrf.mxu0
        %v5162 = vadd.f32 0.0, %v5161
        %v5163 = vpop.f32.mrf.mxu0
        %v5164 = vpop.f32.mrf.mxu0
        %v5165 = vpop.f32.mrf.mxu0
        %5166 = vdwg.mxu0
        %5167 = vrot.lane.b32.xlu0 %v4676, 52
        %v5168 = vpop.permute.xlu0 %5167
        %v5170 = vsel %vm1444, %v4830, 0
        %v5173 = vsel %vm1448, %v5168, 0
        %5175 = vmatprep.subr.bf16.mxu0 0
        %5176 = vmatpush1.bf16.msra.mxu0 0
        %5177 = vmatprep.subr.bf16.mxu0 0
        %5178 = vmatpush1.bf16.msra.mxu0 0
        %5179 = vmatprep.subr.bf16.mxu0 0
        %5180 = vmatpush1.bf16.msra.mxu0 0
        %5181 = vmatprep.subr.bf16.mxu0 0
        %5182 = vmatpush1.bf16.msra.mxu0 0
        %5183 = vmatprep.subr.bf16.mxu0 0
        %5184 = vmatpush1.bf16.msra.mxu0 0
        %5185 = vmatprep.subr.bf16.mxu0 0
        %5186 = vmatpush1.bf16.msra.mxu0 0
        %5187 = vmatprep.subr.bf16.mxu0 0
        %5188 = vmatpush1.bf16.msra.mxu0 0
        %5189 = vmatprep.subr.bf16.mxu0 0
        %5190 = vmatpush1.bf16.msra.mxu0 %v5173
        %5191 = vmatprep.subr.bf16.mxu0 0
        %5192 = vmatpush2.bf16.msra.mxu0 0
        %5193 = vmatprep.subr.bf16.mxu0 0
        %5194 = vmatpush2.bf16.msra.mxu0 0
        %5195 = vmatprep.subr.bf16.mxu0 0
        %5196 = vmatpush2.bf16.msra.mxu0 0
        %5197 = vmatprep.subr.bf16.mxu0 0
        %5198 = vmatpush2.bf16.msra.mxu0 0
        %5199 = vmatprep.subr.bf16.mxu0 0
        %5200 = vmatpush2.bf16.msra.mxu0 0
        %5201 = vmatprep.subr.bf16.mxu0 0
        %5202 = vmatpush2.bf16.msra.mxu0 0
        %5203 = vmatprep.subr.bf16.mxu0 0
        %5204 = vmatpush2.bf16.msra.mxu0 0
        %5205 = vmatprep.subr.bf16.mxu0 0
        %5206 = vmatpush2.bf16.msra.mxu0 0
        %5207 = vmatprep.mubr.bf16.mxu0 0
        %5208 = vmatmul.mubr.bf16.gmra.mxu0 %v5170
        %v5209 = vpop.f32.mrf.mxu0
        %v5210 = vadd.f32 0.0, %v5209
        %v5211 = vpop.f32.mrf.mxu0
        %v5212 = vpop.f32.mrf.mxu0
        %v5213 = vpop.f32.mrf.mxu0
        %5214 = vdwg.mxu0
        %v5215 = vpack.c.bf16 %v4874, %v4874
        %v5216 = vpack.c.bf16 %v4922, %v4922
        %v5217 = vpack.c.bf16 %v4970, %v4970
        %v5218 = vpack.c.bf16 %v5018, %v5018
        %v5219 = vpack.c.bf16 %v5066, %v5066
        %v5220 = vpack.c.bf16 %v5114, %v5114
        %v5221 = vpack.c.bf16 %v5162, %v5162
        %v5222 = vpack.c.bf16 %v5210, %v5210
        %v5232 = vunpack.c.l.s4 1966171168
        %v5233 = vunpack.c.0.s8 %v5232
        %v5234 = vlaneseq
        %v5235 = vshrl.u32 %v5234, 7
        %v5236 = vsub.s32 %v5233, %v5235
        %v5237 = vrot.slane %v5215, %v5236
        %v5239 = vunpack.c.l.s4 1966171168
        %v5240 = vunpack.c.0.s8 %v5239
        %v5241 = vlaneseq
        %v5242 = vshrl.u32 %v5241, 7
        %v5243 = vsub.s32 %v5240, %v5242
        %v5244 = vrot.slane %v5237, %v5243
        %v5246 = vunpack.c.l.s4 1966171168
        %v5247 = vunpack.c.0.s8 %v5246
        %v5248 = vlaneseq
        %v5249 = vshrl.u32 %v5248, 7
        %v5250 = vsub.s32 %v5247, %v5249
        %v5251 = vrot.slane %v5216, %v5250
        %v5253 = vunpack.c.l.s4 1966171168
        %v5254 = vunpack.c.0.s8 %v5253
        %v5255 = vlaneseq
        %v5256 = vshrl.u32 %v5255, 7
        %v5257 = vsub.s32 %v5254, %v5256
        %v5258 = vrot.slane %v5251, %v5257
        %v5260 = vunpack.c.l.s4 1966171168
        %v5261 = vunpack.c.0.s8 %v5260
        %v5262 = vlaneseq
        %v5263 = vshrl.u32 %v5262, 7
        %v5264 = vsub.s32 %v5261, %v5263
        %v5265 = vrot.slane %v5217, %v5264
        %v5267 = vunpack.c.l.s4 1966171168
        %v5268 = vunpack.c.0.s8 %v5267
        %v5269 = vlaneseq
        %v5270 = vshrl.u32 %v5269, 7
        %v5271 = vsub.s32 %v5268, %v5270
        %v5272 = vrot.slane %v5265, %v5271
        %v5274 = vunpack.c.l.s4 1966171168
        %v5275 = vunpack.c.0.s8 %v5274
        %v5276 = vlaneseq
        %v5277 = vshrl.u32 %v5276, 7
        %v5278 = vsub.s32 %v5275, %v5277
        %v5279 = vrot.slane %v5218, %v5278
        %v5281 = vunpack.c.l.s4 1966171168
        %v5282 = vunpack.c.0.s8 %v5281
        %v5283 = vlaneseq
        %v5284 = vshrl.u32 %v5283, 7
        %v5285 = vsub.s32 %v5282, %v5284
        %v5286 = vrot.slane %v5279, %v5285
        %v5288 = vunpack.c.l.s4 1966171168
        %v5289 = vunpack.c.0.s8 %v5288
        %v5290 = vlaneseq
        %v5291 = vshrl.u32 %v5290, 7
        %v5292 = vsub.s32 %v5289, %v5291
        %v5293 = vrot.slane %v5219, %v5292
        %v5295 = vunpack.c.l.s4 1966171168
        %v5296 = vunpack.c.0.s8 %v5295
        %v5297 = vlaneseq
        %v5298 = vshrl.u32 %v5297, 7
        %v5299 = vsub.s32 %v5296, %v5298
        %v5300 = vrot.slane %v5293, %v5299
        %v5302 = vunpack.c.l.s4 1966171168
        %v5303 = vunpack.c.0.s8 %v5302
        %v5304 = vlaneseq
        %v5305 = vshrl.u32 %v5304, 7
        %v5306 = vsub.s32 %v5303, %v5305
        %v5307 = vrot.slane %v5220, %v5306
        %v5309 = vunpack.c.l.s4 1966171168
        %v5310 = vunpack.c.0.s8 %v5309
        %v5311 = vlaneseq
        %v5312 = vshrl.u32 %v5311, 7
        %v5313 = vsub.s32 %v5310, %v5312
        %v5314 = vrot.slane %v5307, %v5313
        %v5316 = vunpack.c.l.s4 1966171168
        %v5317 = vunpack.c.0.s8 %v5316
        %v5318 = vlaneseq
        %v5319 = vshrl.u32 %v5318, 7
        %v5320 = vsub.s32 %v5317, %v5319
        %v5321 = vrot.slane %v5221, %v5320
        %v5323 = vunpack.c.l.s4 1966171168
        %v5324 = vunpack.c.0.s8 %v5323
        %v5325 = vlaneseq
        %v5326 = vshrl.u32 %v5325, 7
        %v5327 = vsub.s32 %v5324, %v5326
        %v5328 = vrot.slane %v5321, %v5327
        %v5330 = vunpack.c.l.s4 1966171168
        %v5331 = vunpack.c.0.s8 %v5330
        %v5332 = vlaneseq
        %v5333 = vshrl.u32 %v5332, 7
        %v5334 = vsub.s32 %v5331, %v5333
        %v5335 = vrot.slane %v5222, %v5334
        %v5337 = vunpack.c.l.s4 1966171168
        %v5338 = vunpack.c.0.s8 %v5337
        %v5339 = vlaneseq
        %v5340 = vshrl.u32 %v5339, 7
        %v5341 = vsub.s32 %v5338, %v5340
        %v5342 = vrot.slane %v5335, %v5341
        %5343 = vrot.lane.b32.xlu0 %v5244, 12
        %v5344 = vpop.permute.xlu0 %5343
        %5345 = vrot.lane.b32.xlu0 %v5258, 12
        %v5346 = vpop.permute.xlu0 %5345
        %5347 = vrot.lane.b32.xlu0 %v5272, 12
        %v5348 = vpop.permute.xlu0 %5347
        %5349 = vrot.lane.b32.xlu0 %v5286, 12
        %v5350 = vpop.permute.xlu0 %5349
        %5351 = vrot.lane.b32.xlu0 %v5300, 12
        %v5352 = vpop.permute.xlu0 %5351
        %5353 = vrot.lane.b32.xlu0 %v5314, 12
        %v5354 = vpop.permute.xlu0 %5353
        %5355 = vrot.lane.b32.xlu0 %v5328, 12
        %v5356 = vpop.permute.xlu0 %5355
        %5357 = vrot.lane.b32.xlu0 %v5342, 12
        %v5358 = vpop.permute.xlu0 %5357
        %vm5367 = vcmask 122976
        %5368 = vst.msk [vmem:[#allocation3] sm:$0x1] %vm5367, %v5344
        %5369 = vst.msk [vmem:[#allocation3 + $0x1] sm:$0x1] %vm5367, %v5346
        %5370 = vst.msk [vmem:[#allocation3 + $0x2] sm:$0x1] %vm5367, %v5348
        %5371 = vst.msk [vmem:[#allocation3 + $0x3] sm:$0x1] %vm5367, %v5350
        %5372 = vst.msk [vmem:[#allocation3 + $0x4] sm:$0x1] %vm5367, %v5352
        %5373 = vst.msk [vmem:[#allocation3 + $0x5] sm:$0x1] %vm5367, %v5354
        %5374 = vst.msk [vmem:[#allocation3 + $0x6] sm:$0x1] %vm5367, %v5356
        %5375 = vst.msk [vmem:[#allocation3 + $0x7] sm:$0x1] %vm5367, %v5358
        %v5376 = vld [vmem:[#allocation2] sm:$0x1]
        %v5377 = vld [vmem:[#allocation2 + $0x1] sm:$0x1]
        %v5378 = vld [vmem:[#allocation2 + $0x2] sm:$0x1]
        %v5379 = vld [vmem:[#allocation2 + $0x3] sm:$0x1]
        %v5380 = vld [vmem:[#allocation2 + $0x4] sm:$0x1]
        %v5381 = vld [vmem:[#allocation2 + $0x5] sm:$0x1]
        %v5382 = vld [vmem:[#allocation2 + $0x6] sm:$0x1]
        %v5383 = vld [vmem:[#allocation2 + $0x7] sm:$0x1]
        %v5386 = vunpack.c.l.s4 1966171168
        %v5387 = vunpack.c.0.s8 %v5386
        %v5388 = vlaneseq
        %v5389 = vshrl.u32 %v5388, 7
        %v5390 = vsub.s32 %v5387, %v5389
        %v5391 = vrot.slane %v5376, %v5390
        %v5393 = vunpack.c.l.s4 1966171168
        %v5394 = vunpack.c.0.s8 %v5393
        %v5395 = vlaneseq
        %v5396 = vshrl.u32 %v5395, 7
        %v5397 = vsub.s32 %v5394, %v5396
        %v5398 = vrot.slane %v5391, %v5397
        %5399 = vrot.lane.b32.xlu0 %v5398, 112
        %v5400 = vpop.permute.xlu0 %5399
        %5401 = vrot.lane.b32.xlu0 %v5398, 80
        %v5402 = vpop.permute.xlu0 %5401
        %v5404 = vsel %vm849, %v5400, 0
        %v5407 = vsel %vm849, %v5402, 0
        %5409 = vmatprep.subr.bf16.mxu0 0
        %5410 = vmatpush1.bf16.xpose.msra.mxu0 0
        %5411 = vmatprep.subr.bf16.mxu0 0
        %5412 = vmatpush1.bf16.xpose.msra.mxu0 0
        %5413 = vmatprep.subr.bf16.mxu0 0
        %5414 = vmatpush1.bf16.xpose.msra.mxu0 0
        %5415 = vmatprep.subr.bf16.mxu0 0
        %5416 = vmatpush1.bf16.xpose.msra.mxu0 0
        %5417 = vmatprep.subr.bf16.mxu0 0
        %5418 = vmatpush1.bf16.xpose.msra.mxu0 0
        %5419 = vmatprep.subr.bf16.mxu0 0
        %5420 = vmatpush1.bf16.xpose.msra.mxu0 0
        %5421 = vmatprep.subr.bf16.mxu0 0
        %5422 = vmatpush1.bf16.xpose.msra.mxu0 0
        %5423 = vmatprep.subr.bf16.mxu0 0
        %5424 = vmatpush1.bf16.xpose.msra.mxu0 %v5407
        %5425 = vmatprep.subr.bf16.mxu0 0
        %5426 = vmatpush2.bf16.xpose.msra.mxu0 0
        %5427 = vmatprep.subr.bf16.mxu0 0
        %5428 = vmatpush2.bf16.xpose.msra.mxu0 0
        %5429 = vmatprep.subr.bf16.mxu0 0
        %5430 = vmatpush2.bf16.xpose.msra.mxu0 0
        %5431 = vmatprep.subr.bf16.mxu0 0
        %5432 = vmatpush2.bf16.xpose.msra.mxu0 0
        %5433 = vmatprep.subr.bf16.mxu0 0
        %5434 = vmatpush2.bf16.xpose.msra.mxu0 0
        %5435 = vmatprep.subr.bf16.mxu0 0
        %5436 = vmatpush2.bf16.xpose.msra.mxu0 0
        %5437 = vmatprep.subr.bf16.mxu0 0
        %5438 = vmatpush2.bf16.xpose.msra.mxu0 0
        %5439 = vmatprep.subr.bf16.mxu0 0
        %5440 = vmatpush2.bf16.xpose.msra.mxu0 0
        %5441 = vmatprep.mubr.bf16.mxu0 0
        %5442 = vmatmul.mubr.bf16.gmra.mxu0 %v5404
        %v5443 = vpop.f32.mrf.mxu0
        %v5444 = vadd.f32 0.0, %v5443
        %v5445 = vpop.f32.mrf.mxu0
        %v5446 = vpop.f32.mrf.mxu0
        %v5447 = vpop.f32.mrf.mxu0
        %5448 = vdwg.mxu0
        %v5451 = vunpack.c.l.s4 1966171168
        %v5452 = vunpack.c.0.s8 %v5451
        %v5453 = vlaneseq
        %v5454 = vshrl.u32 %v5453, 7
        %v5455 = vsub.s32 %v5452, %v5454
        %v5456 = vrot.slane %v5377, %v5455
        %v5458 = vunpack.c.l.s4 1966171168
        %v5459 = vunpack.c.0.s8 %v5458
        %v5460 = vlaneseq
        %v5461 = vshrl.u32 %v5460, 7
        %v5462 = vsub.s32 %v5459, %v5461
        %v5463 = vrot.slane %v5456, %v5462
        %5464 = vrot.lane.b32.xlu0 %v5463, 112
        %v5465 = vpop.permute.xlu0 %5464
        %5466 = vrot.lane.b32.xlu0 %v5463, 80
        %v5467 = vpop.permute.xlu0 %5466
        %v5469 = vsel %vm849, %v5465, 0
        %v5472 = vsel %vm849, %v5467, 0
        %5474 = vmatprep.subr.bf16.mxu0 0
        %5475 = vmatpush1.bf16.xpose.msra.mxu0 0
        %5476 = vmatprep.subr.bf16.mxu0 0
        %5477 = vmatpush1.bf16.xpose.msra.mxu0 0
        %5478 = vmatprep.subr.bf16.mxu0 0
        %5479 = vmatpush1.bf16.xpose.msra.mxu0 0
        %5480 = vmatprep.subr.bf16.mxu0 0
        %5481 = vmatpush1.bf16.xpose.msra.mxu0 0
        %5482 = vmatprep.subr.bf16.mxu0 0
        %5483 = vmatpush1.bf16.xpose.msra.mxu0 0
        %5484 = vmatprep.subr.bf16.mxu0 0
        %5485 = vmatpush1.bf16.xpose.msra.mxu0 0
        %5486 = vmatprep.subr.bf16.mxu0 0
        %5487 = vmatpush1.bf16.xpose.msra.mxu0 0
        %5488 = vmatprep.subr.bf16.mxu0 0
        %5489 = vmatpush1.bf16.xpose.msra.mxu0 %v5472
        %5490 = vmatprep.subr.bf16.mxu0 0
        %5491 = vmatpush2.bf16.xpose.msra.mxu0 0
        %5492 = vmatprep.subr.bf16.mxu0 0
        %5493 = vmatpush2.bf16.xpose.msra.mxu0 0
        %5494 = vmatprep.subr.bf16.mxu0 0
        %5495 = vmatpush2.bf16.xpose.msra.mxu0 0
        %5496 = vmatprep.subr.bf16.mxu0 0
        %5497 = vmatpush2.bf16.xpose.msra.mxu0 0
        %5498 = vmatprep.subr.bf16.mxu0 0
        %5499 = vmatpush2.bf16.xpose.msra.mxu0 0
        %5500 = vmatprep.subr.bf16.mxu0 0
        %5501 = vmatpush2.bf16.xpose.msra.mxu0 0
        %5502 = vmatprep.subr.bf16.mxu0 0
        %5503 = vmatpush2.bf16.xpose.msra.mxu0 0
        %5504 = vmatprep.subr.bf16.mxu0 0
        %5505 = vmatpush2.bf16.xpose.msra.mxu0 0
        %5506 = vmatprep.mubr.bf16.mxu0 0
        %5507 = vmatmul.mubr.bf16.gmra.mxu0 %v5469
        %v5508 = vpop.f32.mrf.mxu0
        %v5509 = vadd.f32 0.0, %v5508
        %v5510 = vpop.f32.mrf.mxu0
        %v5511 = vpop.f32.mrf.mxu0
        %v5512 = vpop.f32.mrf.mxu0
        %5513 = vdwg.mxu0
        %v5516 = vunpack.c.l.s4 1966171168
        %v5517 = vunpack.c.0.s8 %v5516
        %v5518 = vlaneseq
        %v5519 = vshrl.u32 %v5518, 7
        %v5520 = vsub.s32 %v5517, %v5519
        %v5521 = vrot.slane %v5378, %v5520
        %v5523 = vunpack.c.l.s4 1966171168
        %v5524 = vunpack.c.0.s8 %v5523
        %v5525 = vlaneseq
        %v5526 = vshrl.u32 %v5525, 7
        %v5527 = vsub.s32 %v5524, %v5526
        %v5528 = vrot.slane %v5521, %v5527
        %5529 = vrot.lane.b32.xlu0 %v5528, 112
        %v5530 = vpop.permute.xlu0 %5529
        %5531 = vrot.lane.b32.xlu0 %v5528, 80
        %v5532 = vpop.permute.xlu0 %5531
        %v5534 = vsel %vm849, %v5530, 0
        %v5537 = vsel %vm849, %v5532, 0
        %5539 = vmatprep.subr.bf16.mxu0 0
        %5540 = vmatpush1.bf16.xpose.msra.mxu0 0
        %5541 = vmatprep.subr.bf16.mxu0 0
        %5542 = vmatpush1.bf16.xpose.msra.mxu0 0
        %5543 = vmatprep.subr.bf16.mxu0 0
        %5544 = vmatpush1.bf16.xpose.msra.mxu0 0
        %5545 = vmatprep.subr.bf16.mxu0 0
        %5546 = vmatpush1.bf16.xpose.msra.mxu0 0
        %5547 = vmatprep.subr.bf16.mxu0 0
        %5548 = vmatpush1.bf16.xpose.msra.mxu0 0
        %5549 = vmatprep.subr.bf16.mxu0 0
        %5550 = vmatpush1.bf16.xpose.msra.mxu0 0
        %5551 = vmatprep.subr.bf16.mxu0 0
        %5552 = vmatpush1.bf16.xpose.msra.mxu0 0
        %5553 = vmatprep.subr.bf16.mxu0 0
        %5554 = vmatpush1.bf16.xpose.msra.mxu0 %v5537
        %5555 = vmatprep.subr.bf16.mxu0 0
        %5556 = vmatpush2.bf16.xpose.msra.mxu0 0
        %5557 = vmatprep.subr.bf16.mxu0 0
        %5558 = vmatpush2.bf16.xpose.msra.mxu0 0
        %5559 = vmatprep.subr.bf16.mxu0 0
        %5560 = vmatpush2.bf16.xpose.msra.mxu0 0
        %5561 = vmatprep.subr.bf16.mxu0 0
        %5562 = vmatpush2.bf16.xpose.msra.mxu0 0
        %5563 = vmatprep.subr.bf16.mxu0 0
        %5564 = vmatpush2.bf16.xpose.msra.mxu0 0
        %5565 = vmatprep.subr.bf16.mxu0 0
        %5566 = vmatpush2.bf16.xpose.msra.mxu0 0
        %5567 = vmatprep.subr.bf16.mxu0 0
        %5568 = vmatpush2.bf16.xpose.msra.mxu0 0
        %5569 = vmatprep.subr.bf16.mxu0 0
        %5570 = vmatpush2.bf16.xpose.msra.mxu0 0
        %5571 = vmatprep.mubr.bf16.mxu0 0
        %5572 = vmatmul.mubr.bf16.gmra.mxu0 %v5534
        %v5573 = vpop.f32.mrf.mxu0
        %v5574 = vadd.f32 0.0, %v5573
        %v5575 = vpop.f32.mrf.mxu0
        %v5576 = vpop.f32.mrf.mxu0
        %v5577 = vpop.f32.mrf.mxu0
        %5578 = vdwg.mxu0
        %v5581 = vunpack.c.l.s4 1966171168
        %v5582 = vunpack.c.0.s8 %v5581
        %v5583 = vlaneseq
        %v5584 = vshrl.u32 %v5583, 7
        %v5585 = vsub.s32 %v5582, %v5584
        %v5586 = vrot.slane %v5379, %v5585
        %v5588 = vunpack.c.l.s4 1966171168
        %v5589 = vunpack.c.0.s8 %v5588
        %v5590 = vlaneseq
        %v5591 = vshrl.u32 %v5590, 7
        %v5592 = vsub.s32 %v5589, %v5591
        %v5593 = vrot.slane %v5586, %v5592
        %5594 = vrot.lane.b32.xlu0 %v5593, 112
        %v5595 = vpop.permute.xlu0 %5594
        %5596 = vrot.lane.b32.xlu0 %v5593, 80
        %v5597 = vpop.permute.xlu0 %5596
        %v5599 = vsel %vm849, %v5595, 0
        %v5602 = vsel %vm849, %v5597, 0
        %5604 = vmatprep.subr.bf16.mxu0 0
        %5605 = vmatpush1.bf16.xpose.msra.mxu0 0
        %5606 = vmatprep.subr.bf16.mxu0 0
        %5607 = vmatpush1.bf16.xpose.msra.mxu0 0
        %5608 = vmatprep.subr.bf16.mxu0 0
        %5609 = vmatpush1.bf16.xpose.msra.mxu0 0
        %5610 = vmatprep.subr.bf16.mxu0 0
        %5611 = vmatpush1.bf16.xpose.msra.mxu0 0
        %5612 = vmatprep.subr.bf16.mxu0 0
        %5613 = vmatpush1.bf16.xpose.msra.mxu0 0
        %5614 = vmatprep.subr.bf16.mxu0 0
        %5615 = vmatpush1.bf16.xpose.msra.mxu0 0
        %5616 = vmatprep.subr.bf16.mxu0 0
        %5617 = vmatpush1.bf16.xpose.msra.mxu0 0
        %5618 = vmatprep.subr.bf16.mxu0 0
        %5619 = vmatpush1.bf16.xpose.msra.mxu0 %v5602
        %5620 = vmatprep.subr.bf16.mxu0 0
        %5621 = vmatpush2.bf16.xpose.msra.mxu0 0
        %5622 = vmatprep.subr.bf16.mxu0 0
        %5623 = vmatpush2.bf16.xpose.msra.mxu0 0
        %5624 = vmatprep.subr.bf16.mxu0 0
        %5625 = vmatpush2.bf16.xpose.msra.mxu0 0
        %5626 = vmatprep.subr.bf16.mxu0 0
        %5627 = vmatpush2.bf16.xpose.msra.mxu0 0
        %5628 = vmatprep.subr.bf16.mxu0 0
        %5629 = vmatpush2.bf16.xpose.msra.mxu0 0
        %5630 = vmatprep.subr.bf16.mxu0 0
        %5631 = vmatpush2.bf16.xpose.msra.mxu0 0
        %5632 = vmatprep.subr.bf16.mxu0 0
        %5633 = vmatpush2.bf16.xpose.msra.mxu0 0
        %5634 = vmatprep.subr.bf16.mxu0 0
        %5635 = vmatpush2.bf16.xpose.msra.mxu0 0
        %5636 = vmatprep.mubr.bf16.mxu0 0
        %5637 = vmatmul.mubr.bf16.gmra.mxu0 %v5599
        %v5638 = vpop.f32.mrf.mxu0
        %v5639 = vadd.f32 0.0, %v5638
        %v5640 = vpop.f32.mrf.mxu0
        %v5641 = vpop.f32.mrf.mxu0
        %v5642 = vpop.f32.mrf.mxu0
        %5643 = vdwg.mxu0
        %v5646 = vunpack.c.l.s4 1966171168
        %v5647 = vunpack.c.0.s8 %v5646
        %v5648 = vlaneseq
        %v5649 = vshrl.u32 %v5648, 7
        %v5650 = vsub.s32 %v5647, %v5649
        %v5651 = vrot.slane %v5380, %v5650
        %v5653 = vunpack.c.l.s4 1966171168
        %v5654 = vunpack.c.0.s8 %v5653
        %v5655 = vlaneseq
        %v5656 = vshrl.u32 %v5655, 7
        %v5657 = vsub.s32 %v5654, %v5656
        %v5658 = vrot.slane %v5651, %v5657
        %5659 = vrot.lane.b32.xlu0 %v5658, 112
        %v5660 = vpop.permute.xlu0 %5659
        %5661 = vrot.lane.b32.xlu0 %v5658, 80
        %v5662 = vpop.permute.xlu0 %5661
        %v5664 = vsel %vm849, %v5660, 0
        %v5667 = vsel %vm849, %v5662, 0
        %5669 = vmatprep.subr.bf16.mxu0 0
        %5670 = vmatpush1.bf16.xpose.msra.mxu0 0
        %5671 = vmatprep.subr.bf16.mxu0 0
        %5672 = vmatpush1.bf16.xpose.msra.mxu0 0
        %5673 = vmatprep.subr.bf16.mxu0 0
        %5674 = vmatpush1.bf16.xpose.msra.mxu0 0
        %5675 = vmatprep.subr.bf16.mxu0 0
        %5676 = vmatpush1.bf16.xpose.msra.mxu0 0
        %5677 = vmatprep.subr.bf16.mxu0 0
        %5678 = vmatpush1.bf16.xpose.msra.mxu0 0
        %5679 = vmatprep.subr.bf16.mxu0 0
        %5680 = vmatpush1.bf16.xpose.msra.mxu0 0
        %5681 = vmatprep.subr.bf16.mxu0 0
        %5682 = vmatpush1.bf16.xpose.msra.mxu0 0
        %5683 = vmatprep.subr.bf16.mxu0 0
        %5684 = vmatpush1.bf16.xpose.msra.mxu0 %v5667
        %5685 = vmatprep.subr.bf16.mxu0 0
        %5686 = vmatpush2.bf16.xpose.msra.mxu0 0
        %5687 = vmatprep.subr.bf16.mxu0 0
        %5688 = vmatpush2.bf16.xpose.msra.mxu0 0
        %5689 = vmatprep.subr.bf16.mxu0 0
        %5690 = vmatpush2.bf16.xpose.msra.mxu0 0
        %5691 = vmatprep.subr.bf16.mxu0 0
        %5692 = vmatpush2.bf16.xpose.msra.mxu0 0
        %5693 = vmatprep.subr.bf16.mxu0 0
        %5694 = vmatpush2.bf16.xpose.msra.mxu0 0
        %5695 = vmatprep.subr.bf16.mxu0 0
        %5696 = vmatpush2.bf16.xpose.msra.mxu0 0
        %5697 = vmatprep.subr.bf16.mxu0 0
        %5698 = vmatpush2.bf16.xpose.msra.mxu0 0
        %5699 = vmatprep.subr.bf16.mxu0 0
        %5700 = vmatpush2.bf16.xpose.msra.mxu0 0
        %5701 = vmatprep.mubr.bf16.mxu0 0
        %5702 = vmatmul.mubr.bf16.gmra.mxu0 %v5664
        %v5703 = vpop.f32.mrf.mxu0
        %v5704 = vadd.f32 0.0, %v5703
        %v5705 = vpop.f32.mrf.mxu0
        %v5706 = vpop.f32.mrf.mxu0
        %v5707 = vpop.f32.mrf.mxu0
        %5708 = vdwg.mxu0
        %v5711 = vunpack.c.l.s4 1966171168
        %v5712 = vunpack.c.0.s8 %v5711
        %v5713 = vlaneseq
        %v5714 = vshrl.u32 %v5713, 7
        %v5715 = vsub.s32 %v5712, %v5714
        %v5716 = vrot.slane %v5381, %v5715
        %v5718 = vunpack.c.l.s4 1966171168
        %v5719 = vunpack.c.0.s8 %v5718
        %v5720 = vlaneseq
        %v5721 = vshrl.u32 %v5720, 7
        %v5722 = vsub.s32 %v5719, %v5721
        %v5723 = vrot.slane %v5716, %v5722
        %5724 = vrot.lane.b32.xlu0 %v5723, 112
        %v5725 = vpop.permute.xlu0 %5724
        %5726 = vrot.lane.b32.xlu0 %v5723, 80
        %v5727 = vpop.permute.xlu0 %5726
        %v5729 = vsel %vm849, %v5725, 0
        %v5732 = vsel %vm849, %v5727, 0
        %5734 = vmatprep.subr.bf16.mxu0 0
        %5735 = vmatpush1.bf16.xpose.msra.mxu0 0
        %5736 = vmatprep.subr.bf16.mxu0 0
        %5737 = vmatpush1.bf16.xpose.msra.mxu0 0
        %5738 = vmatprep.subr.bf16.mxu0 0
        %5739 = vmatpush1.bf16.xpose.msra.mxu0 0
        %5740 = vmatprep.subr.bf16.mxu0 0
        %5741 = vmatpush1.bf16.xpose.msra.mxu0 0
        %5742 = vmatprep.subr.bf16.mxu0 0
        %5743 = vmatpush1.bf16.xpose.msra.mxu0 0
        %5744 = vmatprep.subr.bf16.mxu0 0
        %5745 = vmatpush1.bf16.xpose.msra.mxu0 0
        %5746 = vmatprep.subr.bf16.mxu0 0
        %5747 = vmatpush1.bf16.xpose.msra.mxu0 0
        %5748 = vmatprep.subr.bf16.mxu0 0
        %5749 = vmatpush1.bf16.xpose.msra.mxu0 %v5732
        %5750 = vmatprep.subr.bf16.mxu0 0
        %5751 = vmatpush2.bf16.xpose.msra.mxu0 0
        %5752 = vmatprep.subr.bf16.mxu0 0
        %5753 = vmatpush2.bf16.xpose.msra.mxu0 0
        %5754 = vmatprep.subr.bf16.mxu0 0
        %5755 = vmatpush2.bf16.xpose.msra.mxu0 0
        %5756 = vmatprep.subr.bf16.mxu0 0
        %5757 = vmatpush2.bf16.xpose.msra.mxu0 0
        %5758 = vmatprep.subr.bf16.mxu0 0
        %5759 = vmatpush2.bf16.xpose.msra.mxu0 0
        %5760 = vmatprep.subr.bf16.mxu0 0
        %5761 = vmatpush2.bf16.xpose.msra.mxu0 0
        %5762 = vmatprep.subr.bf16.mxu0 0
        %5763 = vmatpush2.bf16.xpose.msra.mxu0 0
        %5764 = vmatprep.subr.bf16.mxu0 0
        %5765 = vmatpush2.bf16.xpose.msra.mxu0 0
        %5766 = vmatprep.mubr.bf16.mxu0 0
        %5767 = vmatmul.mubr.bf16.gmra.mxu0 %v5729
        %v5768 = vpop.f32.mrf.mxu0
        %v5769 = vadd.f32 0.0, %v5768
        %v5770 = vpop.f32.mrf.mxu0
        %v5771 = vpop.f32.mrf.mxu0
        %v5772 = vpop.f32.mrf.mxu0
        %5773 = vdwg.mxu0
        %v5776 = vunpack.c.l.s4 1966171168
        %v5777 = vunpack.c.0.s8 %v5776
        %v5778 = vlaneseq
        %v5779 = vshrl.u32 %v5778, 7
        %v5780 = vsub.s32 %v5777, %v5779
        %v5781 = vrot.slane %v5382, %v5780
        %v5783 = vunpack.c.l.s4 1966171168
        %v5784 = vunpack.c.0.s8 %v5783
        %v5785 = vlaneseq
        %v5786 = vshrl.u32 %v5785, 7
        %v5787 = vsub.s32 %v5784, %v5786
        %v5788 = vrot.slane %v5781, %v5787
        %5789 = vrot.lane.b32.xlu0 %v5788, 112
        %v5790 = vpop.permute.xlu0 %5789
        %5791 = vrot.lane.b32.xlu0 %v5788, 80
        %v5792 = vpop.permute.xlu0 %5791
        %v5794 = vsel %vm849, %v5790, 0
        %v5797 = vsel %vm849, %v5792, 0
        %5799 = vmatprep.subr.bf16.mxu0 0
        %5800 = vmatpush1.bf16.xpose.msra.mxu0 0
        %5801 = vmatprep.subr.bf16.mxu0 0
        %5802 = vmatpush1.bf16.xpose.msra.mxu0 0
        %5803 = vmatprep.subr.bf16.mxu0 0
        %5804 = vmatpush1.bf16.xpose.msra.mxu0 0
        %5805 = vmatprep.subr.bf16.mxu0 0
        %5806 = vmatpush1.bf16.xpose.msra.mxu0 0
        %5807 = vmatprep.subr.bf16.mxu0 0
        %5808 = vmatpush1.bf16.xpose.msra.mxu0 0
        %5809 = vmatprep.subr.bf16.mxu0 0
        %5810 = vmatpush1.bf16.xpose.msra.mxu0 0
        %5811 = vmatprep.subr.bf16.mxu0 0
        %5812 = vmatpush1.bf16.xpose.msra.mxu0 0
        %5813 = vmatprep.subr.bf16.mxu0 0
        %5814 = vmatpush1.bf16.xpose.msra.mxu0 %v5797
        %5815 = vmatprep.subr.bf16.mxu0 0
        %5816 = vmatpush2.bf16.xpose.msra.mxu0 0
        %5817 = vmatprep.subr.bf16.mxu0 0
        %5818 = vmatpush2.bf16.xpose.msra.mxu0 0
        %5819 = vmatprep.subr.bf16.mxu0 0
        %5820 = vmatpush2.bf16.xpose.msra.mxu0 0
        %5821 = vmatprep.subr.bf16.mxu0 0
        %5822 = vmatpush2.bf16.xpose.msra.mxu0 0
        %5823 = vmatprep.subr.bf16.mxu0 0
        %5824 = vmatpush2.bf16.xpose.msra.mxu0 0
        %5825 = vmatprep.subr.bf16.mxu0 0
        %5826 = vmatpush2.bf16.xpose.msra.mxu0 0
        %5827 = vmatprep.subr.bf16.mxu0 0
        %5828 = vmatpush2.bf16.xpose.msra.mxu0 0
        %5829 = vmatprep.subr.bf16.mxu0 0
        %5830 = vmatpush2.bf16.xpose.msra.mxu0 0
        %5831 = vmatprep.mubr.bf16.mxu0 0
        %5832 = vmatmul.mubr.bf16.gmra.mxu0 %v5794
        %v5833 = vpop.f32.mrf.mxu0
        %v5834 = vadd.f32 0.0, %v5833
        %v5835 = vpop.f32.mrf.mxu0
        %v5836 = vpop.f32.mrf.mxu0
        %v5837 = vpop.f32.mrf.mxu0
        %5838 = vdwg.mxu0
        %v5841 = vunpack.c.l.s4 1966171168
        %v5842 = vunpack.c.0.s8 %v5841
        %v5843 = vlaneseq
        %v5844 = vshrl.u32 %v5843, 7
        %v5845 = vsub.s32 %v5842, %v5844
        %v5846 = vrot.slane %v5383, %v5845
        %v5848 = vunpack.c.l.s4 1966171168
        %v5849 = vunpack.c.0.s8 %v5848
        %v5850 = vlaneseq
        %v5851 = vshrl.u32 %v5850, 7
        %v5852 = vsub.s32 %v5849, %v5851
        %v5853 = vrot.slane %v5846, %v5852
        %5854 = vrot.lane.b32.xlu0 %v5853, 112
        %v5855 = vpop.permute.xlu0 %5854
        %5856 = vrot.lane.b32.xlu0 %v5853, 80
        %v5857 = vpop.permute.xlu0 %5856
        %v5859 = vsel %vm849, %v5855, 0
        %v5862 = vsel %vm849, %v5857, 0
        %5864 = vmatprep.subr.bf16.mxu0 0
        %5865 = vmatpush1.bf16.xpose.msra.mxu0 0
        %5866 = vmatprep.subr.bf16.mxu0 0
        %5867 = vmatpush1.bf16.xpose.msra.mxu0 0
        %5868 = vmatprep.subr.bf16.mxu0 0
        %5869 = vmatpush1.bf16.xpose.msra.mxu0 0
        %5870 = vmatprep.subr.bf16.mxu0 0
        %5871 = vmatpush1.bf16.xpose.msra.mxu0 0
        %5872 = vmatprep.subr.bf16.mxu0 0
        %5873 = vmatpush1.bf16.xpose.msra.mxu0 0
        %5874 = vmatprep.subr.bf16.mxu0 0
        %5875 = vmatpush1.bf16.xpose.msra.mxu0 0
        %5876 = vmatprep.subr.bf16.mxu0 0
        %5877 = vmatpush1.bf16.xpose.msra.mxu0 0
        %5878 = vmatprep.subr.bf16.mxu0 0
        %5879 = vmatpush1.bf16.xpose.msra.mxu0 %v5862
        %5880 = vmatprep.subr.bf16.mxu0 0
        %5881 = vmatpush2.bf16.xpose.msra.mxu0 0
        %5882 = vmatprep.subr.bf16.mxu0 0
        %5883 = vmatpush2.bf16.xpose.msra.mxu0 0
        %5884 = vmatprep.subr.bf16.mxu0 0
        %5885 = vmatpush2.bf16.xpose.msra.mxu0 0
        %5886 = vmatprep.subr.bf16.mxu0 0
        %5887 = vmatpush2.bf16.xpose.msra.mxu0 0
        %5888 = vmatprep.subr.bf16.mxu0 0
        %5889 = vmatpush2.bf16.xpose.msra.mxu0 0
        %5890 = vmatprep.subr.bf16.mxu0 0
        %5891 = vmatpush2.bf16.xpose.msra.mxu0 0
        %5892 = vmatprep.subr.bf16.mxu0 0
        %5893 = vmatpush2.bf16.xpose.msra.mxu0 0
        %5894 = vmatprep.subr.bf16.mxu0 0
        %5895 = vmatpush2.bf16.xpose.msra.mxu0 0
        %5896 = vmatprep.mubr.bf16.mxu0 0
        %5897 = vmatmul.mubr.bf16.gmra.mxu0 %v5859
        %v5898 = vpop.f32.mrf.mxu0
        %v5899 = vadd.f32 0.0, %v5898
        %v5900 = vpop.f32.mrf.mxu0
        %v5901 = vpop.f32.mrf.mxu0
        %v5902 = vpop.f32.mrf.mxu0
        %5903 = vdwg.mxu0
        %v5904 = vmul.f32 %v5444, 0.5
        %v5905 = vmul.f32 %v5509, 0.5
        %v5906 = vmul.f32 %v5574, 0.5
        %v5907 = vmul.f32 %v5639, 0.5
        %v5908 = vmul.f32 %v5704, 0.5
        %v5909 = vmul.f32 %v5769, 0.5
        %v5910 = vmul.f32 %v5834, 0.5
        %v5911 = vmul.f32 %v5899, 0.5
        %v5912 = vsel %vm1345, %v5904, -inf
        %5913 = vmax.xlane.f32.xlu0 %v5912
        %v5914 = vpop.xlane.xlu0 %5913
        %v5915 = vsel %vm1345, %v5905, -inf
        %5916 = vmax.xlane.f32.xlu0 %v5915
        %v5917 = vpop.xlane.xlu0 %5916
        %v5918 = vsel %vm1345, %v5906, -inf
        %5919 = vmax.xlane.f32.xlu0 %v5918
        %v5920 = vpop.xlane.xlu0 %5919
        %v5921 = vsel %vm1345, %v5907, -inf
        %5922 = vmax.xlane.f32.xlu0 %v5921
        %v5923 = vpop.xlane.xlu0 %5922
        %v5924 = vsel %vm1345, %v5908, -inf
        %5925 = vmax.xlane.f32.xlu0 %v5924
        %v5926 = vpop.xlane.xlu0 %5925
        %v5927 = vsel %vm1345, %v5909, -inf
        %5928 = vmax.xlane.f32.xlu0 %v5927
        %v5929 = vpop.xlane.xlu0 %5928
        %v5930 = vsel %vm1345, %v5910, -inf
        %5931 = vmax.xlane.f32.xlu0 %v5930
        %v5932 = vpop.xlane.xlu0 %5931
        %v5933 = vsel %vm1345, %v5911, -inf
        %5934 = vmax.xlane.f32.xlu0 %v5933
        %v5935 = vpop.xlane.xlu0 %5934
        %v5936 = vsub.f32 %v5904, %v5914
        %v5937 = vsub.f32 %v5905, %v5917
        %v5938 = vsub.f32 %v5906, %v5920
        %v5939 = vsub.f32 %v5907, %v5923
        %v5940 = vsub.f32 %v5908, %v5926
        %v5941 = vsub.f32 %v5909, %v5929
        %v5942 = vsub.f32 %v5910, %v5932
        %v5943 = vsub.f32 %v5911, %v5935
        %v5944 = vmul.f32 %v5936, 1.442695
        %v5945 = vpow.pop %v5944
        %v5946 = vmul.f32 %v5937, 1.442695
        %v5947 = vpow.pop %v5946
        %v5948 = vmul.f32 %v5938, 1.442695
        %v5949 = vpow.pop %v5948
        %v5950 = vmul.f32 %v5939, 1.442695
        %v5951 = vpow.pop %v5950
        %v5952 = vmul.f32 %v5940, 1.442695
        %v5953 = vpow.pop %v5952
        %v5954 = vmul.f32 %v5941, 1.442695
        %v5955 = vpow.pop %v5954
        %v5956 = vmul.f32 %v5942, 1.442695
        %v5957 = vpow.pop %v5956
        %v5958 = vmul.f32 %v5943, 1.442695
        %v5959 = vpow.pop %v5958
        %v5960 = vsel %vm1345, %v5945, 0.0
        %5961 = vadd.xlane.f32.xlu0 %v5960
        %v5962 = vpop.xlane.xlu0 %5961
        %v5963 = vsel %vm1345, %v5947, 0.0
        %5964 = vadd.xlane.f32.xlu0 %v5963
        %v5965 = vpop.xlane.xlu0 %5964
        %v5966 = vsel %vm1345, %v5949, 0.0
        %5967 = vadd.xlane.f32.xlu0 %v5966
        %v5968 = vpop.xlane.xlu0 %5967
        %v5969 = vsel %vm1345, %v5951, 0.0
        %5970 = vadd.xlane.f32.xlu0 %v5969
        %v5971 = vpop.xlane.xlu0 %5970
        %v5972 = vsel %vm1345, %v5953, 0.0
        %5973 = vadd.xlane.f32.xlu0 %v5972
        %v5974 = vpop.xlane.xlu0 %5973
        %v5975 = vsel %vm1345, %v5955, 0.0
        %5976 = vadd.xlane.f32.xlu0 %v5975
        %v5977 = vpop.xlane.xlu0 %5976
        %v5978 = vsel %vm1345, %v5957, 0.0
        %5979 = vadd.xlane.f32.xlu0 %v5978
        %v5980 = vpop.xlane.xlu0 %5979
        %v5981 = vsel %vm1345, %v5959, 0.0
        %5982 = vadd.xlane.f32.xlu0 %v5981
        %v5983 = vpop.xlane.xlu0 %5982
        %v5984 = vrcp.pop %v5962
        %v5985 = vrcp.pop %v5965
        %v5986 = vrcp.pop %v5968
        %v5987 = vrcp.pop %v5971
        %v5988 = vrcp.pop %v5974
        %v5989 = vrcp.pop %v5977
        %v5990 = vrcp.pop %v5980
        %v5991 = vrcp.pop %v5983
        %v5992 = vmul.f32 %v5945, %v5984
        %v5993 = vmul.f32 %v5947, %v5985
        %v5994 = vmul.f32 %v5949, %v5986
        %v5995 = vmul.f32 %v5951, %v5987
        %v5996 = vmul.f32 %v5953, %v5988
        %v5997 = vmul.f32 %v5955, %v5989
        %v5998 = vmul.f32 %v5957, %v5990
        %v5999 = vmul.f32 %v5959, %v5991
        %v6000 = vpack.c.bf16 %v5992, %v5992
        %v6001 = vpack.c.bf16 %v5993, %v5993
        %v6002 = vpack.c.bf16 %v5994, %v5994
        %v6003 = vpack.c.bf16 %v5995, %v5995
        %v6004 = vpack.c.bf16 %v5996, %v5996
        %v6005 = vpack.c.bf16 %v5997, %v5997
        %v6006 = vpack.c.bf16 %v5998, %v5998
        %v6007 = vpack.c.bf16 %v5999, %v5999
        %6008 = vrot.lane.b32.xlu0 %v5398, 48
        %v6009 = vpop.permute.xlu0 %6008
        %v6011 = vsel %vm1444, %v6000, 0
        %v6014 = vsel %vm1448, %v6009, 0
        %6016 = vmatprep.subr.bf16.mxu0 0
        %6017 = vmatpush1.bf16.msra.mxu0 0
        %6018 = vmatprep.subr.bf16.mxu0 0
        %6019 = vmatpush1.bf16.msra.mxu0 0
        %6020 = vmatprep.subr.bf16.mxu0 0
        %6021 = vmatpush1.bf16.msra.mxu0 0
        %6022 = vmatprep.subr.bf16.mxu0 0
        %6023 = vmatpush1.bf16.msra.mxu0 0
        %6024 = vmatprep.subr.bf16.mxu0 0
        %6025 = vmatpush1.bf16.msra.mxu0 0
        %6026 = vmatprep.subr.bf16.mxu0 0
        %6027 = vmatpush1.bf16.msra.mxu0 0
        %6028 = vmatprep.subr.bf16.mxu0 0
        %6029 = vmatpush1.bf16.msra.mxu0 0
        %6030 = vmatprep.subr.bf16.mxu0 0
        %6031 = vmatpush1.bf16.msra.mxu0 %v6014
        %6032 = vmatprep.subr.bf16.mxu0 0
        %6033 = vmatpush2.bf16.msra.mxu0 0
        %6034 = vmatprep.subr.bf16.mxu0 0
        %6035 = vmatpush2.bf16.msra.mxu0 0
        %6036 = vmatprep.subr.bf16.mxu0 0
        %6037 = vmatpush2.bf16.msra.mxu0 0
        %6038 = vmatprep.subr.bf16.mxu0 0
        %6039 = vmatpush2.bf16.msra.mxu0 0
        %6040 = vmatprep.subr.bf16.mxu0 0
        %6041 = vmatpush2.bf16.msra.mxu0 0
        %6042 = vmatprep.subr.bf16.mxu0 0
        %6043 = vmatpush2.bf16.msra.mxu0 0
        %6044 = vmatprep.subr.bf16.mxu0 0
        %6045 = vmatpush2.bf16.msra.mxu0 0
        %6046 = vmatprep.subr.bf16.mxu0 0
        %6047 = vmatpush2.bf16.msra.mxu0 0
        %6048 = vmatprep.mubr.bf16.mxu0 0
        %6049 = vmatmul.mubr.bf16.gmra.mxu0 %v6011
        %v6050 = vpop.f32.mrf.mxu0
        %v6051 = vadd.f32 0.0, %v6050
        %v6052 = vpop.f32.mrf.mxu0
        %v6053 = vpop.f32.mrf.mxu0
        %v6054 = vpop.f32.mrf.mxu0
        %6055 = vdwg.mxu0
        %6056 = vrot.lane.b32.xlu0 %v5463, 48
        %v6057 = vpop.permute.xlu0 %6056
        %v6059 = vsel %vm1444, %v6001, 0
        %v6062 = vsel %vm1448, %v6057, 0
        %6064 = vmatprep.subr.bf16.mxu0 0
        %6065 = vmatpush1.bf16.msra.mxu0 0
        %6066 = vmatprep.subr.bf16.mxu0 0
        %6067 = vmatpush1.bf16.msra.mxu0 0
        %6068 = vmatprep.subr.bf16.mxu0 0
        %6069 = vmatpush1.bf16.msra.mxu0 0
        %6070 = vmatprep.subr.bf16.mxu0 0
        %6071 = vmatpush1.bf16.msra.mxu0 0
        %6072 = vmatprep.subr.bf16.mxu0 0
        %6073 = vmatpush1.bf16.msra.mxu0 0
        %6074 = vmatprep.subr.bf16.mxu0 0
        %6075 = vmatpush1.bf16.msra.mxu0 0
        %6076 = vmatprep.subr.bf16.mxu0 0
        %6077 = vmatpush1.bf16.msra.mxu0 0
        %6078 = vmatprep.subr.bf16.mxu0 0
        %6079 = vmatpush1.bf16.msra.mxu0 %v6062
        %6080 = vmatprep.subr.bf16.mxu0 0
        %6081 = vmatpush2.bf16.msra.mxu0 0
        %6082 = vmatprep.subr.bf16.mxu0 0
        %6083 = vmatpush2.bf16.msra.mxu0 0
        %6084 = vmatprep.subr.bf16.mxu0 0
        %6085 = vmatpush2.bf16.msra.mxu0 0
        %6086 = vmatprep.subr.bf16.mxu0 0
        %6087 = vmatpush2.bf16.msra.mxu0 0
        %6088 = vmatprep.subr.bf16.mxu0 0
        %6089 = vmatpush2.bf16.msra.mxu0 0
        %6090 = vmatprep.subr.bf16.mxu0 0
        %6091 = vmatpush2.bf16.msra.mxu0 0
        %6092 = vmatprep.subr.bf16.mxu0 0
        %6093 = vmatpush2.bf16.msra.mxu0 0
        %6094 = vmatprep.subr.bf16.mxu0 0
        %6095 = vmatpush2.bf16.msra.mxu0 0
        %6096 = vmatprep.mubr.bf16.mxu0 0
        %6097 = vmatmul.mubr.bf16.gmra.mxu0 %v6059
        %v6098 = vpop.f32.mrf.mxu0
        %v6099 = vadd.f32 0.0, %v6098
        %v6100 = vpop.f32.mrf.mxu0
        %v6101 = vpop.f32.mrf.mxu0
        %v6102 = vpop.f32.mrf.mxu0
        %6103 = vdwg.mxu0
        %6104 = vrot.lane.b32.xlu0 %v5528, 48
        %v6105 = vpop.permute.xlu0 %6104
        %v6107 = vsel %vm1444, %v6002, 0
        %v6110 = vsel %vm1448, %v6105, 0
        %6112 = vmatprep.subr.bf16.mxu0 0
        %6113 = vmatpush1.bf16.msra.mxu0 0
        %6114 = vmatprep.subr.bf16.mxu0 0
        %6115 = vmatpush1.bf16.msra.mxu0 0
        %6116 = vmatprep.subr.bf16.mxu0 0
        %6117 = vmatpush1.bf16.msra.mxu0 0
        %6118 = vmatprep.subr.bf16.mxu0 0
        %6119 = vmatpush1.bf16.msra.mxu0 0
        %6120 = vmatprep.subr.bf16.mxu0 0
        %6121 = vmatpush1.bf16.msra.mxu0 0
        %6122 = vmatprep.subr.bf16.mxu0 0
        %6123 = vmatpush1.bf16.msra.mxu0 0
        %6124 = vmatprep.subr.bf16.mxu0 0
        %6125 = vmatpush1.bf16.msra.mxu0 0
        %6126 = vmatprep.subr.bf16.mxu0 0
        %6127 = vmatpush1.bf16.msra.mxu0 %v6110
        %6128 = vmatprep.subr.bf16.mxu0 0
        %6129 = vmatpush2.bf16.msra.mxu0 0
        %6130 = vmatprep.subr.bf16.mxu0 0
        %6131 = vmatpush2.bf16.msra.mxu0 0
        %6132 = vmatprep.subr.bf16.mxu0 0
        %6133 = vmatpush2.bf16.msra.mxu0 0
        %6134 = vmatprep.subr.bf16.mxu0 0
        %6135 = vmatpush2.bf16.msra.mxu0 0
        %6136 = vmatprep.subr.bf16.mxu0 0
        %6137 = vmatpush2.bf16.msra.mxu0 0
        %6138 = vmatprep.subr.bf16.mxu0 0
        %6139 = vmatpush2.bf16.msra.mxu0 0
        %6140 = vmatprep.subr.bf16.mxu0 0
        %6141 = vmatpush2.bf16.msra.mxu0 0
        %6142 = vmatprep.subr.bf16.mxu0 0
        %6143 = vmatpush2.bf16.msra.mxu0 0
        %6144 = vmatprep.mubr.bf16.mxu0 0
        %6145 = vmatmul.mubr.bf16.gmra.mxu0 %v6107
        %v6146 = vpop.f32.mrf.mxu0
        %v6147 = vadd.f32 0.0, %v6146
        %v6148 = vpop.f32.mrf.mxu0
        %v6149 = vpop.f32.mrf.mxu0
        %v6150 = vpop.f32.mrf.mxu0
        %6151 = vdwg.mxu0
        %6152 = vrot.lane.b32.xlu0 %v5593, 48
        %v6153 = vpop.permute.xlu0 %6152
        %v6155 = vsel %vm1444, %v6003, 0
        %v6158 = vsel %vm1448, %v6153, 0
        %6160 = vmatprep.subr.bf16.mxu0 0
        %6161 = vmatpush1.bf16.msra.mxu0 0
        %6162 = vmatprep.subr.bf16.mxu0 0
        %6163 = vmatpush1.bf16.msra.mxu0 0
        %6164 = vmatprep.subr.bf16.mxu0 0
        %6165 = vmatpush1.bf16.msra.mxu0 0
        %6166 = vmatprep.subr.bf16.mxu0 0
        %6167 = vmatpush1.bf16.msra.mxu0 0
        %6168 = vmatprep.subr.bf16.mxu0 0
        %6169 = vmatpush1.bf16.msra.mxu0 0
        %6170 = vmatprep.subr.bf16.mxu0 0
        %6171 = vmatpush1.bf16.msra.mxu0 0
        %6172 = vmatprep.subr.bf16.mxu0 0
        %6173 = vmatpush1.bf16.msra.mxu0 0
        %6174 = vmatprep.subr.bf16.mxu0 0
        %6175 = vmatpush1.bf16.msra.mxu0 %v6158
        %6176 = vmatprep.subr.bf16.mxu0 0
        %6177 = vmatpush2.bf16.msra.mxu0 0
        %6178 = vmatprep.subr.bf16.mxu0 0
        %6179 = vmatpush2.bf16.msra.mxu0 0
        %6180 = vmatprep.subr.bf16.mxu0 0
        %6181 = vmatpush2.bf16.msra.mxu0 0
        %6182 = vmatprep.subr.bf16.mxu0 0
        %6183 = vmatpush2.bf16.msra.mxu0 0
        %6184 = vmatprep.subr.bf16.mxu0 0
        %6185 = vmatpush2.bf16.msra.mxu0 0
        %6186 = vmatprep.subr.bf16.mxu0 0
        %6187 = vmatpush2.bf16.msra.mxu0 0
        %6188 = vmatprep.subr.bf16.mxu0 0
        %6189 = vmatpush2.bf16.msra.mxu0 0
        %6190 = vmatprep.subr.bf16.mxu0 0
        %6191 = vmatpush2.bf16.msra.mxu0 0
        %6192 = vmatprep.mubr.bf16.mxu0 0
        %6193 = vmatmul.mubr.bf16.gmra.mxu0 %v6155
        %v6194 = vpop.f32.mrf.mxu0
        %v6195 = vadd.f32 0.0, %v6194
        %v6196 = vpop.f32.mrf.mxu0
        %v6197 = vpop.f32.mrf.mxu0
        %v6198 = vpop.f32.mrf.mxu0
        %6199 = vdwg.mxu0
        %6200 = vrot.lane.b32.xlu0 %v5658, 48
        %v6201 = vpop.permute.xlu0 %6200
        %v6203 = vsel %vm1444, %v6004, 0
        %v6206 = vsel %vm1448, %v6201, 0
        %6208 = vmatprep.subr.bf16.mxu0 0
        %6209 = vmatpush1.bf16.msra.mxu0 0
        %6210 = vmatprep.subr.bf16.mxu0 0
        %6211 = vmatpush1.bf16.msra.mxu0 0
        %6212 = vmatprep.subr.bf16.mxu0 0
        %6213 = vmatpush1.bf16.msra.mxu0 0
        %6214 = vmatprep.subr.bf16.mxu0 0
        %6215 = vmatpush1.bf16.msra.mxu0 0
        %6216 = vmatprep.subr.bf16.mxu0 0
        %6217 = vmatpush1.bf16.msra.mxu0 0
        %6218 = vmatprep.subr.bf16.mxu0 0
        %6219 = vmatpush1.bf16.msra.mxu0 0
        %6220 = vmatprep.subr.bf16.mxu0 0
        %6221 = vmatpush1.bf16.msra.mxu0 0
        %6222 = vmatprep.subr.bf16.mxu0 0
        %6223 = vmatpush1.bf16.msra.mxu0 %v6206
        %6224 = vmatprep.subr.bf16.mxu0 0
        %6225 = vmatpush2.bf16.msra.mxu0 0
        %6226 = vmatprep.subr.bf16.mxu0 0
        %6227 = vmatpush2.bf16.msra.mxu0 0
        %6228 = vmatprep.subr.bf16.mxu0 0
        %6229 = vmatpush2.bf16.msra.mxu0 0
        %6230 = vmatprep.subr.bf16.mxu0 0
        %6231 = vmatpush2.bf16.msra.mxu0 0
        %6232 = vmatprep.subr.bf16.mxu0 0
        %6233 = vmatpush2.bf16.msra.mxu0 0
        %6234 = vmatprep.subr.bf16.mxu0 0
        %6235 = vmatpush2.bf16.msra.mxu0 0
        %6236 = vmatprep.subr.bf16.mxu0 0
        %6237 = vmatpush2.bf16.msra.mxu0 0
        %6238 = vmatprep.subr.bf16.mxu0 0
        %6239 = vmatpush2.bf16.msra.mxu0 0
        %6240 = vmatprep.mubr.bf16.mxu0 0
        %6241 = vmatmul.mubr.bf16.gmra.mxu0 %v6203
        %v6242 = vpop.f32.mrf.mxu0
        %v6243 = vadd.f32 0.0, %v6242
        %v6244 = vpop.f32.mrf.mxu0
        %v6245 = vpop.f32.mrf.mxu0
        %v6246 = vpop.f32.mrf.mxu0
        %6247 = vdwg.mxu0
        %6248 = vrot.lane.b32.xlu0 %v5723, 48
        %v6249 = vpop.permute.xlu0 %6248
        %v6251 = vsel %vm1444, %v6005, 0
        %v6254 = vsel %vm1448, %v6249, 0
        %6256 = vmatprep.subr.bf16.mxu0 0
        %6257 = vmatpush1.bf16.msra.mxu0 0
        %6258 = vmatprep.subr.bf16.mxu0 0
        %6259 = vmatpush1.bf16.msra.mxu0 0
        %6260 = vmatprep.subr.bf16.mxu0 0
        %6261 = vmatpush1.bf16.msra.mxu0 0
        %6262 = vmatprep.subr.bf16.mxu0 0
        %6263 = vmatpush1.bf16.msra.mxu0 0
        %6264 = vmatprep.subr.bf16.mxu0 0
        %6265 = vmatpush1.bf16.msra.mxu0 0
        %6266 = vmatprep.subr.bf16.mxu0 0
        %6267 = vmatpush1.bf16.msra.mxu0 0
        %6268 = vmatprep.subr.bf16.mxu0 0
        %6269 = vmatpush1.bf16.msra.mxu0 0
        %6270 = vmatprep.subr.bf16.mxu0 0
        %6271 = vmatpush1.bf16.msra.mxu0 %v6254
        %6272 = vmatprep.subr.bf16.mxu0 0
        %6273 = vmatpush2.bf16.msra.mxu0 0
        %6274 = vmatprep.subr.bf16.mxu0 0
        %6275 = vmatpush2.bf16.msra.mxu0 0
        %6276 = vmatprep.subr.bf16.mxu0 0
        %6277 = vmatpush2.bf16.msra.mxu0 0
        %6278 = vmatprep.subr.bf16.mxu0 0
        %6279 = vmatpush2.bf16.msra.mxu0 0
        %6280 = vmatprep.subr.bf16.mxu0 0
        %6281 = vmatpush2.bf16.msra.mxu0 0
        %6282 = vmatprep.subr.bf16.mxu0 0
        %6283 = vmatpush2.bf16.msra.mxu0 0
        %6284 = vmatprep.subr.bf16.mxu0 0
        %6285 = vmatpush2.bf16.msra.mxu0 0
        %6286 = vmatprep.subr.bf16.mxu0 0
        %6287 = vmatpush2.bf16.msra.mxu0 0
        %6288 = vmatprep.mubr.bf16.mxu0 0
        %6289 = vmatmul.mubr.bf16.gmra.mxu0 %v6251
        %v6290 = vpop.f32.mrf.mxu0
        %v6291 = vadd.f32 0.0, %v6290
        %v6292 = vpop.f32.mrf.mxu0
        %v6293 = vpop.f32.mrf.mxu0
        %v6294 = vpop.f32.mrf.mxu0
        %6295 = vdwg.mxu0
        %6296 = vrot.lane.b32.xlu0 %v5788, 48
        %v6297 = vpop.permute.xlu0 %6296
        %v6299 = vsel %vm1444, %v6006, 0
        %v6302 = vsel %vm1448, %v6297, 0
        %6304 = vmatprep.subr.bf16.mxu0 0
        %6305 = vmatpush1.bf16.msra.mxu0 0
        %6306 = vmatprep.subr.bf16.mxu0 0
        %6307 = vmatpush1.bf16.msra.mxu0 0
        %6308 = vmatprep.subr.bf16.mxu0 0
        %6309 = vmatpush1.bf16.msra.mxu0 0
        %6310 = vmatprep.subr.bf16.mxu0 0
        %6311 = vmatpush1.bf16.msra.mxu0 0
        %6312 = vmatprep.subr.bf16.mxu0 0
        %6313 = vmatpush1.bf16.msra.mxu0 0
        %6314 = vmatprep.subr.bf16.mxu0 0
        %6315 = vmatpush1.bf16.msra.mxu0 0
        %6316 = vmatprep.subr.bf16.mxu0 0
        %6317 = vmatpush1.bf16.msra.mxu0 0
        %6318 = vmatprep.subr.bf16.mxu0 0
        %6319 = vmatpush1.bf16.msra.mxu0 %v6302
        %6320 = vmatprep.subr.bf16.mxu0 0
        %6321 = vmatpush2.bf16.msra.mxu0 0
        %6322 = vmatprep.subr.bf16.mxu0 0
        %6323 = vmatpush2.bf16.msra.mxu0 0
        %6324 = vmatprep.subr.bf16.mxu0 0
        %6325 = vmatpush2.bf16.msra.mxu0 0
        %6326 = vmatprep.subr.bf16.mxu0 0
        %6327 = vmatpush2.bf16.msra.mxu0 0
        %6328 = vmatprep.subr.bf16.mxu0 0
        %6329 = vmatpush2.bf16.msra.mxu0 0
        %6330 = vmatprep.subr.bf16.mxu0 0
        %6331 = vmatpush2.bf16.msra.mxu0 0
        %6332 = vmatprep.subr.bf16.mxu0 0
        %6333 = vmatpush2.bf16.msra.mxu0 0
        %6334 = vmatprep.subr.bf16.mxu0 0
        %6335 = vmatpush2.bf16.msra.mxu0 0
        %6336 = vmatprep.mubr.bf16.mxu0 0
        %6337 = vmatmul.mubr.bf16.gmra.mxu0 %v6299
        %v6338 = vpop.f32.mrf.mxu0
        %v6339 = vadd.f32 0.0, %v6338
        %v6340 = vpop.f32.mrf.mxu0
        %v6341 = vpop.f32.mrf.mxu0
        %v6342 = vpop.f32.mrf.mxu0
        %6343 = vdwg.mxu0
        %6344 = vrot.lane.b32.xlu0 %v5853, 48
        %v6345 = vpop.permute.xlu0 %6344
        %v6347 = vsel %vm1444, %v6007, 0
        %v6350 = vsel %vm1448, %v6345, 0
        %6352 = vmatprep.subr.bf16.mxu0 0
        %6353 = vmatpush1.bf16.msra.mxu0 0
        %6354 = vmatprep.subr.bf16.mxu0 0
        %6355 = vmatpush1.bf16.msra.mxu0 0
        %6356 = vmatprep.subr.bf16.mxu0 0
        %6357 = vmatpush1.bf16.msra.mxu0 0
        %6358 = vmatprep.subr.bf16.mxu0 0
        %6359 = vmatpush1.bf16.msra.mxu0 0
        %6360 = vmatprep.subr.bf16.mxu0 0
        %6361 = vmatpush1.bf16.msra.mxu0 0
        %6362 = vmatprep.subr.bf16.mxu0 0
        %6363 = vmatpush1.bf16.msra.mxu0 0
        %6364 = vmatprep.subr.bf16.mxu0 0
        %6365 = vmatpush1.bf16.msra.mxu0 0
        %6366 = vmatprep.subr.bf16.mxu0 0
        %6367 = vmatpush1.bf16.msra.mxu0 %v6350
        %6368 = vmatprep.subr.bf16.mxu0 0
        %6369 = vmatpush2.bf16.msra.mxu0 0
        %6370 = vmatprep.subr.bf16.mxu0 0
        %6371 = vmatpush2.bf16.msra.mxu0 0
        %6372 = vmatprep.subr.bf16.mxu0 0
        %6373 = vmatpush2.bf16.msra.mxu0 0
        %6374 = vmatprep.subr.bf16.mxu0 0
        %6375 = vmatpush2.bf16.msra.mxu0 0
        %6376 = vmatprep.subr.bf16.mxu0 0
        %6377 = vmatpush2.bf16.msra.mxu0 0
        %6378 = vmatprep.subr.bf16.mxu0 0
        %6379 = vmatpush2.bf16.msra.mxu0 0
        %6380 = vmatprep.subr.bf16.mxu0 0
        %6381 = vmatpush2.bf16.msra.mxu0 0
        %6382 = vmatprep.subr.bf16.mxu0 0
        %6383 = vmatpush2.bf16.msra.mxu0 0
        %6384 = vmatprep.mubr.bf16.mxu0 0
        %6385 = vmatmul.mubr.bf16.gmra.mxu0 %v6347
        %v6386 = vpop.f32.mrf.mxu0
        %v6387 = vadd.f32 0.0, %v6386
        %v6388 = vpop.f32.mrf.mxu0
        %v6389 = vpop.f32.mrf.mxu0
        %v6390 = vpop.f32.mrf.mxu0
        %6391 = vdwg.mxu0
        %v6392 = vpack.c.bf16 %v6051, %v6051
        %v6393 = vpack.c.bf16 %v6099, %v6099
        %v6394 = vpack.c.bf16 %v6147, %v6147
        %v6395 = vpack.c.bf16 %v6195, %v6195
        %v6396 = vpack.c.bf16 %v6243, %v6243
        %v6397 = vpack.c.bf16 %v6291, %v6291
        %v6398 = vpack.c.bf16 %v6339, %v6339
        %v6399 = vpack.c.bf16 %v6387, %v6387
        %v6409 = vunpack.c.l.s4 1966171168
        %v6410 = vunpack.c.0.s8 %v6409
        %v6411 = vlaneseq
        %v6412 = vshrl.u32 %v6411, 7
        %v6413 = vsub.s32 %v6410, %v6412
        %v6414 = vrot.slane %v6392, %v6413
        %v6416 = vunpack.c.l.s4 1966171168
        %v6417 = vunpack.c.0.s8 %v6416
        %v6418 = vlaneseq
        %v6419 = vshrl.u32 %v6418, 7
        %v6420 = vsub.s32 %v6417, %v6419
        %v6421 = vrot.slane %v6414, %v6420
        %v6423 = vunpack.c.l.s4 1966171168
        %v6424 = vunpack.c.0.s8 %v6423
        %v6425 = vlaneseq
        %v6426 = vshrl.u32 %v6425, 7
        %v6427 = vsub.s32 %v6424, %v6426
        %v6428 = vrot.slane %v6393, %v6427
        %v6430 = vunpack.c.l.s4 1966171168
        %v6431 = vunpack.c.0.s8 %v6430
        %v6432 = vlaneseq
        %v6433 = vshrl.u32 %v6432, 7
        %v6434 = vsub.s32 %v6431, %v6433
        %v6435 = vrot.slane %v6428, %v6434
        %v6437 = vunpack.c.l.s4 1966171168
        %v6438 = vunpack.c.0.s8 %v6437
        %v6439 = vlaneseq
        %v6440 = vshrl.u32 %v6439, 7
        %v6441 = vsub.s32 %v6438, %v6440
        %v6442 = vrot.slane %v6394, %v6441
        %v6444 = vunpack.c.l.s4 1966171168
        %v6445 = vunpack.c.0.s8 %v6444
        %v6446 = vlaneseq
        %v6447 = vshrl.u32 %v6446, 7
        %v6448 = vsub.s32 %v6445, %v6447
        %v6449 = vrot.slane %v6442, %v6448
        %v6451 = vunpack.c.l.s4 1966171168
        %v6452 = vunpack.c.0.s8 %v6451
        %v6453 = vlaneseq
        %v6454 = vshrl.u32 %v6453, 7
        %v6455 = vsub.s32 %v6452, %v6454
        %v6456 = vrot.slane %v6395, %v6455
        %v6458 = vunpack.c.l.s4 1966171168
        %v6459 = vunpack.c.0.s8 %v6458
        %v6460 = vlaneseq
        %v6461 = vshrl.u32 %v6460, 7
        %v6462 = vsub.s32 %v6459, %v6461
        %v6463 = vrot.slane %v6456, %v6462
        %v6465 = vunpack.c.l.s4 1966171168
        %v6466 = vunpack.c.0.s8 %v6465
        %v6467 = vlaneseq
        %v6468 = vshrl.u32 %v6467, 7
        %v6469 = vsub.s32 %v6466, %v6468
        %v6470 = vrot.slane %v6396, %v6469
        %v6472 = vunpack.c.l.s4 1966171168
        %v6473 = vunpack.c.0.s8 %v6472
        %v6474 = vlaneseq
        %v6475 = vshrl.u32 %v6474, 7
        %v6476 = vsub.s32 %v6473, %v6475
        %v6477 = vrot.slane %v6470, %v6476
        %v6479 = vunpack.c.l.s4 1966171168
        %v6480 = vunpack.c.0.s8 %v6479
        %v6481 = vlaneseq
        %v6482 = vshrl.u32 %v6481, 7
        %v6483 = vsub.s32 %v6480, %v6482
        %v6484 = vrot.slane %v6397, %v6483
        %v6486 = vunpack.c.l.s4 1966171168
        %v6487 = vunpack.c.0.s8 %v6486
        %v6488 = vlaneseq
        %v6489 = vshrl.u32 %v6488, 7
        %v6490 = vsub.s32 %v6487, %v6489
        %v6491 = vrot.slane %v6484, %v6490
        %v6493 = vunpack.c.l.s4 1966171168
        %v6494 = vunpack.c.0.s8 %v6493
        %v6495 = vlaneseq
        %v6496 = vshrl.u32 %v6495, 7
        %v6497 = vsub.s32 %v6494, %v6496
        %v6498 = vrot.slane %v6398, %v6497
        %v6500 = vunpack.c.l.s4 1966171168
        %v6501 = vunpack.c.0.s8 %v6500
        %v6502 = vlaneseq
        %v6503 = vshrl.u32 %v6502, 7
        %v6504 = vsub.s32 %v6501, %v6503
        %v6505 = vrot.slane %v6498, %v6504
        %v6507 = vunpack.c.l.s4 1966171168
        %v6508 = vunpack.c.0.s8 %v6507
        %v6509 = vlaneseq
        %v6510 = vshrl.u32 %v6509, 7
        %v6511 = vsub.s32 %v6508, %v6510
        %v6512 = vrot.slane %v6399, %v6511
        %v6514 = vunpack.c.l.s4 1966171168
        %v6515 = vunpack.c.0.s8 %v6514
        %v6516 = vlaneseq
        %v6517 = vshrl.u32 %v6516, 7
        %v6518 = vsub.s32 %v6515, %v6517
        %v6519 = vrot.slane %v6512, %v6518
        %6520 = vrot.lane.b32.xlu0 %v6421, 16
        %v6521 = vpop.permute.xlu0 %6520
        %6522 = vrot.lane.b32.xlu0 %v6435, 16
        %v6523 = vpop.permute.xlu0 %6522
        %6524 = vrot.lane.b32.xlu0 %v6449, 16
        %v6525 = vpop.permute.xlu0 %6524
        %6526 = vrot.lane.b32.xlu0 %v6463, 16
        %v6527 = vpop.permute.xlu0 %6526
        %6528 = vrot.lane.b32.xlu0 %v6477, 16
        %v6529 = vpop.permute.xlu0 %6528
        %6530 = vrot.lane.b32.xlu0 %v6491, 16
        %v6531 = vpop.permute.xlu0 %6530
        %6532 = vrot.lane.b32.xlu0 %v6505, 16
        %v6533 = vpop.permute.xlu0 %6532
        %6534 = vrot.lane.b32.xlu0 %v6519, 16
        %v6535 = vpop.permute.xlu0 %6534
        %vm6544 = vcmask 155776
        %6545 = vst.msk [vmem:[#allocation3] sm:$0x1] %vm6544, %v6521
        %6546 = vst.msk [vmem:[#allocation3 + $0x1] sm:$0x1] %vm6544, %v6523
        %6547 = vst.msk [vmem:[#allocation3 + $0x2] sm:$0x1] %vm6544, %v6525
        %6548 = vst.msk [vmem:[#allocation3 + $0x3] sm:$0x1] %vm6544, %v6527
        %6549 = vst.msk [vmem:[#allocation3 + $0x4] sm:$0x1] %vm6544, %v6529
        %6550 = vst.msk [vmem:[#allocation3 + $0x5] sm:$0x1] %vm6544, %v6531
        %6551 = vst.msk [vmem:[#allocation3 + $0x6] sm:$0x1] %vm6544, %v6533
        %6552 = vst.msk [vmem:[#allocation3 + $0x7] sm:$0x1] %vm6544, %v6535
        %v6553 = vld [vmem:[#allocation2] sm:$0x1]
        %v6554 = vld [vmem:[#allocation2 + $0x1] sm:$0x1]
        %v6555 = vld [vmem:[#allocation2 + $0x2] sm:$0x1]
        %v6556 = vld [vmem:[#allocation2 + $0x3] sm:$0x1]
        %v6557 = vld [vmem:[#allocation2 + $0x4] sm:$0x1]
        %v6558 = vld [vmem:[#allocation2 + $0x5] sm:$0x1]
        %v6559 = vld [vmem:[#allocation2 + $0x6] sm:$0x1]
        %v6560 = vld [vmem:[#allocation2 + $0x7] sm:$0x1]
        %v6563 = vunpack.c.l.s4 1966171168
        %v6564 = vunpack.c.0.s8 %v6563
        %v6565 = vlaneseq
        %v6566 = vshrl.u32 %v6565, 7
        %v6567 = vsub.s32 %v6564, %v6566
        %v6568 = vrot.slane %v6553, %v6567
        %v6570 = vunpack.c.l.s4 1966171168
        %v6571 = vunpack.c.0.s8 %v6570
        %v6572 = vlaneseq
        %v6573 = vshrl.u32 %v6572, 7
        %v6574 = vsub.s32 %v6571, %v6573
        %v6575 = vrot.slane %v6568, %v6574
        %6576 = vrot.lane.b32.xlu0 %v6575, 108
        %v6577 = vpop.permute.xlu0 %6576
        %6578 = vrot.lane.b32.xlu0 %v6575, 76
        %v6579 = vpop.permute.xlu0 %6578
        %v6581 = vsel %vm849, %v6577, 0
        %v6584 = vsel %vm849, %v6579, 0
        %6586 = vmatprep.subr.bf16.mxu0 0
        %6587 = vmatpush1.bf16.xpose.msra.mxu0 0
        %6588 = vmatprep.subr.bf16.mxu0 0
        %6589 = vmatpush1.bf16.xpose.msra.mxu0 0
        %6590 = vmatprep.subr.bf16.mxu0 0
        %6591 = vmatpush1.bf16.xpose.msra.mxu0 0
        %6592 = vmatprep.subr.bf16.mxu0 0
        %6593 = vmatpush1.bf16.xpose.msra.mxu0 0
        %6594 = vmatprep.subr.bf16.mxu0 0
        %6595 = vmatpush1.bf16.xpose.msra.mxu0 0
        %6596 = vmatprep.subr.bf16.mxu0 0
        %6597 = vmatpush1.bf16.xpose.msra.mxu0 0
        %6598 = vmatprep.subr.bf16.mxu0 0
        %6599 = vmatpush1.bf16.xpose.msra.mxu0 0
        %6600 = vmatprep.subr.bf16.mxu0 0
        %6601 = vmatpush1.bf16.xpose.msra.mxu0 %v6584
        %6602 = vmatprep.subr.bf16.mxu0 0
        %6603 = vmatpush2.bf16.xpose.msra.mxu0 0
        %6604 = vmatprep.subr.bf16.mxu0 0
        %6605 = vmatpush2.bf16.xpose.msra.mxu0 0
        %6606 = vmatprep.subr.bf16.mxu0 0
        %6607 = vmatpush2.bf16.xpose.msra.mxu0 0
        %6608 = vmatprep.subr.bf16.mxu0 0
        %6609 = vmatpush2.bf16.xpose.msra.mxu0 0
        %6610 = vmatprep.subr.bf16.mxu0 0
        %6611 = vmatpush2.bf16.xpose.msra.mxu0 0
        %6612 = vmatprep.subr.bf16.mxu0 0
        %6613 = vmatpush2.bf16.xpose.msra.mxu0 0
        %6614 = vmatprep.subr.bf16.mxu0 0
        %6615 = vmatpush2.bf16.xpose.msra.mxu0 0
        %6616 = vmatprep.subr.bf16.mxu0 0
        %6617 = vmatpush2.bf16.xpose.msra.mxu0 0
        %6618 = vmatprep.mubr.bf16.mxu0 0
        %6619 = vmatmul.mubr.bf16.gmra.mxu0 %v6581
        %v6620 = vpop.f32.mrf.mxu0
        %v6621 = vadd.f32 0.0, %v6620
        %v6622 = vpop.f32.mrf.mxu0
        %v6623 = vpop.f32.mrf.mxu0
        %v6624 = vpop.f32.mrf.mxu0
        %6625 = vdwg.mxu0
        %v6628 = vunpack.c.l.s4 1966171168
        %v6629 = vunpack.c.0.s8 %v6628
        %v6630 = vlaneseq
        %v6631 = vshrl.u32 %v6630, 7
        %v6632 = vsub.s32 %v6629, %v6631
        %v6633 = vrot.slane %v6554, %v6632
        %v6635 = vunpack.c.l.s4 1966171168
        %v6636 = vunpack.c.0.s8 %v6635
        %v6637 = vlaneseq
        %v6638 = vshrl.u32 %v6637, 7
        %v6639 = vsub.s32 %v6636, %v6638
        %v6640 = vrot.slane %v6633, %v6639
        %6641 = vrot.lane.b32.xlu0 %v6640, 108
        %v6642 = vpop.permute.xlu0 %6641
        %6643 = vrot.lane.b32.xlu0 %v6640, 76
        %v6644 = vpop.permute.xlu0 %6643
        %v6646 = vsel %vm849, %v6642, 0
        %v6649 = vsel %vm849, %v6644, 0
        %6651 = vmatprep.subr.bf16.mxu0 0
        %6652 = vmatpush1.bf16.xpose.msra.mxu0 0
        %6653 = vmatprep.subr.bf16.mxu0 0
        %6654 = vmatpush1.bf16.xpose.msra.mxu0 0
        %6655 = vmatprep.subr.bf16.mxu0 0
        %6656 = vmatpush1.bf16.xpose.msra.mxu0 0
        %6657 = vmatprep.subr.bf16.mxu0 0
        %6658 = vmatpush1.bf16.xpose.msra.mxu0 0
        %6659 = vmatprep.subr.bf16.mxu0 0
        %6660 = vmatpush1.bf16.xpose.msra.mxu0 0
        %6661 = vmatprep.subr.bf16.mxu0 0
        %6662 = vmatpush1.bf16.xpose.msra.mxu0 0
        %6663 = vmatprep.subr.bf16.mxu0 0
        %6664 = vmatpush1.bf16.xpose.msra.mxu0 0
        %6665 = vmatprep.subr.bf16.mxu0 0
        %6666 = vmatpush1.bf16.xpose.msra.mxu0 %v6649
        %6667 = vmatprep.subr.bf16.mxu0 0
        %6668 = vmatpush2.bf16.xpose.msra.mxu0 0
        %6669 = vmatprep.subr.bf16.mxu0 0
        %6670 = vmatpush2.bf16.xpose.msra.mxu0 0
        %6671 = vmatprep.subr.bf16.mxu0 0
        %6672 = vmatpush2.bf16.xpose.msra.mxu0 0
        %6673 = vmatprep.subr.bf16.mxu0 0
        %6674 = vmatpush2.bf16.xpose.msra.mxu0 0
        %6675 = vmatprep.subr.bf16.mxu0 0
        %6676 = vmatpush2.bf16.xpose.msra.mxu0 0
        %6677 = vmatprep.subr.bf16.mxu0 0
        %6678 = vmatpush2.bf16.xpose.msra.mxu0 0
        %6679 = vmatprep.subr.bf16.mxu0 0
        %6680 = vmatpush2.bf16.xpose.msra.mxu0 0
        %6681 = vmatprep.subr.bf16.mxu0 0
        %6682 = vmatpush2.bf16.xpose.msra.mxu0 0
        %6683 = vmatprep.mubr.bf16.mxu0 0
        %6684 = vmatmul.mubr.bf16.gmra.mxu0 %v6646
        %v6685 = vpop.f32.mrf.mxu0
        %v6686 = vadd.f32 0.0, %v6685
        %v6687 = vpop.f32.mrf.mxu0
        %v6688 = vpop.f32.mrf.mxu0
        %v6689 = vpop.f32.mrf.mxu0
        %6690 = vdwg.mxu0
        %v6693 = vunpack.c.l.s4 1966171168
        %v6694 = vunpack.c.0.s8 %v6693
        %v6695 = vlaneseq
        %v6696 = vshrl.u32 %v6695, 7
        %v6697 = vsub.s32 %v6694, %v6696
        %v6698 = vrot.slane %v6555, %v6697
        %v6700 = vunpack.c.l.s4 1966171168
        %v6701 = vunpack.c.0.s8 %v6700
        %v6702 = vlaneseq
        %v6703 = vshrl.u32 %v6702, 7
        %v6704 = vsub.s32 %v6701, %v6703
        %v6705 = vrot.slane %v6698, %v6704
        %6706 = vrot.lane.b32.xlu0 %v6705, 108
        %v6707 = vpop.permute.xlu0 %6706
        %6708 = vrot.lane.b32.xlu0 %v6705, 76
        %v6709 = vpop.permute.xlu0 %6708
        %v6711 = vsel %vm849, %v6707, 0
        %v6714 = vsel %vm849, %v6709, 0
        %6716 = vmatprep.subr.bf16.mxu0 0
        %6717 = vmatpush1.bf16.xpose.msra.mxu0 0
        %6718 = vmatprep.subr.bf16.mxu0 0
        %6719 = vmatpush1.bf16.xpose.msra.mxu0 0
        %6720 = vmatprep.subr.bf16.mxu0 0
        %6721 = vmatpush1.bf16.xpose.msra.mxu0 0
        %6722 = vmatprep.subr.bf16.mxu0 0
        %6723 = vmatpush1.bf16.xpose.msra.mxu0 0
        %6724 = vmatprep.subr.bf16.mxu0 0
        %6725 = vmatpush1.bf16.xpose.msra.mxu0 0
        %6726 = vmatprep.subr.bf16.mxu0 0
        %6727 = vmatpush1.bf16.xpose.msra.mxu0 0
        %6728 = vmatprep.subr.bf16.mxu0 0
        %6729 = vmatpush1.bf16.xpose.msra.mxu0 0
        %6730 = vmatprep.subr.bf16.mxu0 0
        %6731 = vmatpush1.bf16.xpose.msra.mxu0 %v6714
        %6732 = vmatprep.subr.bf16.mxu0 0
        %6733 = vmatpush2.bf16.xpose.msra.mxu0 0
        %6734 = vmatprep.subr.bf16.mxu0 0
        %6735 = vmatpush2.bf16.xpose.msra.mxu0 0
        %6736 = vmatprep.subr.bf16.mxu0 0
        %6737 = vmatpush2.bf16.xpose.msra.mxu0 0
        %6738 = vmatprep.subr.bf16.mxu0 0
        %6739 = vmatpush2.bf16.xpose.msra.mxu0 0
        %6740 = vmatprep.subr.bf16.mxu0 0
        %6741 = vmatpush2.bf16.xpose.msra.mxu0 0
        %6742 = vmatprep.subr.bf16.mxu0 0
        %6743 = vmatpush2.bf16.xpose.msra.mxu0 0
        %6744 = vmatprep.subr.bf16.mxu0 0
        %6745 = vmatpush2.bf16.xpose.msra.mxu0 0
        %6746 = vmatprep.subr.bf16.mxu0 0
        %6747 = vmatpush2.bf16.xpose.msra.mxu0 0
        %6748 = vmatprep.mubr.bf16.mxu0 0
        %6749 = vmatmul.mubr.bf16.gmra.mxu0 %v6711
        %v6750 = vpop.f32.mrf.mxu0
        %v6751 = vadd.f32 0.0, %v6750
        %v6752 = vpop.f32.mrf.mxu0
        %v6753 = vpop.f32.mrf.mxu0
        %v6754 = vpop.f32.mrf.mxu0
        %6755 = vdwg.mxu0
        %v6758 = vunpack.c.l.s4 1966171168
        %v6759 = vunpack.c.0.s8 %v6758
        %v6760 = vlaneseq
        %v6761 = vshrl.u32 %v6760, 7
        %v6762 = vsub.s32 %v6759, %v6761
        %v6763 = vrot.slane %v6556, %v6762
        %v6765 = vunpack.c.l.s4 1966171168
        %v6766 = vunpack.c.0.s8 %v6765
        %v6767 = vlaneseq
        %v6768 = vshrl.u32 %v6767, 7
        %v6769 = vsub.s32 %v6766, %v6768
        %v6770 = vrot.slane %v6763, %v6769
        %6771 = vrot.lane.b32.xlu0 %v6770, 108
        %v6772 = vpop.permute.xlu0 %6771
        %6773 = vrot.lane.b32.xlu0 %v6770, 76
        %v6774 = vpop.permute.xlu0 %6773
        %v6776 = vsel %vm849, %v6772, 0
        %v6779 = vsel %vm849, %v6774, 0
        %6781 = vmatprep.subr.bf16.mxu0 0
        %6782 = vmatpush1.bf16.xpose.msra.mxu0 0
        %6783 = vmatprep.subr.bf16.mxu0 0
        %6784 = vmatpush1.bf16.xpose.msra.mxu0 0
        %6785 = vmatprep.subr.bf16.mxu0 0
        %6786 = vmatpush1.bf16.xpose.msra.mxu0 0
        %6787 = vmatprep.subr.bf16.mxu0 0
        %6788 = vmatpush1.bf16.xpose.msra.mxu0 0
        %6789 = vmatprep.subr.bf16.mxu0 0
        %6790 = vmatpush1.bf16.xpose.msra.mxu0 0
        %6791 = vmatprep.subr.bf16.mxu0 0
        %6792 = vmatpush1.bf16.xpose.msra.mxu0 0
        %6793 = vmatprep.subr.bf16.mxu0 0
        %6794 = vmatpush1.bf16.xpose.msra.mxu0 0
        %6795 = vmatprep.subr.bf16.mxu0 0
        %6796 = vmatpush1.bf16.xpose.msra.mxu0 %v6779
        %6797 = vmatprep.subr.bf16.mxu0 0
        %6798 = vmatpush2.bf16.xpose.msra.mxu0 0
        %6799 = vmatprep.subr.bf16.mxu0 0
        %6800 = vmatpush2.bf16.xpose.msra.mxu0 0
        %6801 = vmatprep.subr.bf16.mxu0 0
        %6802 = vmatpush2.bf16.xpose.msra.mxu0 0
        %6803 = vmatprep.subr.bf16.mxu0 0
        %6804 = vmatpush2.bf16.xpose.msra.mxu0 0
        %6805 = vmatprep.subr.bf16.mxu0 0
        %6806 = vmatpush2.bf16.xpose.msra.mxu0 0
        %6807 = vmatprep.subr.bf16.mxu0 0
        %6808 = vmatpush2.bf16.xpose.msra.mxu0 0
        %6809 = vmatprep.subr.bf16.mxu0 0
        %6810 = vmatpush2.bf16.xpose.msra.mxu0 0
        %6811 = vmatprep.subr.bf16.mxu0 0
        %6812 = vmatpush2.bf16.xpose.msra.mxu0 0
        %6813 = vmatprep.mubr.bf16.mxu0 0
        %6814 = vmatmul.mubr.bf16.gmra.mxu0 %v6776
        %v6815 = vpop.f32.mrf.mxu0
        %v6816 = vadd.f32 0.0, %v6815
        %v6817 = vpop.f32.mrf.mxu0
        %v6818 = vpop.f32.mrf.mxu0
        %v6819 = vpop.f32.mrf.mxu0
        %6820 = vdwg.mxu0
        %v6823 = vunpack.c.l.s4 1966171168
        %v6824 = vunpack.c.0.s8 %v6823
        %v6825 = vlaneseq
        %v6826 = vshrl.u32 %v6825, 7
        %v6827 = vsub.s32 %v6824, %v6826
        %v6828 = vrot.slane %v6557, %v6827
        %v6830 = vunpack.c.l.s4 1966171168
        %v6831 = vunpack.c.0.s8 %v6830
        %v6832 = vlaneseq
        %v6833 = vshrl.u32 %v6832, 7
        %v6834 = vsub.s32 %v6831, %v6833
        %v6835 = vrot.slane %v6828, %v6834
        %6836 = vrot.lane.b32.xlu0 %v6835, 108
        %v6837 = vpop.permute.xlu0 %6836
        %6838 = vrot.lane.b32.xlu0 %v6835, 76
        %v6839 = vpop.permute.xlu0 %6838
        %v6841 = vsel %vm849, %v6837, 0
        %v6844 = vsel %vm849, %v6839, 0
        %6846 = vmatprep.subr.bf16.mxu0 0
        %6847 = vmatpush1.bf16.xpose.msra.mxu0 0
        %6848 = vmatprep.subr.bf16.mxu0 0
        %6849 = vmatpush1.bf16.xpose.msra.mxu0 0
        %6850 = vmatprep.subr.bf16.mxu0 0
        %6851 = vmatpush1.bf16.xpose.msra.mxu0 0
        %6852 = vmatprep.subr.bf16.mxu0 0
        %6853 = vmatpush1.bf16.xpose.msra.mxu0 0
        %6854 = vmatprep.subr.bf16.mxu0 0
        %6855 = vmatpush1.bf16.xpose.msra.mxu0 0
        %6856 = vmatprep.subr.bf16.mxu0 0
        %6857 = vmatpush1.bf16.xpose.msra.mxu0 0
        %6858 = vmatprep.subr.bf16.mxu0 0
        %6859 = vmatpush1.bf16.xpose.msra.mxu0 0
        %6860 = vmatprep.subr.bf16.mxu0 0
        %6861 = vmatpush1.bf16.xpose.msra.mxu0 %v6844
        %6862 = vmatprep.subr.bf16.mxu0 0
        %6863 = vmatpush2.bf16.xpose.msra.mxu0 0
        %6864 = vmatprep.subr.bf16.mxu0 0
        %6865 = vmatpush2.bf16.xpose.msra.mxu0 0
        %6866 = vmatprep.subr.bf16.mxu0 0
        %6867 = vmatpush2.bf16.xpose.msra.mxu0 0
        %6868 = vmatprep.subr.bf16.mxu0 0
        %6869 = vmatpush2.bf16.xpose.msra.mxu0 0
        %6870 = vmatprep.subr.bf16.mxu0 0
        %6871 = vmatpush2.bf16.xpose.msra.mxu0 0
        %6872 = vmatprep.subr.bf16.mxu0 0
        %6873 = vmatpush2.bf16.xpose.msra.mxu0 0
        %6874 = vmatprep.subr.bf16.mxu0 0
        %6875 = vmatpush2.bf16.xpose.msra.mxu0 0
        %6876 = vmatprep.subr.bf16.mxu0 0
        %6877 = vmatpush2.bf16.xpose.msra.mxu0 0
        %6878 = vmatprep.mubr.bf16.mxu0 0
        %6879 = vmatmul.mubr.bf16.gmra.mxu0 %v6841
        %v6880 = vpop.f32.mrf.mxu0
        %v6881 = vadd.f32 0.0, %v6880
        %v6882 = vpop.f32.mrf.mxu0
        %v6883 = vpop.f32.mrf.mxu0
        %v6884 = vpop.f32.mrf.mxu0
        %6885 = vdwg.mxu0
        %v6888 = vunpack.c.l.s4 1966171168
        %v6889 = vunpack.c.0.s8 %v6888
        %v6890 = vlaneseq
        %v6891 = vshrl.u32 %v6890, 7
        %v6892 = vsub.s32 %v6889, %v6891
        %v6893 = vrot.slane %v6558, %v6892
        %v6895 = vunpack.c.l.s4 1966171168
        %v6896 = vunpack.c.0.s8 %v6895
        %v6897 = vlaneseq
        %v6898 = vshrl.u32 %v6897, 7
        %v6899 = vsub.s32 %v6896, %v6898
        %v6900 = vrot.slane %v6893, %v6899
        %6901 = vrot.lane.b32.xlu0 %v6900, 108
        %v6902 = vpop.permute.xlu0 %6901
        %6903 = vrot.lane.b32.xlu0 %v6900, 76
        %v6904 = vpop.permute.xlu0 %6903
        %v6906 = vsel %vm849, %v6902, 0
        %v6909 = vsel %vm849, %v6904, 0
        %6911 = vmatprep.subr.bf16.mxu0 0
        %6912 = vmatpush1.bf16.xpose.msra.mxu0 0
        %6913 = vmatprep.subr.bf16.mxu0 0
        %6914 = vmatpush1.bf16.xpose.msra.mxu0 0
        %6915 = vmatprep.subr.bf16.mxu0 0
        %6916 = vmatpush1.bf16.xpose.msra.mxu0 0
        %6917 = vmatprep.subr.bf16.mxu0 0
        %6918 = vmatpush1.bf16.xpose.msra.mxu0 0
        %6919 = vmatprep.subr.bf16.mxu0 0
        %6920 = vmatpush1.bf16.xpose.msra.mxu0 0
        %6921 = vmatprep.subr.bf16.mxu0 0
        %6922 = vmatpush1.bf16.xpose.msra.mxu0 0
        %6923 = vmatprep.subr.bf16.mxu0 0
        %6924 = vmatpush1.bf16.xpose.msra.mxu0 0
        %6925 = vmatprep.subr.bf16.mxu0 0
        %6926 = vmatpush1.bf16.xpose.msra.mxu0 %v6909
        %6927 = vmatprep.subr.bf16.mxu0 0
        %6928 = vmatpush2.bf16.xpose.msra.mxu0 0
        %6929 = vmatprep.subr.bf16.mxu0 0
        %6930 = vmatpush2.bf16.xpose.msra.mxu0 0
        %6931 = vmatprep.subr.bf16.mxu0 0
        %6932 = vmatpush2.bf16.xpose.msra.mxu0 0
        %6933 = vmatprep.subr.bf16.mxu0 0
        %6934 = vmatpush2.bf16.xpose.msra.mxu0 0
        %6935 = vmatprep.subr.bf16.mxu0 0
        %6936 = vmatpush2.bf16.xpose.msra.mxu0 0
        %6937 = vmatprep.subr.bf16.mxu0 0
        %6938 = vmatpush2.bf16.xpose.msra.mxu0 0
        %6939 = vmatprep.subr.bf16.mxu0 0
        %6940 = vmatpush2.bf16.xpose.msra.mxu0 0
        %6941 = vmatprep.subr.bf16.mxu0 0
        %6942 = vmatpush2.bf16.xpose.msra.mxu0 0
        %6943 = vmatprep.mubr.bf16.mxu0 0
        %6944 = vmatmul.mubr.bf16.gmra.mxu0 %v6906
        %v6945 = vpop.f32.mrf.mxu0
        %v6946 = vadd.f32 0.0, %v6945
        %v6947 = vpop.f32.mrf.mxu0
        %v6948 = vpop.f32.mrf.mxu0
        %v6949 = vpop.f32.mrf.mxu0
        %6950 = vdwg.mxu0
        %v6953 = vunpack.c.l.s4 1966171168
        %v6954 = vunpack.c.0.s8 %v6953
        %v6955 = vlaneseq
        %v6956 = vshrl.u32 %v6955, 7
        %v6957 = vsub.s32 %v6954, %v6956
        %v6958 = vrot.slane %v6559, %v6957
        %v6960 = vunpack.c.l.s4 1966171168
        %v6961 = vunpack.c.0.s8 %v6960
        %v6962 = vlaneseq
        %v6963 = vshrl.u32 %v6962, 7
        %v6964 = vsub.s32 %v6961, %v6963
        %v6965 = vrot.slane %v6958, %v6964
        %6966 = vrot.lane.b32.xlu0 %v6965, 108
        %v6967 = vpop.permute.xlu0 %6966
        %6968 = vrot.lane.b32.xlu0 %v6965, 76
        %v6969 = vpop.permute.xlu0 %6968
        %v6971 = vsel %vm849, %v6967, 0
        %v6974 = vsel %vm849, %v6969, 0
        %6976 = vmatprep.subr.bf16.mxu0 0
        %6977 = vmatpush1.bf16.xpose.msra.mxu0 0
        %6978 = vmatprep.subr.bf16.mxu0 0
        %6979 = vmatpush1.bf16.xpose.msra.mxu0 0
        %6980 = vmatprep.subr.bf16.mxu0 0
        %6981 = vmatpush1.bf16.xpose.msra.mxu0 0
        %6982 = vmatprep.subr.bf16.mxu0 0
        %6983 = vmatpush1.bf16.xpose.msra.mxu0 0
        %6984 = vmatprep.subr.bf16.mxu0 0
        %6985 = vmatpush1.bf16.xpose.msra.mxu0 0
        %6986 = vmatprep.subr.bf16.mxu0 0
        %6987 = vmatpush1.bf16.xpose.msra.mxu0 0
        %6988 = vmatprep.subr.bf16.mxu0 0
        %6989 = vmatpush1.bf16.xpose.msra.mxu0 0
        %6990 = vmatprep.subr.bf16.mxu0 0
        %6991 = vmatpush1.bf16.xpose.msra.mxu0 %v6974
        %6992 = vmatprep.subr.bf16.mxu0 0
        %6993 = vmatpush2.bf16.xpose.msra.mxu0 0
        %6994 = vmatprep.subr.bf16.mxu0 0
        %6995 = vmatpush2.bf16.xpose.msra.mxu0 0
        %6996 = vmatprep.subr.bf16.mxu0 0
        %6997 = vmatpush2.bf16.xpose.msra.mxu0 0
        %6998 = vmatprep.subr.bf16.mxu0 0
        %6999 = vmatpush2.bf16.xpose.msra.mxu0 0
        %7000 = vmatprep.subr.bf16.mxu0 0
        %7001 = vmatpush2.bf16.xpose.msra.mxu0 0
        %7002 = vmatprep.subr.bf16.mxu0 0
        %7003 = vmatpush2.bf16.xpose.msra.mxu0 0
        %7004 = vmatprep.subr.bf16.mxu0 0
        %7005 = vmatpush2.bf16.xpose.msra.mxu0 0
        %7006 = vmatprep.subr.bf16.mxu0 0
        %7007 = vmatpush2.bf16.xpose.msra.mxu0 0
        %7008 = vmatprep.mubr.bf16.mxu0 0
        %7009 = vmatmul.mubr.bf16.gmra.mxu0 %v6971
        %v7010 = vpop.f32.mrf.mxu0
        %v7011 = vadd.f32 0.0, %v7010
        %v7012 = vpop.f32.mrf.mxu0
        %v7013 = vpop.f32.mrf.mxu0
        %v7014 = vpop.f32.mrf.mxu0
        %7015 = vdwg.mxu0
        %v7018 = vunpack.c.l.s4 1966171168
        %v7019 = vunpack.c.0.s8 %v7018
        %v7020 = vlaneseq
        %v7021 = vshrl.u32 %v7020, 7
        %v7022 = vsub.s32 %v7019, %v7021
        %v7023 = vrot.slane %v6560, %v7022
        %v7025 = vunpack.c.l.s4 1966171168
        %v7026 = vunpack.c.0.s8 %v7025
        %v7027 = vlaneseq
        %v7028 = vshrl.u32 %v7027, 7
        %v7029 = vsub.s32 %v7026, %v7028
        %v7030 = vrot.slane %v7023, %v7029
        %7031 = vrot.lane.b32.xlu0 %v7030, 108
        %v7032 = vpop.permute.xlu0 %7031
        %7033 = vrot.lane.b32.xlu0 %v7030, 76
        %v7034 = vpop.permute.xlu0 %7033
        %v7036 = vsel %vm849, %v7032, 0
        %v7039 = vsel %vm849, %v7034, 0
        %7041 = vmatprep.subr.bf16.mxu0 0
        %7042 = vmatpush1.bf16.xpose.msra.mxu0 0
        %7043 = vmatprep.subr.bf16.mxu0 0
        %7044 = vmatpush1.bf16.xpose.msra.mxu0 0
        %7045 = vmatprep.subr.bf16.mxu0 0
        %7046 = vmatpush1.bf16.xpose.msra.mxu0 0
        %7047 = vmatprep.subr.bf16.mxu0 0
        %7048 = vmatpush1.bf16.xpose.msra.mxu0 0
        %7049 = vmatprep.subr.bf16.mxu0 0
        %7050 = vmatpush1.bf16.xpose.msra.mxu0 0
        %7051 = vmatprep.subr.bf16.mxu0 0
        %7052 = vmatpush1.bf16.xpose.msra.mxu0 0
        %7053 = vmatprep.subr.bf16.mxu0 0
        %7054 = vmatpush1.bf16.xpose.msra.mxu0 0
        %7055 = vmatprep.subr.bf16.mxu0 0
        %7056 = vmatpush1.bf16.xpose.msra.mxu0 %v7039
        %7057 = vmatprep.subr.bf16.mxu0 0
        %7058 = vmatpush2.bf16.xpose.msra.mxu0 0
        %7059 = vmatprep.subr.bf16.mxu0 0
        %7060 = vmatpush2.bf16.xpose.msra.mxu0 0
        %7061 = vmatprep.subr.bf16.mxu0 0
        %7062 = vmatpush2.bf16.xpose.msra.mxu0 0
        %7063 = vmatprep.subr.bf16.mxu0 0
        %7064 = vmatpush2.bf16.xpose.msra.mxu0 0
        %7065 = vmatprep.subr.bf16.mxu0 0
        %7066 = vmatpush2.bf16.xpose.msra.mxu0 0
        %7067 = vmatprep.subr.bf16.mxu0 0
        %7068 = vmatpush2.bf16.xpose.msra.mxu0 0
        %7069 = vmatprep.subr.bf16.mxu0 0
        %7070 = vmatpush2.bf16.xpose.msra.mxu0 0
        %7071 = vmatprep.subr.bf16.mxu0 0
        %7072 = vmatpush2.bf16.xpose.msra.mxu0 0
        %7073 = vmatprep.mubr.bf16.mxu0 0
        %7074 = vmatmul.mubr.bf16.gmra.mxu0 %v7036
        %v7075 = vpop.f32.mrf.mxu0
        %v7076 = vadd.f32 0.0, %v7075
        %v7077 = vpop.f32.mrf.mxu0
        %v7078 = vpop.f32.mrf.mxu0
        %v7079 = vpop.f32.mrf.mxu0
        %7080 = vdwg.mxu0
        %v7081 = vmul.f32 %v6621, 0.5
        %v7082 = vmul.f32 %v6686, 0.5
        %v7083 = vmul.f32 %v6751, 0.5
        %v7084 = vmul.f32 %v6816, 0.5
        %v7085 = vmul.f32 %v6881, 0.5
        %v7086 = vmul.f32 %v6946, 0.5
        %v7087 = vmul.f32 %v7011, 0.5
        %v7088 = vmul.f32 %v7076, 0.5
        %v7089 = vsel %vm1345, %v7081, -inf
        %7090 = vmax.xlane.f32.xlu0 %v7089
        %v7091 = vpop.xlane.xlu0 %7090
        %v7092 = vsel %vm1345, %v7082, -inf
        %7093 = vmax.xlane.f32.xlu0 %v7092
        %v7094 = vpop.xlane.xlu0 %7093
        %v7095 = vsel %vm1345, %v7083, -inf
        %7096 = vmax.xlane.f32.xlu0 %v7095
        %v7097 = vpop.xlane.xlu0 %7096
        %v7098 = vsel %vm1345, %v7084, -inf
        %7099 = vmax.xlane.f32.xlu0 %v7098
        %v7100 = vpop.xlane.xlu0 %7099
        %v7101 = vsel %vm1345, %v7085, -inf
        %7102 = vmax.xlane.f32.xlu0 %v7101
        %v7103 = vpop.xlane.xlu0 %7102
        %v7104 = vsel %vm1345, %v7086, -inf
        %7105 = vmax.xlane.f32.xlu0 %v7104
        %v7106 = vpop.xlane.xlu0 %7105
        %v7107 = vsel %vm1345, %v7087, -inf
        %7108 = vmax.xlane.f32.xlu0 %v7107
        %v7109 = vpop.xlane.xlu0 %7108
        %v7110 = vsel %vm1345, %v7088, -inf
        %7111 = vmax.xlane.f32.xlu0 %v7110
        %v7112 = vpop.xlane.xlu0 %7111
        %v7113 = vsub.f32 %v7081, %v7091
        %v7114 = vsub.f32 %v7082, %v7094
        %v7115 = vsub.f32 %v7083, %v7097
        %v7116 = vsub.f32 %v7084, %v7100
        %v7117 = vsub.f32 %v7085, %v7103
        %v7118 = vsub.f32 %v7086, %v7106
        %v7119 = vsub.f32 %v7087, %v7109
        %v7120 = vsub.f32 %v7088, %v7112
        %v7121 = vmul.f32 %v7113, 1.442695
        %v7122 = vpow.pop %v7121
        %v7123 = vmul.f32 %v7114, 1.442695
        %v7124 = vpow.pop %v7123
        %v7125 = vmul.f32 %v7115, 1.442695
        %v7126 = vpow.pop %v7125
        %v7127 = vmul.f32 %v7116, 1.442695
        %v7128 = vpow.pop %v7127
        %v7129 = vmul.f32 %v7117, 1.442695
        %v7130 = vpow.pop %v7129
        %v7131 = vmul.f32 %v7118, 1.442695
        %v7132 = vpow.pop %v7131
        %v7133 = vmul.f32 %v7119, 1.442695
        %v7134 = vpow.pop %v7133
        %v7135 = vmul.f32 %v7120, 1.442695
        %v7136 = vpow.pop %v7135
        %v7137 = vsel %vm1345, %v7122, 0.0
        %7138 = vadd.xlane.f32.xlu0 %v7137
        %v7139 = vpop.xlane.xlu0 %7138
        %v7140 = vsel %vm1345, %v7124, 0.0
        %7141 = vadd.xlane.f32.xlu0 %v7140
        %v7142 = vpop.xlane.xlu0 %7141
        %v7143 = vsel %vm1345, %v7126, 0.0
        %7144 = vadd.xlane.f32.xlu0 %v7143
        %v7145 = vpop.xlane.xlu0 %7144
        %v7146 = vsel %vm1345, %v7128, 0.0
        %7147 = vadd.xlane.f32.xlu0 %v7146
        %v7148 = vpop.xlane.xlu0 %7147
        %v7149 = vsel %vm1345, %v7130, 0.0
        %7150 = vadd.xlane.f32.xlu0 %v7149
        %v7151 = vpop.xlane.xlu0 %7150
        %v7152 = vsel %vm1345, %v7132, 0.0
        %7153 = vadd.xlane.f32.xlu0 %v7152
        %v7154 = vpop.xlane.xlu0 %7153
        %v7155 = vsel %vm1345, %v7134, 0.0
        %7156 = vadd.xlane.f32.xlu0 %v7155
        %v7157 = vpop.xlane.xlu0 %7156
        %v7158 = vsel %vm1345, %v7136, 0.0
        %7159 = vadd.xlane.f32.xlu0 %v7158
        %v7160 = vpop.xlane.xlu0 %7159
        %v7161 = vrcp.pop %v7139
        %v7162 = vrcp.pop %v7142
        %v7163 = vrcp.pop %v7145
        %v7164 = vrcp.pop %v7148
        %v7165 = vrcp.pop %v7151
        %v7166 = vrcp.pop %v7154
        %v7167 = vrcp.pop %v7157
        %v7168 = vrcp.pop %v7160
        %v7169 = vmul.f32 %v7122, %v7161
        %v7170 = vmul.f32 %v7124, %v7162
        %v7171 = vmul.f32 %v7126, %v7163
        %v7172 = vmul.f32 %v7128, %v7164
        %v7173 = vmul.f32 %v7130, %v7165
        %v7174 = vmul.f32 %v7132, %v7166
        %v7175 = vmul.f32 %v7134, %v7167
        %v7176 = vmul.f32 %v7136, %v7168
        %v7177 = vpack.c.bf16 %v7169, %v7169
        %v7178 = vpack.c.bf16 %v7170, %v7170
        %v7179 = vpack.c.bf16 %v7171, %v7171
        %v7180 = vpack.c.bf16 %v7172, %v7172
        %v7181 = vpack.c.bf16 %v7173, %v7173
        %v7182 = vpack.c.bf16 %v7174, %v7174
        %v7183 = vpack.c.bf16 %v7175, %v7175
        %v7184 = vpack.c.bf16 %v7176, %v7176
        %7185 = vrot.lane.b32.xlu0 %v6575, 44
        %v7186 = vpop.permute.xlu0 %7185
        %v7188 = vsel %vm1444, %v7177, 0
        %v7191 = vsel %vm1448, %v7186, 0
        %7193 = vmatprep.subr.bf16.mxu0 0
        %7194 = vmatpush1.bf16.msra.mxu0 0
        %7195 = vmatprep.subr.bf16.mxu0 0
        %7196 = vmatpush1.bf16.msra.mxu0 0
        %7197 = vmatprep.subr.bf16.mxu0 0
        %7198 = vmatpush1.bf16.msra.mxu0 0
        %7199 = vmatprep.subr.bf16.mxu0 0
        %7200 = vmatpush1.bf16.msra.mxu0 0
        %7201 = vmatprep.subr.bf16.mxu0 0
        %7202 = vmatpush1.bf16.msra.mxu0 0
        %7203 = vmatprep.subr.bf16.mxu0 0
        %7204 = vmatpush1.bf16.msra.mxu0 0
        %7205 = vmatprep.subr.bf16.mxu0 0
        %7206 = vmatpush1.bf16.msra.mxu0 0
        %7207 = vmatprep.subr.bf16.mxu0 0
        %7208 = vmatpush1.bf16.msra.mxu0 %v7191
        %7209 = vmatprep.subr.bf16.mxu0 0
        %7210 = vmatpush2.bf16.msra.mxu0 0
        %7211 = vmatprep.subr.bf16.mxu0 0
        %7212 = vmatpush2.bf16.msra.mxu0 0
        %7213 = vmatprep.subr.bf16.mxu0 0
        %7214 = vmatpush2.bf16.msra.mxu0 0
        %7215 = vmatprep.subr.bf16.mxu0 0
        %7216 = vmatpush2.bf16.msra.mxu0 0
        %7217 = vmatprep.subr.bf16.mxu0 0
        %7218 = vmatpush2.bf16.msra.mxu0 0
        %7219 = vmatprep.subr.bf16.mxu0 0
        %7220 = vmatpush2.bf16.msra.mxu0 0
        %7221 = vmatprep.subr.bf16.mxu0 0
        %7222 = vmatpush2.bf16.msra.mxu0 0
        %7223 = vmatprep.subr.bf16.mxu0 0
        %7224 = vmatpush2.bf16.msra.mxu0 0
        %7225 = vmatprep.mubr.bf16.mxu0 0
        %7226 = vmatmul.mubr.bf16.gmra.mxu0 %v7188
        %v7227 = vpop.f32.mrf.mxu0
        %v7228 = vadd.f32 0.0, %v7227
        %v7229 = vpop.f32.mrf.mxu0
        %v7230 = vpop.f32.mrf.mxu0
        %v7231 = vpop.f32.mrf.mxu0
        %7232 = vdwg.mxu0
        %7233 = vrot.lane.b32.xlu0 %v6640, 44
        %v7234 = vpop.permute.xlu0 %7233
        %v7236 = vsel %vm1444, %v7178, 0
        %v7239 = vsel %vm1448, %v7234, 0
        %7241 = vmatprep.subr.bf16.mxu0 0
        %7242 = vmatpush1.bf16.msra.mxu0 0
        %7243 = vmatprep.subr.bf16.mxu0 0
        %7244 = vmatpush1.bf16.msra.mxu0 0
        %7245 = vmatprep.subr.bf16.mxu0 0
        %7246 = vmatpush1.bf16.msra.mxu0 0
        %7247 = vmatprep.subr.bf16.mxu0 0
        %7248 = vmatpush1.bf16.msra.mxu0 0
        %7249 = vmatprep.subr.bf16.mxu0 0
        %7250 = vmatpush1.bf16.msra.mxu0 0
        %7251 = vmatprep.subr.bf16.mxu0 0
        %7252 = vmatpush1.bf16.msra.mxu0 0
        %7253 = vmatprep.subr.bf16.mxu0 0
        %7254 = vmatpush1.bf16.msra.mxu0 0
        %7255 = vmatprep.subr.bf16.mxu0 0
        %7256 = vmatpush1.bf16.msra.mxu0 %v7239
        %7257 = vmatprep.subr.bf16.mxu0 0
        %7258 = vmatpush2.bf16.msra.mxu0 0
        %7259 = vmatprep.subr.bf16.mxu0 0
        %7260 = vmatpush2.bf16.msra.mxu0 0
        %7261 = vmatprep.subr.bf16.mxu0 0
        %7262 = vmatpush2.bf16.msra.mxu0 0
        %7263 = vmatprep.subr.bf16.mxu0 0
        %7264 = vmatpush2.bf16.msra.mxu0 0
        %7265 = vmatprep.subr.bf16.mxu0 0
        %7266 = vmatpush2.bf16.msra.mxu0 0
        %7267 = vmatprep.subr.bf16.mxu0 0
        %7268 = vmatpush2.bf16.msra.mxu0 0
        %7269 = vmatprep.subr.bf16.mxu0 0
        %7270 = vmatpush2.bf16.msra.mxu0 0
        %7271 = vmatprep.subr.bf16.mxu0 0
        %7272 = vmatpush2.bf16.msra.mxu0 0
        %7273 = vmatprep.mubr.bf16.mxu0 0
        %7274 = vmatmul.mubr.bf16.gmra.mxu0 %v7236
        %v7275 = vpop.f32.mrf.mxu0
        %v7276 = vadd.f32 0.0, %v7275
        %v7277 = vpop.f32.mrf.mxu0
        %v7278 = vpop.f32.mrf.mxu0
        %v7279 = vpop.f32.mrf.mxu0
        %7280 = vdwg.mxu0
        %7281 = vrot.lane.b32.xlu0 %v6705, 44
        %v7282 = vpop.permute.xlu0 %7281
        %v7284 = vsel %vm1444, %v7179, 0
        %v7287 = vsel %vm1448, %v7282, 0
        %7289 = vmatprep.subr.bf16.mxu0 0
        %7290 = vmatpush1.bf16.msra.mxu0 0
        %7291 = vmatprep.subr.bf16.mxu0 0
        %7292 = vmatpush1.bf16.msra.mxu0 0
        %7293 = vmatprep.subr.bf16.mxu0 0
        %7294 = vmatpush1.bf16.msra.mxu0 0
        %7295 = vmatprep.subr.bf16.mxu0 0
        %7296 = vmatpush1.bf16.msra.mxu0 0
        %7297 = vmatprep.subr.bf16.mxu0 0
        %7298 = vmatpush1.bf16.msra.mxu0 0
        %7299 = vmatprep.subr.bf16.mxu0 0
        %7300 = vmatpush1.bf16.msra.mxu0 0
        %7301 = vmatprep.subr.bf16.mxu0 0
        %7302 = vmatpush1.bf16.msra.mxu0 0
        %7303 = vmatprep.subr.bf16.mxu0 0
        %7304 = vmatpush1.bf16.msra.mxu0 %v7287
        %7305 = vmatprep.subr.bf16.mxu0 0
        %7306 = vmatpush2.bf16.msra.mxu0 0
        %7307 = vmatprep.subr.bf16.mxu0 0
        %7308 = vmatpush2.bf16.msra.mxu0 0
        %7309 = vmatprep.subr.bf16.mxu0 0
        %7310 = vmatpush2.bf16.msra.mxu0 0
        %7311 = vmatprep.subr.bf16.mxu0 0
        %7312 = vmatpush2.bf16.msra.mxu0 0
        %7313 = vmatprep.subr.bf16.mxu0 0
        %7314 = vmatpush2.bf16.msra.mxu0 0
        %7315 = vmatprep.subr.bf16.mxu0 0
        %7316 = vmatpush2.bf16.msra.mxu0 0
        %7317 = vmatprep.subr.bf16.mxu0 0
        %7318 = vmatpush2.bf16.msra.mxu0 0
        %7319 = vmatprep.subr.bf16.mxu0 0
        %7320 = vmatpush2.bf16.msra.mxu0 0
        %7321 = vmatprep.mubr.bf16.mxu0 0
        %7322 = vmatmul.mubr.bf16.gmra.mxu0 %v7284
        %v7323 = vpop.f32.mrf.mxu0
        %v7324 = vadd.f32 0.0, %v7323
        %v7325 = vpop.f32.mrf.mxu0
        %v7326 = vpop.f32.mrf.mxu0
        %v7327 = vpop.f32.mrf.mxu0
        %7328 = vdwg.mxu0
        %7329 = vrot.lane.b32.xlu0 %v6770, 44
        %v7330 = vpop.permute.xlu0 %7329
        %v7332 = vsel %vm1444, %v7180, 0
        %v7335 = vsel %vm1448, %v7330, 0
        %7337 = vmatprep.subr.bf16.mxu0 0
        %7338 = vmatpush1.bf16.msra.mxu0 0
        %7339 = vmatprep.subr.bf16.mxu0 0
        %7340 = vmatpush1.bf16.msra.mxu0 0
        %7341 = vmatprep.subr.bf16.mxu0 0
        %7342 = vmatpush1.bf16.msra.mxu0 0
        %7343 = vmatprep.subr.bf16.mxu0 0
        %7344 = vmatpush1.bf16.msra.mxu0 0
        %7345 = vmatprep.subr.bf16.mxu0 0
        %7346 = vmatpush1.bf16.msra.mxu0 0
        %7347 = vmatprep.subr.bf16.mxu0 0
        %7348 = vmatpush1.bf16.msra.mxu0 0
        %7349 = vmatprep.subr.bf16.mxu0 0
        %7350 = vmatpush1.bf16.msra.mxu0 0
        %7351 = vmatprep.subr.bf16.mxu0 0
        %7352 = vmatpush1.bf16.msra.mxu0 %v7335
        %7353 = vmatprep.subr.bf16.mxu0 0
        %7354 = vmatpush2.bf16.msra.mxu0 0
        %7355 = vmatprep.subr.bf16.mxu0 0
        %7356 = vmatpush2.bf16.msra.mxu0 0
        %7357 = vmatprep.subr.bf16.mxu0 0
        %7358 = vmatpush2.bf16.msra.mxu0 0
        %7359 = vmatprep.subr.bf16.mxu0 0
        %7360 = vmatpush2.bf16.msra.mxu0 0
        %7361 = vmatprep.subr.bf16.mxu0 0
        %7362 = vmatpush2.bf16.msra.mxu0 0
        %7363 = vmatprep.subr.bf16.mxu0 0
        %7364 = vmatpush2.bf16.msra.mxu0 0
        %7365 = vmatprep.subr.bf16.mxu0 0
        %7366 = vmatpush2.bf16.msra.mxu0 0
        %7367 = vmatprep.subr.bf16.mxu0 0
        %7368 = vmatpush2.bf16.msra.mxu0 0
        %7369 = vmatprep.mubr.bf16.mxu0 0
        %7370 = vmatmul.mubr.bf16.gmra.mxu0 %v7332
        %v7371 = vpop.f32.mrf.mxu0
        %v7372 = vadd.f32 0.0, %v7371
        %v7373 = vpop.f32.mrf.mxu0
        %v7374 = vpop.f32.mrf.mxu0
        %v7375 = vpop.f32.mrf.mxu0
        %7376 = vdwg.mxu0
        %7377 = vrot.lane.b32.xlu0 %v6835, 44
        %v7378 = vpop.permute.xlu0 %7377
        %v7380 = vsel %vm1444, %v7181, 0
        %v7383 = vsel %vm1448, %v7378, 0
        %7385 = vmatprep.subr.bf16.mxu0 0
        %7386 = vmatpush1.bf16.msra.mxu0 0
        %7387 = vmatprep.subr.bf16.mxu0 0
        %7388 = vmatpush1.bf16.msra.mxu0 0
        %7389 = vmatprep.subr.bf16.mxu0 0
        %7390 = vmatpush1.bf16.msra.mxu0 0
        %7391 = vmatprep.subr.bf16.mxu0 0
        %7392 = vmatpush1.bf16.msra.mxu0 0
        %7393 = vmatprep.subr.bf16.mxu0 0
        %7394 = vmatpush1.bf16.msra.mxu0 0
        %7395 = vmatprep.subr.bf16.mxu0 0
        %7396 = vmatpush1.bf16.msra.mxu0 0
        %7397 = vmatprep.subr.bf16.mxu0 0
        %7398 = vmatpush1.bf16.msra.mxu0 0
        %7399 = vmatprep.subr.bf16.mxu0 0
        %7400 = vmatpush1.bf16.msra.mxu0 %v7383
        %7401 = vmatprep.subr.bf16.mxu0 0
        %7402 = vmatpush2.bf16.msra.mxu0 0
        %7403 = vmatprep.subr.bf16.mxu0 0
        %7404 = vmatpush2.bf16.msra.mxu0 0
        %7405 = vmatprep.subr.bf16.mxu0 0
        %7406 = vmatpush2.bf16.msra.mxu0 0
        %7407 = vmatprep.subr.bf16.mxu0 0
        %7408 = vmatpush2.bf16.msra.mxu0 0
        %7409 = vmatprep.subr.bf16.mxu0 0
        %7410 = vmatpush2.bf16.msra.mxu0 0
        %7411 = vmatprep.subr.bf16.mxu0 0
        %7412 = vmatpush2.bf16.msra.mxu0 0
        %7413 = vmatprep.subr.bf16.mxu0 0
        %7414 = vmatpush2.bf16.msra.mxu0 0
        %7415 = vmatprep.subr.bf16.mxu0 0
        %7416 = vmatpush2.bf16.msra.mxu0 0
        %7417 = vmatprep.mubr.bf16.mxu0 0
        %7418 = vmatmul.mubr.bf16.gmra.mxu0 %v7380
        %v7419 = vpop.f32.mrf.mxu0
        %v7420 = vadd.f32 0.0, %v7419
        %v7421 = vpop.f32.mrf.mxu0
        %v7422 = vpop.f32.mrf.mxu0
        %v7423 = vpop.f32.mrf.mxu0
        %7424 = vdwg.mxu0
        %7425 = vrot.lane.b32.xlu0 %v6900, 44
        %v7426 = vpop.permute.xlu0 %7425
        %v7428 = vsel %vm1444, %v7182, 0
        %v7431 = vsel %vm1448, %v7426, 0
        %7433 = vmatprep.subr.bf16.mxu0 0
        %7434 = vmatpush1.bf16.msra.mxu0 0
        %7435 = vmatprep.subr.bf16.mxu0 0
        %7436 = vmatpush1.bf16.msra.mxu0 0
        %7437 = vmatprep.subr.bf16.mxu0 0
        %7438 = vmatpush1.bf16.msra.mxu0 0
        %7439 = vmatprep.subr.bf16.mxu0 0
        %7440 = vmatpush1.bf16.msra.mxu0 0
        %7441 = vmatprep.subr.bf16.mxu0 0
        %7442 = vmatpush1.bf16.msra.mxu0 0
        %7443 = vmatprep.subr.bf16.mxu0 0
        %7444 = vmatpush1.bf16.msra.mxu0 0
        %7445 = vmatprep.subr.bf16.mxu0 0
        %7446 = vmatpush1.bf16.msra.mxu0 0
        %7447 = vmatprep.subr.bf16.mxu0 0
        %7448 = vmatpush1.bf16.msra.mxu0 %v7431
        %7449 = vmatprep.subr.bf16.mxu0 0
        %7450 = vmatpush2.bf16.msra.mxu0 0
        %7451 = vmatprep.subr.bf16.mxu0 0
        %7452 = vmatpush2.bf16.msra.mxu0 0
        %7453 = vmatprep.subr.bf16.mxu0 0
        %7454 = vmatpush2.bf16.msra.mxu0 0
        %7455 = vmatprep.subr.bf16.mxu0 0
        %7456 = vmatpush2.bf16.msra.mxu0 0
        %7457 = vmatprep.subr.bf16.mxu0 0
        %7458 = vmatpush2.bf16.msra.mxu0 0
        %7459 = vmatprep.subr.bf16.mxu0 0
        %7460 = vmatpush2.bf16.msra.mxu0 0
        %7461 = vmatprep.subr.bf16.mxu0 0
        %7462 = vmatpush2.bf16.msra.mxu0 0
        %7463 = vmatprep.subr.bf16.mxu0 0
        %7464 = vmatpush2.bf16.msra.mxu0 0
        %7465 = vmatprep.mubr.bf16.mxu0 0
        %7466 = vmatmul.mubr.bf16.gmra.mxu0 %v7428
        %v7467 = vpop.f32.mrf.mxu0
        %v7468 = vadd.f32 0.0, %v7467
        %v7469 = vpop.f32.mrf.mxu0
        %v7470 = vpop.f32.mrf.mxu0
        %v7471 = vpop.f32.mrf.mxu0
        %7472 = vdwg.mxu0
        %7473 = vrot.lane.b32.xlu0 %v6965, 44
        %v7474 = vpop.permute.xlu0 %7473
        %v7476 = vsel %vm1444, %v7183, 0
        %v7479 = vsel %vm1448, %v7474, 0
        %7481 = vmatprep.subr.bf16.mxu0 0
        %7482 = vmatpush1.bf16.msra.mxu0 0
        %7483 = vmatprep.subr.bf16.mxu0 0
        %7484 = vmatpush1.bf16.msra.mxu0 0
        %7485 = vmatprep.subr.bf16.mxu0 0
        %7486 = vmatpush1.bf16.msra.mxu0 0
        %7487 = vmatprep.subr.bf16.mxu0 0
        %7488 = vmatpush1.bf16.msra.mxu0 0
        %7489 = vmatprep.subr.bf16.mxu0 0
        %7490 = vmatpush1.bf16.msra.mxu0 0
        %7491 = vmatprep.subr.bf16.mxu0 0
        %7492 = vmatpush1.bf16.msra.mxu0 0
        %7493 = vmatprep.subr.bf16.mxu0 0
        %7494 = vmatpush1.bf16.msra.mxu0 0
        %7495 = vmatprep.subr.bf16.mxu0 0
        %7496 = vmatpush1.bf16.msra.mxu0 %v7479
        %7497 = vmatprep.subr.bf16.mxu0 0
        %7498 = vmatpush2.bf16.msra.mxu0 0
        %7499 = vmatprep.subr.bf16.mxu0 0
        %7500 = vmatpush2.bf16.msra.mxu0 0
        %7501 = vmatprep.subr.bf16.mxu0 0
        %7502 = vmatpush2.bf16.msra.mxu0 0
        %7503 = vmatprep.subr.bf16.mxu0 0
        %7504 = vmatpush2.bf16.msra.mxu0 0
        %7505 = vmatprep.subr.bf16.mxu0 0
        %7506 = vmatpush2.bf16.msra.mxu0 0
        %7507 = vmatprep.subr.bf16.mxu0 0
        %7508 = vmatpush2.bf16.msra.mxu0 0
        %7509 = vmatprep.subr.bf16.mxu0 0
        %7510 = vmatpush2.bf16.msra.mxu0 0
        %7511 = vmatprep.subr.bf16.mxu0 0
        %7512 = vmatpush2.bf16.msra.mxu0 0
        %7513 = vmatprep.mubr.bf16.mxu0 0
        %7514 = vmatmul.mubr.bf16.gmra.mxu0 %v7476
        %v7515 = vpop.f32.mrf.mxu0
        %v7516 = vadd.f32 0.0, %v7515
        %v7517 = vpop.f32.mrf.mxu0
        %v7518 = vpop.f32.mrf.mxu0
        %v7519 = vpop.f32.mrf.mxu0
        %7520 = vdwg.mxu0
        %7521 = vrot.lane.b32.xlu0 %v7030, 44
        %v7522 = vpop.permute.xlu0 %7521
        %v7524 = vsel %vm1444, %v7184, 0
        %v7527 = vsel %vm1448, %v7522, 0
        %7529 = vmatprep.subr.bf16.mxu0 0
        %7530 = vmatpush1.bf16.msra.mxu0 0
        %7531 = vmatprep.subr.bf16.mxu0 0
        %7532 = vmatpush1.bf16.msra.mxu0 0
        %7533 = vmatprep.subr.bf16.mxu0 0
        %7534 = vmatpush1.bf16.msra.mxu0 0
        %7535 = vmatprep.subr.bf16.mxu0 0
        %7536 = vmatpush1.bf16.msra.mxu0 0
        %7537 = vmatprep.subr.bf16.mxu0 0
        %7538 = vmatpush1.bf16.msra.mxu0 0
        %7539 = vmatprep.subr.bf16.mxu0 0
        %7540 = vmatpush1.bf16.msra.mxu0 0
        %7541 = vmatprep.subr.bf16.mxu0 0
        %7542 = vmatpush1.bf16.msra.mxu0 0
        %7543 = vmatprep.subr.bf16.mxu0 0
        %7544 = vmatpush1.bf16.msra.mxu0 %v7527
        %7545 = vmatprep.subr.bf16.mxu0 0
        %7546 = vmatpush2.bf16.msra.mxu0 0
        %7547 = vmatprep.subr.bf16.mxu0 0
        %7548 = vmatpush2.bf16.msra.mxu0 0
        %7549 = vmatprep.subr.bf16.mxu0 0
        %7550 = vmatpush2.bf16.msra.mxu0 0
        %7551 = vmatprep.subr.bf16.mxu0 0
        %7552 = vmatpush2.bf16.msra.mxu0 0
        %7553 = vmatprep.subr.bf16.mxu0 0
        %7554 = vmatpush2.bf16.msra.mxu0 0
        %7555 = vmatprep.subr.bf16.mxu0 0
        %7556 = vmatpush2.bf16.msra.mxu0 0
        %7557 = vmatprep.subr.bf16.mxu0 0
        %7558 = vmatpush2.bf16.msra.mxu0 0
        %7559 = vmatprep.subr.bf16.mxu0 0
        %7560 = vmatpush2.bf16.msra.mxu0 0
        %7561 = vmatprep.mubr.bf16.mxu0 0
        %7562 = vmatmul.mubr.bf16.gmra.mxu0 %v7524
        %v7563 = vpop.f32.mrf.mxu0
        %v7564 = vadd.f32 0.0, %v7563
        %v7565 = vpop.f32.mrf.mxu0
        %v7566 = vpop.f32.mrf.mxu0
        %v7567 = vpop.f32.mrf.mxu0
        %7568 = vdwg.mxu0
        %v7569 = vpack.c.bf16 %v7228, %v7228
        %v7570 = vpack.c.bf16 %v7276, %v7276
        %v7571 = vpack.c.bf16 %v7324, %v7324
        %v7572 = vpack.c.bf16 %v7372, %v7372
        %v7573 = vpack.c.bf16 %v7420, %v7420
        %v7574 = vpack.c.bf16 %v7468, %v7468
        %v7575 = vpack.c.bf16 %v7516, %v7516
        %v7576 = vpack.c.bf16 %v7564, %v7564
        %v7586 = vunpack.c.l.s4 1966171168
        %v7587 = vunpack.c.0.s8 %v7586
        %v7588 = vlaneseq
        %v7589 = vshrl.u32 %v7588, 7
        %v7590 = vsub.s32 %v7587, %v7589
        %v7591 = vrot.slane %v7569, %v7590
        %v7593 = vunpack.c.l.s4 1966171168
        %v7594 = vunpack.c.0.s8 %v7593
        %v7595 = vlaneseq
        %v7596 = vshrl.u32 %v7595, 7
        %v7597 = vsub.s32 %v7594, %v7596
        %v7598 = vrot.slane %v7591, %v7597
        %v7600 = vunpack.c.l.s4 1966171168
        %v7601 = vunpack.c.0.s8 %v7600
        %v7602 = vlaneseq
        %v7603 = vshrl.u32 %v7602, 7
        %v7604 = vsub.s32 %v7601, %v7603
        %v7605 = vrot.slane %v7570, %v7604
        %v7607 = vunpack.c.l.s4 1966171168
        %v7608 = vunpack.c.0.s8 %v7607
        %v7609 = vlaneseq
        %v7610 = vshrl.u32 %v7609, 7
        %v7611 = vsub.s32 %v7608, %v7610
        %v7612 = vrot.slane %v7605, %v7611
        %v7614 = vunpack.c.l.s4 1966171168
        %v7615 = vunpack.c.0.s8 %v7614
        %v7616 = vlaneseq
        %v7617 = vshrl.u32 %v7616, 7
        %v7618 = vsub.s32 %v7615, %v7617
        %v7619 = vrot.slane %v7571, %v7618
        %v7621 = vunpack.c.l.s4 1966171168
        %v7622 = vunpack.c.0.s8 %v7621
        %v7623 = vlaneseq
        %v7624 = vshrl.u32 %v7623, 7
        %v7625 = vsub.s32 %v7622, %v7624
        %v7626 = vrot.slane %v7619, %v7625
        %v7628 = vunpack.c.l.s4 1966171168
        %v7629 = vunpack.c.0.s8 %v7628
        %v7630 = vlaneseq
        %v7631 = vshrl.u32 %v7630, 7
        %v7632 = vsub.s32 %v7629, %v7631
        %v7633 = vrot.slane %v7572, %v7632
        %v7635 = vunpack.c.l.s4 1966171168
        %v7636 = vunpack.c.0.s8 %v7635
        %v7637 = vlaneseq
        %v7638 = vshrl.u32 %v7637, 7
        %v7639 = vsub.s32 %v7636, %v7638
        %v7640 = vrot.slane %v7633, %v7639
        %v7642 = vunpack.c.l.s4 1966171168
        %v7643 = vunpack.c.0.s8 %v7642
        %v7644 = vlaneseq
        %v7645 = vshrl.u32 %v7644, 7
        %v7646 = vsub.s32 %v7643, %v7645
        %v7647 = vrot.slane %v7573, %v7646
        %v7649 = vunpack.c.l.s4 1966171168
        %v7650 = vunpack.c.0.s8 %v7649
        %v7651 = vlaneseq
        %v7652 = vshrl.u32 %v7651, 7
        %v7653 = vsub.s32 %v7650, %v7652
        %v7654 = vrot.slane %v7647, %v7653
        %v7656 = vunpack.c.l.s4 1966171168
        %v7657 = vunpack.c.0.s8 %v7656
        %v7658 = vlaneseq
        %v7659 = vshrl.u32 %v7658, 7
        %v7660 = vsub.s32 %v7657, %v7659
        %v7661 = vrot.slane %v7574, %v7660
        %v7663 = vunpack.c.l.s4 1966171168
        %v7664 = vunpack.c.0.s8 %v7663
        %v7665 = vlaneseq
        %v7666 = vshrl.u32 %v7665, 7
        %v7667 = vsub.s32 %v7664, %v7666
        %v7668 = vrot.slane %v7661, %v7667
        %v7670 = vunpack.c.l.s4 1966171168
        %v7671 = vunpack.c.0.s8 %v7670
        %v7672 = vlaneseq
        %v7673 = vshrl.u32 %v7672, 7
        %v7674 = vsub.s32 %v7671, %v7673
        %v7675 = vrot.slane %v7575, %v7674
        %v7677 = vunpack.c.l.s4 1966171168
        %v7678 = vunpack.c.0.s8 %v7677
        %v7679 = vlaneseq
        %v7680 = vshrl.u32 %v7679, 7
        %v7681 = vsub.s32 %v7678, %v7680
        %v7682 = vrot.slane %v7675, %v7681
        %v7684 = vunpack.c.l.s4 1966171168
        %v7685 = vunpack.c.0.s8 %v7684
        %v7686 = vlaneseq
        %v7687 = vshrl.u32 %v7686, 7
        %v7688 = vsub.s32 %v7685, %v7687
        %v7689 = vrot.slane %v7576, %v7688
        %v7691 = vunpack.c.l.s4 1966171168
        %v7692 = vunpack.c.0.s8 %v7691
        %v7693 = vlaneseq
        %v7694 = vshrl.u32 %v7693, 7
        %v7695 = vsub.s32 %v7692, %v7694
        %v7696 = vrot.slane %v7689, %v7695
        %7697 = vrot.lane.b32.xlu0 %v7598, 20
        %v7698 = vpop.permute.xlu0 %7697
        %7699 = vrot.lane.b32.xlu0 %v7612, 20
        %v7700 = vpop.permute.xlu0 %7699
        %7701 = vrot.lane.b32.xlu0 %v7626, 20
        %v7702 = vpop.permute.xlu0 %7701
        %7703 = vrot.lane.b32.xlu0 %v7640, 20
        %v7704 = vpop.permute.xlu0 %7703
        %7705 = vrot.lane.b32.xlu0 %v7654, 20
        %v7706 = vpop.permute.xlu0 %7705
        %7707 = vrot.lane.b32.xlu0 %v7668, 20
        %v7708 = vpop.permute.xlu0 %7707
        %7709 = vrot.lane.b32.xlu0 %v7682, 20
        %v7710 = vpop.permute.xlu0 %7709
        %7711 = vrot.lane.b32.xlu0 %v7696, 20
        %v7712 = vpop.permute.xlu0 %7711
        %vm7721 = vcmask 188576
        %7722 = vst.msk [vmem:[#allocation3] sm:$0x1] %vm7721, %v7698
        %7723 = vst.msk [vmem:[#allocation3 + $0x1] sm:$0x1] %vm7721, %v7700
        %7724 = vst.msk [vmem:[#allocation3 + $0x2] sm:$0x1] %vm7721, %v7702
        %7725 = vst.msk [vmem:[#allocation3 + $0x3] sm:$0x1] %vm7721, %v7704
        %7726 = vst.msk [vmem:[#allocation3 + $0x4] sm:$0x1] %vm7721, %v7706
        %7727 = vst.msk [vmem:[#allocation3 + $0x5] sm:$0x1] %vm7721, %v7708
        %7728 = vst.msk [vmem:[#allocation3 + $0x6] sm:$0x1] %vm7721, %v7710
        %7729 = vst.msk [vmem:[#allocation3 + $0x7] sm:$0x1] %vm7721, %v7712
        %v7730 = vld [vmem:[#allocation2] sm:$0x1]
        %v7731 = vld [vmem:[#allocation2 + $0x1] sm:$0x1]
        %v7732 = vld [vmem:[#allocation2 + $0x2] sm:$0x1]
        %v7733 = vld [vmem:[#allocation2 + $0x3] sm:$0x1]
        %v7734 = vld [vmem:[#allocation2 + $0x4] sm:$0x1]
        %v7735 = vld [vmem:[#allocation2 + $0x5] sm:$0x1]
        %v7736 = vld [vmem:[#allocation2 + $0x6] sm:$0x1]
        %v7737 = vld [vmem:[#allocation2 + $0x7] sm:$0x1]
        %v7740 = vunpack.c.l.s4 1966171168
        %v7741 = vunpack.c.0.s8 %v7740
        %v7742 = vlaneseq
        %v7743 = vshrl.u32 %v7742, 7
        %v7744 = vsub.s32 %v7741, %v7743
        %v7745 = vrot.slane %v7730, %v7744
        %v7747 = vunpack.c.l.s4 1966171168
        %v7748 = vunpack.c.0.s8 %v7747
        %v7749 = vlaneseq
        %v7750 = vshrl.u32 %v7749, 7
        %v7751 = vsub.s32 %v7748, %v7750
        %v7752 = vrot.slane %v7745, %v7751
        %7753 = vrot.lane.b32.xlu0 %v7752, 104
        %v7754 = vpop.permute.xlu0 %7753
        %7755 = vrot.lane.b32.xlu0 %v7752, 72
        %v7756 = vpop.permute.xlu0 %7755
        %v7758 = vsel %vm849, %v7754, 0
        %v7761 = vsel %vm849, %v7756, 0
        %7763 = vmatprep.subr.bf16.mxu0 0
        %7764 = vmatpush1.bf16.xpose.msra.mxu0 0
        %7765 = vmatprep.subr.bf16.mxu0 0
        %7766 = vmatpush1.bf16.xpose.msra.mxu0 0
        %7767 = vmatprep.subr.bf16.mxu0 0
        %7768 = vmatpush1.bf16.xpose.msra.mxu0 0
        %7769 = vmatprep.subr.bf16.mxu0 0
        %7770 = vmatpush1.bf16.xpose.msra.mxu0 0
        %7771 = vmatprep.subr.bf16.mxu0 0
        %7772 = vmatpush1.bf16.xpose.msra.mxu0 0
        %7773 = vmatprep.subr.bf16.mxu0 0
        %7774 = vmatpush1.bf16.xpose.msra.mxu0 0
        %7775 = vmatprep.subr.bf16.mxu0 0
        %7776 = vmatpush1.bf16.xpose.msra.mxu0 0
        %7777 = vmatprep.subr.bf16.mxu0 0
        %7778 = vmatpush1.bf16.xpose.msra.mxu0 %v7761
        %7779 = vmatprep.subr.bf16.mxu0 0
        %7780 = vmatpush2.bf16.xpose.msra.mxu0 0
        %7781 = vmatprep.subr.bf16.mxu0 0
        %7782 = vmatpush2.bf16.xpose.msra.mxu0 0
        %7783 = vmatprep.subr.bf16.mxu0 0
        %7784 = vmatpush2.bf16.xpose.msra.mxu0 0
        %7785 = vmatprep.subr.bf16.mxu0 0
        %7786 = vmatpush2.bf16.xpose.msra.mxu0 0
        %7787 = vmatprep.subr.bf16.mxu0 0
        %7788 = vmatpush2.bf16.xpose.msra.mxu0 0
        %7789 = vmatprep.subr.bf16.mxu0 0
        %7790 = vmatpush2.bf16.xpose.msra.mxu0 0
        %7791 = vmatprep.subr.bf16.mxu0 0
        %7792 = vmatpush2.bf16.xpose.msra.mxu0 0
        %7793 = vmatprep.subr.bf16.mxu0 0
        %7794 = vmatpush2.bf16.xpose.msra.mxu0 0
        %7795 = vmatprep.mubr.bf16.mxu0 0
        %7796 = vmatmul.mubr.bf16.gmra.mxu0 %v7758
        %v7797 = vpop.f32.mrf.mxu0
        %v7798 = vadd.f32 0.0, %v7797
        %v7799 = vpop.f32.mrf.mxu0
        %v7800 = vpop.f32.mrf.mxu0
        %v7801 = vpop.f32.mrf.mxu0
        %7802 = vdwg.mxu0
        %v7805 = vunpack.c.l.s4 1966171168
        %v7806 = vunpack.c.0.s8 %v7805
        %v7807 = vlaneseq
        %v7808 = vshrl.u32 %v7807, 7
        %v7809 = vsub.s32 %v7806, %v7808
        %v7810 = vrot.slane %v7731, %v7809
        %v7812 = vunpack.c.l.s4 1966171168
        %v7813 = vunpack.c.0.s8 %v7812
        %v7814 = vlaneseq
        %v7815 = vshrl.u32 %v7814, 7
        %v7816 = vsub.s32 %v7813, %v7815
        %v7817 = vrot.slane %v7810, %v7816
        %7818 = vrot.lane.b32.xlu0 %v7817, 104
        %v7819 = vpop.permute.xlu0 %7818
        %7820 = vrot.lane.b32.xlu0 %v7817, 72
        %v7821 = vpop.permute.xlu0 %7820
        %v7823 = vsel %vm849, %v7819, 0
        %v7826 = vsel %vm849, %v7821, 0
        %7828 = vmatprep.subr.bf16.mxu0 0
        %7829 = vmatpush1.bf16.xpose.msra.mxu0 0
        %7830 = vmatprep.subr.bf16.mxu0 0
        %7831 = vmatpush1.bf16.xpose.msra.mxu0 0
        %7832 = vmatprep.subr.bf16.mxu0 0
        %7833 = vmatpush1.bf16.xpose.msra.mxu0 0
        %7834 = vmatprep.subr.bf16.mxu0 0
        %7835 = vmatpush1.bf16.xpose.msra.mxu0 0
        %7836 = vmatprep.subr.bf16.mxu0 0
        %7837 = vmatpush1.bf16.xpose.msra.mxu0 0
        %7838 = vmatprep.subr.bf16.mxu0 0
        %7839 = vmatpush1.bf16.xpose.msra.mxu0 0
        %7840 = vmatprep.subr.bf16.mxu0 0
        %7841 = vmatpush1.bf16.xpose.msra.mxu0 0
        %7842 = vmatprep.subr.bf16.mxu0 0
        %7843 = vmatpush1.bf16.xpose.msra.mxu0 %v7826
        %7844 = vmatprep.subr.bf16.mxu0 0
        %7845 = vmatpush2.bf16.xpose.msra.mxu0 0
        %7846 = vmatprep.subr.bf16.mxu0 0
        %7847 = vmatpush2.bf16.xpose.msra.mxu0 0
        %7848 = vmatprep.subr.bf16.mxu0 0
        %7849 = vmatpush2.bf16.xpose.msra.mxu0 0
        %7850 = vmatprep.subr.bf16.mxu0 0
        %7851 = vmatpush2.bf16.xpose.msra.mxu0 0
        %7852 = vmatprep.subr.bf16.mxu0 0
        %7853 = vmatpush2.bf16.xpose.msra.mxu0 0
        %7854 = vmatprep.subr.bf16.mxu0 0
        %7855 = vmatpush2.bf16.xpose.msra.mxu0 0
        %7856 = vmatprep.subr.bf16.mxu0 0
        %7857 = vmatpush2.bf16.xpose.msra.mxu0 0
        %7858 = vmatprep.subr.bf16.mxu0 0
        %7859 = vmatpush2.bf16.xpose.msra.mxu0 0
        %7860 = vmatprep.mubr.bf16.mxu0 0
        %7861 = vmatmul.mubr.bf16.gmra.mxu0 %v7823
        %v7862 = vpop.f32.mrf.mxu0
        %v7863 = vadd.f32 0.0, %v7862
        %v7864 = vpop.f32.mrf.mxu0
        %v7865 = vpop.f32.mrf.mxu0
        %v7866 = vpop.f32.mrf.mxu0
        %7867 = vdwg.mxu0
        %v7870 = vunpack.c.l.s4 1966171168
        %v7871 = vunpack.c.0.s8 %v7870
        %v7872 = vlaneseq
        %v7873 = vshrl.u32 %v7872, 7
        %v7874 = vsub.s32 %v7871, %v7873
        %v7875 = vrot.slane %v7732, %v7874
        %v7877 = vunpack.c.l.s4 1966171168
        %v7878 = vunpack.c.0.s8 %v7877
        %v7879 = vlaneseq
        %v7880 = vshrl.u32 %v7879, 7
        %v7881 = vsub.s32 %v7878, %v7880
        %v7882 = vrot.slane %v7875, %v7881
        %7883 = vrot.lane.b32.xlu0 %v7882, 104
        %v7884 = vpop.permute.xlu0 %7883
        %7885 = vrot.lane.b32.xlu0 %v7882, 72
        %v7886 = vpop.permute.xlu0 %7885
        %v7888 = vsel %vm849, %v7884, 0
        %v7891 = vsel %vm849, %v7886, 0
        %7893 = vmatprep.subr.bf16.mxu0 0
        %7894 = vmatpush1.bf16.xpose.msra.mxu0 0
        %7895 = vmatprep.subr.bf16.mxu0 0
        %7896 = vmatpush1.bf16.xpose.msra.mxu0 0
        %7897 = vmatprep.subr.bf16.mxu0 0
        %7898 = vmatpush1.bf16.xpose.msra.mxu0 0
        %7899 = vmatprep.subr.bf16.mxu0 0
        %7900 = vmatpush1.bf16.xpose.msra.mxu0 0
        %7901 = vmatprep.subr.bf16.mxu0 0
        %7902 = vmatpush1.bf16.xpose.msra.mxu0 0
        %7903 = vmatprep.subr.bf16.mxu0 0
        %7904 = vmatpush1.bf16.xpose.msra.mxu0 0
        %7905 = vmatprep.subr.bf16.mxu0 0
        %7906 = vmatpush1.bf16.xpose.msra.mxu0 0
        %7907 = vmatprep.subr.bf16.mxu0 0
        %7908 = vmatpush1.bf16.xpose.msra.mxu0 %v7891
        %7909 = vmatprep.subr.bf16.mxu0 0
        %7910 = vmatpush2.bf16.xpose.msra.mxu0 0
        %7911 = vmatprep.subr.bf16.mxu0 0
        %7912 = vmatpush2.bf16.xpose.msra.mxu0 0
        %7913 = vmatprep.subr.bf16.mxu0 0
        %7914 = vmatpush2.bf16.xpose.msra.mxu0 0
        %7915 = vmatprep.subr.bf16.mxu0 0
        %7916 = vmatpush2.bf16.xpose.msra.mxu0 0
        %7917 = vmatprep.subr.bf16.mxu0 0
        %7918 = vmatpush2.bf16.xpose.msra.mxu0 0
        %7919 = vmatprep.subr.bf16.mxu0 0
        %7920 = vmatpush2.bf16.xpose.msra.mxu0 0
        %7921 = vmatprep.subr.bf16.mxu0 0
        %7922 = vmatpush2.bf16.xpose.msra.mxu0 0
        %7923 = vmatprep.subr.bf16.mxu0 0
        %7924 = vmatpush2.bf16.xpose.msra.mxu0 0
        %7925 = vmatprep.mubr.bf16.mxu0 0
        %7926 = vmatmul.mubr.bf16.gmra.mxu0 %v7888
        %v7927 = vpop.f32.mrf.mxu0
        %v7928 = vadd.f32 0.0, %v7927
        %v7929 = vpop.f32.mrf.mxu0
        %v7930 = vpop.f32.mrf.mxu0
        %v7931 = vpop.f32.mrf.mxu0
        %7932 = vdwg.mxu0
        %v7935 = vunpack.c.l.s4 1966171168
        %v7936 = vunpack.c.0.s8 %v7935
        %v7937 = vlaneseq
        %v7938 = vshrl.u32 %v7937, 7
        %v7939 = vsub.s32 %v7936, %v7938
        %v7940 = vrot.slane %v7733, %v7939
        %v7942 = vunpack.c.l.s4 1966171168
        %v7943 = vunpack.c.0.s8 %v7942
        %v7944 = vlaneseq
        %v7945 = vshrl.u32 %v7944, 7
        %v7946 = vsub.s32 %v7943, %v7945
        %v7947 = vrot.slane %v7940, %v7946
        %7948 = vrot.lane.b32.xlu0 %v7947, 104
        %v7949 = vpop.permute.xlu0 %7948
        %7950 = vrot.lane.b32.xlu0 %v7947, 72
        %v7951 = vpop.permute.xlu0 %7950
        %v7953 = vsel %vm849, %v7949, 0
        %v7956 = vsel %vm849, %v7951, 0
        %7958 = vmatprep.subr.bf16.mxu0 0
        %7959 = vmatpush1.bf16.xpose.msra.mxu0 0
        %7960 = vmatprep.subr.bf16.mxu0 0
        %7961 = vmatpush1.bf16.xpose.msra.mxu0 0
        %7962 = vmatprep.subr.bf16.mxu0 0
        %7963 = vmatpush1.bf16.xpose.msra.mxu0 0
        %7964 = vmatprep.subr.bf16.mxu0 0
        %7965 = vmatpush1.bf16.xpose.msra.mxu0 0
        %7966 = vmatprep.subr.bf16.mxu0 0
        %7967 = vmatpush1.bf16.xpose.msra.mxu0 0
        %7968 = vmatprep.subr.bf16.mxu0 0
        %7969 = vmatpush1.bf16.xpose.msra.mxu0 0
        %7970 = vmatprep.subr.bf16.mxu0 0
        %7971 = vmatpush1.bf16.xpose.msra.mxu0 0
        %7972 = vmatprep.subr.bf16.mxu0 0
        %7973 = vmatpush1.bf16.xpose.msra.mxu0 %v7956
        %7974 = vmatprep.subr.bf16.mxu0 0
        %7975 = vmatpush2.bf16.xpose.msra.mxu0 0
        %7976 = vmatprep.subr.bf16.mxu0 0
        %7977 = vmatpush2.bf16.xpose.msra.mxu0 0
        %7978 = vmatprep.subr.bf16.mxu0 0
        %7979 = vmatpush2.bf16.xpose.msra.mxu0 0
        %7980 = vmatprep.subr.bf16.mxu0 0
        %7981 = vmatpush2.bf16.xpose.msra.mxu0 0
        %7982 = vmatprep.subr.bf16.mxu0 0
        %7983 = vmatpush2.bf16.xpose.msra.mxu0 0
        %7984 = vmatprep.subr.bf16.mxu0 0
        %7985 = vmatpush2.bf16.xpose.msra.mxu0 0
        %7986 = vmatprep.subr.bf16.mxu0 0
        %7987 = vmatpush2.bf16.xpose.msra.mxu0 0
        %7988 = vmatprep.subr.bf16.mxu0 0
        %7989 = vmatpush2.bf16.xpose.msra.mxu0 0
        %7990 = vmatprep.mubr.bf16.mxu0 0
        %7991 = vmatmul.mubr.bf16.gmra.mxu0 %v7953
        %v7992 = vpop.f32.mrf.mxu0
        %v7993 = vadd.f32 0.0, %v7992
        %v7994 = vpop.f32.mrf.mxu0
        %v7995 = vpop.f32.mrf.mxu0
        %v7996 = vpop.f32.mrf.mxu0
        %7997 = vdwg.mxu0
        %v8000 = vunpack.c.l.s4 1966171168
        %v8001 = vunpack.c.0.s8 %v8000
        %v8002 = vlaneseq
        %v8003 = vshrl.u32 %v8002, 7
        %v8004 = vsub.s32 %v8001, %v8003
        %v8005 = vrot.slane %v7734, %v8004
        %v8007 = vunpack.c.l.s4 1966171168
        %v8008 = vunpack.c.0.s8 %v8007
        %v8009 = vlaneseq
        %v8010 = vshrl.u32 %v8009, 7
        %v8011 = vsub.s32 %v8008, %v8010
        %v8012 = vrot.slane %v8005, %v8011
        %8013 = vrot.lane.b32.xlu0 %v8012, 104
        %v8014 = vpop.permute.xlu0 %8013
        %8015 = vrot.lane.b32.xlu0 %v8012, 72
        %v8016 = vpop.permute.xlu0 %8015
        %v8018 = vsel %vm849, %v8014, 0
        %v8021 = vsel %vm849, %v8016, 0
        %8023 = vmatprep.subr.bf16.mxu0 0
        %8024 = vmatpush1.bf16.xpose.msra.mxu0 0
        %8025 = vmatprep.subr.bf16.mxu0 0
        %8026 = vmatpush1.bf16.xpose.msra.mxu0 0
        %8027 = vmatprep.subr.bf16.mxu0 0
        %8028 = vmatpush1.bf16.xpose.msra.mxu0 0
        %8029 = vmatprep.subr.bf16.mxu0 0
        %8030 = vmatpush1.bf16.xpose.msra.mxu0 0
        %8031 = vmatprep.subr.bf16.mxu0 0
        %8032 = vmatpush1.bf16.xpose.msra.mxu0 0
        %8033 = vmatprep.subr.bf16.mxu0 0
        %8034 = vmatpush1.bf16.xpose.msra.mxu0 0
        %8035 = vmatprep.subr.bf16.mxu0 0
        %8036 = vmatpush1.bf16.xpose.msra.mxu0 0
        %8037 = vmatprep.subr.bf16.mxu0 0
        %8038 = vmatpush1.bf16.xpose.msra.mxu0 %v8021
        %8039 = vmatprep.subr.bf16.mxu0 0
        %8040 = vmatpush2.bf16.xpose.msra.mxu0 0
        %8041 = vmatprep.subr.bf16.mxu0 0
        %8042 = vmatpush2.bf16.xpose.msra.mxu0 0
        %8043 = vmatprep.subr.bf16.mxu0 0
        %8044 = vmatpush2.bf16.xpose.msra.mxu0 0
        %8045 = vmatprep.subr.bf16.mxu0 0
        %8046 = vmatpush2.bf16.xpose.msra.mxu0 0
        %8047 = vmatprep.subr.bf16.mxu0 0
        %8048 = vmatpush2.bf16.xpose.msra.mxu0 0
        %8049 = vmatprep.subr.bf16.mxu0 0
        %8050 = vmatpush2.bf16.xpose.msra.mxu0 0
        %8051 = vmatprep.subr.bf16.mxu0 0
        %8052 = vmatpush2.bf16.xpose.msra.mxu0 0
        %8053 = vmatprep.subr.bf16.mxu0 0
        %8054 = vmatpush2.bf16.xpose.msra.mxu0 0
        %8055 = vmatprep.mubr.bf16.mxu0 0
        %8056 = vmatmul.mubr.bf16.gmra.mxu0 %v8018
        %v8057 = vpop.f32.mrf.mxu0
        %v8058 = vadd.f32 0.0, %v8057
        %v8059 = vpop.f32.mrf.mxu0
        %v8060 = vpop.f32.mrf.mxu0
        %v8061 = vpop.f32.mrf.mxu0
        %8062 = vdwg.mxu0
        %v8065 = vunpack.c.l.s4 1966171168
        %v8066 = vunpack.c.0.s8 %v8065
        %v8067 = vlaneseq
        %v8068 = vshrl.u32 %v8067, 7
        %v8069 = vsub.s32 %v8066, %v8068
        %v8070 = vrot.slane %v7735, %v8069
        %v8072 = vunpack.c.l.s4 1966171168
        %v8073 = vunpack.c.0.s8 %v8072
        %v8074 = vlaneseq
        %v8075 = vshrl.u32 %v8074, 7
        %v8076 = vsub.s32 %v8073, %v8075
        %v8077 = vrot.slane %v8070, %v8076
        %8078 = vrot.lane.b32.xlu0 %v8077, 104
        %v8079 = vpop.permute.xlu0 %8078
        %8080 = vrot.lane.b32.xlu0 %v8077, 72
        %v8081 = vpop.permute.xlu0 %8080
        %v8083 = vsel %vm849, %v8079, 0
        %v8086 = vsel %vm849, %v8081, 0
        %8088 = vmatprep.subr.bf16.mxu0 0
        %8089 = vmatpush1.bf16.xpose.msra.mxu0 0
        %8090 = vmatprep.subr.bf16.mxu0 0
        %8091 = vmatpush1.bf16.xpose.msra.mxu0 0
        %8092 = vmatprep.subr.bf16.mxu0 0
        %8093 = vmatpush1.bf16.xpose.msra.mxu0 0
        %8094 = vmatprep.subr.bf16.mxu0 0
        %8095 = vmatpush1.bf16.xpose.msra.mxu0 0
        %8096 = vmatprep.subr.bf16.mxu0 0
        %8097 = vmatpush1.bf16.xpose.msra.mxu0 0
        %8098 = vmatprep.subr.bf16.mxu0 0
        %8099 = vmatpush1.bf16.xpose.msra.mxu0 0
        %8100 = vmatprep.subr.bf16.mxu0 0
        %8101 = vmatpush1.bf16.xpose.msra.mxu0 0
        %8102 = vmatprep.subr.bf16.mxu0 0
        %8103 = vmatpush1.bf16.xpose.msra.mxu0 %v8086
        %8104 = vmatprep.subr.bf16.mxu0 0
        %8105 = vmatpush2.bf16.xpose.msra.mxu0 0
        %8106 = vmatprep.subr.bf16.mxu0 0
        %8107 = vmatpush2.bf16.xpose.msra.mxu0 0
        %8108 = vmatprep.subr.bf16.mxu0 0
        %8109 = vmatpush2.bf16.xpose.msra.mxu0 0
        %8110 = vmatprep.subr.bf16.mxu0 0
        %8111 = vmatpush2.bf16.xpose.msra.mxu0 0
        %8112 = vmatprep.subr.bf16.mxu0 0
        %8113 = vmatpush2.bf16.xpose.msra.mxu0 0
        %8114 = vmatprep.subr.bf16.mxu0 0
        %8115 = vmatpush2.bf16.xpose.msra.mxu0 0
        %8116 = vmatprep.subr.bf16.mxu0 0
        %8117 = vmatpush2.bf16.xpose.msra.mxu0 0
        %8118 = vmatprep.subr.bf16.mxu0 0
        %8119 = vmatpush2.bf16.xpose.msra.mxu0 0
        %8120 = vmatprep.mubr.bf16.mxu0 0
        %8121 = vmatmul.mubr.bf16.gmra.mxu0 %v8083
        %v8122 = vpop.f32.mrf.mxu0
        %v8123 = vadd.f32 0.0, %v8122
        %v8124 = vpop.f32.mrf.mxu0
        %v8125 = vpop.f32.mrf.mxu0
        %v8126 = vpop.f32.mrf.mxu0
        %8127 = vdwg.mxu0
        %v8130 = vunpack.c.l.s4 1966171168
        %v8131 = vunpack.c.0.s8 %v8130
        %v8132 = vlaneseq
        %v8133 = vshrl.u32 %v8132, 7
        %v8134 = vsub.s32 %v8131, %v8133
        %v8135 = vrot.slane %v7736, %v8134
        %v8137 = vunpack.c.l.s4 1966171168
        %v8138 = vunpack.c.0.s8 %v8137
        %v8139 = vlaneseq
        %v8140 = vshrl.u32 %v8139, 7
        %v8141 = vsub.s32 %v8138, %v8140
        %v8142 = vrot.slane %v8135, %v8141
        %8143 = vrot.lane.b32.xlu0 %v8142, 104
        %v8144 = vpop.permute.xlu0 %8143
        %8145 = vrot.lane.b32.xlu0 %v8142, 72
        %v8146 = vpop.permute.xlu0 %8145
        %v8148 = vsel %vm849, %v8144, 0
        %v8151 = vsel %vm849, %v8146, 0
        %8153 = vmatprep.subr.bf16.mxu0 0
        %8154 = vmatpush1.bf16.xpose.msra.mxu0 0
        %8155 = vmatprep.subr.bf16.mxu0 0
        %8156 = vmatpush1.bf16.xpose.msra.mxu0 0
        %8157 = vmatprep.subr.bf16.mxu0 0
        %8158 = vmatpush1.bf16.xpose.msra.mxu0 0
        %8159 = vmatprep.subr.bf16.mxu0 0
        %8160 = vmatpush1.bf16.xpose.msra.mxu0 0
        %8161 = vmatprep.subr.bf16.mxu0 0
        %8162 = vmatpush1.bf16.xpose.msra.mxu0 0
        %8163 = vmatprep.subr.bf16.mxu0 0
        %8164 = vmatpush1.bf16.xpose.msra.mxu0 0
        %8165 = vmatprep.subr.bf16.mxu0 0
        %8166 = vmatpush1.bf16.xpose.msra.mxu0 0
        %8167 = vmatprep.subr.bf16.mxu0 0
        %8168 = vmatpush1.bf16.xpose.msra.mxu0 %v8151
        %8169 = vmatprep.subr.bf16.mxu0 0
        %8170 = vmatpush2.bf16.xpose.msra.mxu0 0
        %8171 = vmatprep.subr.bf16.mxu0 0
        %8172 = vmatpush2.bf16.xpose.msra.mxu0 0
        %8173 = vmatprep.subr.bf16.mxu0 0
        %8174 = vmatpush2.bf16.xpose.msra.mxu0 0
        %8175 = vmatprep.subr.bf16.mxu0 0
        %8176 = vmatpush2.bf16.xpose.msra.mxu0 0
        %8177 = vmatprep.subr.bf16.mxu0 0
        %8178 = vmatpush2.bf16.xpose.msra.mxu0 0
        %8179 = vmatprep.subr.bf16.mxu0 0
        %8180 = vmatpush2.bf16.xpose.msra.mxu0 0
        %8181 = vmatprep.subr.bf16.mxu0 0
        %8182 = vmatpush2.bf16.xpose.msra.mxu0 0
        %8183 = vmatprep.subr.bf16.mxu0 0
        %8184 = vmatpush2.bf16.xpose.msra.mxu0 0
        %8185 = vmatprep.mubr.bf16.mxu0 0
        %8186 = vmatmul.mubr.bf16.gmra.mxu0 %v8148
        %v8187 = vpop.f32.mrf.mxu0
        %v8188 = vadd.f32 0.0, %v8187
        %v8189 = vpop.f32.mrf.mxu0
        %v8190 = vpop.f32.mrf.mxu0
        %v8191 = vpop.f32.mrf.mxu0
        %8192 = vdwg.mxu0
        %v8195 = vunpack.c.l.s4 1966171168
        %v8196 = vunpack.c.0.s8 %v8195
        %v8197 = vlaneseq
        %v8198 = vshrl.u32 %v8197, 7
        %v8199 = vsub.s32 %v8196, %v8198
        %v8200 = vrot.slane %v7737, %v8199
        %v8202 = vunpack.c.l.s4 1966171168
        %v8203 = vunpack.c.0.s8 %v8202
        %v8204 = vlaneseq
        %v8205 = vshrl.u32 %v8204, 7
        %v8206 = vsub.s32 %v8203, %v8205
        %v8207 = vrot.slane %v8200, %v8206
        %8208 = vrot.lane.b32.xlu0 %v8207, 104
        %v8209 = vpop.permute.xlu0 %8208
        %8210 = vrot.lane.b32.xlu0 %v8207, 72
        %v8211 = vpop.permute.xlu0 %8210
        %v8213 = vsel %vm849, %v8209, 0
        %v8216 = vsel %vm849, %v8211, 0
        %8218 = vmatprep.subr.bf16.mxu0 0
        %8219 = vmatpush1.bf16.xpose.msra.mxu0 0
        %8220 = vmatprep.subr.bf16.mxu0 0
        %8221 = vmatpush1.bf16.xpose.msra.mxu0 0
        %8222 = vmatprep.subr.bf16.mxu0 0
        %8223 = vmatpush1.bf16.xpose.msra.mxu0 0
        %8224 = vmatprep.subr.bf16.mxu0 0
        %8225 = vmatpush1.bf16.xpose.msra.mxu0 0
        %8226 = vmatprep.subr.bf16.mxu0 0
        %8227 = vmatpush1.bf16.xpose.msra.mxu0 0
        %8228 = vmatprep.subr.bf16.mxu0 0
        %8229 = vmatpush1.bf16.xpose.msra.mxu0 0
        %8230 = vmatprep.subr.bf16.mxu0 0
        %8231 = vmatpush1.bf16.xpose.msra.mxu0 0
        %8232 = vmatprep.subr.bf16.mxu0 0
        %8233 = vmatpush1.bf16.xpose.msra.mxu0 %v8216
        %8234 = vmatprep.subr.bf16.mxu0 0
        %8235 = vmatpush2.bf16.xpose.msra.mxu0 0
        %8236 = vmatprep.subr.bf16.mxu0 0
        %8237 = vmatpush2.bf16.xpose.msra.mxu0 0
        %8238 = vmatprep.subr.bf16.mxu0 0
        %8239 = vmatpush2.bf16.xpose.msra.mxu0 0
        %8240 = vmatprep.subr.bf16.mxu0 0
        %8241 = vmatpush2.bf16.xpose.msra.mxu0 0
        %8242 = vmatprep.subr.bf16.mxu0 0
        %8243 = vmatpush2.bf16.xpose.msra.mxu0 0
        %8244 = vmatprep.subr.bf16.mxu0 0
        %8245 = vmatpush2.bf16.xpose.msra.mxu0 0
        %8246 = vmatprep.subr.bf16.mxu0 0
        %8247 = vmatpush2.bf16.xpose.msra.mxu0 0
        %8248 = vmatprep.subr.bf16.mxu0 0
        %8249 = vmatpush2.bf16.xpose.msra.mxu0 0
        %8250 = vmatprep.mubr.bf16.mxu0 0
        %8251 = vmatmul.mubr.bf16.gmra.mxu0 %v8213
        %v8252 = vpop.f32.mrf.mxu0
        %v8253 = vadd.f32 0.0, %v8252
        %v8254 = vpop.f32.mrf.mxu0
        %v8255 = vpop.f32.mrf.mxu0
        %v8256 = vpop.f32.mrf.mxu0
        %8257 = vdwg.mxu0
        %v8258 = vmul.f32 %v7798, 0.5
        %v8259 = vmul.f32 %v7863, 0.5
        %v8260 = vmul.f32 %v7928, 0.5
        %v8261 = vmul.f32 %v7993, 0.5
        %v8262 = vmul.f32 %v8058, 0.5
        %v8263 = vmul.f32 %v8123, 0.5
        %v8264 = vmul.f32 %v8188, 0.5
        %v8265 = vmul.f32 %v8253, 0.5
        %v8266 = vsel %vm1345, %v8258, -inf
        %8267 = vmax.xlane.f32.xlu0 %v8266
        %v8268 = vpop.xlane.xlu0 %8267
        %v8269 = vsel %vm1345, %v8259, -inf
        %8270 = vmax.xlane.f32.xlu0 %v8269
        %v8271 = vpop.xlane.xlu0 %8270
        %v8272 = vsel %vm1345, %v8260, -inf
        %8273 = vmax.xlane.f32.xlu0 %v8272
        %v8274 = vpop.xlane.xlu0 %8273
        %v8275 = vsel %vm1345, %v8261, -inf
        %8276 = vmax.xlane.f32.xlu0 %v8275
        %v8277 = vpop.xlane.xlu0 %8276
        %v8278 = vsel %vm1345, %v8262, -inf
        %8279 = vmax.xlane.f32.xlu0 %v8278
        %v8280 = vpop.xlane.xlu0 %8279
        %v8281 = vsel %vm1345, %v8263, -inf
        %8282 = vmax.xlane.f32.xlu0 %v8281
        %v8283 = vpop.xlane.xlu0 %8282
        %v8284 = vsel %vm1345, %v8264, -inf
        %8285 = vmax.xlane.f32.xlu0 %v8284
        %v8286 = vpop.xlane.xlu0 %8285
        %v8287 = vsel %vm1345, %v8265, -inf
        %8288 = vmax.xlane.f32.xlu0 %v8287
        %v8289 = vpop.xlane.xlu0 %8288
        %v8290 = vsub.f32 %v8258, %v8268
        %v8291 = vsub.f32 %v8259, %v8271
        %v8292 = vsub.f32 %v8260, %v8274
        %v8293 = vsub.f32 %v8261, %v8277
        %v8294 = vsub.f32 %v8262, %v8280
        %v8295 = vsub.f32 %v8263, %v8283
        %v8296 = vsub.f32 %v8264, %v8286
        %v8297 = vsub.f32 %v8265, %v8289
        %v8298 = vmul.f32 %v8290, 1.442695
        %v8299 = vpow.pop %v8298
        %v8300 = vmul.f32 %v8291, 1.442695
        %v8301 = vpow.pop %v8300
        %v8302 = vmul.f32 %v8292, 1.442695
        %v8303 = vpow.pop %v8302
        %v8304 = vmul.f32 %v8293, 1.442695
        %v8305 = vpow.pop %v8304
        %v8306 = vmul.f32 %v8294, 1.442695
        %v8307 = vpow.pop %v8306
        %v8308 = vmul.f32 %v8295, 1.442695
        %v8309 = vpow.pop %v8308
        %v8310 = vmul.f32 %v8296, 1.442695
        %v8311 = vpow.pop %v8310
        %v8312 = vmul.f32 %v8297, 1.442695
        %v8313 = vpow.pop %v8312
        %v8314 = vsel %vm1345, %v8299, 0.0
        %8315 = vadd.xlane.f32.xlu0 %v8314
        %v8316 = vpop.xlane.xlu0 %8315
        %v8317 = vsel %vm1345, %v8301, 0.0
        %8318 = vadd.xlane.f32.xlu0 %v8317
        %v8319 = vpop.xlane.xlu0 %8318
        %v8320 = vsel %vm1345, %v8303, 0.0
        %8321 = vadd.xlane.f32.xlu0 %v8320
        %v8322 = vpop.xlane.xlu0 %8321
        %v8323 = vsel %vm1345, %v8305, 0.0
        %8324 = vadd.xlane.f32.xlu0 %v8323
        %v8325 = vpop.xlane.xlu0 %8324
        %v8326 = vsel %vm1345, %v8307, 0.0
        %8327 = vadd.xlane.f32.xlu0 %v8326
        %v8328 = vpop.xlane.xlu0 %8327
        %v8329 = vsel %vm1345, %v8309, 0.0
        %8330 = vadd.xlane.f32.xlu0 %v8329
        %v8331 = vpop.xlane.xlu0 %8330
        %v8332 = vsel %vm1345, %v8311, 0.0
        %8333 = vadd.xlane.f32.xlu0 %v8332
        %v8334 = vpop.xlane.xlu0 %8333
        %v8335 = vsel %vm1345, %v8313, 0.0
        %8336 = vadd.xlane.f32.xlu0 %v8335
        %v8337 = vpop.xlane.xlu0 %8336
        %v8338 = vrcp.pop %v8316
        %v8339 = vrcp.pop %v8319
        %v8340 = vrcp.pop %v8322
        %v8341 = vrcp.pop %v8325
        %v8342 = vrcp.pop %v8328
        %v8343 = vrcp.pop %v8331
        %v8344 = vrcp.pop %v8334
        %v8345 = vrcp.pop %v8337
        %v8346 = vmul.f32 %v8299, %v8338
        %v8347 = vmul.f32 %v8301, %v8339
        %v8348 = vmul.f32 %v8303, %v8340
        %v8349 = vmul.f32 %v8305, %v8341
        %v8350 = vmul.f32 %v8307, %v8342
        %v8351 = vmul.f32 %v8309, %v8343
        %v8352 = vmul.f32 %v8311, %v8344
        %v8353 = vmul.f32 %v8313, %v8345
        %v8354 = vpack.c.bf16 %v8346, %v8346
        %v8355 = vpack.c.bf16 %v8347, %v8347
        %v8356 = vpack.c.bf16 %v8348, %v8348
        %v8357 = vpack.c.bf16 %v8349, %v8349
        %v8358 = vpack.c.bf16 %v8350, %v8350
        %v8359 = vpack.c.bf16 %v8351, %v8351
        %v8360 = vpack.c.bf16 %v8352, %v8352
        %v8361 = vpack.c.bf16 %v8353, %v8353
        %8362 = vrot.lane.b32.xlu0 %v7752, 40
        %v8363 = vpop.permute.xlu0 %8362
        %v8365 = vsel %vm1444, %v8354, 0
        %v8368 = vsel %vm1448, %v8363, 0
        %8370 = vmatprep.subr.bf16.mxu0 0
        %8371 = vmatpush1.bf16.msra.mxu0 0
        %8372 = vmatprep.subr.bf16.mxu0 0
        %8373 = vmatpush1.bf16.msra.mxu0 0
        %8374 = vmatprep.subr.bf16.mxu0 0
        %8375 = vmatpush1.bf16.msra.mxu0 0
        %8376 = vmatprep.subr.bf16.mxu0 0
        %8377 = vmatpush1.bf16.msra.mxu0 0
        %8378 = vmatprep.subr.bf16.mxu0 0
        %8379 = vmatpush1.bf16.msra.mxu0 0
        %8380 = vmatprep.subr.bf16.mxu0 0
        %8381 = vmatpush1.bf16.msra.mxu0 0
        %8382 = vmatprep.subr.bf16.mxu0 0
        %8383 = vmatpush1.bf16.msra.mxu0 0
        %8384 = vmatprep.subr.bf16.mxu0 0
        %8385 = vmatpush1.bf16.msra.mxu0 %v8368
        %8386 = vmatprep.subr.bf16.mxu0 0
        %8387 = vmatpush2.bf16.msra.mxu0 0
        %8388 = vmatprep.subr.bf16.mxu0 0
        %8389 = vmatpush2.bf16.msra.mxu0 0
        %8390 = vmatprep.subr.bf16.mxu0 0
        %8391 = vmatpush2.bf16.msra.mxu0 0
        %8392 = vmatprep.subr.bf16.mxu0 0
        %8393 = vmatpush2.bf16.msra.mxu0 0
        %8394 = vmatprep.subr.bf16.mxu0 0
        %8395 = vmatpush2.bf16.msra.mxu0 0
        %8396 = vmatprep.subr.bf16.mxu0 0
        %8397 = vmatpush2.bf16.msra.mxu0 0
        %8398 = vmatprep.subr.bf16.mxu0 0
        %8399 = vmatpush2.bf16.msra.mxu0 0
        %8400 = vmatprep.subr.bf16.mxu0 0
        %8401 = vmatpush2.bf16.msra.mxu0 0
        %8402 = vmatprep.mubr.bf16.mxu0 0
        %8403 = vmatmul.mubr.bf16.gmra.mxu0 %v8365
        %v8404 = vpop.f32.mrf.mxu0
        %v8405 = vadd.f32 0.0, %v8404
        %v8406 = vpop.f32.mrf.mxu0
        %v8407 = vpop.f32.mrf.mxu0
        %v8408 = vpop.f32.mrf.mxu0
        %8409 = vdwg.mxu0
        %8410 = vrot.lane.b32.xlu0 %v7817, 40
        %v8411 = vpop.permute.xlu0 %8410
        %v8413 = vsel %vm1444, %v8355, 0
        %v8416 = vsel %vm1448, %v8411, 0
        %8418 = vmatprep.subr.bf16.mxu0 0
        %8419 = vmatpush1.bf16.msra.mxu0 0
        %8420 = vmatprep.subr.bf16.mxu0 0
        %8421 = vmatpush1.bf16.msra.mxu0 0
        %8422 = vmatprep.subr.bf16.mxu0 0
        %8423 = vmatpush1.bf16.msra.mxu0 0
        %8424 = vmatprep.subr.bf16.mxu0 0
        %8425 = vmatpush1.bf16.msra.mxu0 0
        %8426 = vmatprep.subr.bf16.mxu0 0
        %8427 = vmatpush1.bf16.msra.mxu0 0
        %8428 = vmatprep.subr.bf16.mxu0 0
        %8429 = vmatpush1.bf16.msra.mxu0 0
        %8430 = vmatprep.subr.bf16.mxu0 0
        %8431 = vmatpush1.bf16.msra.mxu0 0
        %8432 = vmatprep.subr.bf16.mxu0 0
        %8433 = vmatpush1.bf16.msra.mxu0 %v8416
        %8434 = vmatprep.subr.bf16.mxu0 0
        %8435 = vmatpush2.bf16.msra.mxu0 0
        %8436 = vmatprep.subr.bf16.mxu0 0
        %8437 = vmatpush2.bf16.msra.mxu0 0
        %8438 = vmatprep.subr.bf16.mxu0 0
        %8439 = vmatpush2.bf16.msra.mxu0 0
        %8440 = vmatprep.subr.bf16.mxu0 0
        %8441 = vmatpush2.bf16.msra.mxu0 0
        %8442 = vmatprep.subr.bf16.mxu0 0
        %8443 = vmatpush2.bf16.msra.mxu0 0
        %8444 = vmatprep.subr.bf16.mxu0 0
        %8445 = vmatpush2.bf16.msra.mxu0 0
        %8446 = vmatprep.subr.bf16.mxu0 0
        %8447 = vmatpush2.bf16.msra.mxu0 0
        %8448 = vmatprep.subr.bf16.mxu0 0
        %8449 = vmatpush2.bf16.msra.mxu0 0
        %8450 = vmatprep.mubr.bf16.mxu0 0
        %8451 = vmatmul.mubr.bf16.gmra.mxu0 %v8413
        %v8452 = vpop.f32.mrf.mxu0
        %v8453 = vadd.f32 0.0, %v8452
        %v8454 = vpop.f32.mrf.mxu0
        %v8455 = vpop.f32.mrf.mxu0
        %v8456 = vpop.f32.mrf.mxu0
        %8457 = vdwg.mxu0
        %8458 = vrot.lane.b32.xlu0 %v7882, 40
        %v8459 = vpop.permute.xlu0 %8458
        %v8461 = vsel %vm1444, %v8356, 0
        %v8464 = vsel %vm1448, %v8459, 0
        %8466 = vmatprep.subr.bf16.mxu0 0
        %8467 = vmatpush1.bf16.msra.mxu0 0
        %8468 = vmatprep.subr.bf16.mxu0 0
        %8469 = vmatpush1.bf16.msra.mxu0 0
        %8470 = vmatprep.subr.bf16.mxu0 0
        %8471 = vmatpush1.bf16.msra.mxu0 0
        %8472 = vmatprep.subr.bf16.mxu0 0
        %8473 = vmatpush1.bf16.msra.mxu0 0
        %8474 = vmatprep.subr.bf16.mxu0 0
        %8475 = vmatpush1.bf16.msra.mxu0 0
        %8476 = vmatprep.subr.bf16.mxu0 0
        %8477 = vmatpush1.bf16.msra.mxu0 0
        %8478 = vmatprep.subr.bf16.mxu0 0
        %8479 = vmatpush1.bf16.msra.mxu0 0
        %8480 = vmatprep.subr.bf16.mxu0 0
        %8481 = vmatpush1.bf16.msra.mxu0 %v8464
        %8482 = vmatprep.subr.bf16.mxu0 0
        %8483 = vmatpush2.bf16.msra.mxu0 0
        %8484 = vmatprep.subr.bf16.mxu0 0
        %8485 = vmatpush2.bf16.msra.mxu0 0
        %8486 = vmatprep.subr.bf16.mxu0 0
        %8487 = vmatpush2.bf16.msra.mxu0 0
        %8488 = vmatprep.subr.bf16.mxu0 0
        %8489 = vmatpush2.bf16.msra.mxu0 0
        %8490 = vmatprep.subr.bf16.mxu0 0
        %8491 = vmatpush2.bf16.msra.mxu0 0
        %8492 = vmatprep.subr.bf16.mxu0 0
        %8493 = vmatpush2.bf16.msra.mxu0 0
        %8494 = vmatprep.subr.bf16.mxu0 0
        %8495 = vmatpush2.bf16.msra.mxu0 0
        %8496 = vmatprep.subr.bf16.mxu0 0
        %8497 = vmatpush2.bf16.msra.mxu0 0
        %8498 = vmatprep.mubr.bf16.mxu0 0
        %8499 = vmatmul.mubr.bf16.gmra.mxu0 %v8461
        %v8500 = vpop.f32.mrf.mxu0
        %v8501 = vadd.f32 0.0, %v8500
        %v8502 = vpop.f32.mrf.mxu0
        %v8503 = vpop.f32.mrf.mxu0
        %v8504 = vpop.f32.mrf.mxu0
        %8505 = vdwg.mxu0
        %8506 = vrot.lane.b32.xlu0 %v7947, 40
        %v8507 = vpop.permute.xlu0 %8506
        %v8509 = vsel %vm1444, %v8357, 0
        %v8512 = vsel %vm1448, %v8507, 0
        %8514 = vmatprep.subr.bf16.mxu0 0
        %8515 = vmatpush1.bf16.msra.mxu0 0
        %8516 = vmatprep.subr.bf16.mxu0 0
        %8517 = vmatpush1.bf16.msra.mxu0 0
        %8518 = vmatprep.subr.bf16.mxu0 0
        %8519 = vmatpush1.bf16.msra.mxu0 0
        %8520 = vmatprep.subr.bf16.mxu0 0
        %8521 = vmatpush1.bf16.msra.mxu0 0
        %8522 = vmatprep.subr.bf16.mxu0 0
        %8523 = vmatpush1.bf16.msra.mxu0 0
        %8524 = vmatprep.subr.bf16.mxu0 0
        %8525 = vmatpush1.bf16.msra.mxu0 0
        %8526 = vmatprep.subr.bf16.mxu0 0
        %8527 = vmatpush1.bf16.msra.mxu0 0
        %8528 = vmatprep.subr.bf16.mxu0 0
        %8529 = vmatpush1.bf16.msra.mxu0 %v8512
        %8530 = vmatprep.subr.bf16.mxu0 0
        %8531 = vmatpush2.bf16.msra.mxu0 0
        %8532 = vmatprep.subr.bf16.mxu0 0
        %8533 = vmatpush2.bf16.msra.mxu0 0
        %8534 = vmatprep.subr.bf16.mxu0 0
        %8535 = vmatpush2.bf16.msra.mxu0 0
        %8536 = vmatprep.subr.bf16.mxu0 0
        %8537 = vmatpush2.bf16.msra.mxu0 0
        %8538 = vmatprep.subr.bf16.mxu0 0
        %8539 = vmatpush2.bf16.msra.mxu0 0
        %8540 = vmatprep.subr.bf16.mxu0 0
        %8541 = vmatpush2.bf16.msra.mxu0 0
        %8542 = vmatprep.subr.bf16.mxu0 0
        %8543 = vmatpush2.bf16.msra.mxu0 0
        %8544 = vmatprep.subr.bf16.mxu0 0
        %8545 = vmatpush2.bf16.msra.mxu0 0
        %8546 = vmatprep.mubr.bf16.mxu0 0
        %8547 = vmatmul.mubr.bf16.gmra.mxu0 %v8509
        %v8548 = vpop.f32.mrf.mxu0
        %v8549 = vadd.f32 0.0, %v8548
        %v8550 = vpop.f32.mrf.mxu0
        %v8551 = vpop.f32.mrf.mxu0
        %v8552 = vpop.f32.mrf.mxu0
        %8553 = vdwg.mxu0
        %8554 = vrot.lane.b32.xlu0 %v8012, 40
        %v8555 = vpop.permute.xlu0 %8554
        %v8557 = vsel %vm1444, %v8358, 0
        %v8560 = vsel %vm1448, %v8555, 0
        %8562 = vmatprep.subr.bf16.mxu0 0
        %8563 = vmatpush1.bf16.msra.mxu0 0
        %8564 = vmatprep.subr.bf16.mxu0 0
        %8565 = vmatpush1.bf16.msra.mxu0 0
        %8566 = vmatprep.subr.bf16.mxu0 0
        %8567 = vmatpush1.bf16.msra.mxu0 0
        %8568 = vmatprep.subr.bf16.mxu0 0
        %8569 = vmatpush1.bf16.msra.mxu0 0
        %8570 = vmatprep.subr.bf16.mxu0 0
        %8571 = vmatpush1.bf16.msra.mxu0 0
        %8572 = vmatprep.subr.bf16.mxu0 0
        %8573 = vmatpush1.bf16.msra.mxu0 0
        %8574 = vmatprep.subr.bf16.mxu0 0
        %8575 = vmatpush1.bf16.msra.mxu0 0
        %8576 = vmatprep.subr.bf16.mxu0 0
        %8577 = vmatpush1.bf16.msra.mxu0 %v8560
        %8578 = vmatprep.subr.bf16.mxu0 0
        %8579 = vmatpush2.bf16.msra.mxu0 0
        %8580 = vmatprep.subr.bf16.mxu0 0
        %8581 = vmatpush2.bf16.msra.mxu0 0
        %8582 = vmatprep.subr.bf16.mxu0 0
        %8583 = vmatpush2.bf16.msra.mxu0 0
        %8584 = vmatprep.subr.bf16.mxu0 0
        %8585 = vmatpush2.bf16.msra.mxu0 0
        %8586 = vmatprep.subr.bf16.mxu0 0
        %8587 = vmatpush2.bf16.msra.mxu0 0
        %8588 = vmatprep.subr.bf16.mxu0 0
        %8589 = vmatpush2.bf16.msra.mxu0 0
        %8590 = vmatprep.subr.bf16.mxu0 0
        %8591 = vmatpush2.bf16.msra.mxu0 0
        %8592 = vmatprep.subr.bf16.mxu0 0
        %8593 = vmatpush2.bf16.msra.mxu0 0
        %8594 = vmatprep.mubr.bf16.mxu0 0
        %8595 = vmatmul.mubr.bf16.gmra.mxu0 %v8557
        %v8596 = vpop.f32.mrf.mxu0
        %v8597 = vadd.f32 0.0, %v8596
        %v8598 = vpop.f32.mrf.mxu0
        %v8599 = vpop.f32.mrf.mxu0
        %v8600 = vpop.f32.mrf.mxu0
        %8601 = vdwg.mxu0
        %8602 = vrot.lane.b32.xlu0 %v8077, 40
        %v8603 = vpop.permute.xlu0 %8602
        %v8605 = vsel %vm1444, %v8359, 0
        %v8608 = vsel %vm1448, %v8603, 0
        %8610 = vmatprep.subr.bf16.mxu0 0
        %8611 = vmatpush1.bf16.msra.mxu0 0
        %8612 = vmatprep.subr.bf16.mxu0 0
        %8613 = vmatpush1.bf16.msra.mxu0 0
        %8614 = vmatprep.subr.bf16.mxu0 0
        %8615 = vmatpush1.bf16.msra.mxu0 0
        %8616 = vmatprep.subr.bf16.mxu0 0
        %8617 = vmatpush1.bf16.msra.mxu0 0
        %8618 = vmatprep.subr.bf16.mxu0 0
        %8619 = vmatpush1.bf16.msra.mxu0 0
        %8620 = vmatprep.subr.bf16.mxu0 0
        %8621 = vmatpush1.bf16.msra.mxu0 0
        %8622 = vmatprep.subr.bf16.mxu0 0
        %8623 = vmatpush1.bf16.msra.mxu0 0
        %8624 = vmatprep.subr.bf16.mxu0 0
        %8625 = vmatpush1.bf16.msra.mxu0 %v8608
        %8626 = vmatprep.subr.bf16.mxu0 0
        %8627 = vmatpush2.bf16.msra.mxu0 0
        %8628 = vmatprep.subr.bf16.mxu0 0
        %8629 = vmatpush2.bf16.msra.mxu0 0
        %8630 = vmatprep.subr.bf16.mxu0 0
        %8631 = vmatpush2.bf16.msra.mxu0 0
        %8632 = vmatprep.subr.bf16.mxu0 0
        %8633 = vmatpush2.bf16.msra.mxu0 0
        %8634 = vmatprep.subr.bf16.mxu0 0
        %8635 = vmatpush2.bf16.msra.mxu0 0
        %8636 = vmatprep.subr.bf16.mxu0 0
        %8637 = vmatpush2.bf16.msra.mxu0 0
        %8638 = vmatprep.subr.bf16.mxu0 0
        %8639 = vmatpush2.bf16.msra.mxu0 0
        %8640 = vmatprep.subr.bf16.mxu0 0
        %8641 = vmatpush2.bf16.msra.mxu0 0
        %8642 = vmatprep.mubr.bf16.mxu0 0
        %8643 = vmatmul.mubr.bf16.gmra.mxu0 %v8605
        %v8644 = vpop.f32.mrf.mxu0
        %v8645 = vadd.f32 0.0, %v8644
        %v8646 = vpop.f32.mrf.mxu0
        %v8647 = vpop.f32.mrf.mxu0
        %v8648 = vpop.f32.mrf.mxu0
        %8649 = vdwg.mxu0
        %8650 = vrot.lane.b32.xlu0 %v8142, 40
        %v8651 = vpop.permute.xlu0 %8650
        %v8653 = vsel %vm1444, %v8360, 0
        %v8656 = vsel %vm1448, %v8651, 0
        %8658 = vmatprep.subr.bf16.mxu0 0
        %8659 = vmatpush1.bf16.msra.mxu0 0
        %8660 = vmatprep.subr.bf16.mxu0 0
        %8661 = vmatpush1.bf16.msra.mxu0 0
        %8662 = vmatprep.subr.bf16.mxu0 0
        %8663 = vmatpush1.bf16.msra.mxu0 0
        %8664 = vmatprep.subr.bf16.mxu0 0
        %8665 = vmatpush1.bf16.msra.mxu0 0
        %8666 = vmatprep.subr.bf16.mxu0 0
        %8667 = vmatpush1.bf16.msra.mxu0 0
        %8668 = vmatprep.subr.bf16.mxu0 0
        %8669 = vmatpush1.bf16.msra.mxu0 0
        %8670 = vmatprep.subr.bf16.mxu0 0
        %8671 = vmatpush1.bf16.msra.mxu0 0
        %8672 = vmatprep.subr.bf16.mxu0 0
        %8673 = vmatpush1.bf16.msra.mxu0 %v8656
        %8674 = vmatprep.subr.bf16.mxu0 0
        %8675 = vmatpush2.bf16.msra.mxu0 0
        %8676 = vmatprep.subr.bf16.mxu0 0
        %8677 = vmatpush2.bf16.msra.mxu0 0
        %8678 = vmatprep.subr.bf16.mxu0 0
        %8679 = vmatpush2.bf16.msra.mxu0 0
        %8680 = vmatprep.subr.bf16.mxu0 0
        %8681 = vmatpush2.bf16.msra.mxu0 0
        %8682 = vmatprep.subr.bf16.mxu0 0
        %8683 = vmatpush2.bf16.msra.mxu0 0
        %8684 = vmatprep.subr.bf16.mxu0 0
        %8685 = vmatpush2.bf16.msra.mxu0 0
        %8686 = vmatprep.subr.bf16.mxu0 0
        %8687 = vmatpush2.bf16.msra.mxu0 0
        %8688 = vmatprep.subr.bf16.mxu0 0
        %8689 = vmatpush2.bf16.msra.mxu0 0
        %8690 = vmatprep.mubr.bf16.mxu0 0
        %8691 = vmatmul.mubr.bf16.gmra.mxu0 %v8653
        %v8692 = vpop.f32.mrf.mxu0
        %v8693 = vadd.f32 0.0, %v8692
        %v8694 = vpop.f32.mrf.mxu0
        %v8695 = vpop.f32.mrf.mxu0
        %v8696 = vpop.f32.mrf.mxu0
        %8697 = vdwg.mxu0
        %8698 = vrot.lane.b32.xlu0 %v8207, 40
        %v8699 = vpop.permute.xlu0 %8698
        %v8701 = vsel %vm1444, %v8361, 0
        %v8704 = vsel %vm1448, %v8699, 0
        %8706 = vmatprep.subr.bf16.mxu0 0
        %8707 = vmatpush1.bf16.msra.mxu0 0
        %8708 = vmatprep.subr.bf16.mxu0 0
        %8709 = vmatpush1.bf16.msra.mxu0 0
        %8710 = vmatprep.subr.bf16.mxu0 0
        %8711 = vmatpush1.bf16.msra.mxu0 0
        %8712 = vmatprep.subr.bf16.mxu0 0
        %8713 = vmatpush1.bf16.msra.mxu0 0
        %8714 = vmatprep.subr.bf16.mxu0 0
        %8715 = vmatpush1.bf16.msra.mxu0 0
        %8716 = vmatprep.subr.bf16.mxu0 0
        %8717 = vmatpush1.bf16.msra.mxu0 0
        %8718 = vmatprep.subr.bf16.mxu0 0
        %8719 = vmatpush1.bf16.msra.mxu0 0
        %8720 = vmatprep.subr.bf16.mxu0 0
        %8721 = vmatpush1.bf16.msra.mxu0 %v8704
        %8722 = vmatprep.subr.bf16.mxu0 0
        %8723 = vmatpush2.bf16.msra.mxu0 0
        %8724 = vmatprep.subr.bf16.mxu0 0
        %8725 = vmatpush2.bf16.msra.mxu0 0
        %8726 = vmatprep.subr.bf16.mxu0 0
        %8727 = vmatpush2.bf16.msra.mxu0 0
        %8728 = vmatprep.subr.bf16.mxu0 0
        %8729 = vmatpush2.bf16.msra.mxu0 0
        %8730 = vmatprep.subr.bf16.mxu0 0
        %8731 = vmatpush2.bf16.msra.mxu0 0
        %8732 = vmatprep.subr.bf16.mxu0 0
        %8733 = vmatpush2.bf16.msra.mxu0 0
        %8734 = vmatprep.subr.bf16.mxu0 0
        %8735 = vmatpush2.bf16.msra.mxu0 0
        %8736 = vmatprep.subr.bf16.mxu0 0
        %8737 = vmatpush2.bf16.msra.mxu0 0
        %8738 = vmatprep.mubr.bf16.mxu0 0
        %8739 = vmatmul.mubr.bf16.gmra.mxu0 %v8701
        %v8740 = vpop.f32.mrf.mxu0
        %v8741 = vadd.f32 0.0, %v8740
        %v8742 = vpop.f32.mrf.mxu0
        %v8743 = vpop.f32.mrf.mxu0
        %v8744 = vpop.f32.mrf.mxu0
        %8745 = vdwg.mxu0
        %v8746 = vpack.c.bf16 %v8405, %v8405
        %v8747 = vpack.c.bf16 %v8453, %v8453
        %v8748 = vpack.c.bf16 %v8501, %v8501
        %v8749 = vpack.c.bf16 %v8549, %v8549
        %v8750 = vpack.c.bf16 %v8597, %v8597
        %v8751 = vpack.c.bf16 %v8645, %v8645
        %v8752 = vpack.c.bf16 %v8693, %v8693
        %v8753 = vpack.c.bf16 %v8741, %v8741
        %v8763 = vunpack.c.l.s4 1966171168
        %v8764 = vunpack.c.0.s8 %v8763
        %v8765 = vlaneseq
        %v8766 = vshrl.u32 %v8765, 7
        %v8767 = vsub.s32 %v8764, %v8766
        %v8768 = vrot.slane %v8746, %v8767
        %v8770 = vunpack.c.l.s4 1966171168
        %v8771 = vunpack.c.0.s8 %v8770
        %v8772 = vlaneseq
        %v8773 = vshrl.u32 %v8772, 7
        %v8774 = vsub.s32 %v8771, %v8773
        %v8775 = vrot.slane %v8768, %v8774
        %v8777 = vunpack.c.l.s4 1966171168
        %v8778 = vunpack.c.0.s8 %v8777
        %v8779 = vlaneseq
        %v8780 = vshrl.u32 %v8779, 7
        %v8781 = vsub.s32 %v8778, %v8780
        %v8782 = vrot.slane %v8747, %v8781
        %v8784 = vunpack.c.l.s4 1966171168
        %v8785 = vunpack.c.0.s8 %v8784
        %v8786 = vlaneseq
        %v8787 = vshrl.u32 %v8786, 7
        %v8788 = vsub.s32 %v8785, %v8787
        %v8789 = vrot.slane %v8782, %v8788
        %v8791 = vunpack.c.l.s4 1966171168
        %v8792 = vunpack.c.0.s8 %v8791
        %v8793 = vlaneseq
        %v8794 = vshrl.u32 %v8793, 7
        %v8795 = vsub.s32 %v8792, %v8794
        %v8796 = vrot.slane %v8748, %v8795
        %v8798 = vunpack.c.l.s4 1966171168
        %v8799 = vunpack.c.0.s8 %v8798
        %v8800 = vlaneseq
        %v8801 = vshrl.u32 %v8800, 7
        %v8802 = vsub.s32 %v8799, %v8801
        %v8803 = vrot.slane %v8796, %v8802
        %v8805 = vunpack.c.l.s4 1966171168
        %v8806 = vunpack.c.0.s8 %v8805
        %v8807 = vlaneseq
        %v8808 = vshrl.u32 %v8807, 7
        %v8809 = vsub.s32 %v8806, %v8808
        %v8810 = vrot.slane %v8749, %v8809
        %v8812 = vunpack.c.l.s4 1966171168
        %v8813 = vunpack.c.0.s8 %v8812
        %v8814 = vlaneseq
        %v8815 = vshrl.u32 %v8814, 7
        %v8816 = vsub.s32 %v8813, %v8815
        %v8817 = vrot.slane %v8810, %v8816
        %v8819 = vunpack.c.l.s4 1966171168
        %v8820 = vunpack.c.0.s8 %v8819
        %v8821 = vlaneseq
        %v8822 = vshrl.u32 %v8821, 7
        %v8823 = vsub.s32 %v8820, %v8822
        %v8824 = vrot.slane %v8750, %v8823
        %v8826 = vunpack.c.l.s4 1966171168
        %v8827 = vunpack.c.0.s8 %v8826
        %v8828 = vlaneseq
        %v8829 = vshrl.u32 %v8828, 7
        %v8830 = vsub.s32 %v8827, %v8829
        %v8831 = vrot.slane %v8824, %v8830
        %v8833 = vunpack.c.l.s4 1966171168
        %v8834 = vunpack.c.0.s8 %v8833
        %v8835 = vlaneseq
        %v8836 = vshrl.u32 %v8835, 7
        %v8837 = vsub.s32 %v8834, %v8836
        %v8838 = vrot.slane %v8751, %v8837
        %v8840 = vunpack.c.l.s4 1966171168
        %v8841 = vunpack.c.0.s8 %v8840
        %v8842 = vlaneseq
        %v8843 = vshrl.u32 %v8842, 7
        %v8844 = vsub.s32 %v8841, %v8843
        %v8845 = vrot.slane %v8838, %v8844
        %v8847 = vunpack.c.l.s4 1966171168
        %v8848 = vunpack.c.0.s8 %v8847
        %v8849 = vlaneseq
        %v8850 = vshrl.u32 %v8849, 7
        %v8851 = vsub.s32 %v8848, %v8850
        %v8852 = vrot.slane %v8752, %v8851
        %v8854 = vunpack.c.l.s4 1966171168
        %v8855 = vunpack.c.0.s8 %v8854
        %v8856 = vlaneseq
        %v8857 = vshrl.u32 %v8856, 7
        %v8858 = vsub.s32 %v8855, %v8857
        %v8859 = vrot.slane %v8852, %v8858
        %v8861 = vunpack.c.l.s4 1966171168
        %v8862 = vunpack.c.0.s8 %v8861
        %v8863 = vlaneseq
        %v8864 = vshrl.u32 %v8863, 7
        %v8865 = vsub.s32 %v8862, %v8864
        %v8866 = vrot.slane %v8753, %v8865
        %v8868 = vunpack.c.l.s4 1966171168
        %v8869 = vunpack.c.0.s8 %v8868
        %v8870 = vlaneseq
        %v8871 = vshrl.u32 %v8870, 7
        %v8872 = vsub.s32 %v8869, %v8871
        %v8873 = vrot.slane %v8866, %v8872
        %8874 = vrot.lane.b32.xlu0 %v8775, 24
        %v8875 = vpop.permute.xlu0 %8874
        %8876 = vrot.lane.b32.xlu0 %v8789, 24
        %v8877 = vpop.permute.xlu0 %8876
        %8878 = vrot.lane.b32.xlu0 %v8803, 24
        %v8879 = vpop.permute.xlu0 %8878
        %8880 = vrot.lane.b32.xlu0 %v8817, 24
        %v8881 = vpop.permute.xlu0 %8880
        %8882 = vrot.lane.b32.xlu0 %v8831, 24
        %v8883 = vpop.permute.xlu0 %8882
        %8884 = vrot.lane.b32.xlu0 %v8845, 24
        %v8885 = vpop.permute.xlu0 %8884
        %8886 = vrot.lane.b32.xlu0 %v8859, 24
        %v8887 = vpop.permute.xlu0 %8886
        %8888 = vrot.lane.b32.xlu0 %v8873, 24
        %v8889 = vpop.permute.xlu0 %8888
        %vm8898 = vcmask 221376
        %8899 = vst.msk [vmem:[#allocation3] sm:$0x1] %vm8898, %v8875
        %8900 = vst.msk [vmem:[#allocation3 + $0x1] sm:$0x1] %vm8898, %v8877
        %8901 = vst.msk [vmem:[#allocation3 + $0x2] sm:$0x1] %vm8898, %v8879
        %8902 = vst.msk [vmem:[#allocation3 + $0x3] sm:$0x1] %vm8898, %v8881
        %8903 = vst.msk [vmem:[#allocation3 + $0x4] sm:$0x1] %vm8898, %v8883
        %8904 = vst.msk [vmem:[#allocation3 + $0x5] sm:$0x1] %vm8898, %v8885
        %8905 = vst.msk [vmem:[#allocation3 + $0x6] sm:$0x1] %vm8898, %v8887
        %8906 = vst.msk [vmem:[#allocation3 + $0x7] sm:$0x1] %vm8898, %v8889
        %v8907 = vld [vmem:[#allocation2] sm:$0x1]
        %v8908 = vld [vmem:[#allocation2 + $0x1] sm:$0x1]
        %v8909 = vld [vmem:[#allocation2 + $0x2] sm:$0x1]
        %v8910 = vld [vmem:[#allocation2 + $0x3] sm:$0x1]
        %v8911 = vld [vmem:[#allocation2 + $0x4] sm:$0x1]
        %v8912 = vld [vmem:[#allocation2 + $0x5] sm:$0x1]
        %v8913 = vld [vmem:[#allocation2 + $0x6] sm:$0x1]
        %v8914 = vld [vmem:[#allocation2 + $0x7] sm:$0x1]
        %v8917 = vunpack.c.l.s4 1966171168
        %v8918 = vunpack.c.0.s8 %v8917
        %v8919 = vlaneseq
        %v8920 = vshrl.u32 %v8919, 7
        %v8921 = vsub.s32 %v8918, %v8920
        %v8922 = vrot.slane %v8907, %v8921
        %v8924 = vunpack.c.l.s4 1966171168
        %v8925 = vunpack.c.0.s8 %v8924
        %v8926 = vlaneseq
        %v8927 = vshrl.u32 %v8926, 7
        %v8928 = vsub.s32 %v8925, %v8927
        %v8929 = vrot.slane %v8922, %v8928
        %8930 = vrot.lane.b32.xlu0 %v8929, 100
        %v8931 = vpop.permute.xlu0 %8930
        %8932 = vrot.lane.b32.xlu0 %v8929, 68
        %v8933 = vpop.permute.xlu0 %8932
        %v8935 = vsel %vm849, %v8931, 0
        %v8938 = vsel %vm849, %v8933, 0
        %8940 = vmatprep.subr.bf16.mxu0 0
        %8941 = vmatpush1.bf16.xpose.msra.mxu0 0
        %8942 = vmatprep.subr.bf16.mxu0 0
        %8943 = vmatpush1.bf16.xpose.msra.mxu0 0
        %8944 = vmatprep.subr.bf16.mxu0 0
        %8945 = vmatpush1.bf16.xpose.msra.mxu0 0
        %8946 = vmatprep.subr.bf16.mxu0 0
        %8947 = vmatpush1.bf16.xpose.msra.mxu0 0
        %8948 = vmatprep.subr.bf16.mxu0 0
        %8949 = vmatpush1.bf16.xpose.msra.mxu0 0
        %8950 = vmatprep.subr.bf16.mxu0 0
        %8951 = vmatpush1.bf16.xpose.msra.mxu0 0
        %8952 = vmatprep.subr.bf16.mxu0 0
        %8953 = vmatpush1.bf16.xpose.msra.mxu0 0
        %8954 = vmatprep.subr.bf16.mxu0 0
        %8955 = vmatpush1.bf16.xpose.msra.mxu0 %v8938
        %8956 = vmatprep.subr.bf16.mxu0 0
        %8957 = vmatpush2.bf16.xpose.msra.mxu0 0
        %8958 = vmatprep.subr.bf16.mxu0 0
        %8959 = vmatpush2.bf16.xpose.msra.mxu0 0
        %8960 = vmatprep.subr.bf16.mxu0 0
        %8961 = vmatpush2.bf16.xpose.msra.mxu0 0
        %8962 = vmatprep.subr.bf16.mxu0 0
        %8963 = vmatpush2.bf16.xpose.msra.mxu0 0
        %8964 = vmatprep.subr.bf16.mxu0 0
        %8965 = vmatpush2.bf16.xpose.msra.mxu0 0
        %8966 = vmatprep.subr.bf16.mxu0 0
        %8967 = vmatpush2.bf16.xpose.msra.mxu0 0
        %8968 = vmatprep.subr.bf16.mxu0 0
        %8969 = vmatpush2.bf16.xpose.msra.mxu0 0
        %8970 = vmatprep.subr.bf16.mxu0 0
        %8971 = vmatpush2.bf16.xpose.msra.mxu0 0
        %8972 = vmatprep.mubr.bf16.mxu0 0
        %8973 = vmatmul.mubr.bf16.gmra.mxu0 %v8935
        %v8974 = vpop.f32.mrf.mxu0
        %v8975 = vadd.f32 0.0, %v8974
        %v8976 = vpop.f32.mrf.mxu0
        %v8977 = vpop.f32.mrf.mxu0
        %v8978 = vpop.f32.mrf.mxu0
        %8979 = vdwg.mxu0
        %v8982 = vunpack.c.l.s4 1966171168
        %v8983 = vunpack.c.0.s8 %v8982
        %v8984 = vlaneseq
        %v8985 = vshrl.u32 %v8984, 7
        %v8986 = vsub.s32 %v8983, %v8985
        %v8987 = vrot.slane %v8908, %v8986
        %v8989 = vunpack.c.l.s4 1966171168
        %v8990 = vunpack.c.0.s8 %v8989
        %v8991 = vlaneseq
        %v8992 = vshrl.u32 %v8991, 7
        %v8993 = vsub.s32 %v8990, %v8992
        %v8994 = vrot.slane %v8987, %v8993
        %8995 = vrot.lane.b32.xlu0 %v8994, 100
        %v8996 = vpop.permute.xlu0 %8995
        %8997 = vrot.lane.b32.xlu0 %v8994, 68
        %v8998 = vpop.permute.xlu0 %8997
        %v9000 = vsel %vm849, %v8996, 0
        %v9003 = vsel %vm849, %v8998, 0
        %9005 = vmatprep.subr.bf16.mxu0 0
        %9006 = vmatpush1.bf16.xpose.msra.mxu0 0
        %9007 = vmatprep.subr.bf16.mxu0 0
        %9008 = vmatpush1.bf16.xpose.msra.mxu0 0
        %9009 = vmatprep.subr.bf16.mxu0 0
        %9010 = vmatpush1.bf16.xpose.msra.mxu0 0
        %9011 = vmatprep.subr.bf16.mxu0 0
        %9012 = vmatpush1.bf16.xpose.msra.mxu0 0
        %9013 = vmatprep.subr.bf16.mxu0 0
        %9014 = vmatpush1.bf16.xpose.msra.mxu0 0
        %9015 = vmatprep.subr.bf16.mxu0 0
        %9016 = vmatpush1.bf16.xpose.msra.mxu0 0
        %9017 = vmatprep.subr.bf16.mxu0 0
        %9018 = vmatpush1.bf16.xpose.msra.mxu0 0
        %9019 = vmatprep.subr.bf16.mxu0 0
        %9020 = vmatpush1.bf16.xpose.msra.mxu0 %v9003
        %9021 = vmatprep.subr.bf16.mxu0 0
        %9022 = vmatpush2.bf16.xpose.msra.mxu0 0
        %9023 = vmatprep.subr.bf16.mxu0 0
        %9024 = vmatpush2.bf16.xpose.msra.mxu0 0
        %9025 = vmatprep.subr.bf16.mxu0 0
        %9026 = vmatpush2.bf16.xpose.msra.mxu0 0
        %9027 = vmatprep.subr.bf16.mxu0 0
        %9028 = vmatpush2.bf16.xpose.msra.mxu0 0
        %9029 = vmatprep.subr.bf16.mxu0 0
        %9030 = vmatpush2.bf16.xpose.msra.mxu0 0
        %9031 = vmatprep.subr.bf16.mxu0 0
        %9032 = vmatpush2.bf16.xpose.msra.mxu0 0
        %9033 = vmatprep.subr.bf16.mxu0 0
        %9034 = vmatpush2.bf16.xpose.msra.mxu0 0
        %9035 = vmatprep.subr.bf16.mxu0 0
        %9036 = vmatpush2.bf16.xpose.msra.mxu0 0
        %9037 = vmatprep.mubr.bf16.mxu0 0
        %9038 = vmatmul.mubr.bf16.gmra.mxu0 %v9000
        %v9039 = vpop.f32.mrf.mxu0
        %v9040 = vadd.f32 0.0, %v9039
        %v9041 = vpop.f32.mrf.mxu0
        %v9042 = vpop.f32.mrf.mxu0
        %v9043 = vpop.f32.mrf.mxu0
        %9044 = vdwg.mxu0
        %v9047 = vunpack.c.l.s4 1966171168
        %v9048 = vunpack.c.0.s8 %v9047
        %v9049 = vlaneseq
        %v9050 = vshrl.u32 %v9049, 7
        %v9051 = vsub.s32 %v9048, %v9050
        %v9052 = vrot.slane %v8909, %v9051
        %v9054 = vunpack.c.l.s4 1966171168
        %v9055 = vunpack.c.0.s8 %v9054
        %v9056 = vlaneseq
        %v9057 = vshrl.u32 %v9056, 7
        %v9058 = vsub.s32 %v9055, %v9057
        %v9059 = vrot.slane %v9052, %v9058
        %9060 = vrot.lane.b32.xlu0 %v9059, 100
        %v9061 = vpop.permute.xlu0 %9060
        %9062 = vrot.lane.b32.xlu0 %v9059, 68
        %v9063 = vpop.permute.xlu0 %9062
        %v9065 = vsel %vm849, %v9061, 0
        %v9068 = vsel %vm849, %v9063, 0
        %9070 = vmatprep.subr.bf16.mxu0 0
        %9071 = vmatpush1.bf16.xpose.msra.mxu0 0
        %9072 = vmatprep.subr.bf16.mxu0 0
        %9073 = vmatpush1.bf16.xpose.msra.mxu0 0
        %9074 = vmatprep.subr.bf16.mxu0 0
        %9075 = vmatpush1.bf16.xpose.msra.mxu0 0
        %9076 = vmatprep.subr.bf16.mxu0 0
        %9077 = vmatpush1.bf16.xpose.msra.mxu0 0
        %9078 = vmatprep.subr.bf16.mxu0 0
        %9079 = vmatpush1.bf16.xpose.msra.mxu0 0
        %9080 = vmatprep.subr.bf16.mxu0 0
        %9081 = vmatpush1.bf16.xpose.msra.mxu0 0
        %9082 = vmatprep.subr.bf16.mxu0 0
        %9083 = vmatpush1.bf16.xpose.msra.mxu0 0
        %9084 = vmatprep.subr.bf16.mxu0 0
        %9085 = vmatpush1.bf16.xpose.msra.mxu0 %v9068
        %9086 = vmatprep.subr.bf16.mxu0 0
        %9087 = vmatpush2.bf16.xpose.msra.mxu0 0
        %9088 = vmatprep.subr.bf16.mxu0 0
        %9089 = vmatpush2.bf16.xpose.msra.mxu0 0
        %9090 = vmatprep.subr.bf16.mxu0 0
        %9091 = vmatpush2.bf16.xpose.msra.mxu0 0
        %9092 = vmatprep.subr.bf16.mxu0 0
        %9093 = vmatpush2.bf16.xpose.msra.mxu0 0
        %9094 = vmatprep.subr.bf16.mxu0 0
        %9095 = vmatpush2.bf16.xpose.msra.mxu0 0
        %9096 = vmatprep.subr.bf16.mxu0 0
        %9097 = vmatpush2.bf16.xpose.msra.mxu0 0
        %9098 = vmatprep.subr.bf16.mxu0 0
        %9099 = vmatpush2.bf16.xpose.msra.mxu0 0
        %9100 = vmatprep.subr.bf16.mxu0 0
        %9101 = vmatpush2.bf16.xpose.msra.mxu0 0
        %9102 = vmatprep.mubr.bf16.mxu0 0
        %9103 = vmatmul.mubr.bf16.gmra.mxu0 %v9065
        %v9104 = vpop.f32.mrf.mxu0
        %v9105 = vadd.f32 0.0, %v9104
        %v9106 = vpop.f32.mrf.mxu0
        %v9107 = vpop.f32.mrf.mxu0
        %v9108 = vpop.f32.mrf.mxu0
        %9109 = vdwg.mxu0
        %v9112 = vunpack.c.l.s4 1966171168
        %v9113 = vunpack.c.0.s8 %v9112
        %v9114 = vlaneseq
        %v9115 = vshrl.u32 %v9114, 7
        %v9116 = vsub.s32 %v9113, %v9115
        %v9117 = vrot.slane %v8910, %v9116
        %v9119 = vunpack.c.l.s4 1966171168
        %v9120 = vunpack.c.0.s8 %v9119
        %v9121 = vlaneseq
        %v9122 = vshrl.u32 %v9121, 7
        %v9123 = vsub.s32 %v9120, %v9122
        %v9124 = vrot.slane %v9117, %v9123
        %9125 = vrot.lane.b32.xlu0 %v9124, 100
        %v9126 = vpop.permute.xlu0 %9125
        %9127 = vrot.lane.b32.xlu0 %v9124, 68
        %v9128 = vpop.permute.xlu0 %9127
        %v9130 = vsel %vm849, %v9126, 0
        %v9133 = vsel %vm849, %v9128, 0
        %9135 = vmatprep.subr.bf16.mxu0 0
        %9136 = vmatpush1.bf16.xpose.msra.mxu0 0
        %9137 = vmatprep.subr.bf16.mxu0 0
        %9138 = vmatpush1.bf16.xpose.msra.mxu0 0
        %9139 = vmatprep.subr.bf16.mxu0 0
        %9140 = vmatpush1.bf16.xpose.msra.mxu0 0
        %9141 = vmatprep.subr.bf16.mxu0 0
        %9142 = vmatpush1.bf16.xpose.msra.mxu0 0
        %9143 = vmatprep.subr.bf16.mxu0 0
        %9144 = vmatpush1.bf16.xpose.msra.mxu0 0
        %9145 = vmatprep.subr.bf16.mxu0 0
        %9146 = vmatpush1.bf16.xpose.msra.mxu0 0
        %9147 = vmatprep.subr.bf16.mxu0 0
        %9148 = vmatpush1.bf16.xpose.msra.mxu0 0
        %9149 = vmatprep.subr.bf16.mxu0 0
        %9150 = vmatpush1.bf16.xpose.msra.mxu0 %v9133
        %9151 = vmatprep.subr.bf16.mxu0 0
        %9152 = vmatpush2.bf16.xpose.msra.mxu0 0
        %9153 = vmatprep.subr.bf16.mxu0 0
        %9154 = vmatpush2.bf16.xpose.msra.mxu0 0
        %9155 = vmatprep.subr.bf16.mxu0 0
        %9156 = vmatpush2.bf16.xpose.msra.mxu0 0
        %9157 = vmatprep.subr.bf16.mxu0 0
        %9158 = vmatpush2.bf16.xpose.msra.mxu0 0
        %9159 = vmatprep.subr.bf16.mxu0 0
        %9160 = vmatpush2.bf16.xpose.msra.mxu0 0
        %9161 = vmatprep.subr.bf16.mxu0 0
        %9162 = vmatpush2.bf16.xpose.msra.mxu0 0
        %9163 = vmatprep.subr.bf16.mxu0 0
        %9164 = vmatpush2.bf16.xpose.msra.mxu0 0
        %9165 = vmatprep.subr.bf16.mxu0 0
        %9166 = vmatpush2.bf16.xpose.msra.mxu0 0
        %9167 = vmatprep.mubr.bf16.mxu0 0
        %9168 = vmatmul.mubr.bf16.gmra.mxu0 %v9130
        %v9169 = vpop.f32.mrf.mxu0
        %v9170 = vadd.f32 0.0, %v9169
        %v9171 = vpop.f32.mrf.mxu0
        %v9172 = vpop.f32.mrf.mxu0
        %v9173 = vpop.f32.mrf.mxu0
        %9174 = vdwg.mxu0
        %v9177 = vunpack.c.l.s4 1966171168
        %v9178 = vunpack.c.0.s8 %v9177
        %v9179 = vlaneseq
        %v9180 = vshrl.u32 %v9179, 7
        %v9181 = vsub.s32 %v9178, %v9180
        %v9182 = vrot.slane %v8911, %v9181
        %v9184 = vunpack.c.l.s4 1966171168
        %v9185 = vunpack.c.0.s8 %v9184
        %v9186 = vlaneseq
        %v9187 = vshrl.u32 %v9186, 7
        %v9188 = vsub.s32 %v9185, %v9187
        %v9189 = vrot.slane %v9182, %v9188
        %9190 = vrot.lane.b32.xlu0 %v9189, 100
        %v9191 = vpop.permute.xlu0 %9190
        %9192 = vrot.lane.b32.xlu0 %v9189, 68
        %v9193 = vpop.permute.xlu0 %9192
        %v9195 = vsel %vm849, %v9191, 0
        %v9198 = vsel %vm849, %v9193, 0
        %9200 = vmatprep.subr.bf16.mxu0 0
        %9201 = vmatpush1.bf16.xpose.msra.mxu0 0
        %9202 = vmatprep.subr.bf16.mxu0 0
        %9203 = vmatpush1.bf16.xpose.msra.mxu0 0
        %9204 = vmatprep.subr.bf16.mxu0 0
        %9205 = vmatpush1.bf16.xpose.msra.mxu0 0
        %9206 = vmatprep.subr.bf16.mxu0 0
        %9207 = vmatpush1.bf16.xpose.msra.mxu0 0
        %9208 = vmatprep.subr.bf16.mxu0 0
        %9209 = vmatpush1.bf16.xpose.msra.mxu0 0
        %9210 = vmatprep.subr.bf16.mxu0 0
        %9211 = vmatpush1.bf16.xpose.msra.mxu0 0
        %9212 = vmatprep.subr.bf16.mxu0 0
        %9213 = vmatpush1.bf16.xpose.msra.mxu0 0
        %9214 = vmatprep.subr.bf16.mxu0 0
        %9215 = vmatpush1.bf16.xpose.msra.mxu0 %v9198
        %9216 = vmatprep.subr.bf16.mxu0 0
        %9217 = vmatpush2.bf16.xpose.msra.mxu0 0
        %9218 = vmatprep.subr.bf16.mxu0 0
        %9219 = vmatpush2.bf16.xpose.msra.mxu0 0
        %9220 = vmatprep.subr.bf16.mxu0 0
        %9221 = vmatpush2.bf16.xpose.msra.mxu0 0
        %9222 = vmatprep.subr.bf16.mxu0 0
        %9223 = vmatpush2.bf16.xpose.msra.mxu0 0
        %9224 = vmatprep.subr.bf16.mxu0 0
        %9225 = vmatpush2.bf16.xpose.msra.mxu0 0
        %9226 = vmatprep.subr.bf16.mxu0 0
        %9227 = vmatpush2.bf16.xpose.msra.mxu0 0
        %9228 = vmatprep.subr.bf16.mxu0 0
        %9229 = vmatpush2.bf16.xpose.msra.mxu0 0
        %9230 = vmatprep.subr.bf16.mxu0 0
        %9231 = vmatpush2.bf16.xpose.msra.mxu0 0
        %9232 = vmatprep.mubr.bf16.mxu0 0
        %9233 = vmatmul.mubr.bf16.gmra.mxu0 %v9195
        %v9234 = vpop.f32.mrf.mxu0
        %v9235 = vadd.f32 0.0, %v9234
        %v9236 = vpop.f32.mrf.mxu0
        %v9237 = vpop.f32.mrf.mxu0
        %v9238 = vpop.f32.mrf.mxu0
        %9239 = vdwg.mxu0
        %v9242 = vunpack.c.l.s4 1966171168
        %v9243 = vunpack.c.0.s8 %v9242
        %v9244 = vlaneseq
        %v9245 = vshrl.u32 %v9244, 7
        %v9246 = vsub.s32 %v9243, %v9245
        %v9247 = vrot.slane %v8912, %v9246
        %v9249 = vunpack.c.l.s4 1966171168
        %v9250 = vunpack.c.0.s8 %v9249
        %v9251 = vlaneseq
        %v9252 = vshrl.u32 %v9251, 7
        %v9253 = vsub.s32 %v9250, %v9252
        %v9254 = vrot.slane %v9247, %v9253
        %9255 = vrot.lane.b32.xlu0 %v9254, 100
        %v9256 = vpop.permute.xlu0 %9255
        %9257 = vrot.lane.b32.xlu0 %v9254, 68
        %v9258 = vpop.permute.xlu0 %9257
        %v9260 = vsel %vm849, %v9256, 0
        %v9263 = vsel %vm849, %v9258, 0
        %9265 = vmatprep.subr.bf16.mxu0 0
        %9266 = vmatpush1.bf16.xpose.msra.mxu0 0
        %9267 = vmatprep.subr.bf16.mxu0 0
        %9268 = vmatpush1.bf16.xpose.msra.mxu0 0
        %9269 = vmatprep.subr.bf16.mxu0 0
        %9270 = vmatpush1.bf16.xpose.msra.mxu0 0
        %9271 = vmatprep.subr.bf16.mxu0 0
        %9272 = vmatpush1.bf16.xpose.msra.mxu0 0
        %9273 = vmatprep.subr.bf16.mxu0 0
        %9274 = vmatpush1.bf16.xpose.msra.mxu0 0
        %9275 = vmatprep.subr.bf16.mxu0 0
        %9276 = vmatpush1.bf16.xpose.msra.mxu0 0
        %9277 = vmatprep.subr.bf16.mxu0 0
        %9278 = vmatpush1.bf16.xpose.msra.mxu0 0
        %9279 = vmatprep.subr.bf16.mxu0 0
        %9280 = vmatpush1.bf16.xpose.msra.mxu0 %v9263
        %9281 = vmatprep.subr.bf16.mxu0 0
        %9282 = vmatpush2.bf16.xpose.msra.mxu0 0
        %9283 = vmatprep.subr.bf16.mxu0 0
        %9284 = vmatpush2.bf16.xpose.msra.mxu0 0
        %9285 = vmatprep.subr.bf16.mxu0 0
        %9286 = vmatpush2.bf16.xpose.msra.mxu0 0
        %9287 = vmatprep.subr.bf16.mxu0 0
        %9288 = vmatpush2.bf16.xpose.msra.mxu0 0
        %9289 = vmatprep.subr.bf16.mxu0 0
        %9290 = vmatpush2.bf16.xpose.msra.mxu0 0
        %9291 = vmatprep.subr.bf16.mxu0 0
        %9292 = vmatpush2.bf16.xpose.msra.mxu0 0
        %9293 = vmatprep.subr.bf16.mxu0 0
        %9294 = vmatpush2.bf16.xpose.msra.mxu0 0
        %9295 = vmatprep.subr.bf16.mxu0 0
        %9296 = vmatpush2.bf16.xpose.msra.mxu0 0
        %9297 = vmatprep.mubr.bf16.mxu0 0
        %9298 = vmatmul.mubr.bf16.gmra.mxu0 %v9260
        %v9299 = vpop.f32.mrf.mxu0
        %v9300 = vadd.f32 0.0, %v9299
        %v9301 = vpop.f32.mrf.mxu0
        %v9302 = vpop.f32.mrf.mxu0
        %v9303 = vpop.f32.mrf.mxu0
        %9304 = vdwg.mxu0
        %v9307 = vunpack.c.l.s4 1966171168
        %v9308 = vunpack.c.0.s8 %v9307
        %v9309 = vlaneseq
        %v9310 = vshrl.u32 %v9309, 7
        %v9311 = vsub.s32 %v9308, %v9310
        %v9312 = vrot.slane %v8913, %v9311
        %v9314 = vunpack.c.l.s4 1966171168
        %v9315 = vunpack.c.0.s8 %v9314
        %v9316 = vlaneseq
        %v9317 = vshrl.u32 %v9316, 7
        %v9318 = vsub.s32 %v9315, %v9317
        %v9319 = vrot.slane %v9312, %v9318
        %9320 = vrot.lane.b32.xlu0 %v9319, 100
        %v9321 = vpop.permute.xlu0 %9320
        %9322 = vrot.lane.b32.xlu0 %v9319, 68
        %v9323 = vpop.permute.xlu0 %9322
        %v9325 = vsel %vm849, %v9321, 0
        %v9328 = vsel %vm849, %v9323, 0
        %9330 = vmatprep.subr.bf16.mxu0 0
        %9331 = vmatpush1.bf16.xpose.msra.mxu0 0
        %9332 = vmatprep.subr.bf16.mxu0 0
        %9333 = vmatpush1.bf16.xpose.msra.mxu0 0
        %9334 = vmatprep.subr.bf16.mxu0 0
        %9335 = vmatpush1.bf16.xpose.msra.mxu0 0
        %9336 = vmatprep.subr.bf16.mxu0 0
        %9337 = vmatpush1.bf16.xpose.msra.mxu0 0
        %9338 = vmatprep.subr.bf16.mxu0 0
        %9339 = vmatpush1.bf16.xpose.msra.mxu0 0
        %9340 = vmatprep.subr.bf16.mxu0 0
        %9341 = vmatpush1.bf16.xpose.msra.mxu0 0
        %9342 = vmatprep.subr.bf16.mxu0 0
        %9343 = vmatpush1.bf16.xpose.msra.mxu0 0
        %9344 = vmatprep.subr.bf16.mxu0 0
        %9345 = vmatpush1.bf16.xpose.msra.mxu0 %v9328
        %9346 = vmatprep.subr.bf16.mxu0 0
        %9347 = vmatpush2.bf16.xpose.msra.mxu0 0
        %9348 = vmatprep.subr.bf16.mxu0 0
        %9349 = vmatpush2.bf16.xpose.msra.mxu0 0
        %9350 = vmatprep.subr.bf16.mxu0 0
        %9351 = vmatpush2.bf16.xpose.msra.mxu0 0
        %9352 = vmatprep.subr.bf16.mxu0 0
        %9353 = vmatpush2.bf16.xpose.msra.mxu0 0
        %9354 = vmatprep.subr.bf16.mxu0 0
        %9355 = vmatpush2.bf16.xpose.msra.mxu0 0
        %9356 = vmatprep.subr.bf16.mxu0 0
        %9357 = vmatpush2.bf16.xpose.msra.mxu0 0
        %9358 = vmatprep.subr.bf16.mxu0 0
        %9359 = vmatpush2.bf16.xpose.msra.mxu0 0
        %9360 = vmatprep.subr.bf16.mxu0 0
        %9361 = vmatpush2.bf16.xpose.msra.mxu0 0
        %9362 = vmatprep.mubr.bf16.mxu0 0
        %9363 = vmatmul.mubr.bf16.gmra.mxu0 %v9325
        %v9364 = vpop.f32.mrf.mxu0
        %v9365 = vadd.f32 0.0, %v9364
        %v9366 = vpop.f32.mrf.mxu0
        %v9367 = vpop.f32.mrf.mxu0
        %v9368 = vpop.f32.mrf.mxu0
        %9369 = vdwg.mxu0
        %v9372 = vunpack.c.l.s4 1966171168
        %v9373 = vunpack.c.0.s8 %v9372
        %v9374 = vlaneseq
        %v9375 = vshrl.u32 %v9374, 7
        %v9376 = vsub.s32 %v9373, %v9375
        %v9377 = vrot.slane %v8914, %v9376
        %v9379 = vunpack.c.l.s4 1966171168
        %v9380 = vunpack.c.0.s8 %v9379
        %v9381 = vlaneseq
        %v9382 = vshrl.u32 %v9381, 7
        %v9383 = vsub.s32 %v9380, %v9382
        %v9384 = vrot.slane %v9377, %v9383
        %9385 = vrot.lane.b32.xlu0 %v9384, 100
        %v9386 = vpop.permute.xlu0 %9385
        %9387 = vrot.lane.b32.xlu0 %v9384, 68
        %v9388 = vpop.permute.xlu0 %9387
        %v9390 = vsel %vm849, %v9386, 0
        %v9393 = vsel %vm849, %v9388, 0
        %9395 = vmatprep.subr.bf16.mxu0 0
        %9396 = vmatpush1.bf16.xpose.msra.mxu0 0
        %9397 = vmatprep.subr.bf16.mxu0 0
        %9398 = vmatpush1.bf16.xpose.msra.mxu0 0
        %9399 = vmatprep.subr.bf16.mxu0 0
        %9400 = vmatpush1.bf16.xpose.msra.mxu0 0
        %9401 = vmatprep.subr.bf16.mxu0 0
        %9402 = vmatpush1.bf16.xpose.msra.mxu0 0
        %9403 = vmatprep.subr.bf16.mxu0 0
        %9404 = vmatpush1.bf16.xpose.msra.mxu0 0
        %9405 = vmatprep.subr.bf16.mxu0 0
        %9406 = vmatpush1.bf16.xpose.msra.mxu0 0
        %9407 = vmatprep.subr.bf16.mxu0 0
        %9408 = vmatpush1.bf16.xpose.msra.mxu0 0
        %9409 = vmatprep.subr.bf16.mxu0 0
        %9410 = vmatpush1.bf16.xpose.msra.mxu0 %v9393
        %9411 = vmatprep.subr.bf16.mxu0 0
        %9412 = vmatpush2.bf16.xpose.msra.mxu0 0
        %9413 = vmatprep.subr.bf16.mxu0 0
        %9414 = vmatpush2.bf16.xpose.msra.mxu0 0
        %9415 = vmatprep.subr.bf16.mxu0 0
        %9416 = vmatpush2.bf16.xpose.msra.mxu0 0
        %9417 = vmatprep.subr.bf16.mxu0 0
        %9418 = vmatpush2.bf16.xpose.msra.mxu0 0
        %9419 = vmatprep.subr.bf16.mxu0 0
        %9420 = vmatpush2.bf16.xpose.msra.mxu0 0
        %9421 = vmatprep.subr.bf16.mxu0 0
        %9422 = vmatpush2.bf16.xpose.msra.mxu0 0
        %9423 = vmatprep.subr.bf16.mxu0 0
        %9424 = vmatpush2.bf16.xpose.msra.mxu0 0
        %9425 = vmatprep.subr.bf16.mxu0 0
        %9426 = vmatpush2.bf16.xpose.msra.mxu0 0
        %9427 = vmatprep.mubr.bf16.mxu0 0
        %9428 = vmatmul.mubr.bf16.gmra.mxu0 %v9390
        %v9429 = vpop.f32.mrf.mxu0
        %v9430 = vadd.f32 0.0, %v9429
        %v9431 = vpop.f32.mrf.mxu0
        %v9432 = vpop.f32.mrf.mxu0
        %v9433 = vpop.f32.mrf.mxu0
        %9434 = vdwg.mxu0
        %v9435 = vmul.f32 %v8975, 0.5
        %v9436 = vmul.f32 %v9040, 0.5
        %v9437 = vmul.f32 %v9105, 0.5
        %v9438 = vmul.f32 %v9170, 0.5
        %v9439 = vmul.f32 %v9235, 0.5
        %v9440 = vmul.f32 %v9300, 0.5
        %v9441 = vmul.f32 %v9365, 0.5
        %v9442 = vmul.f32 %v9430, 0.5
        %v9443 = vsel %vm1345, %v9435, -inf
        %9444 = vmax.xlane.f32.xlu0 %v9443
        %v9445 = vpop.xlane.xlu0 %9444
        %v9446 = vsel %vm1345, %v9436, -inf
        %9447 = vmax.xlane.f32.xlu0 %v9446
        %v9448 = vpop.xlane.xlu0 %9447
        %v9449 = vsel %vm1345, %v9437, -inf
        %9450 = vmax.xlane.f32.xlu0 %v9449
        %v9451 = vpop.xlane.xlu0 %9450
        %v9452 = vsel %vm1345, %v9438, -inf
        %9453 = vmax.xlane.f32.xlu0 %v9452
        %v9454 = vpop.xlane.xlu0 %9453
        %v9455 = vsel %vm1345, %v9439, -inf
        %9456 = vmax.xlane.f32.xlu0 %v9455
        %v9457 = vpop.xlane.xlu0 %9456
        %v9458 = vsel %vm1345, %v9440, -inf
        %9459 = vmax.xlane.f32.xlu0 %v9458
        %v9460 = vpop.xlane.xlu0 %9459
        %v9461 = vsel %vm1345, %v9441, -inf
        %9462 = vmax.xlane.f32.xlu0 %v9461
        %v9463 = vpop.xlane.xlu0 %9462
        %v9464 = vsel %vm1345, %v9442, -inf
        %9465 = vmax.xlane.f32.xlu0 %v9464
        %v9466 = vpop.xlane.xlu0 %9465
        %v9467 = vsub.f32 %v9435, %v9445
        %v9468 = vsub.f32 %v9436, %v9448
        %v9469 = vsub.f32 %v9437, %v9451
        %v9470 = vsub.f32 %v9438, %v9454
        %v9471 = vsub.f32 %v9439, %v9457
        %v9472 = vsub.f32 %v9440, %v9460
        %v9473 = vsub.f32 %v9441, %v9463
        %v9474 = vsub.f32 %v9442, %v9466
        %v9475 = vmul.f32 %v9467, 1.442695
        %v9476 = vpow.pop %v9475
        %v9477 = vmul.f32 %v9468, 1.442695
        %v9478 = vpow.pop %v9477
        %v9479 = vmul.f32 %v9469, 1.442695
        %v9480 = vpow.pop %v9479
        %v9481 = vmul.f32 %v9470, 1.442695
        %v9482 = vpow.pop %v9481
        %v9483 = vmul.f32 %v9471, 1.442695
        %v9484 = vpow.pop %v9483
        %v9485 = vmul.f32 %v9472, 1.442695
        %v9486 = vpow.pop %v9485
        %v9487 = vmul.f32 %v9473, 1.442695
        %v9488 = vpow.pop %v9487
        %v9489 = vmul.f32 %v9474, 1.442695
        %v9490 = vpow.pop %v9489
        %v9491 = vsel %vm1345, %v9476, 0.0
        %9492 = vadd.xlane.f32.xlu0 %v9491
        %v9493 = vpop.xlane.xlu0 %9492
        %v9494 = vsel %vm1345, %v9478, 0.0
        %9495 = vadd.xlane.f32.xlu0 %v9494
        %v9496 = vpop.xlane.xlu0 %9495
        %v9497 = vsel %vm1345, %v9480, 0.0
        %9498 = vadd.xlane.f32.xlu0 %v9497
        %v9499 = vpop.xlane.xlu0 %9498
        %v9500 = vsel %vm1345, %v9482, 0.0
        %9501 = vadd.xlane.f32.xlu0 %v9500
        %v9502 = vpop.xlane.xlu0 %9501
        %v9503 = vsel %vm1345, %v9484, 0.0
        %9504 = vadd.xlane.f32.xlu0 %v9503
        %v9505 = vpop.xlane.xlu0 %9504
        %v9506 = vsel %vm1345, %v9486, 0.0
        %9507 = vadd.xlane.f32.xlu0 %v9506
        %v9508 = vpop.xlane.xlu0 %9507
        %v9509 = vsel %vm1345, %v9488, 0.0
        %9510 = vadd.xlane.f32.xlu0 %v9509
        %v9511 = vpop.xlane.xlu0 %9510
        %v9512 = vsel %vm1345, %v9490, 0.0
        %9513 = vadd.xlane.f32.xlu0 %v9512
        %v9514 = vpop.xlane.xlu0 %9513
        %v9515 = vrcp.pop %v9493
        %v9516 = vrcp.pop %v9496
        %v9517 = vrcp.pop %v9499
        %v9518 = vrcp.pop %v9502
        %v9519 = vrcp.pop %v9505
        %v9520 = vrcp.pop %v9508
        %v9521 = vrcp.pop %v9511
        %v9522 = vrcp.pop %v9514
        %v9523 = vmul.f32 %v9476, %v9515
        %v9524 = vmul.f32 %v9478, %v9516
        %v9525 = vmul.f32 %v9480, %v9517
        %v9526 = vmul.f32 %v9482, %v9518
        %v9527 = vmul.f32 %v9484, %v9519
        %v9528 = vmul.f32 %v9486, %v9520
        %v9529 = vmul.f32 %v9488, %v9521
        %v9530 = vmul.f32 %v9490, %v9522
        %v9531 = vpack.c.bf16 %v9523, %v9523
        %v9532 = vpack.c.bf16 %v9524, %v9524
        %v9533 = vpack.c.bf16 %v9525, %v9525
        %v9534 = vpack.c.bf16 %v9526, %v9526
        %v9535 = vpack.c.bf16 %v9527, %v9527
        %v9536 = vpack.c.bf16 %v9528, %v9528
        %v9537 = vpack.c.bf16 %v9529, %v9529
        %v9538 = vpack.c.bf16 %v9530, %v9530
        %9539 = vrot.lane.b32.xlu0 %v8929, 36
        %v9540 = vpop.permute.xlu0 %9539
        %v9542 = vsel %vm1444, %v9531, 0
        %v9545 = vsel %vm1448, %v9540, 0
        %9547 = vmatprep.subr.bf16.mxu0 0
        %9548 = vmatpush1.bf16.msra.mxu0 0
        %9549 = vmatprep.subr.bf16.mxu0 0
        %9550 = vmatpush1.bf16.msra.mxu0 0
        %9551 = vmatprep.subr.bf16.mxu0 0
        %9552 = vmatpush1.bf16.msra.mxu0 0
        %9553 = vmatprep.subr.bf16.mxu0 0
        %9554 = vmatpush1.bf16.msra.mxu0 0
        %9555 = vmatprep.subr.bf16.mxu0 0
        %9556 = vmatpush1.bf16.msra.mxu0 0
        %9557 = vmatprep.subr.bf16.mxu0 0
        %9558 = vmatpush1.bf16.msra.mxu0 0
        %9559 = vmatprep.subr.bf16.mxu0 0
        %9560 = vmatpush1.bf16.msra.mxu0 0
        %9561 = vmatprep.subr.bf16.mxu0 0
        %9562 = vmatpush1.bf16.msra.mxu0 %v9545
        %9563 = vmatprep.subr.bf16.mxu0 0
        %9564 = vmatpush2.bf16.msra.mxu0 0
        %9565 = vmatprep.subr.bf16.mxu0 0
        %9566 = vmatpush2.bf16.msra.mxu0 0
        %9567 = vmatprep.subr.bf16.mxu0 0
        %9568 = vmatpush2.bf16.msra.mxu0 0
        %9569 = vmatprep.subr.bf16.mxu0 0
        %9570 = vmatpush2.bf16.msra.mxu0 0
        %9571 = vmatprep.subr.bf16.mxu0 0
        %9572 = vmatpush2.bf16.msra.mxu0 0
        %9573 = vmatprep.subr.bf16.mxu0 0
        %9574 = vmatpush2.bf16.msra.mxu0 0
        %9575 = vmatprep.subr.bf16.mxu0 0
        %9576 = vmatpush2.bf16.msra.mxu0 0
        %9577 = vmatprep.subr.bf16.mxu0 0
        %9578 = vmatpush2.bf16.msra.mxu0 0
        %9579 = vmatprep.mubr.bf16.mxu0 0
        %9580 = vmatmul.mubr.bf16.gmra.mxu0 %v9542
        %v9581 = vpop.f32.mrf.mxu0
        %v9582 = vadd.f32 0.0, %v9581
        %v9583 = vpop.f32.mrf.mxu0
        %v9584 = vpop.f32.mrf.mxu0
        %v9585 = vpop.f32.mrf.mxu0
        %9586 = vdwg.mxu0
        %9587 = vrot.lane.b32.xlu0 %v8994, 36
        %v9588 = vpop.permute.xlu0 %9587
        %v9590 = vsel %vm1444, %v9532, 0
        %v9593 = vsel %vm1448, %v9588, 0
        %9595 = vmatprep.subr.bf16.mxu0 0
        %9596 = vmatpush1.bf16.msra.mxu0 0
        %9597 = vmatprep.subr.bf16.mxu0 0
        %9598 = vmatpush1.bf16.msra.mxu0 0
        %9599 = vmatprep.subr.bf16.mxu0 0
        %9600 = vmatpush1.bf16.msra.mxu0 0
        %9601 = vmatprep.subr.bf16.mxu0 0
        %9602 = vmatpush1.bf16.msra.mxu0 0
        %9603 = vmatprep.subr.bf16.mxu0 0
        %9604 = vmatpush1.bf16.msra.mxu0 0
        %9605 = vmatprep.subr.bf16.mxu0 0
        %9606 = vmatpush1.bf16.msra.mxu0 0
        %9607 = vmatprep.subr.bf16.mxu0 0
        %9608 = vmatpush1.bf16.msra.mxu0 0
        %9609 = vmatprep.subr.bf16.mxu0 0
        %9610 = vmatpush1.bf16.msra.mxu0 %v9593
        %9611 = vmatprep.subr.bf16.mxu0 0
        %9612 = vmatpush2.bf16.msra.mxu0 0
        %9613 = vmatprep.subr.bf16.mxu0 0
        %9614 = vmatpush2.bf16.msra.mxu0 0
        %9615 = vmatprep.subr.bf16.mxu0 0
        %9616 = vmatpush2.bf16.msra.mxu0 0
        %9617 = vmatprep.subr.bf16.mxu0 0
        %9618 = vmatpush2.bf16.msra.mxu0 0
        %9619 = vmatprep.subr.bf16.mxu0 0
        %9620 = vmatpush2.bf16.msra.mxu0 0
        %9621 = vmatprep.subr.bf16.mxu0 0
        %9622 = vmatpush2.bf16.msra.mxu0 0
        %9623 = vmatprep.subr.bf16.mxu0 0
        %9624 = vmatpush2.bf16.msra.mxu0 0
        %9625 = vmatprep.subr.bf16.mxu0 0
        %9626 = vmatpush2.bf16.msra.mxu0 0
        %9627 = vmatprep.mubr.bf16.mxu0 0
        %9628 = vmatmul.mubr.bf16.gmra.mxu0 %v9590
        %v9629 = vpop.f32.mrf.mxu0
        %v9630 = vadd.f32 0.0, %v9629
        %v9631 = vpop.f32.mrf.mxu0
        %v9632 = vpop.f32.mrf.mxu0
        %v9633 = vpop.f32.mrf.mxu0
        %9634 = vdwg.mxu0
        %9635 = vrot.lane.b32.xlu0 %v9059, 36
        %v9636 = vpop.permute.xlu0 %9635
        %v9638 = vsel %vm1444, %v9533, 0
        %v9641 = vsel %vm1448, %v9636, 0
        %9643 = vmatprep.subr.bf16.mxu0 0
        %9644 = vmatpush1.bf16.msra.mxu0 0
        %9645 = vmatprep.subr.bf16.mxu0 0
        %9646 = vmatpush1.bf16.msra.mxu0 0
        %9647 = vmatprep.subr.bf16.mxu0 0
        %9648 = vmatpush1.bf16.msra.mxu0 0
        %9649 = vmatprep.subr.bf16.mxu0 0
        %9650 = vmatpush1.bf16.msra.mxu0 0
        %9651 = vmatprep.subr.bf16.mxu0 0
        %9652 = vmatpush1.bf16.msra.mxu0 0
        %9653 = vmatprep.subr.bf16.mxu0 0
        %9654 = vmatpush1.bf16.msra.mxu0 0
        %9655 = vmatprep.subr.bf16.mxu0 0
        %9656 = vmatpush1.bf16.msra.mxu0 0
        %9657 = vmatprep.subr.bf16.mxu0 0
        %9658 = vmatpush1.bf16.msra.mxu0 %v9641
        %9659 = vmatprep.subr.bf16.mxu0 0
        %9660 = vmatpush2.bf16.msra.mxu0 0
        %9661 = vmatprep.subr.bf16.mxu0 0
        %9662 = vmatpush2.bf16.msra.mxu0 0
        %9663 = vmatprep.subr.bf16.mxu0 0
        %9664 = vmatpush2.bf16.msra.mxu0 0
        %9665 = vmatprep.subr.bf16.mxu0 0
        %9666 = vmatpush2.bf16.msra.mxu0 0
        %9667 = vmatprep.subr.bf16.mxu0 0
        %9668 = vmatpush2.bf16.msra.mxu0 0
        %9669 = vmatprep.subr.bf16.mxu0 0
        %9670 = vmatpush2.bf16.msra.mxu0 0
        %9671 = vmatprep.subr.bf16.mxu0 0
        %9672 = vmatpush2.bf16.msra.mxu0 0
        %9673 = vmatprep.subr.bf16.mxu0 0
        %9674 = vmatpush2.bf16.msra.mxu0 0
        %9675 = vmatprep.mubr.bf16.mxu0 0
        %9676 = vmatmul.mubr.bf16.gmra.mxu0 %v9638
        %v9677 = vpop.f32.mrf.mxu0
        %v9678 = vadd.f32 0.0, %v9677
        %v9679 = vpop.f32.mrf.mxu0
        %v9680 = vpop.f32.mrf.mxu0
        %v9681 = vpop.f32.mrf.mxu0
        %9682 = vdwg.mxu0
        %9683 = vrot.lane.b32.xlu0 %v9124, 36
        %v9684 = vpop.permute.xlu0 %9683
        %v9686 = vsel %vm1444, %v9534, 0
        %v9689 = vsel %vm1448, %v9684, 0
        %9691 = vmatprep.subr.bf16.mxu0 0
        %9692 = vmatpush1.bf16.msra.mxu0 0
        %9693 = vmatprep.subr.bf16.mxu0 0
        %9694 = vmatpush1.bf16.msra.mxu0 0
        %9695 = vmatprep.subr.bf16.mxu0 0
        %9696 = vmatpush1.bf16.msra.mxu0 0
        %9697 = vmatprep.subr.bf16.mxu0 0
        %9698 = vmatpush1.bf16.msra.mxu0 0
        %9699 = vmatprep.subr.bf16.mxu0 0
        %9700 = vmatpush1.bf16.msra.mxu0 0
        %9701 = vmatprep.subr.bf16.mxu0 0
        %9702 = vmatpush1.bf16.msra.mxu0 0
        %9703 = vmatprep.subr.bf16.mxu0 0
        %9704 = vmatpush1.bf16.msra.mxu0 0
        %9705 = vmatprep.subr.bf16.mxu0 0
        %9706 = vmatpush1.bf16.msra.mxu0 %v9689
        %9707 = vmatprep.subr.bf16.mxu0 0
        %9708 = vmatpush2.bf16.msra.mxu0 0
        %9709 = vmatprep.subr.bf16.mxu0 0
        %9710 = vmatpush2.bf16.msra.mxu0 0
        %9711 = vmatprep.subr.bf16.mxu0 0
        %9712 = vmatpush2.bf16.msra.mxu0 0
        %9713 = vmatprep.subr.bf16.mxu0 0
        %9714 = vmatpush2.bf16.msra.mxu0 0
        %9715 = vmatprep.subr.bf16.mxu0 0
        %9716 = vmatpush2.bf16.msra.mxu0 0
        %9717 = vmatprep.subr.bf16.mxu0 0
        %9718 = vmatpush2.bf16.msra.mxu0 0
        %9719 = vmatprep.subr.bf16.mxu0 0
        %9720 = vmatpush2.bf16.msra.mxu0 0
        %9721 = vmatprep.subr.bf16.mxu0 0
        %9722 = vmatpush2.bf16.msra.mxu0 0
        %9723 = vmatprep.mubr.bf16.mxu0 0
        %9724 = vmatmul.mubr.bf16.gmra.mxu0 %v9686
        %v9725 = vpop.f32.mrf.mxu0
        %v9726 = vadd.f32 0.0, %v9725
        %v9727 = vpop.f32.mrf.mxu0
        %v9728 = vpop.f32.mrf.mxu0
        %v9729 = vpop.f32.mrf.mxu0
        %9730 = vdwg.mxu0
        %9731 = vrot.lane.b32.xlu0 %v9189, 36
        %v9732 = vpop.permute.xlu0 %9731
        %v9734 = vsel %vm1444, %v9535, 0
        %v9737 = vsel %vm1448, %v9732, 0
        %9739 = vmatprep.subr.bf16.mxu0 0
        %9740 = vmatpush1.bf16.msra.mxu0 0
        %9741 = vmatprep.subr.bf16.mxu0 0
        %9742 = vmatpush1.bf16.msra.mxu0 0
        %9743 = vmatprep.subr.bf16.mxu0 0
        %9744 = vmatpush1.bf16.msra.mxu0 0
        %9745 = vmatprep.subr.bf16.mxu0 0
        %9746 = vmatpush1.bf16.msra.mxu0 0
        %9747 = vmatprep.subr.bf16.mxu0 0
        %9748 = vmatpush1.bf16.msra.mxu0 0
        %9749 = vmatprep.subr.bf16.mxu0 0
        %9750 = vmatpush1.bf16.msra.mxu0 0
        %9751 = vmatprep.subr.bf16.mxu0 0
        %9752 = vmatpush1.bf16.msra.mxu0 0
        %9753 = vmatprep.subr.bf16.mxu0 0
        %9754 = vmatpush1.bf16.msra.mxu0 %v9737
        %9755 = vmatprep.subr.bf16.mxu0 0
        %9756 = vmatpush2.bf16.msra.mxu0 0
        %9757 = vmatprep.subr.bf16.mxu0 0
        %9758 = vmatpush2.bf16.msra.mxu0 0
        %9759 = vmatprep.subr.bf16.mxu0 0
        %9760 = vmatpush2.bf16.msra.mxu0 0
        %9761 = vmatprep.subr.bf16.mxu0 0
        %9762 = vmatpush2.bf16.msra.mxu0 0
        %9763 = vmatprep.subr.bf16.mxu0 0
        %9764 = vmatpush2.bf16.msra.mxu0 0
        %9765 = vmatprep.subr.bf16.mxu0 0
        %9766 = vmatpush2.bf16.msra.mxu0 0
        %9767 = vmatprep.subr.bf16.mxu0 0
        %9768 = vmatpush2.bf16.msra.mxu0 0
        %9769 = vmatprep.subr.bf16.mxu0 0
        %9770 = vmatpush2.bf16.msra.mxu0 0
        %9771 = vmatprep.mubr.bf16.mxu0 0
        %9772 = vmatmul.mubr.bf16.gmra.mxu0 %v9734
        %v9773 = vpop.f32.mrf.mxu0
        %v9774 = vadd.f32 0.0, %v9773
        %v9775 = vpop.f32.mrf.mxu0
        %v9776 = vpop.f32.mrf.mxu0
        %v9777 = vpop.f32.mrf.mxu0
        %9778 = vdwg.mxu0
        %9779 = vrot.lane.b32.xlu0 %v9254, 36
        %v9780 = vpop.permute.xlu0 %9779
        %v9782 = vsel %vm1444, %v9536, 0
        %v9785 = vsel %vm1448, %v9780, 0
        %9787 = vmatprep.subr.bf16.mxu0 0
        %9788 = vmatpush1.bf16.msra.mxu0 0
        %9789 = vmatprep.subr.bf16.mxu0 0
        %9790 = vmatpush1.bf16.msra.mxu0 0
        %9791 = vmatprep.subr.bf16.mxu0 0
        %9792 = vmatpush1.bf16.msra.mxu0 0
        %9793 = vmatprep.subr.bf16.mxu0 0
        %9794 = vmatpush1.bf16.msra.mxu0 0
        %9795 = vmatprep.subr.bf16.mxu0 0
        %9796 = vmatpush1.bf16.msra.mxu0 0
        %9797 = vmatprep.subr.bf16.mxu0 0
        %9798 = vmatpush1.bf16.msra.mxu0 0
        %9799 = vmatprep.subr.bf16.mxu0 0
        %9800 = vmatpush1.bf16.msra.mxu0 0
        %9801 = vmatprep.subr.bf16.mxu0 0
        %9802 = vmatpush1.bf16.msra.mxu0 %v9785
        %9803 = vmatprep.subr.bf16.mxu0 0
        %9804 = vmatpush2.bf16.msra.mxu0 0
        %9805 = vmatprep.subr.bf16.mxu0 0
        %9806 = vmatpush2.bf16.msra.mxu0 0
        %9807 = vmatprep.subr.bf16.mxu0 0
        %9808 = vmatpush2.bf16.msra.mxu0 0
        %9809 = vmatprep.subr.bf16.mxu0 0
        %9810 = vmatpush2.bf16.msra.mxu0 0
        %9811 = vmatprep.subr.bf16.mxu0 0
        %9812 = vmatpush2.bf16.msra.mxu0 0
        %9813 = vmatprep.subr.bf16.mxu0 0
        %9814 = vmatpush2.bf16.msra.mxu0 0
        %9815 = vmatprep.subr.bf16.mxu0 0
        %9816 = vmatpush2.bf16.msra.mxu0 0
        %9817 = vmatprep.subr.bf16.mxu0 0
        %9818 = vmatpush2.bf16.msra.mxu0 0
        %9819 = vmatprep.mubr.bf16.mxu0 0
        %9820 = vmatmul.mubr.bf16.gmra.mxu0 %v9782
        %v9821 = vpop.f32.mrf.mxu0
        %v9822 = vadd.f32 0.0, %v9821
        %v9823 = vpop.f32.mrf.mxu0
        %v9824 = vpop.f32.mrf.mxu0
        %v9825 = vpop.f32.mrf.mxu0
        %9826 = vdwg.mxu0
        %9827 = vrot.lane.b32.xlu0 %v9319, 36
        %v9828 = vpop.permute.xlu0 %9827
        %v9830 = vsel %vm1444, %v9537, 0
        %v9833 = vsel %vm1448, %v9828, 0
        %9835 = vmatprep.subr.bf16.mxu0 0
        %9836 = vmatpush1.bf16.msra.mxu0 0
        %9837 = vmatprep.subr.bf16.mxu0 0
        %9838 = vmatpush1.bf16.msra.mxu0 0
        %9839 = vmatprep.subr.bf16.mxu0 0
        %9840 = vmatpush1.bf16.msra.mxu0 0
        %9841 = vmatprep.subr.bf16.mxu0 0
        %9842 = vmatpush1.bf16.msra.mxu0 0
        %9843 = vmatprep.subr.bf16.mxu0 0
        %9844 = vmatpush1.bf16.msra.mxu0 0
        %9845 = vmatprep.subr.bf16.mxu0 0
        %9846 = vmatpush1.bf16.msra.mxu0 0
        %9847 = vmatprep.subr.bf16.mxu0 0
        %9848 = vmatpush1.bf16.msra.mxu0 0
        %9849 = vmatprep.subr.bf16.mxu0 0
        %9850 = vmatpush1.bf16.msra.mxu0 %v9833
        %9851 = vmatprep.subr.bf16.mxu0 0
        %9852 = vmatpush2.bf16.msra.mxu0 0
        %9853 = vmatprep.subr.bf16.mxu0 0
        %9854 = vmatpush2.bf16.msra.mxu0 0
        %9855 = vmatprep.subr.bf16.mxu0 0
        %9856 = vmatpush2.bf16.msra.mxu0 0
        %9857 = vmatprep.subr.bf16.mxu0 0
        %9858 = vmatpush2.bf16.msra.mxu0 0
        %9859 = vmatprep.subr.bf16.mxu0 0
        %9860 = vmatpush2.bf16.msra.mxu0 0
        %9861 = vmatprep.subr.bf16.mxu0 0
        %9862 = vmatpush2.bf16.msra.mxu0 0
        %9863 = vmatprep.subr.bf16.mxu0 0
        %9864 = vmatpush2.bf16.msra.mxu0 0
        %9865 = vmatprep.subr.bf16.mxu0 0
        %9866 = vmatpush2.bf16.msra.mxu0 0
        %9867 = vmatprep.mubr.bf16.mxu0 0
        %9868 = vmatmul.mubr.bf16.gmra.mxu0 %v9830
        %v9869 = vpop.f32.mrf.mxu0
        %v9870 = vadd.f32 0.0, %v9869
        %v9871 = vpop.f32.mrf.mxu0
        %v9872 = vpop.f32.mrf.mxu0
        %v9873 = vpop.f32.mrf.mxu0
        %9874 = vdwg.mxu0
        %9875 = vrot.lane.b32.xlu0 %v9384, 36
        %v9876 = vpop.permute.xlu0 %9875
        %v9878 = vsel %vm1444, %v9538, 0
        %v9881 = vsel %vm1448, %v9876, 0
        %9883 = vmatprep.subr.bf16.mxu0 0
        %9884 = vmatpush1.bf16.msra.mxu0 0
        %9885 = vmatprep.subr.bf16.mxu0 0
        %9886 = vmatpush1.bf16.msra.mxu0 0
        %9887 = vmatprep.subr.bf16.mxu0 0
        %9888 = vmatpush1.bf16.msra.mxu0 0
        %9889 = vmatprep.subr.bf16.mxu0 0
        %9890 = vmatpush1.bf16.msra.mxu0 0
        %9891 = vmatprep.subr.bf16.mxu0 0
        %9892 = vmatpush1.bf16.msra.mxu0 0
        %9893 = vmatprep.subr.bf16.mxu0 0
        %9894 = vmatpush1.bf16.msra.mxu0 0
        %9895 = vmatprep.subr.bf16.mxu0 0
        %9896 = vmatpush1.bf16.msra.mxu0 0
        %9897 = vmatprep.subr.bf16.mxu0 0
        %9898 = vmatpush1.bf16.msra.mxu0 %v9881
        %9899 = vmatprep.subr.bf16.mxu0 0
        %9900 = vmatpush2.bf16.msra.mxu0 0
        %9901 = vmatprep.subr.bf16.mxu0 0
        %9902 = vmatpush2.bf16.msra.mxu0 0
        %9903 = vmatprep.subr.bf16.mxu0 0
        %9904 = vmatpush2.bf16.msra.mxu0 0
        %9905 = vmatprep.subr.bf16.mxu0 0
        %9906 = vmatpush2.bf16.msra.mxu0 0
        %9907 = vmatprep.subr.bf16.mxu0 0
        %9908 = vmatpush2.bf16.msra.mxu0 0
        %9909 = vmatprep.subr.bf16.mxu0 0
        %9910 = vmatpush2.bf16.msra.mxu0 0
        %9911 = vmatprep.subr.bf16.mxu0 0
        %9912 = vmatpush2.bf16.msra.mxu0 0
        %9913 = vmatprep.subr.bf16.mxu0 0
        %9914 = vmatpush2.bf16.msra.mxu0 0
        %9915 = vmatprep.mubr.bf16.mxu0 0
        %9916 = vmatmul.mubr.bf16.gmra.mxu0 %v9878
        %v9917 = vpop.f32.mrf.mxu0
        %v9918 = vadd.f32 0.0, %v9917
        %v9919 = vpop.f32.mrf.mxu0
        %v9920 = vpop.f32.mrf.mxu0
        %v9921 = vpop.f32.mrf.mxu0
        %9922 = vdwg.mxu0
        %v9923 = vpack.c.bf16 %v9582, %v9582
        %v9924 = vpack.c.bf16 %v9630, %v9630
        %v9925 = vpack.c.bf16 %v9678, %v9678
        %v9926 = vpack.c.bf16 %v9726, %v9726
        %v9927 = vpack.c.bf16 %v9774, %v9774
        %v9928 = vpack.c.bf16 %v9822, %v9822
        %v9929 = vpack.c.bf16 %v9870, %v9870
        %v9930 = vpack.c.bf16 %v9918, %v9918
        %v9940 = vunpack.c.l.s4 1966171168
        %v9941 = vunpack.c.0.s8 %v9940
        %v9942 = vlaneseq
        %v9943 = vshrl.u32 %v9942, 7
        %v9944 = vsub.s32 %v9941, %v9943
        %v9945 = vrot.slane %v9923, %v9944
        %v9947 = vunpack.c.l.s4 1966171168
        %v9948 = vunpack.c.0.s8 %v9947
        %v9949 = vlaneseq
        %v9950 = vshrl.u32 %v9949, 7
        %v9951 = vsub.s32 %v9948, %v9950
        %v9952 = vrot.slane %v9945, %v9951
        %v9954 = vunpack.c.l.s4 1966171168
        %v9955 = vunpack.c.0.s8 %v9954
        %v9956 = vlaneseq
        %v9957 = vshrl.u32 %v9956, 7
        %v9958 = vsub.s32 %v9955, %v9957
        %v9959 = vrot.slane %v9924, %v9958
        %v9961 = vunpack.c.l.s4 1966171168
        %v9962 = vunpack.c.0.s8 %v9961
        %v9963 = vlaneseq
        %v9964 = vshrl.u32 %v9963, 7
        %v9965 = vsub.s32 %v9962, %v9964
        %v9966 = vrot.slane %v9959, %v9965
        %v9968 = vunpack.c.l.s4 1966171168
        %v9969 = vunpack.c.0.s8 %v9968
        %v9970 = vlaneseq
        %v9971 = vshrl.u32 %v9970, 7
        %v9972 = vsub.s32 %v9969, %v9971
        %v9973 = vrot.slane %v9925, %v9972
        %v9975 = vunpack.c.l.s4 1966171168
        %v9976 = vunpack.c.0.s8 %v9975
        %v9977 = vlaneseq
        %v9978 = vshrl.u32 %v9977, 7
        %v9979 = vsub.s32 %v9976, %v9978
        %v9980 = vrot.slane %v9973, %v9979
        %v9982 = vunpack.c.l.s4 1966171168
        %v9983 = vunpack.c.0.s8 %v9982
        %v9984 = vlaneseq
        %v9985 = vshrl.u32 %v9984, 7
        %v9986 = vsub.s32 %v9983, %v9985
        %v9987 = vrot.slane %v9926, %v9986
        %v9989 = vunpack.c.l.s4 1966171168
        %v9990 = vunpack.c.0.s8 %v9989
        %v9991 = vlaneseq
        %v9992 = vshrl.u32 %v9991, 7
        %v9993 = vsub.s32 %v9990, %v9992
        %v9994 = vrot.slane %v9987, %v9993
        %v9996 = vunpack.c.l.s4 1966171168
        %v9997 = vunpack.c.0.s8 %v9996
        %v9998 = vlaneseq
        %v9999 = vshrl.u32 %v9998, 7
        %v10000 = vsub.s32 %v9997, %v9999
        %v10001 = vrot.slane %v9927, %v10000
        %v10003 = vunpack.c.l.s4 1966171168
        %v10004 = vunpack.c.0.s8 %v10003
        %v10005 = vlaneseq
        %v10006 = vshrl.u32 %v10005, 7
        %v10007 = vsub.s32 %v10004, %v10006
        %v10008 = vrot.slane %v10001, %v10007
        %v10010 = vunpack.c.l.s4 1966171168
        %v10011 = vunpack.c.0.s8 %v10010
        %v10012 = vlaneseq
        %v10013 = vshrl.u32 %v10012, 7
        %v10014 = vsub.s32 %v10011, %v10013
        %v10015 = vrot.slane %v9928, %v10014
        %v10017 = vunpack.c.l.s4 1966171168
        %v10018 = vunpack.c.0.s8 %v10017
        %v10019 = vlaneseq
        %v10020 = vshrl.u32 %v10019, 7
        %v10021 = vsub.s32 %v10018, %v10020
        %v10022 = vrot.slane %v10015, %v10021
        %v10024 = vunpack.c.l.s4 1966171168
        %v10025 = vunpack.c.0.s8 %v10024
        %v10026 = vlaneseq
        %v10027 = vshrl.u32 %v10026, 7
        %v10028 = vsub.s32 %v10025, %v10027
        %v10029 = vrot.slane %v9929, %v10028
        %v10031 = vunpack.c.l.s4 1966171168
        %v10032 = vunpack.c.0.s8 %v10031
        %v10033 = vlaneseq
        %v10034 = vshrl.u32 %v10033, 7
        %v10035 = vsub.s32 %v10032, %v10034
        %v10036 = vrot.slane %v10029, %v10035
        %v10038 = vunpack.c.l.s4 1966171168
        %v10039 = vunpack.c.0.s8 %v10038
        %v10040 = vlaneseq
        %v10041 = vshrl.u32 %v10040, 7
        %v10042 = vsub.s32 %v10039, %v10041
        %v10043 = vrot.slane %v9930, %v10042
        %v10045 = vunpack.c.l.s4 1966171168
        %v10046 = vunpack.c.0.s8 %v10045
        %v10047 = vlaneseq
        %v10048 = vshrl.u32 %v10047, 7
        %v10049 = vsub.s32 %v10046, %v10048
        %v10050 = vrot.slane %v10043, %v10049
        %10051 = vrot.lane.b32.xlu0 %v9952, 28
        %v10052 = vpop.permute.xlu0 %10051
        %10053 = vrot.lane.b32.xlu0 %v9966, 28
        %v10054 = vpop.permute.xlu0 %10053
        %10055 = vrot.lane.b32.xlu0 %v9980, 28
        %v10056 = vpop.permute.xlu0 %10055
        %10057 = vrot.lane.b32.xlu0 %v9994, 28
        %v10058 = vpop.permute.xlu0 %10057
        %10059 = vrot.lane.b32.xlu0 %v10008, 28
        %v10060 = vpop.permute.xlu0 %10059
        %10061 = vrot.lane.b32.xlu0 %v10022, 28
        %v10062 = vpop.permute.xlu0 %10061
        %10063 = vrot.lane.b32.xlu0 %v10036, 28
        %v10064 = vpop.permute.xlu0 %10063
        %10065 = vrot.lane.b32.xlu0 %v10050, 28
        %v10066 = vpop.permute.xlu0 %10065
        %vm10075 = vcmask 254176
        %10076 = vst.msk [vmem:[#allocation3] sm:$0x1] %vm10075, %v10052
        %10077 = vst.msk [vmem:[#allocation3 + $0x1] sm:$0x1] %vm10075, %v10054
        %10078 = vst.msk [vmem:[#allocation3 + $0x2] sm:$0x1] %vm10075, %v10056
        %10079 = vst.msk [vmem:[#allocation3 + $0x3] sm:$0x1] %vm10075, %v10058
        %10080 = vst.msk [vmem:[#allocation3 + $0x4] sm:$0x1] %vm10075, %v10060
        %10081 = vst.msk [vmem:[#allocation3 + $0x5] sm:$0x1] %vm10075, %v10062
        %10082 = vst.msk [vmem:[#allocation3 + $0x6] sm:$0x1] %vm10075, %v10064
        %10083 = vst.msk [vmem:[#allocation3 + $0x7] sm:$0x1] %vm10075, %v10066
        %v10084 = vld [vmem:[#allocation3] sm:$0x1]
        %v10085 = vld [vmem:[#allocation3 + $0x1] sm:$0x1]
        %v10086 = vld [vmem:[#allocation3 + $0x2] sm:$0x1]
        %v10087 = vld [vmem:[#allocation3 + $0x3] sm:$0x1]
        %v10088 = vld [vmem:[#allocation3 + $0x4] sm:$0x1]
        %v10089 = vld [vmem:[#allocation3 + $0x5] sm:$0x1]
        %v10090 = vld [vmem:[#allocation3 + $0x6] sm:$0x1]
        %v10091 = vld [vmem:[#allocation3 + $0x7] sm:$0x1]
        %v10101 = vunpack.c.l.s4 1966171168
        %v10102 = vunpack.c.0.s8 %v10101
        %v10103 = vlaneseq
        %v10104 = vshrl.u32 %v10103, 7
        %v10105 = vsub.s32 %v10102, %v10104
        %v10106 = vrot.slane %v10084, %v10105
        %v10108 = vunpack.c.l.s4 1966171168
        %v10109 = vunpack.c.0.s8 %v10108
        %v10110 = vlaneseq
        %v10111 = vshrl.u32 %v10110, 7
        %v10112 = vsub.s32 %v10109, %v10111
        %v10113 = vrot.slane %v10106, %v10112
        %v10115 = vunpack.c.l.s4 1966171168
        %v10116 = vunpack.c.0.s8 %v10115
        %v10117 = vlaneseq
        %v10118 = vshrl.u32 %v10117, 7
        %v10119 = vsub.s32 %v10116, %v10118
        %v10120 = vrot.slane %v10085, %v10119
        %v10122 = vunpack.c.l.s4 1966171168
        %v10123 = vunpack.c.0.s8 %v10122
        %v10124 = vlaneseq
        %v10125 = vshrl.u32 %v10124, 7
        %v10126 = vsub.s32 %v10123, %v10125
        %v10127 = vrot.slane %v10120, %v10126
        %v10129 = vunpack.c.l.s4 1966171168
        %v10130 = vunpack.c.0.s8 %v10129
        %v10131 = vlaneseq
        %v10132 = vshrl.u32 %v10131, 7
        %v10133 = vsub.s32 %v10130, %v10132
        %v10134 = vrot.slane %v10086, %v10133
        %v10136 = vunpack.c.l.s4 1966171168
        %v10137 = vunpack.c.0.s8 %v10136
        %v10138 = vlaneseq
        %v10139 = vshrl.u32 %v10138, 7
        %v10140 = vsub.s32 %v10137, %v10139
        %v10141 = vrot.slane %v10134, %v10140
        %v10143 = vunpack.c.l.s4 1966171168
        %v10144 = vunpack.c.0.s8 %v10143
        %v10145 = vlaneseq
        %v10146 = vshrl.u32 %v10145, 7
        %v10147 = vsub.s32 %v10144, %v10146
        %v10148 = vrot.slane %v10087, %v10147
        %v10150 = vunpack.c.l.s4 1966171168
        %v10151 = vunpack.c.0.s8 %v10150
        %v10152 = vlaneseq
        %v10153 = vshrl.u32 %v10152, 7
        %v10154 = vsub.s32 %v10151, %v10153
        %v10155 = vrot.slane %v10148, %v10154
        %v10157 = vunpack.c.l.s4 1966171168
        %v10158 = vunpack.c.0.s8 %v10157
        %v10159 = vlaneseq
        %v10160 = vshrl.u32 %v10159, 7
        %v10161 = vsub.s32 %v10158, %v10160
        %v10162 = vrot.slane %v10088, %v10161
        %v10164 = vunpack.c.l.s4 1966171168
        %v10165 = vunpack.c.0.s8 %v10164
        %v10166 = vlaneseq
        %v10167 = vshrl.u32 %v10166, 7
        %v10168 = vsub.s32 %v10165, %v10167
        %v10169 = vrot.slane %v10162, %v10168
        %v10171 = vunpack.c.l.s4 1966171168
        %v10172 = vunpack.c.0.s8 %v10171
        %v10173 = vlaneseq
        %v10174 = vshrl.u32 %v10173, 7
        %v10175 = vsub.s32 %v10172, %v10174
        %v10176 = vrot.slane %v10089, %v10175
        %v10178 = vunpack.c.l.s4 1966171168
        %v10179 = vunpack.c.0.s8 %v10178
        %v10180 = vlaneseq
        %v10181 = vshrl.u32 %v10180, 7
        %v10182 = vsub.s32 %v10179, %v10181
        %v10183 = vrot.slane %v10176, %v10182
        %v10185 = vunpack.c.l.s4 1966171168
        %v10186 = vunpack.c.0.s8 %v10185
        %v10187 = vlaneseq
        %v10188 = vshrl.u32 %v10187, 7
        %v10189 = vsub.s32 %v10186, %v10188
        %v10190 = vrot.slane %v10090, %v10189
        %v10192 = vunpack.c.l.s4 1966171168
        %v10193 = vunpack.c.0.s8 %v10192
        %v10194 = vlaneseq
        %v10195 = vshrl.u32 %v10194, 7
        %v10196 = vsub.s32 %v10193, %v10195
        %v10197 = vrot.slane %v10190, %v10196
        %v10199 = vunpack.c.l.s4 1966171168
        %v10200 = vunpack.c.0.s8 %v10199
        %v10201 = vlaneseq
        %v10202 = vshrl.u32 %v10201, 7
        %v10203 = vsub.s32 %v10200, %v10202
        %v10204 = vrot.slane %v10091, %v10203
        %v10206 = vunpack.c.l.s4 1966171168
        %v10207 = vunpack.c.0.s8 %v10206
        %v10208 = vlaneseq
        %v10209 = vshrl.u32 %v10208, 7
        %v10210 = vsub.s32 %v10207, %v10209
        %v10211 = vrot.slane %v10204, %v10210
        %v10212 = vunpack.c.l.b16 %v10113
        %v10213 = vunpack.c.l.b16 %v10127
        %v10214 = vunpack.c.l.b16 %v10141
        %v10215 = vunpack.c.l.b16 %v10155
        %v10216 = vunpack.c.l.b16 %v10169
        %v10217 = vunpack.c.l.b16 %v10183
        %v10218 = vunpack.c.l.b16 %v10197
        %v10219 = vunpack.c.l.b16 %v10211
        %v10220 = vrot.slane %v10213, 7
        %v10221 = vsel %vm400, %v10220, %v10212
        %v10222 = vrot.slane %v10214, 6
        %v10223 = vsel %vm403, %v10222, %v10221
        %v10224 = vrot.slane %v10215, 5
        %v10225 = vsel %vm406, %v10224, %v10223
        %v10226 = vrot.slane %v10216, 4
        %v10227 = vsel %vm409, %v10226, %v10225
        %v10228 = vrot.slane %v10217, 3
        %v10229 = vsel %vm412, %v10228, %v10227
        %v10230 = vrot.slane %v10218, 2
        %v10231 = vsel %vm415, %v10230, %v10229
        %v10232 = vrot.slane %v10219, 1
        %v10233 = vsel %vm418, %v10232, %v10231
        %v10234 = vpack.c.b16 %v10233, %v10233
        %v10239 = vunpack.c.l.b16 %v252
        %v10240 = vunpack.c.l.b16 %v253
        %v10241 = vunpack.c.l.b16 %v254
        %v10242 = vunpack.c.l.b16 %v255
        %v10243 = vpack.c.b16 %v10240, %v10239
        %v10244 = vpack.c.b16 %v10242, %v10241
        %10247 = vrot.lane.b32.xlu0 %v269, 32
        %v10248 = vpop.permute.xlu0 %10247
        %v10251 = vsel %vm433, %v10234, 0
        %10253 = vmatprep.subr.bf16.mxu0 0
        %10254 = vmatpush1.bf16.msra.mxu0 0
        %10255 = vmatprep.subr.bf16.mxu0 0
        %10256 = vmatpush1.bf16.msra.mxu0 0
        %10257 = vmatprep.subr.bf16.mxu0 0
        %10258 = vmatpush1.bf16.msra.mxu0 0
        %10259 = vmatprep.subr.bf16.mxu0 0
        %10260 = vmatpush1.bf16.msra.mxu0 0
        %10261 = vmatprep.subr.bf16.mxu0 0
        %10262 = vmatpush1.bf16.msra.mxu0 0
        %10263 = vmatprep.subr.bf16.mxu0 0
        %10264 = vmatpush1.bf16.msra.mxu0 0
        %10265 = vmatprep.subr.bf16.mxu0 0
        %10266 = vmatpush1.bf16.msra.mxu0 %v10244
        %10267 = vmatprep.subr.bf16.mxu0 0
        %10268 = vmatpush1.bf16.msra.mxu0 %v10243
        %10269 = vmatprep.subr.bf16.mxu0 0
        %10270 = vmatpush2.bf16.msra.mxu0 0
        %10271 = vmatprep.subr.bf16.mxu0 0
        %10272 = vmatpush2.bf16.msra.mxu0 0
        %10273 = vmatprep.subr.bf16.mxu0 0
        %10274 = vmatpush2.bf16.msra.mxu0 0
        %10275 = vmatprep.subr.bf16.mxu0 0
        %10276 = vmatpush2.bf16.msra.mxu0 0
        %10277 = vmatprep.subr.bf16.mxu0 0
        %10278 = vmatpush2.bf16.msra.mxu0 0
        %10279 = vmatprep.subr.bf16.mxu0 0
        %10280 = vmatpush2.bf16.msra.mxu0 0
        %10281 = vmatprep.subr.bf16.mxu0 0
        %10282 = vmatpush2.bf16.msra.mxu0 0
        %10283 = vmatprep.subr.bf16.mxu0 0
        %10284 = vmatpush2.bf16.msra.mxu0 0
        %10285 = vmatprep.mubr.bf16.mxu0 0
        %10286 = vmatmul.mubr.bf16.gmra.mxu0 %v10251
        %v10287 = vpop.f32.mrf.mxu0
        %v10288 = vadd.f32 %v10248, %v10287
        %v10289 = vpop.f32.mrf.mxu0
        %v10290 = vpop.f32.mrf.mxu0
        %v10291 = vpop.f32.mrf.mxu0
        %10292 = vdwg.mxu0
        %v10294 = vcombine.high %v10288, %v10288
        %v10296 = vunpack.c.l.s4 1966171168
        %v10297 = vunpack.c.0.s8 %v10296
        %v10298 = vlaneseq
        %v10299 = vshrl.u32 %v10298, 7
        %v10300 = vsub.s32 %v10297, %v10299
        %v10301 = vrot.slane %v10288, %v10300
        %v10303 = vunpack.c.l.s4 1966171168
        %v10304 = vunpack.c.0.s8 %v10303
        %v10305 = vlaneseq
        %v10306 = vshrl.u32 %v10305, 7
        %v10307 = vsub.s32 %v10304, %v10306
        %v10308 = vrot.slane %v10294, %v10307
        %v10309 = vcombine.high %v10301, %v10301
        %v10310 = vcombine.high %v10308, %v10308
        %v10312 = vunpack.c.l.s4 1966171168
        %v10313 = vunpack.c.0.s8 %v10312
        %v10314 = vlaneseq
        %v10315 = vshrl.u32 %v10314, 7
        %v10316 = vsub.s32 %v10313, %v10315
        %v10317 = vrot.slane %v10301, %v10316
        %v10319 = vunpack.c.l.s4 1966171168
        %v10320 = vunpack.c.0.s8 %v10319
        %v10321 = vlaneseq
        %v10322 = vshrl.u32 %v10321, 7
        %v10323 = vsub.s32 %v10320, %v10322
        %v10324 = vrot.slane %v10308, %v10323
        %v10326 = vunpack.c.l.s4 1966171168
        %v10327 = vunpack.c.0.s8 %v10326
        %v10328 = vlaneseq
        %v10329 = vshrl.u32 %v10328, 7
        %v10330 = vsub.s32 %v10327, %v10329
        %v10331 = vrot.slane %v10309, %v10330
        %v10333 = vunpack.c.l.s4 1966171168
        %v10334 = vunpack.c.0.s8 %v10333
        %v10335 = vlaneseq
        %v10336 = vshrl.u32 %v10335, 7
        %v10337 = vsub.s32 %v10334, %v10336
        %v10338 = vrot.slane %v10310, %v10337
        %v10339 = vcombine.high %v10317, %v10317
        %v10340 = vcombine.high %v10324, %v10324
        %v10341 = vcombine.high %v10331, %v10331
        %v10342 = vcombine.high %v10338, %v10338
        %vm10351 = vcmask 253952
        %10352 = vst.msk [vmem:[%s244] sm:$0x1] %vm10351, %v10317
        %10353 = vst.msk [vmem:[%s244 + $0x2] sm:$0x1] %vm10351, %v10331
        %10354 = vst.msk [vmem:[%s244 + $0x4] sm:$0x1] %vm10351, %v10339
        %10355 = vst.msk [vmem:[%s244 + $0x6] sm:$0x1] %vm10351, %v10341
        %10356 = vst.msk [vmem:[%s244 + $0x8] sm:$0x1] %vm10351, %v10324
        %10357 = vst.msk [vmem:[%s244 + $0xa] sm:$0x1] %vm10351, %v10338
        %10358 = vst.msk [vmem:[%s244 + $0xc] sm:$0x1] %vm10351, %v10340
        %10359 = vst.msk [vmem:[%s244 + $0xe] sm:$0x1] %vm10351, %v10342
        %v10360 = vld [vmem:[#allocation3] sm:$0x1]
        %v10361 = vld [vmem:[#allocation3 + $0x1] sm:$0x1]
        %v10362 = vld [vmem:[#allocation3 + $0x2] sm:$0x1]
        %v10363 = vld [vmem:[#allocation3 + $0x3] sm:$0x1]
        %v10364 = vld [vmem:[#allocation3 + $0x4] sm:$0x1]
        %v10365 = vld [vmem:[#allocation3 + $0x5] sm:$0x1]
        %v10366 = vld [vmem:[#allocation3 + $0x6] sm:$0x1]
        %v10367 = vld [vmem:[#allocation3 + $0x7] sm:$0x1]
        %v10377 = vunpack.c.l.s4 1966171168
        %v10378 = vunpack.c.0.s8 %v10377
        %v10379 = vlaneseq
        %v10380 = vshrl.u32 %v10379, 7
        %v10381 = vsub.s32 %v10378, %v10380
        %v10382 = vrot.slane %v10360, %v10381
        %v10384 = vunpack.c.l.s4 1966171168
        %v10385 = vunpack.c.0.s8 %v10384
        %v10386 = vlaneseq
        %v10387 = vshrl.u32 %v10386, 7
        %v10388 = vsub.s32 %v10385, %v10387
        %v10389 = vrot.slane %v10382, %v10388
        %v10391 = vunpack.c.l.s4 1966171168
        %v10392 = vunpack.c.0.s8 %v10391
        %v10393 = vlaneseq
        %v10394 = vshrl.u32 %v10393, 7
        %v10395 = vsub.s32 %v10392, %v10394
        %v10396 = vrot.slane %v10361, %v10395
        %v10398 = vunpack.c.l.s4 1966171168
        %v10399 = vunpack.c.0.s8 %v10398
        %v10400 = vlaneseq
        %v10401 = vshrl.u32 %v10400, 7
        %v10402 = vsub.s32 %v10399, %v10401
        %v10403 = vrot.slane %v10396, %v10402
        %v10405 = vunpack.c.l.s4 1966171168
        %v10406 = vunpack.c.0.s8 %v10405
        %v10407 = vlaneseq
        %v10408 = vshrl.u32 %v10407, 7
        %v10409 = vsub.s32 %v10406, %v10408
        %v10410 = vrot.slane %v10362, %v10409
        %v10412 = vunpack.c.l.s4 1966171168
        %v10413 = vunpack.c.0.s8 %v10412
        %v10414 = vlaneseq
        %v10415 = vshrl.u32 %v10414, 7
        %v10416 = vsub.s32 %v10413, %v10415
        %v10417 = vrot.slane %v10410, %v10416
        %v10419 = vunpack.c.l.s4 1966171168
        %v10420 = vunpack.c.0.s8 %v10419
        %v10421 = vlaneseq
        %v10422 = vshrl.u32 %v10421, 7
        %v10423 = vsub.s32 %v10420, %v10422
        %v10424 = vrot.slane %v10363, %v10423
        %v10426 = vunpack.c.l.s4 1966171168
        %v10427 = vunpack.c.0.s8 %v10426
        %v10428 = vlaneseq
        %v10429 = vshrl.u32 %v10428, 7
        %v10430 = vsub.s32 %v10427, %v10429
        %v10431 = vrot.slane %v10424, %v10430
        %v10433 = vunpack.c.l.s4 1966171168
        %v10434 = vunpack.c.0.s8 %v10433
        %v10435 = vlaneseq
        %v10436 = vshrl.u32 %v10435, 7
        %v10437 = vsub.s32 %v10434, %v10436
        %v10438 = vrot.slane %v10364, %v10437
        %v10440 = vunpack.c.l.s4 1966171168
        %v10441 = vunpack.c.0.s8 %v10440
        %v10442 = vlaneseq
        %v10443 = vshrl.u32 %v10442, 7
        %v10444 = vsub.s32 %v10441, %v10443
        %v10445 = vrot.slane %v10438, %v10444
        %v10447 = vunpack.c.l.s4 1966171168
        %v10448 = vunpack.c.0.s8 %v10447
        %v10449 = vlaneseq
        %v10450 = vshrl.u32 %v10449, 7
        %v10451 = vsub.s32 %v10448, %v10450
        %v10452 = vrot.slane %v10365, %v10451
        %v10454 = vunpack.c.l.s4 1966171168
        %v10455 = vunpack.c.0.s8 %v10454
        %v10456 = vlaneseq
        %v10457 = vshrl.u32 %v10456, 7
        %v10458 = vsub.s32 %v10455, %v10457
        %v10459 = vrot.slane %v10452, %v10458
        %v10461 = vunpack.c.l.s4 1966171168
        %v10462 = vunpack.c.0.s8 %v10461
        %v10463 = vlaneseq
        %v10464 = vshrl.u32 %v10463, 7
        %v10465 = vsub.s32 %v10462, %v10464
        %v10466 = vrot.slane %v10366, %v10465
        %v10468 = vunpack.c.l.s4 1966171168
        %v10469 = vunpack.c.0.s8 %v10468
        %v10470 = vlaneseq
        %v10471 = vshrl.u32 %v10470, 7
        %v10472 = vsub.s32 %v10469, %v10471
        %v10473 = vrot.slane %v10466, %v10472
        %v10475 = vunpack.c.l.s4 1966171168
        %v10476 = vunpack.c.0.s8 %v10475
        %v10477 = vlaneseq
        %v10478 = vshrl.u32 %v10477, 7
        %v10479 = vsub.s32 %v10476, %v10478
        %v10480 = vrot.slane %v10367, %v10479
        %v10482 = vunpack.c.l.s4 1966171168
        %v10483 = vunpack.c.0.s8 %v10482
        %v10484 = vlaneseq
        %v10485 = vshrl.u32 %v10484, 7
        %v10486 = vsub.s32 %v10483, %v10485
        %v10487 = vrot.slane %v10480, %v10486
        %v10488 = vunpack.c.l.b16 %v10389
        %v10489 = vunpack.c.l.b16 %v10403
        %v10490 = vunpack.c.l.b16 %v10417
        %v10491 = vunpack.c.l.b16 %v10431
        %v10492 = vunpack.c.l.b16 %v10445
        %v10493 = vunpack.c.l.b16 %v10459
        %v10494 = vunpack.c.l.b16 %v10473
        %v10495 = vunpack.c.l.b16 %v10487
        %v10496 = vrot.slane %v10488, 1
        %v10497 = vsel %vm400, %v10489, %v10496
        %v10498 = vrot.slane %v10490, 7
        %v10499 = vsel %vm403, %v10498, %v10497
        %v10500 = vrot.slane %v10491, 6
        %v10501 = vsel %vm406, %v10500, %v10499
        %v10502 = vrot.slane %v10492, 5
        %v10503 = vsel %vm409, %v10502, %v10501
        %v10504 = vrot.slane %v10493, 4
        %v10505 = vsel %vm412, %v10504, %v10503
        %v10506 = vrot.slane %v10494, 3
        %v10507 = vsel %vm415, %v10506, %v10505
        %v10508 = vrot.slane %v10495, 2
        %v10509 = vsel %vm418, %v10508, %v10507
        %v10510 = vpack.c.b16 %v10509, %v10509
        %v10512 = vsel %vm433, %v10510, 0
        %10514 = vmatprep.subr.bf16.mxu0 0
        %10515 = vmatpush1.bf16.msra.mxu0 0
        %10516 = vmatprep.subr.bf16.mxu0 0
        %10517 = vmatpush1.bf16.msra.mxu0 0
        %10518 = vmatprep.subr.bf16.mxu0 0
        %10519 = vmatpush1.bf16.msra.mxu0 0
        %10520 = vmatprep.subr.bf16.mxu0 0
        %10521 = vmatpush1.bf16.msra.mxu0 0
        %10522 = vmatprep.subr.bf16.mxu0 0
        %10523 = vmatpush1.bf16.msra.mxu0 0
        %10524 = vmatprep.subr.bf16.mxu0 0
        %10525 = vmatpush1.bf16.msra.mxu0 0
        %10526 = vmatprep.subr.bf16.mxu0 0
        %10527 = vmatpush1.bf16.msra.mxu0 %v10244
        %10528 = vmatprep.subr.bf16.mxu0 0
        %10529 = vmatpush1.bf16.msra.mxu0 %v10243
        %10530 = vmatprep.subr.bf16.mxu0 0
        %10531 = vmatpush2.bf16.msra.mxu0 0
        %10532 = vmatprep.subr.bf16.mxu0 0
        %10533 = vmatpush2.bf16.msra.mxu0 0
        %10534 = vmatprep.subr.bf16.mxu0 0
        %10535 = vmatpush2.bf16.msra.mxu0 0
        %10536 = vmatprep.subr.bf16.mxu0 0
        %10537 = vmatpush2.bf16.msra.mxu0 0
        %10538 = vmatprep.subr.bf16.mxu0 0
        %10539 = vmatpush2.bf16.msra.mxu0 0
        %10540 = vmatprep.subr.bf16.mxu0 0
        %10541 = vmatpush2.bf16.msra.mxu0 0
        %10542 = vmatprep.subr.bf16.mxu0 0
        %10543 = vmatpush2.bf16.msra.mxu0 0
        %10544 = vmatprep.subr.bf16.mxu0 0
        %10545 = vmatpush2.bf16.msra.mxu0 0
        %10546 = vmatprep.mubr.bf16.mxu0 0
        %10547 = vmatmul.mubr.bf16.gmra.mxu0 %v10512
        %v10548 = vpop.f32.mrf.mxu0
        %v10549 = vadd.f32 %v10248, %v10548
        %v10550 = vpop.f32.mrf.mxu0
        %v10551 = vpop.f32.mrf.mxu0
        %v10552 = vpop.f32.mrf.mxu0
        %10553 = vdwg.mxu0
        %v10555 = vcombine.high %v10549, %v10549
        %v10557 = vunpack.c.l.s4 1966171168
        %v10558 = vunpack.c.0.s8 %v10557
        %v10559 = vlaneseq
        %v10560 = vshrl.u32 %v10559, 7
        %v10561 = vsub.s32 %v10558, %v10560
        %v10562 = vrot.slane %v10549, %v10561
        %v10564 = vunpack.c.l.s4 1966171168
        %v10565 = vunpack.c.0.s8 %v10564
        %v10566 = vlaneseq
        %v10567 = vshrl.u32 %v10566, 7
        %v10568 = vsub.s32 %v10565, %v10567
        %v10569 = vrot.slane %v10555, %v10568
        %v10570 = vcombine.high %v10562, %v10562
        %v10571 = vcombine.high %v10569, %v10569
        %v10573 = vunpack.c.l.s4 1966171168
        %v10574 = vunpack.c.0.s8 %v10573
        %v10575 = vlaneseq
        %v10576 = vshrl.u32 %v10575, 7
        %v10577 = vsub.s32 %v10574, %v10576
        %v10578 = vrot.slane %v10562, %v10577
        %v10580 = vunpack.c.l.s4 1966171168
        %v10581 = vunpack.c.0.s8 %v10580
        %v10582 = vlaneseq
        %v10583 = vshrl.u32 %v10582, 7
        %v10584 = vsub.s32 %v10581, %v10583
        %v10585 = vrot.slane %v10569, %v10584
        %v10587 = vunpack.c.l.s4 1966171168
        %v10588 = vunpack.c.0.s8 %v10587
        %v10589 = vlaneseq
        %v10590 = vshrl.u32 %v10589, 7
        %v10591 = vsub.s32 %v10588, %v10590
        %v10592 = vrot.slane %v10570, %v10591
        %v10594 = vunpack.c.l.s4 1966171168
        %v10595 = vunpack.c.0.s8 %v10594
        %v10596 = vlaneseq
        %v10597 = vshrl.u32 %v10596, 7
        %v10598 = vsub.s32 %v10595, %v10597
        %v10599 = vrot.slane %v10571, %v10598
        %v10600 = vcombine.high %v10578, %v10578
        %v10601 = vcombine.high %v10585, %v10585
        %v10602 = vcombine.high %v10592, %v10592
        %v10603 = vcombine.high %v10599, %v10599
        %10612 = vst.msk [vmem:[%s244 + $0x1] sm:$0x1] %vm10351, %v10578
        %10613 = vst.msk [vmem:[%s244 + $0x3] sm:$0x1] %vm10351, %v10592
        %10614 = vst.msk [vmem:[%s244 + $0x5] sm:$0x1] %vm10351, %v10600
        %10615 = vst.msk [vmem:[%s244 + $0x7] sm:$0x1] %vm10351, %v10602
        %10616 = vst.msk [vmem:[%s244 + $0x9] sm:$0x1] %vm10351, %v10585
        %10617 = vst.msk [vmem:[%s244 + $0xb] sm:$0x1] %vm10351, %v10599
        %10618 = vst.msk [vmem:[%s244 + $0xd] sm:$0x1] %vm10351, %v10601
        %10619 = vst.msk [vmem:[%s244 + $0xf] sm:$0x1] %vm10351, %v10603
        %s10620 = sand.u32 %s119, 1
        %s10621 = scalar_lea.sflag [#allocation6], %s10620
        %s10622 = sand.u32 %s119, 1
        %s10623 = smul.addr %s10622, 16
        %s10624 = scalar_lea.vmem [#allocation10], %s10623
        // Predicated region
        $region49: #{tpu_custom_call.1} parent=35 // pred_check
          %p10625 = pneg %p129
        $region50: #{tpu_custom_call.1} parent=35 // pred_check_branch
          %10627 = sbr.rel (%p10625) target = $region52
        $region51: #{tpu_custom_call.1} parent=35 // pred_region
          %s10628 = smul.u32 8, %s22
          %s10630 = ssub.s32 256, 256
          %10631 = vsyncadd %s10621, %s10630
          %s10632 = smul.addr %s10628, 32
          %s10633 = scalar_lea.hbm %s4, %s10632
          %s10634 = sshll.u32 %s10624, 4
          %s10635 = int_to_ptr.vmem [resolvable:$true] %s10634
          %10640 = dma.vmem_to_hbm [thread:$0]  %s10635, 256, %s10633, %s10621, 32, 32, 2
        $region52: #{tpu_custom_call.1} parent=35 // pred_fallthru
          _
      $region36: #{tpu_custom_call.1} parent=5 // pred_fallthru
        _
      %p10641 = scmp.le.s32.totalorder 2, %s17
      // Predicated region
      $region53: #{tpu_custom_call.1} parent=5 // pred_check
        %p10642 = pneg %p10641
      $region54: #{tpu_custom_call.1} parent=5 // pred_check_branch
        %10644 = sbr.rel (%p10642) target = $region56
      $region55: #{tpu_custom_call.1} parent=5 // pred_region
        %s10645 = ssub.s32 %s17, 2
        // Predicated region
        $region57: #{tpu_custom_call.1} parent=55 // pred_check
          %p10646 = pneg %p135
        $region58: #{tpu_custom_call.1} parent=55 // pred_check_branch
          %10648 = sbr.rel (%p10646) target = $region60
        $region59: #{tpu_custom_call.1} parent=55 // pred_region
          %s10649 = sand.u32 %s120, 1
          %s10650 = scalar_lea.sflag [#allocation6], %s10649
          %s10651 = sand.u32 %s120, 1
          %s10652 = smul.addr %s10651, 16
          %s10653 = scalar_lea.vmem [#allocation10], %s10652
          %10654 = dma.done %s10650, 256
        $region60: #{tpu_custom_call.1} parent=55 // pred_fallthru
          _
      $region56: #{tpu_custom_call.1} parent=5 // pred_fallthru
        _
    $region6: #{tpu_custom_call.1} parent=1 // loop_footer
      %s21 = sadd.s32 1, %s17
    $region7: #{tpu_custom_call.1} parent=1 // loop_footer_branch
      %16 = sbr.rel target = $region3
    $region8: #{tpu_custom_call.1} parent=1 // loop_exit
      _
    %10655 = vsyncpa [#allocation5], 1
    %s10656 = scalar_lea.sflag [#allocation5], 1
    %10657 = vsyncpa %s10656, 1
    %10658 = vsyncpa [#allocation8], 1
    %10659 = vsyncpa [#allocation6], 1
    %s10660 = scalar_lea.sflag [#allocation6], 1
    %10661 = vsyncpa %s10660, 1

</llo_original>
